<compile_context>
chip_gen: v7x
topology: tpu7x:2x2x1
jax: 0.10.0
libtpu: 0.0.40
codegen_flags: <defaults>
</compile_context>

<pallas_src>
import functools

import jax
import jax.numpy as jnp
from jax import lax
from jax.experimental import pallas as pl
from jax.experimental.pallas import tpu as pltpu


# Fused single-matmul (K = 9*C) path only when the in-kernel channel concat is
# lane-aligned (lane width = 128); otherwise per-tap K = C dots.
_FUSE_CHANNEL_ALIGN = 128


def _basic_block_kernel(x_ref, w1_ref, w2_ref, b1_ref, b2_ref,
                        out_ref, xpad_sc, midpad_sc, *, fuse_k):
    # x_ref     : (1, H, W, C)  bf16 unpadded input block (also the residual)
    # w1_ref    : (9*C, P) bf16 [fused] or (9, C, P) bf16 [per-tap], BN-scaled
    # w2_ref    : (9*P, P) bf16 [fused] or (9, P, P) bf16 [per-tap], BN-scaled
    # b*_ref    : (1, P) f32 folded BN bias
    # out_ref   : (1, H, W, P) out_dtype
    # xpad_sc   : (H+2, W+2, C) bf16 spatially padded copy of x
    # midpad_sc : (H+2, W+2, P) bf16 spatially padded conv1 output
    _, H, W, P = out_ref.shape
    C = x_ref.shape[-1]

    def zero_halo(sc):
        # Only the 1-element halo ring must be zero (the conv "SAME" padding);
        # the interior is fully overwritten below.  Done every grid step
        # (perimeter only, cheap) so it stays correct under megacore grid
        # partitioning.
        Hp, Wp, Cc = sc.shape
        sc[0:1, :, :] = jnp.zeros((1, Wp, Cc), sc.dtype)
        sc[Hp - 1:Hp, :, :] = jnp.zeros((1, Wp, Cc), sc.dtype)
        sc[:, 0:1, :] = jnp.zeros((Hp, 1, Cc), sc.dtype)
        sc[:, Wp - 1:Wp, :] = jnp.zeros((Hp, 1, Cc), sc.dtype)

    zero_halo(xpad_sc)
    zero_halo(midpad_sc)

    x = x_ref[0]                                    # (H, W, C) bf16
    xpad_sc[1:H + 1, 1:W + 1, :] = x                # no cast: scratch is bf16

    def conv3x3(src_sc, w_ref):
        if fuse_k:
            # im2col on the channel axis: one MXU contraction with K = 9*Cin
            # instead of nine K = Cin dots + eight full-tensor adds.
            slab = jnp.concatenate(
                [src_sc[dh:dh + H, dw:dw + W, :]
                 for dh in range(3) for dw in range(3)], axis=-1)
            return lax.dot_general(
                slab, w_ref[...],
                dimension_numbers=(((2,), (0,)), ((), ())),
                preferred_element_type=jnp.float32)
        # Per-tap path for lane-unaligned channel counts: accumulator is
        # initialised from the first tap (no zeros + add).
        acc = None
        for t in range(9):
            dh, dw = divmod(t, 3)
            patch = src_sc[dh:dh + H, dw:dw + W, :]
            part = lax.dot_general(
                patch, w_ref[t],
                dimension_numbers=(((2,), (0,)), ((), ())),
                preferred_element_type=jnp.float32)
            acc = part if acc is None else acc + part
        return acc

    # ---- conv1 (BN scale folded into weights) -> + bias -> relu ----
    out1 = jnp.maximum(conv3x3(xpad_sc, w1_ref) + b1_ref[0], 0.0)
    midpad_sc[1:H + 1, 1:W + 1, :] = out1.astype(midpad_sc.dtype)

    # ---- conv2 -> + bias -> + residual -> relu ----
    out2 = conv3x3(midpad_sc, w2_ref) + b2_ref[0]
    out2 = out2 + x.astype(jnp.float32)
    out_ref[0] = jnp.maximum(out2, 0.0).astype(out_ref.dtype)


def basic_block_forward_nhwc(x_nhwc, w1, w2, s1, b1, s2, b2,
                             *, out_dtype=jnp.bfloat16):
    """Fused BasicBlock forward in NHWC.

    x_nhwc: (N, H, W, C); w1: (3,3,C,P), w2: (3,3,P,P) (HWIO); s*/b*: (P,)
    folded BatchNorm scale / bias.  Returns (N, H, W, P) in out_dtype
    (bfloat16 by default so a ResNet stack can chain blocks without casts).
    """
    N, H, W, C = x_nhwc.shape
    P = w1.shape[-1]
    assert w1.shape == (3, 3, C, P) and w2.shape == (3, 3, P, P)
    assert C == P, "identity shortcut requires inplanes == planes (stride=1)"

    fuse_k = (C % _FUSE_CHANNEL_ALIGN == 0) and (P % _FUSE_CHANNEL_ALIGN == 0)

    x_bf = x_nhwc.astype(jnp.bfloat16)

    # Fold BN scale into conv weights (per output channel) on the host; only
    # the bias add stays in the kernel.
    w1f = (w1 * s1.reshape(1, 1, 1, P)).astype(jnp.float32)
    w2f = (w2 * s2.reshape(1, 1, 1, P)).astype(jnp.float32)
    if fuse_k:
        w1k = w1f.reshape(9 * C, P).astype(jnp.bfloat16)
        w2k = w2f.reshape(9 * P, P).astype(jnp.bfloat16)
        w1_spec = pl.BlockSpec((9 * C, P), lambda n: (0, 0))
        w2_spec = pl.BlockSpec((9 * P, P), lambda n: (0, 0))
    else:
        w1k = w1f.reshape(9, C, P).astype(jnp.bfloat16)
        w2k = w2f.reshape(9, P, P).astype(jnp.bfloat16)
        w1_spec = pl.BlockSpec((9, C, P), lambda n: (0, 0, 0))
        w2_spec = pl.BlockSpec((9, P, P), lambda n: (0, 0, 0))

    b1r = b1.reshape(1, P).astype(jnp.float32)
    b2r = b2.reshape(1, P).astype(jnp.float32)

    kernel = functools.partial(_basic_block_kernel, fuse_k=fuse_k)

    out_itemsize = jnp.dtype(out_dtype).itemsize
    cost = pl.CostEstimate(
        flops=N * (2 * H * W * 9 * C * P + 2 * H * W * 9 * P * P),
        transcendentals=0,
        bytes_accessed=(N * H * W * C * 2            # x (bf16)
                        + (9 * C * P + 9 * P * P) * 2  # weights (bf16)
                        + 2 * P * 4                    # biases (f32)
                        + N * H * W * P * out_itemsize))

    return pl.pallas_call(
        kernel,
        out_shape=jax.ShapeDtypeStruct((N, H, W, P), out_dtype),
        grid_spec=pltpu.PrefetchScalarGridSpec(
            num_scalar_prefetch=0,
            grid=(N,),
            in_specs=[
                pl.BlockSpec((1, H, W, C), lambda n: (n, 0, 0, 0)),
                w1_spec,
                w2_spec,
                pl.BlockSpec((1, P), lambda n: (0, 0)),
                pl.BlockSpec((1, P), lambda n: (0, 0)),
            ],
            out_specs=pl.BlockSpec((1, H, W, P), lambda n: (n, 0, 0, 0)),
            scratch_shapes=[
                pltpu.VMEM((H + 2, W + 2, C), jnp.bfloat16),
                pltpu.VMEM((H + 2, W + 2, P), jnp.bfloat16),
            ],
        ),
        compiler_params=pltpu.CompilerParams(
            dimension_semantics=("parallel",),
            vmem_limit_bytes=48 * 1024 * 1024),
        cost_estimate=cost,
    )(x_bf, w1k, w2k, b1r, b2r)


def basic_block_forward(x_nchw, w1, w2, s1, b1, s2, b2):
    # NCHW wrapper matching the PyTorch interface (f32 output, as torch).
    # A ResNet stack should call basic_block_forward_nhwc directly and keep
    # activations NHWC/bf16 between blocks to avoid these transposes + casts.
    x = jnp.transpose(x_nchw, (0, 2, 3, 1))
    out = basic_block_forward_nhwc(x, w1, w2, s1, b1, s2, b2,
                                   out_dtype=jnp.float32)
    return jnp.transpose(out, (0, 3, 1, 2))


# -------- pure-JAX reference with matching precision (for verification) -----
def _conv3x3_ref(x_nhwc, w_hwio):
    # conv operands in bf16 (matching the kernel's MXU path), f32 accumulation.
    return lax.conv_general_dilated(
        x_nhwc.astype(jnp.bfloat16), w_hwio.astype(jnp.bfloat16),
        window_strides=(1, 1), padding="SAME",
        dimension_numbers=("NHWC", "HWIO", "NHWC"),
        preferred_element_type=jnp.float32)


def basic_block_reference(x_nchw, w1, w2, s1, b1, s2, b2):
    x = jnp.transpose(x_nchw, (0, 2, 3, 1))
    xres = x.astype(jnp.bfloat16).astype(jnp.float32)  # residual as kernel sees it
    w1f = w1 * s1.reshape(1, 1, 1, -1)                  # BN scale folded, like kernel
    w2f = w2 * s2.reshape(1, 1, 1, -1)
    o = jnp.maximum(_conv3x3_ref(x, w1f) + b1, 0.0)
    o = _conv3x3_ref(o, w2f) + b2
    o = jnp.maximum(o + xres, 0.0)
    return jnp.transpose(o, (0, 3, 1, 2))


if __name__ == "__main__":
    key = jax.random.PRNGKey(0)
    N, C, H, W = 2, 4, 16, 16          # inplanes = planes = 4, stride=1, no downsample
    P = C

    kx, kw1, kw2, kg1, kb1, km1, kv1, kg2, kb2, km2, kv2 = jax.random.split(key, 11)

    x = jax.random.normal(kx, (N, C, H, W), jnp.float32)

    # conv weights (HWIO layout), deterministic random init
    w1 = 0.1 * jax.random.normal(kw1, (3, 3, C, P), jnp.float32)
    w2 = 0.1 * jax.random.normal(kw2, (3, 3, P, P), jnp.float32)

    # BatchNorm params + running stats (eval mode), folded into scale/bias
    eps = 1e-5
    g1 = 1.0 + 0.1 * jax.random.normal(kg1, (P,), jnp.float32)
    be1 = 0.1 * jax.random.normal(kb1, (P,), jnp.float32)
    m1 = 0.1 * jax.random.normal(km1, (P,), jnp.float32)
    v1 = jax.random.uniform(kv1, (P,), jnp.float32, 0.5, 1.5)
    g2 = 1.0 + 0.1 * jax.random.normal(kg2, (P,), jnp.float32)
    be2 = 0.1 * jax.random.normal(kb2, (P,), jnp.float32)
    m2 = 0.1 * jax.random.normal(km2, (P,), jnp.float32)
    v2 = jax.random.uniform(kv2, (P,), jnp.float32, 0.5, 1.5)

    s1 = g1 / jnp.sqrt(v1 + eps)
    b1 = be1 - m1 * s1
    s2 = g2 / jnp.sqrt(v2 + eps)
    b2 = be2 - m2 * s2

    fwd = jax.jit(basic_block_forward)
    out = jax.block_until_ready(fwd(x, w1, w2, s1, b1, s2, b2))

    ref = basic_block_reference(x, w1, w2, s1, b1, s2, b2)
    assert out.shape == (N, P, H, W), out.shape
    assert jnp.allclose(out, ref, atol=2e-3, rtol=2e-3), (
        float(jnp.max(jnp.abs(out - ref))))

    print("KERNEL_OK")
</pallas_src>

<mosaic_0001>
module attributes {stable_mosaic.version = 11 : i64} {
  func.func @_basic_block_kernel(%arg0: i32, %arg1: memref<1x16x16x4xbf16, #tpu.memory_space<vmem>>, %arg2: memref<9x4x4xbf16, #tpu.memory_space<vmem>>, %arg3: memref<9x4x4xbf16, #tpu.memory_space<vmem>>, %arg4: memref<1x4xf32, #tpu.memory_space<vmem>>, %arg5: memref<1x4xf32, #tpu.memory_space<vmem>>, %arg6: memref<1x16x16x4xf32, #tpu.memory_space<vmem>>, %arg7: memref<18x18x4xbf16, #tpu.memory_space<vmem>>, %arg8: memref<18x18x4xbf16, #tpu.memory_space<vmem>>) attributes {dimension_semantics = [#tpu.dimension_semantics<parallel>], iteration_bounds = array<i64: 2>, scalar_prefetch = 0 : i64, scratch_operands = 2 : i64, tpu.core_type = #tpu.core_type<tc>, window_params = [{transform_indices = @transform_0, window_bounds = array<i64: 1, 16, 16, 4>}, {pipeline_mode = #tpu.pipeline_mode<synchronous>, transform_indices = @transform_1, window_bounds = array<i64: 9, 4, 4>}, {pipeline_mode = #tpu.pipeline_mode<synchronous>, transform_indices = @transform_2, window_bounds = array<i64: 9, 4, 4>}, {pipeline_mode = #tpu.pipeline_mode<synchronous>, transform_indices = @transform_3, window_bounds = array<i64: 1, 4>}, {pipeline_mode = #tpu.pipeline_mode<synchronous>, transform_indices = @transform_4, window_bounds = array<i64: 1, 4>}, {transform_indices = @transform_5, window_bounds = array<i64: 1, 16, 16, 4>}]} {
    %cst = arith.constant 0.000000e+00 : bf16
    %0 = vector.broadcast %cst : bf16 to vector<1x18x4xbf16>
    %c0 = arith.constant 0 : index
    %c0_0 = arith.constant 0 : index
    %c0_1 = arith.constant 0 : index
    %1 = vector.load %arg7[%c0, %c0_0, %c0_1] : memref<18x18x4xbf16, #tpu.memory_space<vmem>>, vector<1x18x4xbf16>
    tpu.vector_store %arg7[%c0, %c0_0, %c0_1], %0 {strides = array<i32>} : memref<18x18x4xbf16, #tpu.memory_space<vmem>>, vector<1x18x4xbf16>,
    %cst_2 = arith.constant 0.000000e+00 : bf16
    %2 = vector.broadcast %cst_2 : bf16 to vector<1x18x4xbf16>
    %c17 = arith.constant 17 : index
    %c0_3 = arith.constant 0 : index
    %c0_4 = arith.constant 0 : index
    %3 = vector.load %arg7[%c17, %c0_3, %c0_4] : memref<18x18x4xbf16, #tpu.memory_space<vmem>>, vector<1x18x4xbf16>
    tpu.vector_store %arg7[%c17, %c0_3, %c0_4], %2 {strides = array<i32>} : memref<18x18x4xbf16, #tpu.memory_space<vmem>>, vector<1x18x4xbf16>,
    %cst_5 = arith.constant 0.000000e+00 : bf16
    %4 = vector.broadcast %cst_5 : bf16 to vector<18x1x4xbf16>
    %c0_6 = arith.constant 0 : index
    %c0_7 = arith.constant 0 : index
    %c0_8 = arith.constant 0 : index
    %5 = vector.load %arg7[%c0_6, %c0_7, %c0_8] : memref<18x18x4xbf16, #tpu.memory_space<vmem>>, vector<18x1x4xbf16>
    tpu.vector_store %arg7[%c0_6, %c0_7, %c0_8], %4 {strides = array<i32>} : memref<18x18x4xbf16, #tpu.memory_space<vmem>>, vector<18x1x4xbf16>,
    %cst_9 = arith.constant 0.000000e+00 : bf16
    %6 = vector.broadcast %cst_9 : bf16 to vector<18x1x4xbf16>
    %c0_10 = arith.constant 0 : index
    %c17_11 = arith.constant 17 : index
    %c0_12 = arith.constant 0 : index
    %7 = vector.load %arg7[%c0_10, %c17_11, %c0_12] : memref<18x18x4xbf16, #tpu.memory_space<vmem>>, vector<18x1x4xbf16>
    tpu.vector_store %arg7[%c0_10, %c17_11, %c0_12], %6 {strides = array<i32>} : memref<18x18x4xbf16, #tpu.memory_space<vmem>>, vector<18x1x4xbf16>,
    %cst_13 = arith.constant 0.000000e+00 : bf16
    %8 = vector.broadcast %cst_13 : bf16 to vector<1x18x4xbf16>
    %c0_14 = arith.constant 0 : index
    %c0_15 = arith.constant 0 : index
    %c0_16 = arith.constant 0 : index
    %9 = vector.load %arg8[%c0_14, %c0_15, %c0_16] : memref<18x18x4xbf16, #tpu.memory_space<vmem>>, vector<1x18x4xbf16>
    tpu.vector_store %arg8[%c0_14, %c0_15, %c0_16], %8 {strides = array<i32>} : memref<18x18x4xbf16, #tpu.memory_space<vmem>>, vector<1x18x4xbf16>,
    %cst_17 = arith.constant 0.000000e+00 : bf16
    %10 = vector.broadcast %cst_17 : bf16 to vector<1x18x4xbf16>
    %c17_18 = arith.constant 17 : index
    %c0_19 = arith.constant 0 : index
    %c0_20 = arith.constant 0 : index
    %11 = vector.load %arg8[%c17_18, %c0_19, %c0_20] : memref<18x18x4xbf16, #tpu.memory_space<vmem>>, vector<1x18x4xbf16>
    tpu.vector_store %arg8[%c17_18, %c0_19, %c0_20], %10 {strides = array<i32>} : memref<18x18x4xbf16, #tpu.memory_space<vmem>>, vector<1x18x4xbf16>,
    %cst_21 = arith.constant 0.000000e+00 : bf16
    %12 = vector.broadcast %cst_21 : bf16 to vector<18x1x4xbf16>
    %c0_22 = arith.constant 0 : index
    %c0_23 = arith.constant 0 : index
    %c0_24 = arith.constant 0 : index
    %13 = vector.load %arg8[%c0_22, %c0_23, %c0_24] : memref<18x18x4xbf16, #tpu.memory_space<vmem>>, vector<18x1x4xbf16>
    tpu.vector_store %arg8[%c0_22, %c0_23, %c0_24], %12 {strides = array<i32>} : memref<18x18x4xbf16, #tpu.memory_space<vmem>>, vector<18x1x4xbf16>,
    %cst_25 = arith.constant 0.000000e+00 : bf16
    %14 = vector.broadcast %cst_25 : bf16 to vector<18x1x4xbf16>
    %c0_26 = arith.constant 0 : index
    %c17_27 = arith.constant 17 : index
    %c0_28 = arith.constant 0 : index
    %15 = vector.load %arg8[%c0_26, %c17_27, %c0_28] : memref<18x18x4xbf16, #tpu.memory_space<vmem>>, vector<18x1x4xbf16>
    tpu.vector_store %arg8[%c0_26, %c17_27, %c0_28], %14 {strides = array<i32>} : memref<18x18x4xbf16, #tpu.memory_space<vmem>>, vector<18x1x4xbf16>,
    %c0_29 = arith.constant 0 : index
    %c0_30 = arith.constant 0 : index
    %c0_31 = arith.constant 0 : index
    %c0_32 = arith.constant 0 : index
    %16 = vector.load %arg1[%c0_29, %c0_30, %c0_31, %c0_32] : memref<1x16x16x4xbf16, #tpu.memory_space<vmem>>, vector<1x16x16x4xbf16>
    %17 = vector.shape_cast %16 : vector<1x16x16x4xbf16> to vector<16x16x4xbf16>
    %c1 = arith.constant 1 : index
    %c1_33 = arith.constant 1 : index
    %c0_34 = arith.constant 0 : index
    %18 = vector.load %arg7[%c1, %c1_33, %c0_34] : memref<18x18x4xbf16, #tpu.memory_space<vmem>>, vector<16x16x4xbf16>
    tpu.vector_store %arg7[%c1, %c1_33, %c0_34], %17 {strides = array<i32>} : memref<18x18x4xbf16, #tpu.memory_space<vmem>>, vector<16x16x4xbf16>,
    %c0_35 = arith.constant 0 : index
    %c0_36 = arith.constant 0 : index
    %c0_37 = arith.constant 0 : index
    %19 = vector.load %arg7[%c0_35, %c0_36, %c0_37] : memref<18x18x4xbf16, #tpu.memory_space<vmem>>, vector<16x16x4xbf16>
    %c0_38 = arith.constant 0 : index
    %c0_39 = arith.constant 0 : index
    %c0_40 = arith.constant 0 : index
    %20 = vector.load %arg2[%c0_38, %c0_39, %c0_40] : memref<9x4x4xbf16, #tpu.memory_space<vmem>>, vector<1x4x4xbf16>
    %21 = vector.shape_cast %20 : vector<1x4x4xbf16> to vector<4x4xbf16>
    %cst_41 = arith.constant dense<0.000000e+00> : vector<16x16x4xf32>
    %22 = tpu.matmul %19, %21, %cst_41 {dimension_numbers = #tpu.dot_dimension_numbers<[2], [0], [0, 1], [1], [0, 0, 0, 1, 1, 1], [], []>} : vector<16x16x4xbf16>, vector<4x4xbf16>, vector<16x16x4xf32> -> vector<16x16x4xf32>
    %c0_42 = arith.constant 0 : index
    %c1_43 = arith.constant 1 : index
    %c0_44 = arith.constant 0 : index
    %23 = vector.load %arg7[%c0_42, %c1_43, %c0_44] : memref<18x18x4xbf16, #tpu.memory_space<vmem>>, vector<16x16x4xbf16>
    %c1_45 = arith.constant 1 : index
    %c0_46 = arith.constant 0 : index
    %c0_47 = arith.constant 0 : index
    %24 = vector.load %arg2[%c1_45, %c0_46, %c0_47] : memref<9x4x4xbf16, #tpu.memory_space<vmem>>, vector<1x4x4xbf16>
    %25 = vector.shape_cast %24 : vector<1x4x4xbf16> to vector<4x4xbf16>
    %cst_48 = arith.constant dense<0.000000e+00> : vector<16x16x4xf32>
    %26 = tpu.matmul %23, %25, %cst_48 {dimension_numbers = #tpu.dot_dimension_numbers<[2], [0], [0, 1], [1], [0, 0, 0, 1, 1, 1], [], []>} : vector<16x16x4xbf16>, vector<4x4xbf16>, vector<16x16x4xf32> -> vector<16x16x4xf32>
    %27 = arith.addf %22, %26 : vector<16x16x4xf32>
    %c0_49 = arith.constant 0 : index
    %c2 = arith.constant 2 : index
    %c0_50 = arith.constant 0 : index
    %28 = vector.load %arg7[%c0_49, %c2, %c0_50] : memref<18x18x4xbf16, #tpu.memory_space<vmem>>, vector<16x16x4xbf16>
    %c2_51 = arith.constant 2 : index
    %c0_52 = arith.constant 0 : index
    %c0_53 = arith.constant 0 : index
    %29 = vector.load %arg2[%c2_51, %c0_52, %c0_53] : memref<9x4x4xbf16, #tpu.memory_space<vmem>>, vector<1x4x4xbf16>
    %30 = vector.shape_cast %29 : vector<1x4x4xbf16> to vector<4x4xbf16>
    %cst_54 = arith.constant dense<0.000000e+00> : vector<16x16x4xf32>
    %31 = tpu.matmul %28, %30, %cst_54 {dimension_numbers = #tpu.dot_dimension_numbers<[2], [0], [0, 1], [1], [0, 0, 0, 1, 1, 1], [], []>} : vector<16x16x4xbf16>, vector<4x4xbf16>, vector<16x16x4xf32> -> vector<16x16x4xf32>
    %32 = arith.addf %27, %31 : vector<16x16x4xf32>
    %c1_55 = arith.constant 1 : index
    %c0_56 = arith.constant 0 : index
    %c0_57 = arith.constant 0 : index
    %33 = vector.load %arg7[%c1_55, %c0_56, %c0_57] : memref<18x18x4xbf16, #tpu.memory_space<vmem>>, vector<16x16x4xbf16>
    %c3 = arith.constant 3 : index
    %c0_58 = arith.constant 0 : index
    %c0_59 = arith.constant 0 : index
    %34 = vector.load %arg2[%c3, %c0_58, %c0_59] : memref<9x4x4xbf16, #tpu.memory_space<vmem>>, vector<1x4x4xbf16>
    %35 = vector.shape_cast %34 : vector<1x4x4xbf16> to vector<4x4xbf16>
    %cst_60 = arith.constant dense<0.000000e+00> : vector<16x16x4xf32>
    %36 = tpu.matmul %33, %35, %cst_60 {dimension_numbers = #tpu.dot_dimension_numbers<[2], [0], [0, 1], [1], [0, 0, 0, 1, 1, 1], [], []>} : vector<16x16x4xbf16>, vector<4x4xbf16>, vector<16x16x4xf32> -> vector<16x16x4xf32>
    %37 = arith.addf %32, %36 : vector<16x16x4xf32>
    %c1_61 = arith.constant 1 : index
    %c1_62 = arith.constant 1 : index
    %c0_63 = arith.constant 0 : index
    %38 = vector.load %arg7[%c1_61, %c1_62, %c0_63] : memref<18x18x4xbf16, #tpu.memory_space<vmem>>, vector<16x16x4xbf16>
    %c4 = arith.constant 4 : index
    %c0_64 = arith.constant 0 : index
    %c0_65 = arith.constant 0 : index
    %39 = vector.load %arg2[%c4, %c0_64, %c0_65] : memref<9x4x4xbf16, #tpu.memory_space<vmem>>, vector<1x4x4xbf16>
    %40 = vector.shape_cast %39 : vector<1x4x4xbf16> to vector<4x4xbf16>
    %cst_66 = arith.constant dense<0.000000e+00> : vector<16x16x4xf32>
    %41 = tpu.matmul %38, %40, %cst_66 {dimension_numbers = #tpu.dot_dimension_numbers<[2], [0], [0, 1], [1], [0, 0, 0, 1, 1, 1], [], []>} : vector<16x16x4xbf16>, vector<4x4xbf16>, vector<16x16x4xf32> -> vector<16x16x4xf32>
    %42 = arith.addf %37, %41 : vector<16x16x4xf32>
    %c1_67 = arith.constant 1 : index
    %c2_68 = arith.constant 2 : index
    %c0_69 = arith.constant 0 : index
    %43 = vector.load %arg7[%c1_67, %c2_68, %c0_69] : memref<18x18x4xbf16, #tpu.memory_space<vmem>>, vector<16x16x4xbf16>
    %c5 = arith.constant 5 : index
    %c0_70 = arith.constant 0 : index
    %c0_71 = arith.constant 0 : index
    %44 = vector.load %arg2[%c5, %c0_70, %c0_71] : memref<9x4x4xbf16, #tpu.memory_space<vmem>>, vector<1x4x4xbf16>
    %45 = vector.shape_cast %44 : vector<1x4x4xbf16> to vector<4x4xbf16>
    %cst_72 = arith.constant dense<0.000000e+00> : vector<16x16x4xf32>
    %46 = tpu.matmul %43, %45, %cst_72 {dimension_numbers = #tpu.dot_dimension_numbers<[2], [0], [0, 1], [1], [0, 0, 0, 1, 1, 1], [], []>} : vector<16x16x4xbf16>, vector<4x4xbf16>, vector<16x16x4xf32> -> vector<16x16x4xf32>
    %47 = arith.addf %42, %46 : vector<16x16x4xf32>
    %c2_73 = arith.constant 2 : index
    %c0_74 = arith.constant 0 : index
    %c0_75 = arith.constant 0 : index
    %48 = vector.load %arg7[%c2_73, %c0_74, %c0_75] : memref<18x18x4xbf16, #tpu.memory_space<vmem>>, vector<16x16x4xbf16>
    %c6 = arith.constant 6 : index
    %c0_76 = arith.constant 0 : index
    %c0_77 = arith.constant 0 : index
    %49 = vector.load %arg2[%c6, %c0_76, %c0_77] : memref<9x4x4xbf16, #tpu.memory_space<vmem>>, vector<1x4x4xbf16>
    %50 = vector.shape_cast %49 : vector<1x4x4xbf16> to vector<4x4xbf16>
    %cst_78 = arith.constant dense<0.000000e+00> : vector<16x16x4xf32>
    %51 = tpu.matmul %48, %50, %cst_78 {dimension_numbers = #tpu.dot_dimension_numbers<[2], [0], [0, 1], [1], [0, 0, 0, 1, 1, 1], [], []>} : vector<16x16x4xbf16>, vector<4x4xbf16>, vector<16x16x4xf32> -> vector<16x16x4xf32>
    %52 = arith.addf %47, %51 : vector<16x16x4xf32>
    %c2_79 = arith.constant 2 : index
    %c1_80 = arith.constant 1 : index
    %c0_81 = arith.constant 0 : index
    %53 = vector.load %arg7[%c2_79, %c1_80, %c0_81] : memref<18x18x4xbf16, #tpu.memory_space<vmem>>, vector<16x16x4xbf16>
    %c7 = arith.constant 7 : index
    %c0_82 = arith.constant 0 : index
    %c0_83 = arith.constant 0 : index
    %54 = vector.load %arg2[%c7, %c0_82, %c0_83] : memref<9x4x4xbf16, #tpu.memory_space<vmem>>, vector<1x4x4xbf16>
    %55 = vector.shape_cast %54 : vector<1x4x4xbf16> to vector<4x4xbf16>
    %cst_84 = arith.constant dense<0.000000e+00> : vector<16x16x4xf32>
    %56 = tpu.matmul %53, %55, %cst_84 {dimension_numbers = #tpu.dot_dimension_numbers<[2], [0], [0, 1], [1], [0, 0, 0, 1, 1, 1], [], []>} : vector<16x16x4xbf16>, vector<4x4xbf16>, vector<16x16x4xf32> -> vector<16x16x4xf32>
    %57 = arith.addf %52, %56 : vector<16x16x4xf32>
    %c2_85 = arith.constant 2 : index
    %c2_86 = arith.constant 2 : index
    %c0_87 = arith.constant 0 : index
    %58 = vector.load %arg7[%c2_85, %c2_86, %c0_87] : memref<18x18x4xbf16, #tpu.memory_space<vmem>>, vector<16x16x4xbf16>
    %c8 = arith.constant 8 : index
    %c0_88 = arith.constant 0 : index
    %c0_89 = arith.constant 0 : index
    %59 = vector.load %arg2[%c8, %c0_88, %c0_89] : memref<9x4x4xbf16, #tpu.memory_space<vmem>>, vector<1x4x4xbf16>
    %60 = vector.shape_cast %59 : vector<1x4x4xbf16> to vector<4x4xbf16>
    %cst_90 = arith.constant dense<0.000000e+00> : vector<16x16x4xf32>
    %61 = tpu.matmul %58, %60, %cst_90 {dimension_numbers = #tpu.dot_dimension_numbers<[2], [0], [0, 1], [1], [0, 0, 0, 1, 1, 1], [], []>} : vector<16x16x4xbf16>, vector<4x4xbf16>, vector<16x16x4xf32> -> vector<16x16x4xf32>
    %62 = arith.addf %57, %61 : vector<16x16x4xf32>
    %c0_91 = arith.constant 0 : index
    %c0_92 = arith.constant 0 : index
    %63 = vector.load %arg4[%c0_91, %c0_92] : memref<1x4xf32, #tpu.memory_space<vmem>>, vector<1x4xf32>
    %64 = vector.shape_cast %63 : vector<1x4xf32> to vector<4xf32>
    %65 = vector.shape_cast %64 : vector<4xf32> to vector<1x1x4xf32>
    %66 = vector.broadcast %65 : vector<1x1x4xf32> to vector<16x16x4xf32>
    %67 = arith.addf %62, %66 : vector<16x16x4xf32>
    %cst_93 = arith.constant 0.000000e+00 : f32
    %68 = vector.broadcast %cst_93 : f32 to vector<16x16x4xf32>
    %69 = arith.maximumf %67, %68 : vector<16x16x4xf32>
    %70 = arith.truncf %69 : vector<16x16x4xf32> to vector<16x16x4xbf16>
    %c1_94 = arith.constant 1 : index
    %c1_95 = arith.constant 1 : index
    %c0_96 = arith.constant 0 : index
    %71 = vector.load %arg8[%c1_94, %c1_95, %c0_96] : memref<18x18x4xbf16, #tpu.memory_space<vmem>>, vector<16x16x4xbf16>
    tpu.vector_store %arg8[%c1_94, %c1_95, %c0_96], %70 {strides = array<i32>} : memref<18x18x4xbf16, #tpu.memory_space<vmem>>, vector<16x16x4xbf16>,
    %c0_97 = arith.constant 0 : index
    %c0_98 = arith.constant 0 : index
    %c0_99 = arith.constant 0 : index
    %72 = vector.load %arg8[%c0_97, %c0_98, %c0_99] : memref<18x18x4xbf16, #tpu.memory_space<vmem>>, vector<16x16x4xbf16>
    %c0_100 = arith.constant 0 : index
    %c0_101 = arith.constant 0 : index
    %c0_102 = arith.constant 0 : index
    %73 = vector.load %arg3[%c0_100, %c0_101, %c0_102] : memref<9x4x4xbf16, #tpu.memory_space<vmem>>, vector<1x4x4xbf16>
    %74 = vector.shape_cast %73 : vector<1x4x4xbf16> to vector<4x4xbf16>
    %cst_103 = arith.constant dense<0.000000e+00> : vector<16x16x4xf32>
    %75 = tpu.matmul %72, %74, %cst_103 {dimension_numbers = #tpu.dot_dimension_numbers<[2], [0], [0, 1], [1], [0, 0, 0, 1, 1, 1], [], []>} : vector<16x16x4xbf16>, vector<4x4xbf16>, vector<16x16x4xf32> -> vector<16x16x4xf32>
    %c0_104 = arith.constant 0 : index
    %c1_105 = arith.constant 1 : index
    %c0_106 = arith.constant 0 : index
    %76 = vector.load %arg8[%c0_104, %c1_105, %c0_106] : memref<18x18x4xbf16, #tpu.memory_space<vmem>>, vector<16x16x4xbf16>
    %c1_107 = arith.constant 1 : index
    %c0_108 = arith.constant 0 : index
    %c0_109 = arith.constant 0 : index
    %77 = vector.load %arg3[%c1_107, %c0_108, %c0_109] : memref<9x4x4xbf16, #tpu.memory_space<vmem>>, vector<1x4x4xbf16>
    %78 = vector.shape_cast %77 : vector<1x4x4xbf16> to vector<4x4xbf16>
    %cst_110 = arith.constant dense<0.000000e+00> : vector<16x16x4xf32>
    %79 = tpu.matmul %76, %78, %cst_110 {dimension_numbers = #tpu.dot_dimension_numbers<[2], [0], [0, 1], [1], [0, 0, 0, 1, 1, 1], [], []>} : vector<16x16x4xbf16>, vector<4x4xbf16>, vector<16x16x4xf32> -> vector<16x16x4xf32>
    %80 = arith.addf %75, %79 : vector<16x16x4xf32>
    %c0_111 = arith.constant 0 : index
    %c2_112 = arith.constant 2 : index
    %c0_113 = arith.constant 0 : index
    %81 = vector.load %arg8[%c0_111, %c2_112, %c0_113] : memref<18x18x4xbf16, #tpu.memory_space<vmem>>, vector<16x16x4xbf16>
    %c2_114 = arith.constant 2 : index
    %c0_115 = arith.constant 0 : index
    %c0_116 = arith.constant 0 : index
    %82 = vector.load %arg3[%c2_114, %c0_115, %c0_116] : memref<9x4x4xbf16, #tpu.memory_space<vmem>>, vector<1x4x4xbf16>
    %83 = vector.shape_cast %82 : vector<1x4x4xbf16> to vector<4x4xbf16>
    %cst_117 = arith.constant dense<0.000000e+00> : vector<16x16x4xf32>
    %84 = tpu.matmul %81, %83, %cst_117 {dimension_numbers = #tpu.dot_dimension_numbers<[2], [0], [0, 1], [1], [0, 0, 0, 1, 1, 1], [], []>} : vector<16x16x4xbf16>, vector<4x4xbf16>, vector<16x16x4xf32> -> vector<16x16x4xf32>
    %85 = arith.addf %80, %84 : vector<16x16x4xf32>
    %c1_118 = arith.constant 1 : index
    %c0_119 = arith.constant 0 : index
    %c0_120 = arith.constant 0 : index
    %86 = vector.load %arg8[%c1_118, %c0_119, %c0_120] : memref<18x18x4xbf16, #tpu.memory_space<vmem>>, vector<16x16x4xbf16>
    %c3_121 = arith.constant 3 : index
    %c0_122 = arith.constant 0 : index
    %c0_123 = arith.constant 0 : index
    %87 = vector.load %arg3[%c3_121, %c0_122, %c0_123] : memref<9x4x4xbf16, #tpu.memory_space<vmem>>, vector<1x4x4xbf16>
    %88 = vector.shape_cast %87 : vector<1x4x4xbf16> to vector<4x4xbf16>
    %cst_124 = arith.constant dense<0.000000e+00> : vector<16x16x4xf32>
    %89 = tpu.matmul %86, %88, %cst_124 {dimension_numbers = #tpu.dot_dimension_numbers<[2], [0], [0, 1], [1], [0, 0, 0, 1, 1, 1], [], []>} : vector<16x16x4xbf16>, vector<4x4xbf16>, vector<16x16x4xf32> -> vector<16x16x4xf32>
    %90 = arith.addf %85, %89 : vector<16x16x4xf32>
    %c1_125 = arith.constant 1 : index
    %c1_126 = arith.constant 1 : index
    %c0_127 = arith.constant 0 : index
    %91 = vector.load %arg8[%c1_125, %c1_126, %c0_127] : memref<18x18x4xbf16, #tpu.memory_space<vmem>>, vector<16x16x4xbf16>
    %c4_128 = arith.constant 4 : index
    %c0_129 = arith.constant 0 : index
    %c0_130 = arith.constant 0 : index
    %92 = vector.load %arg3[%c4_128, %c0_129, %c0_130] : memref<9x4x4xbf16, #tpu.memory_space<vmem>>, vector<1x4x4xbf16>
    %93 = vector.shape_cast %92 : vector<1x4x4xbf16> to vector<4x4xbf16>
    %cst_131 = arith.constant dense<0.000000e+00> : vector<16x16x4xf32>
    %94 = tpu.matmul %91, %93, %cst_131 {dimension_numbers = #tpu.dot_dimension_numbers<[2], [0], [0, 1], [1], [0, 0, 0, 1, 1, 1], [], []>} : vector<16x16x4xbf16>, vector<4x4xbf16>, vector<16x16x4xf32> -> vector<16x16x4xf32>
    %95 = arith.addf %90, %94 : vector<16x16x4xf32>
    %c1_132 = arith.constant 1 : index
    %c2_133 = arith.constant 2 : index
    %c0_134 = arith.constant 0 : index
    %96 = vector.load %arg8[%c1_132, %c2_133, %c0_134] : memref<18x18x4xbf16, #tpu.memory_space<vmem>>, vector<16x16x4xbf16>
    %c5_135 = arith.constant 5 : index
    %c0_136 = arith.constant 0 : index
    %c0_137 = arith.constant 0 : index
    %97 = vector.load %arg3[%c5_135, %c0_136, %c0_137] : memref<9x4x4xbf16, #tpu.memory_space<vmem>>, vector<1x4x4xbf16>
    %98 = vector.shape_cast %97 : vector<1x4x4xbf16> to vector<4x4xbf16>
    %cst_138 = arith.constant dense<0.000000e+00> : vector<16x16x4xf32>
    %99 = tpu.matmul %96, %98, %cst_138 {dimension_numbers = #tpu.dot_dimension_numbers<[2], [0], [0, 1], [1], [0, 0, 0, 1, 1, 1], [], []>} : vector<16x16x4xbf16>, vector<4x4xbf16>, vector<16x16x4xf32> -> vector<16x16x4xf32>
    %100 = arith.addf %95, %99 : vector<16x16x4xf32>
    %c2_139 = arith.constant 2 : index
    %c0_140 = arith.constant 0 : index
    %c0_141 = arith.constant 0 : index
    %101 = vector.load %arg8[%c2_139, %c0_140, %c0_141] : memref<18x18x4xbf16, #tpu.memory_space<vmem>>, vector<16x16x4xbf16>
    %c6_142 = arith.constant 6 : index
    %c0_143 = arith.constant 0 : index
    %c0_144 = arith.constant 0 : index
    %102 = vector.load %arg3[%c6_142, %c0_143, %c0_144] : memref<9x4x4xbf16, #tpu.memory_space<vmem>>, vector<1x4x4xbf16>
    %103 = vector.shape_cast %102 : vector<1x4x4xbf16> to vector<4x4xbf16>
    %cst_145 = arith.constant dense<0.000000e+00> : vector<16x16x4xf32>
    %104 = tpu.matmul %101, %103, %cst_145 {dimension_numbers = #tpu.dot_dimension_numbers<[2], [0], [0, 1], [1], [0, 0, 0, 1, 1, 1], [], []>} : vector<16x16x4xbf16>, vector<4x4xbf16>, vector<16x16x4xf32> -> vector<16x16x4xf32>
    %105 = arith.addf %100, %104 : vector<16x16x4xf32>
    %c2_146 = arith.constant 2 : index
    %c1_147 = arith.constant 1 : index
    %c0_148 = arith.constant 0 : index
    %106 = vector.load %arg8[%c2_146, %c1_147, %c0_148] : memref<18x18x4xbf16, #tpu.memory_space<vmem>>, vector<16x16x4xbf16>
    %c7_149 = arith.constant 7 : index
    %c0_150 = arith.constant 0 : index
    %c0_151 = arith.constant 0 : index
    %107 = vector.load %arg3[%c7_149, %c0_150, %c0_151] : memref<9x4x4xbf16, #tpu.memory_space<vmem>>, vector<1x4x4xbf16>
    %108 = vector.shape_cast %107 : vector<1x4x4xbf16> to vector<4x4xbf16>
    %cst_152 = arith.constant dense<0.000000e+00> : vector<16x16x4xf32>
    %109 = tpu.matmul %106, %108, %cst_152 {dimension_numbers = #tpu.dot_dimension_numbers<[2], [0], [0, 1], [1], [0, 0, 0, 1, 1, 1], [], []>} : vector<16x16x4xbf16>, vector<4x4xbf16>, vector<16x16x4xf32> -> vector<16x16x4xf32>
    %110 = arith.addf %105, %109 : vector<16x16x4xf32>
    %c2_153 = arith.constant 2 : index
    %c2_154 = arith.constant 2 : index
    %c0_155 = arith.constant 0 : index
    %111 = vector.load %arg8[%c2_153, %c2_154, %c0_155] : memref<18x18x4xbf16, #tpu.memory_space<vmem>>, vector<16x16x4xbf16>
    %c8_156 = arith.constant 8 : index
    %c0_157 = arith.constant 0 : index
    %c0_158 = arith.constant 0 : index
    %112 = vector.load %arg3[%c8_156, %c0_157, %c0_158] : memref<9x4x4xbf16, #tpu.memory_space<vmem>>, vector<1x4x4xbf16>
    %113 = vector.shape_cast %112 : vector<1x4x4xbf16> to vector<4x4xbf16>
    %cst_159 = arith.constant dense<0.000000e+00> : vector<16x16x4xf32>
    %114 = tpu.matmul %111, %113, %cst_159 {dimension_numbers = #tpu.dot_dimension_numbers<[2], [0], [0, 1], [1], [0, 0, 0, 1, 1, 1], [], []>} : vector<16x16x4xbf16>, vector<4x4xbf16>, vector<16x16x4xf32> -> vector<16x16x4xf32>
    %115 = arith.addf %110, %114 : vector<16x16x4xf32>
    %c0_160 = arith.constant 0 : index
    %c0_161 = arith.constant 0 : index
    %116 = vector.load %arg5[%c0_160, %c0_161] : memref<1x4xf32, #tpu.memory_space<vmem>>, vector<1x4xf32>
    %117 = vector.shape_cast %116 : vector<1x4xf32> to vector<4xf32>
    %118 = vector.shape_cast %117 : vector<4xf32> to vector<1x1x4xf32>
    %119 = vector.broadcast %118 : vector<1x1x4xf32> to vector<16x16x4xf32>
    %120 = arith.addf %115, %119 : vector<16x16x4xf32>
    %121 = arith.extf %17 : vector<16x16x4xbf16> to vector<16x16x4xf32>
    %122 = arith.addf %120, %121 : vector<16x16x4xf32>
    %cst_162 = arith.constant 0.000000e+00 : f32
    %123 = vector.broadcast %cst_162 : f32 to vector<16x16x4xf32>
    %124 = arith.maximumf %122, %123 : vector<16x16x4xf32>
    %c0_163 = arith.constant 0 : index
    %c0_164 = arith.constant 0 : index
    %c0_165 = arith.constant 0 : index
    %c0_166 = arith.constant 0 : index
    %125 = vector.load %arg6[%c0_163, %c0_164, %c0_165, %c0_166] : memref<1x16x16x4xf32, #tpu.memory_space<vmem>>, vector<1x16x16x4xf32>
    %126 = vector.shape_cast %125 : vector<1x16x16x4xf32> to vector<16x16x4xf32>
    %127 = vector.shape_cast %124 : vector<16x16x4xf32> to vector<1x16x16x4xf32>
    tpu.vector_store %arg6[%c0_163, %c0_164, %c0_165, %c0_166], %127 {strides = array<i32>} : memref<1x16x16x4xf32, #tpu.memory_space<vmem>>, vector<1x16x16x4xf32>,
    return
  }
  func.func @transform_0(%arg0: i32) -> (i32, i32, i32, i32) {
    %c0_i32 = arith.constant 0 : i32
    %c0_i32_0 = arith.constant 0 : i32
    %c0_i32_1 = arith.constant 0 : i32
    %c0_i32_2 = arith.constant 0 : i32
    return %arg0, %c0_i32, %c0_i32_0, %c0_i32_1 : i32, i32, i32, i32
  }
  func.func @transform_1(%arg0: i32) -> (i32, i32, i32) {
    %c0_i32 = arith.constant 0 : i32
    %c0_i32_0 = arith.constant 0 : i32
    %c0_i32_1 = arith.constant 0 : i32
    %c0_i32_2 = arith.constant 0 : i32
    return %c0_i32, %c0_i32_0, %c0_i32_1 : i32, i32, i32
  }
  func.func @transform_2(%arg0: i32) -> (i32, i32, i32) {
    %c0_i32 = arith.constant 0 : i32
    %c0_i32_0 = arith.constant 0 : i32
    %c0_i32_1 = arith.constant 0 : i32
    %c0_i32_2 = arith.constant 0 : i32
    return %c0_i32, %c0_i32_0, %c0_i32_1 : i32, i32, i32
  }
  func.func @transform_3(%arg0: i32) -> (i32, i32) {
    %c0_i32 = arith.constant 0 : i32
    %c0_i32_0 = arith.constant 0 : i32
    %c0_i32_1 = arith.constant 0 : i32
    return %c0_i32, %c0_i32_0 : i32, i32
  }
  func.func @transform_4(%arg0: i32) -> (i32, i32) {
    %c0_i32 = arith.constant 0 : i32
    %c0_i32_0 = arith.constant 0 : i32
    %c0_i32_1 = arith.constant 0 : i32
    return %c0_i32, %c0_i32_0 : i32, i32
  }
  func.func @transform_5(%arg0: i32) -> (i32, i32, i32, i32) {
    %c0_i32 = arith.constant 0 : i32
    %c0_i32_0 = arith.constant 0 : i32
    %c0_i32_1 = arith.constant 0 : i32
    %c0_i32_2 = arith.constant 0 : i32
    return %arg0, %c0_i32, %c0_i32_0, %c0_i32_1 : i32, i32, i32, i32
  }
}

</mosaic_0001>

<llo_original>
// kernel: basic_block_forward.1
$region0: #{basic_block_forward.1}
  #allocation0 [shape = 'u32[]', space=smem, size = 0x4, offset = 0x4, fixed_abs, tag = 'smem constant byte address 0x4 - core index']
  #allocation1 [shape = 'u32[144,128]{1,0:T(1,128)}', space=vmem, size = 0x12000, scoped, tag = 'internal scratch']
  #allocation2 [shape = 'bf16[18,18,4]{2,1,0:T(8,128)(2,1)}', space=vmem, size = 0x1b000, scoped, tag = 'scratch operand']
  #allocation3 [shape = 'bf16[18,18,4]{2,1,0:T(8,128)(2,1)}', space=vmem, size = 0x1b000, scoped, tag = 'scratch operand']
  %s0 = inlined_call_operand.vmem [shape: bf16[2,16,16,4], index: 0, kind: input, shape index: {}]
  %s1 = inlined_call_operand.vmem [shape: bf16[9,4,4], index: 1, kind: input, shape index: {}]
  %s2 = inlined_call_operand.vmem [shape: bf16[9,4,4], index: 2, kind: input, shape index: {}]
  %s3 = inlined_call_operand.vmem [shape: f32[1,4], index: 3, kind: input, shape index: {}]
  %s4 = inlined_call_operand.vmem [shape: f32[1,4], index: 4, kind: input, shape index: {}]
  %s5 = inlined_call_operand.vmem [shape: f32[2,16,16,4], index: 5, kind: output, shape index: {}]
  %s6 = sld [smem:[#allocation0]]
  $region53: #{basic_block_forward.1} parent=0
    _
  %s8 = ssub.s32 1, %s6
  %s9 = scalar_select 0, %s8, %s6
  loop: start=0, step=1, limit=4
  $region2: #{basic_block_forward.1} parent=0 // loop_pre_header
    _
  $region3: #{basic_block_forward.1} parent=0 // loop_header
    %s11 = sphi 0, %s15
    %p12 = scmp.ge.s32.totalorder %s11, 4
    %s21 = sphi 0, %s23
    %s24 = sphi 0, %s21
    %s25 = sphi 0, %s24
    %s41 = sphi 0, %s25
    %s45 = sphi 0, %s45
    %s47 = sphi 0, %s45
    %s48 = sphi 0, %s47
    %s62 = sphi 0, %s48
    %s66 = sphi 0, %s66
    %s68 = sphi 0, %s66
    %s69 = sphi 0, %s68
    %s83 = sphi 0, %s69
    %s87 = sphi 0, %s87
    %s89 = sphi 0, %s87
    %s90 = sphi 0, %s89
    %s104 = sphi 0, %s90
    %s108 = sphi 0, %s108
    %s110 = sphi 0, %s108
    %s111 = sphi 0, %s110
    %s125 = sphi 0, %s111
    %s131 = sphi 0, %s133
    %s134 = sphi 0, %s131
    %s135 = sphi 0, %s134
    %s151 = sphi 0, %s135
  $region4: #{basic_block_forward.1} parent=0 // loop_header_branch
    %14 = sbr.rel (%p12) target = $region8
  $region5: #{basic_block_forward.1} parent=0 // loop_body
    %s16 = ssub.s32 %s11, 1
    %s17 = ssub.s32 %s11, 2
    %s18 = sadd.s32 %s11, 1
    %s19 = ssub.s32 %s11, %s18
    %p20 = scmp.eq.s32.totalorder %s19, 0
    %s22 = sadd.s32 %s21, 1
    %s23 = scalar_select %p20, %s21, %s22
    %p26 = pneg %p20
    %p27 = scmp.eq.s32.totalorder %s11, 1
    %p28 = por %p26, %p27
    %p29 = scmp.ne.s32.totalorder %s21, %s24
    %p30 = scmp.eq.s32.totalorder %s11, 0
    %p31 = por %p29, %p30
    %p32 = scmp.ne.s32.totalorder %s21, %s24
    %p33 = scmp.eq.s32.totalorder %s16, 1
    %p34 = por %p32, %p33
    %p35 = scmp.ne.s32.totalorder %s24, %s25
    %p36 = scmp.eq.s32.totalorder %s16, 0
    %p37 = por %p35, %p36
    %p38 = scmp.ne.s32.totalorder %s24, %s25
    %p39 = scmp.eq.s32.totalorder %s17, 1
    %p40 = por %p38, %p39
    %p42 = scmp.ne.s32.totalorder %s25, %s41
    %p43 = scmp.eq.s32.totalorder %s17, 0
    %p44 = por %p42, %p43
    %s46 = sadd.s32 %s45, 1
    %p49 = scmp.eq.s32.totalorder %s11, 1
    %p50 = scmp.ne.s32.totalorder %s45, %s47
    %p51 = scmp.eq.s32.totalorder %s11, 0
    %p52 = por %p50, %p51
    %p53 = scmp.ne.s32.totalorder %s45, %s47
    %p54 = scmp.eq.s32.totalorder %s16, 1
    %p55 = por %p53, %p54
    %p56 = scmp.ne.s32.totalorder %s47, %s48
    %p57 = scmp.eq.s32.totalorder %s16, 0
    %p58 = por %p56, %p57
    %p59 = scmp.ne.s32.totalorder %s47, %s48
    %p60 = scmp.eq.s32.totalorder %s17, 1
    %p61 = por %p59, %p60
    %p63 = scmp.ne.s32.totalorder %s48, %s62
    %p64 = scmp.eq.s32.totalorder %s17, 0
    %p65 = por %p63, %p64
    %s67 = sadd.s32 %s66, 1
    %p70 = scmp.eq.s32.totalorder %s11, 1
    %p71 = scmp.ne.s32.totalorder %s66, %s68
    %p72 = scmp.eq.s32.totalorder %s11, 0
    %p73 = por %p71, %p72
    %p74 = scmp.ne.s32.totalorder %s66, %s68
    %p75 = scmp.eq.s32.totalorder %s16, 1
    %p76 = por %p74, %p75
    %p77 = scmp.ne.s32.totalorder %s68, %s69
    %p78 = scmp.eq.s32.totalorder %s16, 0
    %p79 = por %p77, %p78
    %p80 = scmp.ne.s32.totalorder %s68, %s69
    %p81 = scmp.eq.s32.totalorder %s17, 1
    %p82 = por %p80, %p81
    %p84 = scmp.ne.s32.totalorder %s69, %s83
    %p85 = scmp.eq.s32.totalorder %s17, 0
    %p86 = por %p84, %p85
    %s88 = sadd.s32 %s87, 1
    %p91 = scmp.eq.s32.totalorder %s11, 1
    %p92 = scmp.ne.s32.totalorder %s87, %s89
    %p93 = scmp.eq.s32.totalorder %s11, 0
    %p94 = por %p92, %p93
    %p95 = scmp.ne.s32.totalorder %s87, %s89
    %p96 = scmp.eq.s32.totalorder %s16, 1
    %p97 = por %p95, %p96
    %p98 = scmp.ne.s32.totalorder %s89, %s90
    %p99 = scmp.eq.s32.totalorder %s16, 0
    %p100 = por %p98, %p99
    %p101 = scmp.ne.s32.totalorder %s89, %s90
    %p102 = scmp.eq.s32.totalorder %s17, 1
    %p103 = por %p101, %p102
    %p105 = scmp.ne.s32.totalorder %s90, %s104
    %p106 = scmp.eq.s32.totalorder %s17, 0
    %p107 = por %p105, %p106
    %s109 = sadd.s32 %s108, 1
    %p112 = scmp.eq.s32.totalorder %s11, 1
    %p113 = scmp.ne.s32.totalorder %s108, %s110
    %p114 = scmp.eq.s32.totalorder %s11, 0
    %p115 = por %p113, %p114
    %p116 = scmp.ne.s32.totalorder %s108, %s110
    %p117 = scmp.eq.s32.totalorder %s16, 1
    %p118 = por %p116, %p117
    %p119 = scmp.ne.s32.totalorder %s110, %s111
    %p120 = scmp.eq.s32.totalorder %s16, 0
    %p121 = por %p119, %p120
    %p122 = scmp.ne.s32.totalorder %s110, %s111
    %p123 = scmp.eq.s32.totalorder %s17, 1
    %p124 = por %p122, %p123
    %p126 = scmp.ne.s32.totalorder %s111, %s125
    %p127 = scmp.eq.s32.totalorder %s17, 0
    %p128 = por %p126, %p127
    %s129 = ssub.s32 %s11, %s18
    %p130 = scmp.eq.s32.totalorder %s129, 0
    %s132 = sadd.s32 %s131, 1
    %s133 = scalar_select %p130, %s131, %s132
    %p136 = pneg %p130
    %p137 = scmp.eq.s32.totalorder %s11, 1
    %p138 = por %p136, %p137
    %p139 = scmp.ne.s32.totalorder %s131, %s134
    %p140 = scmp.eq.s32.totalorder %s11, 0
    %p141 = por %p139, %p140
    %p142 = scmp.ne.s32.totalorder %s131, %s134
    %p143 = scmp.eq.s32.totalorder %s16, 1
    %p144 = por %p142, %p143
    %p145 = scmp.ne.s32.totalorder %s134, %s135
    %p146 = scmp.eq.s32.totalorder %s16, 0
    %p147 = por %p145, %p146
    %p148 = scmp.ne.s32.totalorder %s134, %s135
    %p149 = scmp.eq.s32.totalorder %s17, 1
    %p150 = por %p148, %p149
    %p152 = scmp.ne.s32.totalorder %s135, %s151
    %p153 = scmp.eq.s32.totalorder %s17, 0
    %p154 = por %p152, %p153
    %p155 = scmp.le.s32.totalorder 1, %s11
    %p156 = scmp.lt.s32.totalorder %s11, 3
    %p157 = pnand %p155, %p156
    %p158 = pneg %p157
    // Predicated region
    $region9: #{basic_block_forward.1} parent=5 // pred_check
      _
    $region10: #{basic_block_forward.1} parent=5 // pred_check_branch
      %160 = sbr.rel (%p157) target = $region12
    $region11: #{basic_block_forward.1} parent=5 // pred_region
      %s161 = ssub.s32 %s11, 1
      // Predicated region
      $region13: #{basic_block_forward.1} parent=11 // pred_check
        %p162 = pneg %p58
      $region14: #{basic_block_forward.1} parent=11 // pred_check_branch
        %164 = sbr.rel (%p162) target = $region16
      $region15: #{basic_block_forward.1} parent=11 // pred_region
        _
      $region16: #{basic_block_forward.1} parent=11 // pred_fallthru
        _
      // Predicated region
      $region17: #{basic_block_forward.1} parent=11 // pred_check
        %p165 = pneg %p79
      $region18: #{basic_block_forward.1} parent=11 // pred_check_branch
        %167 = sbr.rel (%p165) target = $region20
      $region19: #{basic_block_forward.1} parent=11 // pred_region
        _
      $region20: #{basic_block_forward.1} parent=11 // pred_fallthru
        _
      // Predicated region
      $region21: #{basic_block_forward.1} parent=11 // pred_check
        %p168 = pneg %p100
      $region22: #{basic_block_forward.1} parent=11 // pred_check_branch
        %170 = sbr.rel (%p168) target = $region24
      $region23: #{basic_block_forward.1} parent=11 // pred_region
        _
      $region24: #{basic_block_forward.1} parent=11 // pred_fallthru
        _
      // Predicated region
      $region25: #{basic_block_forward.1} parent=11 // pred_check
        %p171 = pneg %p121
      $region26: #{basic_block_forward.1} parent=11 // pred_check_branch
        %173 = sbr.rel (%p171) target = $region28
      $region27: #{basic_block_forward.1} parent=11 // pred_region
        _
      $region28: #{basic_block_forward.1} parent=11 // pred_fallthru
        _
    $region12: #{basic_block_forward.1} parent=5 // pred_fallthru
      _
    %p174 = scmp.lt.s32.totalorder %s11, 2
    // Predicated region
    $region29: #{basic_block_forward.1} parent=5 // pred_check
      %p175 = pneg %p174
    $region30: #{basic_block_forward.1} parent=5 // pred_check_branch
      %177 = sbr.rel (%p175) target = $region32
    $region31: #{basic_block_forward.1} parent=5 // pred_region
      // Predicated region
      $region33: #{basic_block_forward.1} parent=31 // pred_check
        %p178 = pneg %p31
      $region34: #{basic_block_forward.1} parent=31 // pred_check_branch
        %180 = sbr.rel (%p178) target = $region36
      $region35: #{basic_block_forward.1} parent=31 // pred_region
        %p181 = scmp.lt.s32.totalorder %s11, 1
        %s182 = scalar_select %p181, %s11, 1
        %s183 = smul.addr %s182, 32
        %s184 = smul.addr %s183, 4
        %s185 = scalar_lea.vmem %s0, %s184
      $region36: #{basic_block_forward.1} parent=31 // pred_fallthru
        _
    $region32: #{basic_block_forward.1} parent=5 // pred_fallthru
      _
    %p186 = scmp.le.s32.totalorder 1, %s11
    %p187 = scmp.lt.s32.totalorder %s11, 3
    %p188 = pnand %p186, %p187
    %p189 = pneg %p188
    // Predicated region
    $region37: #{basic_block_forward.1} parent=5 // pred_check
      _
    $region38: #{basic_block_forward.1} parent=5 // pred_check_branch
      %191 = sbr.rel (%p188) target = $region40
    $region39: #{basic_block_forward.1} parent=5 // pred_region
      %s192 = ssub.s32 %s11, 1
      %p193 = scmp.lt.s32.totalorder %s16, 1
      %s194 = scalar_select %p193, %s16, 1
      %s195 = smul.addr %s194, 32
      %s196 = smul.addr %s195, 4
      %s197 = scalar_lea.vmem %s0, %s196
      %p198 = pneg %p37
      %p199 = pneg %p34
      %p200 = pneg %p58
      %p201 = pneg %p55
      %p202 = pneg %p79
      %p203 = pneg %p76
      %p204 = pneg %p100
      %p205 = pneg %p97
      %p206 = pneg %p121
      %p207 = pneg %p118
      %p208 = pneg %p147
      %p209 = pneg %p144
      %p210 = scmp.lt.s32.totalorder %s16, 1
      %s211 = scalar_select %p210, %s16, 1
      %s212 = smul.addr %s211, 32
      %s213 = smul.addr %s212, 8
      %s214 = scalar_lea.vmem %s5, %s213
      %p215 = scmp.lt.s32.totalorder %s16, 1
      %s216 = scalar_select %p215, %s16, 1
      %s217 = smul.addr %s216, 32
      %s218 = smul.addr %s217, 4
      %s219 = scalar_lea.vmem %s0, %s218
      %p220 = scmp.lt.s32.totalorder %s16, 1
      %s221 = scalar_select %p220, %s16, 1
      %s222 = smul.addr %s221, 32
      %s223 = smul.addr %s222, 8
      %s224 = scalar_lea.vmem %s5, %s223
      %vm226 = vcmask 27648
      %227 = vst.msk [vmem:[#allocation2] sm:$0xf] %vm226, 0
      %228 = vst.msk [vmem:[#allocation2 + $0x4] sm:$0xf] %vm226, 0
      %vm229 = vcmask 24576
      %230 = vst.msk [vmem:[#allocation2 + $0x8] sm:$0x1] %vm229, 0
      %s231 = scalar_lea.vmem [#allocation2], 204
      %232 = vst.msk [vmem:[%s231] sm:$0xf] %vm226, 0
      %233 = vst.msk [vmem:[%s231 + $0x4] sm:$0xf] %vm226, 0
      %234 = vst.msk [vmem:[%s231 + $0x8] sm:$0x1] %vm229, 0
      %vm235 = vcmask 24576
      %vm236 = vsmask.f32 256
      %vm237 = vmand %vm235, %vm236
      %v238 = vld [vmem:[#allocation2] sm:$0x1]
      %v239 = vsel %vm237, 0, %v238
      %240 = vst [vmem:[#allocation2] sm:$0x1] %v239
      %v241 = vld [vmem:[#allocation2 + $0xc] sm:$0x1]
      %v242 = vsel %vm237, 0, %v241
      %243 = vst [vmem:[#allocation2 + $0xc] sm:$0x1] %v242
      %v244 = vld [vmem:[#allocation2 + $0x18] sm:$0x1]
      %v245 = vsel %vm237, 0, %v244
      %246 = vst [vmem:[#allocation2 + $0x18] sm:$0x1] %v245
      %v247 = vld [vmem:[#allocation2 + $0x24] sm:$0x1]
      %v248 = vsel %vm237, 0, %v247
      %249 = vst [vmem:[#allocation2 + $0x24] sm:$0x1] %v248
      %v250 = vld [vmem:[#allocation2 + $0x30] sm:$0x1]
      %v251 = vsel %vm237, 0, %v250
      %252 = vst [vmem:[#allocation2 + $0x30] sm:$0x1] %v251
      %v253 = vld [vmem:[#allocation2 + $0x3c] sm:$0x1]
      %v254 = vsel %vm237, 0, %v253
      %255 = vst [vmem:[#allocation2 + $0x3c] sm:$0x1] %v254
      %v256 = vld [vmem:[#allocation2 + $0x48] sm:$0x1]
      %v257 = vsel %vm237, 0, %v256
      %258 = vst [vmem:[#allocation2 + $0x48] sm:$0x1] %v257
      %v259 = vld [vmem:[#allocation2 + $0x54] sm:$0x1]
      %v260 = vsel %vm237, 0, %v259
      %261 = vst [vmem:[#allocation2 + $0x54] sm:$0x1] %v260
      %v262 = vld [vmem:[#allocation2 + $0x60] sm:$0x1]
      %v263 = vsel %vm237, 0, %v262
      %264 = vst [vmem:[#allocation2 + $0x60] sm:$0x1] %v263
      %v265 = vld [vmem:[#allocation2 + $0x6c] sm:$0x1]
      %v266 = vsel %vm237, 0, %v265
      %267 = vst [vmem:[#allocation2 + $0x6c] sm:$0x1] %v266
      %v268 = vld [vmem:[#allocation2 + $0x78] sm:$0x1]
      %v269 = vsel %vm237, 0, %v268
      %270 = vst [vmem:[#allocation2 + $0x78] sm:$0x1] %v269
      %v271 = vld [vmem:[#allocation2 + $0x84] sm:$0x1]
      %v272 = vsel %vm237, 0, %v271
      %273 = vst [vmem:[#allocation2 + $0x84] sm:$0x1] %v272
      %v274 = vld [vmem:[#allocation2 + $0x90] sm:$0x1]
      %v275 = vsel %vm237, 0, %v274
      %276 = vst [vmem:[#allocation2 + $0x90] sm:$0x1] %v275
      %v277 = vld [vmem:[#allocation2 + $0x9c] sm:$0x1]
      %v278 = vsel %vm237, 0, %v277
      %279 = vst [vmem:[#allocation2 + $0x9c] sm:$0x1] %v278
      %v280 = vld [vmem:[#allocation2 + $0xa8] sm:$0x1]
      %v281 = vsel %vm237, 0, %v280
      %282 = vst [vmem:[#allocation2 + $0xa8] sm:$0x1] %v281
      %v283 = vld [vmem:[#allocation2 + $0xb4] sm:$0x1]
      %v284 = vsel %vm237, 0, %v283
      %285 = vst [vmem:[#allocation2 + $0xb4] sm:$0x1] %v284
      %v286 = vld [vmem:[#allocation2 + $0xc0] sm:$0x1]
      %v287 = vsel %vm237, 0, %v286
      %288 = vst [vmem:[#allocation2 + $0xc0] sm:$0x1] %v287
      %v289 = vld [vmem:[#allocation2 + $0xcc] sm:$0x1]
      %v290 = vsel %vm237, 0, %v289
      %291 = vst [vmem:[#allocation2 + $0xcc] sm:$0x1] %v290
      %vm292 = vsmask.f32 7938
      %vm293 = vmand %vm235, %vm292
      %v294 = vld [vmem:[#allocation2 + $0x8] sm:$0x1]
      %v295 = vsel %vm293, 0, %v294
      %296 = vst [vmem:[#allocation2 + $0x8] sm:$0x1] %v295
      %v297 = vld [vmem:[#allocation2 + $0x14] sm:$0x1]
      %v298 = vsel %vm293, 0, %v297
      %299 = vst [vmem:[#allocation2 + $0x14] sm:$0x1] %v298
      %v300 = vld [vmem:[#allocation2 + $0x20] sm:$0x1]
      %v301 = vsel %vm293, 0, %v300
      %302 = vst [vmem:[#allocation2 + $0x20] sm:$0x1] %v301
      %v303 = vld [vmem:[#allocation2 + $0x2c] sm:$0x1]
      %v304 = vsel %vm293, 0, %v303
      %305 = vst [vmem:[#allocation2 + $0x2c] sm:$0x1] %v304
      %v306 = vld [vmem:[#allocation2 + $0x38] sm:$0x1]
      %v307 = vsel %vm293, 0, %v306
      %308 = vst [vmem:[#allocation2 + $0x38] sm:$0x1] %v307
      %v309 = vld [vmem:[#allocation2 + $0x44] sm:$0x1]
      %v310 = vsel %vm293, 0, %v309
      %311 = vst [vmem:[#allocation2 + $0x44] sm:$0x1] %v310
      %v312 = vld [vmem:[#allocation2 + $0x50] sm:$0x1]
      %v313 = vsel %vm293, 0, %v312
      %314 = vst [vmem:[#allocation2 + $0x50] sm:$0x1] %v313
      %v315 = vld [vmem:[#allocation2 + $0x5c] sm:$0x1]
      %v316 = vsel %vm293, 0, %v315
      %317 = vst [vmem:[#allocation2 + $0x5c] sm:$0x1] %v316
      %v318 = vld [vmem:[#allocation2 + $0x68] sm:$0x1]
      %v319 = vsel %vm293, 0, %v318
      %320 = vst [vmem:[#allocation2 + $0x68] sm:$0x1] %v319
      %v321 = vld [vmem:[#allocation2 + $0x74] sm:$0x1]
      %v322 = vsel %vm293, 0, %v321
      %323 = vst [vmem:[#allocation2 + $0x74] sm:$0x1] %v322
      %v324 = vld [vmem:[#allocation2 + $0x80] sm:$0x1]
      %v325 = vsel %vm293, 0, %v324
      %326 = vst [vmem:[#allocation2 + $0x80] sm:$0x1] %v325
      %v327 = vld [vmem:[#allocation2 + $0x8c] sm:$0x1]
      %v328 = vsel %vm293, 0, %v327
      %329 = vst [vmem:[#allocation2 + $0x8c] sm:$0x1] %v328
      %v330 = vld [vmem:[#allocation2 + $0x98] sm:$0x1]
      %v331 = vsel %vm293, 0, %v330
      %332 = vst [vmem:[#allocation2 + $0x98] sm:$0x1] %v331
      %v333 = vld [vmem:[#allocation2 + $0xa4] sm:$0x1]
      %v334 = vsel %vm293, 0, %v333
      %335 = vst [vmem:[#allocation2 + $0xa4] sm:$0x1] %v334
      %v336 = vld [vmem:[#allocation2 + $0xb0] sm:$0x1]
      %v337 = vsel %vm293, 0, %v336
      %338 = vst [vmem:[#allocation2 + $0xb0] sm:$0x1] %v337
      %v339 = vld [vmem:[#allocation2 + $0xbc] sm:$0x1]
      %v340 = vsel %vm293, 0, %v339
      %341 = vst [vmem:[#allocation2 + $0xbc] sm:$0x1] %v340
      %v342 = vld [vmem:[#allocation2 + $0xc8] sm:$0x1]
      %v343 = vsel %vm293, 0, %v342
      %344 = vst [vmem:[#allocation2 + $0xc8] sm:$0x1] %v343
      %v345 = vld [vmem:[#allocation2 + $0xd4] sm:$0x1]
      %v346 = vsel %vm293, 0, %v345
      %347 = vst [vmem:[#allocation2 + $0xd4] sm:$0x1] %v346
      %348 = vst.msk [vmem:[#allocation3] sm:$0xf] %vm226, 0
      %349 = vst.msk [vmem:[#allocation3 + $0x4] sm:$0xf] %vm226, 0
      %350 = vst.msk [vmem:[#allocation3 + $0x8] sm:$0x1] %vm229, 0
      %s351 = scalar_lea.vmem [#allocation3], 204
      %352 = vst.msk [vmem:[%s351] sm:$0xf] %vm226, 0
      %353 = vst.msk [vmem:[%s351 + $0x4] sm:$0xf] %vm226, 0
      %354 = vst.msk [vmem:[%s351 + $0x8] sm:$0x1] %vm229, 0
      %v355 = vld [vmem:[#allocation3] sm:$0x1]
      %v356 = vsel %vm237, 0, %v355
      %357 = vst [vmem:[#allocation3] sm:$0x1] %v356
      %v358 = vld [vmem:[#allocation3 + $0xc] sm:$0x1]
      %v359 = vsel %vm237, 0, %v358
      %360 = vst [vmem:[#allocation3 + $0xc] sm:$0x1] %v359
      %v361 = vld [vmem:[#allocation3 + $0x18] sm:$0x1]
      %v362 = vsel %vm237, 0, %v361
      %363 = vst [vmem:[#allocation3 + $0x18] sm:$0x1] %v362
      %v364 = vld [vmem:[#allocation3 + $0x24] sm:$0x1]
      %v365 = vsel %vm237, 0, %v364
      %366 = vst [vmem:[#allocation3 + $0x24] sm:$0x1] %v365
      %v367 = vld [vmem:[#allocation3 + $0x30] sm:$0x1]
      %v368 = vsel %vm237, 0, %v367
      %369 = vst [vmem:[#allocation3 + $0x30] sm:$0x1] %v368
      %v370 = vld [vmem:[#allocation3 + $0x3c] sm:$0x1]
      %v371 = vsel %vm237, 0, %v370
      %372 = vst [vmem:[#allocation3 + $0x3c] sm:$0x1] %v371
      %v373 = vld [vmem:[#allocation3 + $0x48] sm:$0x1]
      %v374 = vsel %vm237, 0, %v373
      %375 = vst [vmem:[#allocation3 + $0x48] sm:$0x1] %v374
      %v376 = vld [vmem:[#allocation3 + $0x54] sm:$0x1]
      %v377 = vsel %vm237, 0, %v376
      %378 = vst [vmem:[#allocation3 + $0x54] sm:$0x1] %v377
      %v379 = vld [vmem:[#allocation3 + $0x60] sm:$0x1]
      %v380 = vsel %vm237, 0, %v379
      %381 = vst [vmem:[#allocation3 + $0x60] sm:$0x1] %v380
      %v382 = vld [vmem:[#allocation3 + $0x6c] sm:$0x1]
      %v383 = vsel %vm237, 0, %v382
      %384 = vst [vmem:[#allocation3 + $0x6c] sm:$0x1] %v383
      %v385 = vld [vmem:[#allocation3 + $0x78] sm:$0x1]
      %v386 = vsel %vm237, 0, %v385
      %387 = vst [vmem:[#allocation3 + $0x78] sm:$0x1] %v386
      %v388 = vld [vmem:[#allocation3 + $0x84] sm:$0x1]
      %v389 = vsel %vm237, 0, %v388
      %390 = vst [vmem:[#allocation3 + $0x84] sm:$0x1] %v389
      %v391 = vld [vmem:[#allocation3 + $0x90] sm:$0x1]
      %v392 = vsel %vm237, 0, %v391
      %393 = vst [vmem:[#allocation3 + $0x90] sm:$0x1] %v392
      %v394 = vld [vmem:[#allocation3 + $0x9c] sm:$0x1]
      %v395 = vsel %vm237, 0, %v394
      %396 = vst [vmem:[#allocation3 + $0x9c] sm:$0x1] %v395
      %v397 = vld [vmem:[#allocation3 + $0xa8] sm:$0x1]
      %v398 = vsel %vm237, 0, %v397
      %399 = vst [vmem:[#allocation3 + $0xa8] sm:$0x1] %v398
      %v400 = vld [vmem:[#allocation3 + $0xb4] sm:$0x1]
      %v401 = vsel %vm237, 0, %v400
      %402 = vst [vmem:[#allocation3 + $0xb4] sm:$0x1] %v401
      %v403 = vld [vmem:[#allocation3 + $0xc0] sm:$0x1]
      %v404 = vsel %vm237, 0, %v403
      %405 = vst [vmem:[#allocation3 + $0xc0] sm:$0x1] %v404
      %v406 = vld [vmem:[#allocation3 + $0xcc] sm:$0x1]
      %v407 = vsel %vm237, 0, %v406
      %408 = vst [vmem:[#allocation3 + $0xcc] sm:$0x1] %v407
      %v409 = vld [vmem:[#allocation3 + $0x8] sm:$0x1]
      %v410 = vsel %vm293, 0, %v409
      %411 = vst [vmem:[#allocation3 + $0x8] sm:$0x1] %v410
      %v412 = vld [vmem:[#allocation3 + $0x14] sm:$0x1]
      %v413 = vsel %vm293, 0, %v412
      %414 = vst [vmem:[#allocation3 + $0x14] sm:$0x1] %v413
      %v415 = vld [vmem:[#allocation3 + $0x20] sm:$0x1]
      %v416 = vsel %vm293, 0, %v415
      %417 = vst [vmem:[#allocation3 + $0x20] sm:$0x1] %v416
      %v418 = vld [vmem:[#allocation3 + $0x2c] sm:$0x1]
      %v419 = vsel %vm293, 0, %v418
      %420 = vst [vmem:[#allocation3 + $0x2c] sm:$0x1] %v419
      %v421 = vld [vmem:[#allocation3 + $0x38] sm:$0x1]
      %v422 = vsel %vm293, 0, %v421
      %423 = vst [vmem:[#allocation3 + $0x38] sm:$0x1] %v422
      %v424 = vld [vmem:[#allocation3 + $0x44] sm:$0x1]
      %v425 = vsel %vm293, 0, %v424
      %426 = vst [vmem:[#allocation3 + $0x44] sm:$0x1] %v425
      %v427 = vld [vmem:[#allocation3 + $0x50] sm:$0x1]
      %v428 = vsel %vm293, 0, %v427
      %429 = vst [vmem:[#allocation3 + $0x50] sm:$0x1] %v428
      %v430 = vld [vmem:[#allocation3 + $0x5c] sm:$0x1]
      %v431 = vsel %vm293, 0, %v430
      %432 = vst [vmem:[#allocation3 + $0x5c] sm:$0x1] %v431
      %v433 = vld [vmem:[#allocation3 + $0x68] sm:$0x1]
      %v434 = vsel %vm293, 0, %v433
      %435 = vst [vmem:[#allocation3 + $0x68] sm:$0x1] %v434
      %v436 = vld [vmem:[#allocation3 + $0x74] sm:$0x1]
      %v437 = vsel %vm293, 0, %v436
      %438 = vst [vmem:[#allocation3 + $0x74] sm:$0x1] %v437
      %v439 = vld [vmem:[#allocation3 + $0x80] sm:$0x1]
      %v440 = vsel %vm293, 0, %v439
      %441 = vst [vmem:[#allocation3 + $0x80] sm:$0x1] %v440
      %v442 = vld [vmem:[#allocation3 + $0x8c] sm:$0x1]
      %v443 = vsel %vm293, 0, %v442
      %444 = vst [vmem:[#allocation3 + $0x8c] sm:$0x1] %v443
      %v445 = vld [vmem:[#allocation3 + $0x98] sm:$0x1]
      %v446 = vsel %vm293, 0, %v445
      %447 = vst [vmem:[#allocation3 + $0x98] sm:$0x1] %v446
      %v448 = vld [vmem:[#allocation3 + $0xa4] sm:$0x1]
      %v449 = vsel %vm293, 0, %v448
      %450 = vst [vmem:[#allocation3 + $0xa4] sm:$0x1] %v449
      %v451 = vld [vmem:[#allocation3 + $0xb0] sm:$0x1]
      %v452 = vsel %vm293, 0, %v451
      %453 = vst [vmem:[#allocation3 + $0xb0] sm:$0x1] %v452
      %v454 = vld [vmem:[#allocation3 + $0xbc] sm:$0x1]
      %v455 = vsel %vm293, 0, %v454
      %456 = vst [vmem:[#allocation3 + $0xbc] sm:$0x1] %v455
      %v457 = vld [vmem:[#allocation3 + $0xc8] sm:$0x1]
      %v458 = vsel %vm293, 0, %v457
      %459 = vst [vmem:[#allocation3 + $0xc8] sm:$0x1] %v458
      %v460 = vld [vmem:[#allocation3 + $0xd4] sm:$0x1]
      %v461 = vsel %vm293, 0, %v460
      %462 = vst [vmem:[#allocation3 + $0xd4] sm:$0x1] %v461
      %v463 = vld [vmem:[%s219] sm:$0xf]
      %v464 = vld [vmem:[%s219 + $0x4] sm:$0xf]
      %v465 = vld [vmem:[%s219 + $0x8] sm:$0xf]
      %v466 = vld [vmem:[%s219 + $0xc] sm:$0xf]
      %v467 = vld [vmem:[%s219 + $0x10] sm:$0xf]
      %v468 = vld [vmem:[%s219 + $0x14] sm:$0xf]
      %v469 = vld [vmem:[%s219 + $0x18] sm:$0xf]
      %v470 = vld [vmem:[%s219 + $0x1c] sm:$0xf]
      %v471 = vld [vmem:[%s219 + $0x20] sm:$0xf]
      %v472 = vld [vmem:[%s219 + $0x24] sm:$0xf]
      %v473 = vld [vmem:[%s219 + $0x28] sm:$0xf]
      %v474 = vld [vmem:[%s219 + $0x2c] sm:$0xf]
      %v475 = vld [vmem:[%s219 + $0x30] sm:$0xf]
      %v476 = vld [vmem:[%s219 + $0x34] sm:$0xf]
      %v477 = vld [vmem:[%s219 + $0x38] sm:$0xf]
      %v478 = vld [vmem:[%s219 + $0x3c] sm:$0xf]
      %v479 = vld [vmem:[%s219 + $0x40] sm:$0xf]
      %v480 = vld [vmem:[%s219 + $0x44] sm:$0xf]
      %v481 = vld [vmem:[%s219 + $0x48] sm:$0xf]
      %v482 = vld [vmem:[%s219 + $0x4c] sm:$0xf]
      %v483 = vld [vmem:[%s219 + $0x50] sm:$0xf]
      %v484 = vld [vmem:[%s219 + $0x54] sm:$0xf]
      %v485 = vld [vmem:[%s219 + $0x58] sm:$0xf]
      %v486 = vld [vmem:[%s219 + $0x5c] sm:$0xf]
      %v487 = vld [vmem:[%s219 + $0x60] sm:$0xf]
      %v488 = vld [vmem:[%s219 + $0x64] sm:$0xf]
      %v489 = vld [vmem:[%s219 + $0x68] sm:$0xf]
      %v490 = vld [vmem:[%s219 + $0x6c] sm:$0xf]
      %v491 = vld [vmem:[%s219 + $0x70] sm:$0xf]
      %v492 = vld [vmem:[%s219 + $0x74] sm:$0xf]
      %v493 = vld [vmem:[%s219 + $0x78] sm:$0xf]
      %v494 = vld [vmem:[%s219 + $0x7c] sm:$0xf]
      %vm495 = vsmask.f32 4368
      %vm496 = vmor %vm236, %vm495
      %v498 = vshrl.u32 %v463, 16
      %v500 = vrot.slane %v498, 7
      %v501 = vshll.u32 %v463, 16
      %v503 = vor.u32 %v500, %v501
      %v504 = vrot.slane %v500, 4
      %v506 = vshrl.u32 %v464, 16
      %v508 = vrot.slane %v506, 7
      %v509 = vshll.u32 %v464, 16
      %v511 = vor.u32 %v508, %v509
      %v512 = vsel %vm496, %v504, %v511
      %v513 = vrot.slane %v508, 4
      %v515 = vshrl.u32 %v465, 16
      %v517 = vrot.slane %v515, 7
      %v518 = vshll.u32 %v465, 16
      %v520 = vor.u32 %v517, %v518
      %v521 = vrot.slane %v517, 4
      %v523 = vshrl.u32 %v466, 16
      %v525 = vrot.slane %v523, 7
      %v526 = vshll.u32 %v466, 16
      %v528 = vor.u32 %v525, %v526
      %v529 = vsel %vm496, %v521, %v528
      %v530 = vrot.slane %v525, 4
      %v532 = vshrl.u32 %v467, 16
      %v534 = vrot.slane %v532, 7
      %v535 = vshll.u32 %v467, 16
      %v537 = vor.u32 %v534, %v535
      %v538 = vrot.slane %v534, 4
      %v540 = vshrl.u32 %v468, 16
      %v542 = vrot.slane %v540, 7
      %v543 = vshll.u32 %v468, 16
      %v545 = vor.u32 %v542, %v543
      %v546 = vsel %vm496, %v538, %v545
      %v547 = vrot.slane %v542, 4
      %v549 = vshrl.u32 %v469, 16
      %v551 = vrot.slane %v549, 7
      %v552 = vshll.u32 %v469, 16
      %v554 = vor.u32 %v551, %v552
      %v555 = vrot.slane %v551, 4
      %v557 = vshrl.u32 %v470, 16
      %v559 = vrot.slane %v557, 7
      %v560 = vshll.u32 %v470, 16
      %v562 = vor.u32 %v559, %v560
      %v563 = vsel %vm496, %v555, %v562
      %v564 = vrot.slane %v559, 4
      %v566 = vshrl.u32 %v471, 16
      %v568 = vrot.slane %v566, 7
      %v569 = vshll.u32 %v471, 16
      %v571 = vor.u32 %v568, %v569
      %v572 = vrot.slane %v568, 4
      %v574 = vshrl.u32 %v472, 16
      %v576 = vrot.slane %v574, 7
      %v577 = vshll.u32 %v472, 16
      %v579 = vor.u32 %v576, %v577
      %v580 = vsel %vm496, %v572, %v579
      %v581 = vrot.slane %v576, 4
      %v583 = vshrl.u32 %v473, 16
      %v585 = vrot.slane %v583, 7
      %v586 = vshll.u32 %v473, 16
      %v588 = vor.u32 %v585, %v586
      %v589 = vrot.slane %v585, 4
      %v591 = vshrl.u32 %v474, 16
      %v593 = vrot.slane %v591, 7
      %v594 = vshll.u32 %v474, 16
      %v596 = vor.u32 %v593, %v594
      %v597 = vsel %vm496, %v589, %v596
      %v598 = vrot.slane %v593, 4
      %v600 = vshrl.u32 %v475, 16
      %v602 = vrot.slane %v600, 7
      %v603 = vshll.u32 %v475, 16
      %v605 = vor.u32 %v602, %v603
      %v606 = vrot.slane %v602, 4
      %v608 = vshrl.u32 %v476, 16
      %v610 = vrot.slane %v608, 7
      %v611 = vshll.u32 %v476, 16
      %v613 = vor.u32 %v610, %v611
      %v614 = vsel %vm496, %v606, %v613
      %v615 = vrot.slane %v610, 4
      %v617 = vshrl.u32 %v477, 16
      %v619 = vrot.slane %v617, 7
      %v620 = vshll.u32 %v477, 16
      %v622 = vor.u32 %v619, %v620
      %v623 = vrot.slane %v619, 4
      %v625 = vshrl.u32 %v478, 16
      %v627 = vrot.slane %v625, 7
      %v628 = vshll.u32 %v478, 16
      %v630 = vor.u32 %v627, %v628
      %v631 = vsel %vm496, %v623, %v630
      %v632 = vrot.slane %v627, 4
      %v634 = vshrl.u32 %v479, 16
      %v636 = vrot.slane %v634, 7
      %v637 = vshll.u32 %v479, 16
      %v639 = vor.u32 %v636, %v637
      %v640 = vrot.slane %v636, 4
      %v642 = vshrl.u32 %v480, 16
      %v644 = vrot.slane %v642, 7
      %v645 = vshll.u32 %v480, 16
      %v647 = vor.u32 %v644, %v645
      %v648 = vsel %vm496, %v640, %v647
      %v649 = vrot.slane %v644, 4
      %v651 = vshrl.u32 %v481, 16
      %v653 = vrot.slane %v651, 7
      %v654 = vshll.u32 %v481, 16
      %v656 = vor.u32 %v653, %v654
      %v657 = vrot.slane %v653, 4
      %v659 = vshrl.u32 %v482, 16
      %v661 = vrot.slane %v659, 7
      %v662 = vshll.u32 %v482, 16
      %v664 = vor.u32 %v661, %v662
      %v665 = vsel %vm496, %v657, %v664
      %v666 = vrot.slane %v661, 4
      %v668 = vshrl.u32 %v483, 16
      %v670 = vrot.slane %v668, 7
      %v671 = vshll.u32 %v483, 16
      %v673 = vor.u32 %v670, %v671
      %v674 = vrot.slane %v670, 4
      %v676 = vshrl.u32 %v484, 16
      %v678 = vrot.slane %v676, 7
      %v679 = vshll.u32 %v484, 16
      %v681 = vor.u32 %v678, %v679
      %v682 = vsel %vm496, %v674, %v681
      %v683 = vrot.slane %v678, 4
      %v685 = vshrl.u32 %v485, 16
      %v687 = vrot.slane %v685, 7
      %v688 = vshll.u32 %v485, 16
      %v690 = vor.u32 %v687, %v688
      %v691 = vrot.slane %v687, 4
      %v693 = vshrl.u32 %v486, 16
      %v695 = vrot.slane %v693, 7
      %v696 = vshll.u32 %v486, 16
      %v698 = vor.u32 %v695, %v696
      %v699 = vsel %vm496, %v691, %v698
      %v700 = vrot.slane %v695, 4
      %v702 = vshrl.u32 %v487, 16
      %v704 = vrot.slane %v702, 7
      %v705 = vshll.u32 %v487, 16
      %v707 = vor.u32 %v704, %v705
      %v708 = vrot.slane %v704, 4
      %v710 = vshrl.u32 %v488, 16
      %v712 = vrot.slane %v710, 7
      %v713 = vshll.u32 %v488, 16
      %v715 = vor.u32 %v712, %v713
      %v716 = vsel %vm496, %v708, %v715
      %v717 = vrot.slane %v712, 4
      %v719 = vshrl.u32 %v489, 16
      %v721 = vrot.slane %v719, 7
      %v722 = vshll.u32 %v489, 16
      %v724 = vor.u32 %v721, %v722
      %v725 = vrot.slane %v721, 4
      %v727 = vshrl.u32 %v490, 16
      %v729 = vrot.slane %v727, 7
      %v730 = vshll.u32 %v490, 16
      %v732 = vor.u32 %v729, %v730
      %v733 = vsel %vm496, %v725, %v732
      %v734 = vrot.slane %v729, 4
      %v736 = vshrl.u32 %v491, 16
      %v738 = vrot.slane %v736, 7
      %v739 = vshll.u32 %v491, 16
      %v741 = vor.u32 %v738, %v739
      %v742 = vrot.slane %v738, 4
      %v744 = vshrl.u32 %v492, 16
      %v746 = vrot.slane %v744, 7
      %v747 = vshll.u32 %v492, 16
      %v749 = vor.u32 %v746, %v747
      %v750 = vsel %vm496, %v742, %v749
      %v751 = vrot.slane %v746, 4
      %v753 = vshrl.u32 %v493, 16
      %v755 = vrot.slane %v753, 7
      %v756 = vshll.u32 %v493, 16
      %v758 = vor.u32 %v755, %v756
      %v759 = vrot.slane %v755, 4
      %v761 = vshrl.u32 %v494, 16
      %v763 = vrot.slane %v761, 7
      %v764 = vshll.u32 %v494, 16
      %v766 = vor.u32 %v763, %v764
      %v767 = vsel %vm496, %v759, %v766
      %v768 = vrot.slane %v763, 4
      %s817 = scalar_lea.vmem [#allocation2], 12
      %vm818 = vcmask 27648
      %vm819 = vmand %vm818, %vm292
      %v820 = vld [vmem:[%s817] sm:$0xf]
      %v821 = vsel %vm819, %v503, %v820
      %822 = vst [vmem:[%s817] sm:$0xf] %v821
      %823 = vst.msk [vmem:[%s817 + $0x4] sm:$0xf] %vm226, %v512
      %v824 = vld [vmem:[%s817 + $0x8] sm:$0x1]
      %v825 = vsel %vm237, %v513, %v824
      %826 = vst [vmem:[%s817 + $0x8] sm:$0x1] %v825
      %v827 = vld [vmem:[%s817 + $0xc] sm:$0xf]
      %v828 = vsel %vm819, %v520, %v827
      %829 = vst [vmem:[%s817 + $0xc] sm:$0xf] %v828
      %830 = vst.msk [vmem:[%s817 + $0x10] sm:$0xf] %vm226, %v529
      %v831 = vld [vmem:[%s817 + $0x14] sm:$0x1]
      %v832 = vsel %vm237, %v530, %v831
      %833 = vst [vmem:[%s817 + $0x14] sm:$0x1] %v832
      %v834 = vld [vmem:[%s817 + $0x18] sm:$0xf]
      %v835 = vsel %vm819, %v537, %v834
      %836 = vst [vmem:[%s817 + $0x18] sm:$0xf] %v835
      %837 = vst.msk [vmem:[%s817 + $0x1c] sm:$0xf] %vm226, %v546
      %v838 = vld [vmem:[%s817 + $0x20] sm:$0x1]
      %v839 = vsel %vm237, %v547, %v838
      %840 = vst [vmem:[%s817 + $0x20] sm:$0x1] %v839
      %v841 = vld [vmem:[%s817 + $0x24] sm:$0xf]
      %v842 = vsel %vm819, %v554, %v841
      %843 = vst [vmem:[%s817 + $0x24] sm:$0xf] %v842
      %844 = vst.msk [vmem:[%s817 + $0x28] sm:$0xf] %vm226, %v563
      %v845 = vld [vmem:[%s817 + $0x2c] sm:$0x1]
      %v846 = vsel %vm237, %v564, %v845
      %847 = vst [vmem:[%s817 + $0x2c] sm:$0x1] %v846
      %v848 = vld [vmem:[%s817 + $0x30] sm:$0xf]
      %v849 = vsel %vm819, %v571, %v848
      %850 = vst [vmem:[%s817 + $0x30] sm:$0xf] %v849
      %851 = vst.msk [vmem:[%s817 + $0x34] sm:$0xf] %vm226, %v580
      %v852 = vld [vmem:[%s817 + $0x38] sm:$0x1]
      %v853 = vsel %vm237, %v581, %v852
      %854 = vst [vmem:[%s817 + $0x38] sm:$0x1] %v853
      %v855 = vld [vmem:[%s817 + $0x3c] sm:$0xf]
      %v856 = vsel %vm819, %v588, %v855
      %857 = vst [vmem:[%s817 + $0x3c] sm:$0xf] %v856
      %858 = vst.msk [vmem:[%s817 + $0x40] sm:$0xf] %vm226, %v597
      %v859 = vld [vmem:[%s817 + $0x44] sm:$0x1]
      %v860 = vsel %vm237, %v598, %v859
      %861 = vst [vmem:[%s817 + $0x44] sm:$0x1] %v860
      %v862 = vld [vmem:[%s817 + $0x48] sm:$0xf]
      %v863 = vsel %vm819, %v605, %v862
      %864 = vst [vmem:[%s817 + $0x48] sm:$0xf] %v863
      %865 = vst.msk [vmem:[%s817 + $0x4c] sm:$0xf] %vm226, %v614
      %v866 = vld [vmem:[%s817 + $0x50] sm:$0x1]
      %v867 = vsel %vm237, %v615, %v866
      %868 = vst [vmem:[%s817 + $0x50] sm:$0x1] %v867
      %v869 = vld [vmem:[%s817 + $0x54] sm:$0xf]
      %v870 = vsel %vm819, %v622, %v869
      %871 = vst [vmem:[%s817 + $0x54] sm:$0xf] %v870
      %872 = vst.msk [vmem:[%s817 + $0x58] sm:$0xf] %vm226, %v631
      %v873 = vld [vmem:[%s817 + $0x5c] sm:$0x1]
      %v874 = vsel %vm237, %v632, %v873
      %875 = vst [vmem:[%s817 + $0x5c] sm:$0x1] %v874
      %v876 = vld [vmem:[%s817 + $0x60] sm:$0xf]
      %v877 = vsel %vm819, %v639, %v876
      %878 = vst [vmem:[%s817 + $0x60] sm:$0xf] %v877
      %879 = vst.msk [vmem:[%s817 + $0x64] sm:$0xf] %vm226, %v648
      %v880 = vld [vmem:[%s817 + $0x68] sm:$0x1]
      %v881 = vsel %vm237, %v649, %v880
      %882 = vst [vmem:[%s817 + $0x68] sm:$0x1] %v881
      %v883 = vld [vmem:[%s817 + $0x6c] sm:$0xf]
      %v884 = vsel %vm819, %v656, %v883
      %885 = vst [vmem:[%s817 + $0x6c] sm:$0xf] %v884
      %886 = vst.msk [vmem:[%s817 + $0x70] sm:$0xf] %vm226, %v665
      %v887 = vld [vmem:[%s817 + $0x74] sm:$0x1]
      %v888 = vsel %vm237, %v666, %v887
      %889 = vst [vmem:[%s817 + $0x74] sm:$0x1] %v888
      %v890 = vld [vmem:[%s817 + $0x78] sm:$0xf]
      %v891 = vsel %vm819, %v673, %v890
      %892 = vst [vmem:[%s817 + $0x78] sm:$0xf] %v891
      %893 = vst.msk [vmem:[%s817 + $0x7c] sm:$0xf] %vm226, %v682
      %v894 = vld [vmem:[%s817 + $0x80] sm:$0x1]
      %v895 = vsel %vm237, %v683, %v894
      %896 = vst [vmem:[%s817 + $0x80] sm:$0x1] %v895
      %v897 = vld [vmem:[%s817 + $0x84] sm:$0xf]
      %v898 = vsel %vm819, %v690, %v897
      %899 = vst [vmem:[%s817 + $0x84] sm:$0xf] %v898
      %900 = vst.msk [vmem:[%s817 + $0x88] sm:$0xf] %vm226, %v699
      %v901 = vld [vmem:[%s817 + $0x8c] sm:$0x1]
      %v902 = vsel %vm237, %v700, %v901
      %903 = vst [vmem:[%s817 + $0x8c] sm:$0x1] %v902
      %v904 = vld [vmem:[%s817 + $0x90] sm:$0xf]
      %v905 = vsel %vm819, %v707, %v904
      %906 = vst [vmem:[%s817 + $0x90] sm:$0xf] %v905
      %907 = vst.msk [vmem:[%s817 + $0x94] sm:$0xf] %vm226, %v716
      %v908 = vld [vmem:[%s817 + $0x98] sm:$0x1]
      %v909 = vsel %vm237, %v717, %v908
      %910 = vst [vmem:[%s817 + $0x98] sm:$0x1] %v909
      %v911 = vld [vmem:[%s817 + $0x9c] sm:$0xf]
      %v912 = vsel %vm819, %v724, %v911
      %913 = vst [vmem:[%s817 + $0x9c] sm:$0xf] %v912
      %914 = vst.msk [vmem:[%s817 + $0xa0] sm:$0xf] %vm226, %v733
      %v915 = vld [vmem:[%s817 + $0xa4] sm:$0x1]
      %v916 = vsel %vm237, %v734, %v915
      %917 = vst [vmem:[%s817 + $0xa4] sm:$0x1] %v916
      %v918 = vld [vmem:[%s817 + $0xa8] sm:$0xf]
      %v919 = vsel %vm819, %v741, %v918
      %920 = vst [vmem:[%s817 + $0xa8] sm:$0xf] %v919
      %921 = vst.msk [vmem:[%s817 + $0xac] sm:$0xf] %vm226, %v750
      %v922 = vld [vmem:[%s817 + $0xb0] sm:$0x1]
      %v923 = vsel %vm237, %v751, %v922
      %924 = vst [vmem:[%s817 + $0xb0] sm:$0x1] %v923
      %v925 = vld [vmem:[%s817 + $0xb4] sm:$0xf]
      %v926 = vsel %vm819, %v758, %v925
      %927 = vst [vmem:[%s817 + $0xb4] sm:$0xf] %v926
      %928 = vst.msk [vmem:[%s817 + $0xb8] sm:$0xf] %vm226, %v767
      %v929 = vld [vmem:[%s817 + $0xbc] sm:$0x1]
      %v930 = vsel %vm237, %v768, %v929
      %931 = vst [vmem:[%s817 + $0xbc] sm:$0x1] %v930
      %v932 = vld [vmem:[#allocation2] sm:$0xf]
      %v933 = vld [vmem:[#allocation2 + $0x4] sm:$0xf]
      %v934 = vld [vmem:[#allocation2 + $0xc] sm:$0xf]
      %v935 = vld [vmem:[#allocation2 + $0x10] sm:$0xf]
      %v936 = vld [vmem:[#allocation2 + $0x18] sm:$0xf]
      %v937 = vld [vmem:[#allocation2 + $0x1c] sm:$0xf]
      %v938 = vld [vmem:[#allocation2 + $0x24] sm:$0xf]
      %v939 = vld [vmem:[#allocation2 + $0x28] sm:$0xf]
      %v940 = vld [vmem:[#allocation2 + $0x30] sm:$0xf]
      %v941 = vld [vmem:[#allocation2 + $0x34] sm:$0xf]
      %v942 = vld [vmem:[#allocation2 + $0x3c] sm:$0xf]
      %v943 = vld [vmem:[#allocation2 + $0x40] sm:$0xf]
      %v944 = vld [vmem:[#allocation2 + $0x48] sm:$0xf]
      %v945 = vld [vmem:[#allocation2 + $0x4c] sm:$0xf]
      %v946 = vld [vmem:[#allocation2 + $0x54] sm:$0xf]
      %v947 = vld [vmem:[#allocation2 + $0x58] sm:$0xf]
      %v948 = vld [vmem:[#allocation2 + $0x60] sm:$0xf]
      %v949 = vld [vmem:[#allocation2 + $0x64] sm:$0xf]
      %v950 = vld [vmem:[#allocation2 + $0x6c] sm:$0xf]
      %v951 = vld [vmem:[#allocation2 + $0x70] sm:$0xf]
      %v952 = vld [vmem:[#allocation2 + $0x78] sm:$0xf]
      %v953 = vld [vmem:[#allocation2 + $0x7c] sm:$0xf]
      %v954 = vld [vmem:[#allocation2 + $0x84] sm:$0xf]
      %v955 = vld [vmem:[#allocation2 + $0x88] sm:$0xf]
      %v956 = vld [vmem:[#allocation2 + $0x90] sm:$0xf]
      %v957 = vld [vmem:[#allocation2 + $0x94] sm:$0xf]
      %v958 = vld [vmem:[#allocation2 + $0x9c] sm:$0xf]
      %v959 = vld [vmem:[#allocation2 + $0xa0] sm:$0xf]
      %v960 = vld [vmem:[#allocation2 + $0xa8] sm:$0xf]
      %v961 = vld [vmem:[#allocation2 + $0xac] sm:$0xf]
      %v962 = vld [vmem:[#allocation2 + $0xb4] sm:$0xf]
      %v963 = vld [vmem:[#allocation2 + $0xb8] sm:$0xf]
      %v964 = vld [vmem:[%s1] sm:$0x3]
      %v965 = vld [vmem:[#allocation2 + $0x8] sm:$0x1]
      %v966 = vld [vmem:[#allocation2 + $0x14] sm:$0x1]
      %v967 = vld [vmem:[#allocation2 + $0x20] sm:$0x1]
      %v968 = vld [vmem:[#allocation2 + $0x2c] sm:$0x1]
      %v969 = vld [vmem:[#allocation2 + $0x38] sm:$0x1]
      %v970 = vld [vmem:[#allocation2 + $0x44] sm:$0x1]
      %v971 = vld [vmem:[#allocation2 + $0x50] sm:$0x1]
      %v972 = vld [vmem:[#allocation2 + $0x5c] sm:$0x1]
      %v973 = vld [vmem:[#allocation2 + $0x68] sm:$0x1]
      %v974 = vld [vmem:[#allocation2 + $0x74] sm:$0x1]
      %v975 = vld [vmem:[#allocation2 + $0x80] sm:$0x1]
      %v976 = vld [vmem:[#allocation2 + $0x8c] sm:$0x1]
      %v977 = vld [vmem:[#allocation2 + $0x98] sm:$0x1]
      %v978 = vld [vmem:[#allocation2 + $0xa4] sm:$0x1]
      %v979 = vld [vmem:[#allocation2 + $0xb0] sm:$0x1]
      %v980 = vld [vmem:[#allocation2 + $0xbc] sm:$0x1]
      %s981 = scalar_lea.vmem %s1, 2
      %v982 = vld [vmem:[%s981] sm:$0x3]
      %vm983 = vsmask.f32 3328
      %vm984 = vsmask.f32 7440
      %vm985 = vmor %vm983, %vm984
      %v987 = vshrl.u32 %v932, 16
      %v989 = vrot.slane %v987, 4
      %v990 = vshll.u32 %v932, 16
      %v992 = vrot.slane %v990, 5
      %v993 = vor.u32 %v989, %v992
      %v994 = vrot.slane %v993, 4
      %v996 = vshll.u32 %v933, 16
      %v998 = vrot.slane %v996, 5
      %v999 = vsel %vm985, %v994, %v998
      %v1000 = vshrl.u32 %v933, 16
      %v1002 = vrot.slane %v1000, 4
      %v1003 = vor.u32 %v1002, %v998
      %v1004 = vrot.slane %v1003, 4
      %v1006 = vshll.u32 %v965, 16
      %v1008 = vrot.slane %v1006, 5
      %v1009 = vsel %vm985, %v1004, %v1008
      %v1011 = vshrl.u32 %v934, 16
      %v1013 = vrot.slane %v1011, 4
      %v1014 = vshll.u32 %v934, 16
      %v1016 = vrot.slane %v1014, 5
      %v1017 = vor.u32 %v1013, %v1016
      %v1018 = vrot.slane %v1017, 4
      %v1020 = vshll.u32 %v935, 16
      %v1022 = vrot.slane %v1020, 5
      %v1023 = vsel %vm985, %v1018, %v1022
      %v1024 = vshrl.u32 %v935, 16
      %v1026 = vrot.slane %v1024, 4
      %v1027 = vor.u32 %v1026, %v1022
      %v1028 = vrot.slane %v1027, 4
      %v1030 = vshll.u32 %v966, 16
      %v1032 = vrot.slane %v1030, 5
      %v1033 = vsel %vm985, %v1028, %v1032
      %v1035 = vshrl.u32 %v936, 16
      %v1037 = vrot.slane %v1035, 4
      %v1038 = vshll.u32 %v936, 16
      %v1040 = vrot.slane %v1038, 5
      %v1041 = vor.u32 %v1037, %v1040
      %v1042 = vrot.slane %v1041, 4
      %v1044 = vshll.u32 %v937, 16
      %v1046 = vrot.slane %v1044, 5
      %v1047 = vsel %vm985, %v1042, %v1046
      %v1048 = vshrl.u32 %v937, 16
      %v1050 = vrot.slane %v1048, 4
      %v1051 = vor.u32 %v1050, %v1046
      %v1052 = vrot.slane %v1051, 4
      %v1054 = vshll.u32 %v967, 16
      %v1056 = vrot.slane %v1054, 5
      %v1057 = vsel %vm985, %v1052, %v1056
      %v1059 = vshrl.u32 %v938, 16
      %v1061 = vrot.slane %v1059, 4
      %v1062 = vshll.u32 %v938, 16
      %v1064 = vrot.slane %v1062, 5
      %v1065 = vor.u32 %v1061, %v1064
      %v1066 = vrot.slane %v1065, 4
      %v1068 = vshll.u32 %v939, 16
      %v1070 = vrot.slane %v1068, 5
      %v1071 = vsel %vm985, %v1066, %v1070
      %v1072 = vshrl.u32 %v939, 16
      %v1074 = vrot.slane %v1072, 4
      %v1075 = vor.u32 %v1074, %v1070
      %v1076 = vrot.slane %v1075, 4
      %v1078 = vshll.u32 %v968, 16
      %v1080 = vrot.slane %v1078, 5
      %v1081 = vsel %vm985, %v1076, %v1080
      %v1083 = vshrl.u32 %v940, 16
      %v1085 = vrot.slane %v1083, 4
      %v1086 = vshll.u32 %v940, 16
      %v1088 = vrot.slane %v1086, 5
      %v1089 = vor.u32 %v1085, %v1088
      %v1090 = vrot.slane %v1089, 4
      %v1092 = vshll.u32 %v941, 16
      %v1094 = vrot.slane %v1092, 5
      %v1095 = vsel %vm985, %v1090, %v1094
      %v1096 = vshrl.u32 %v941, 16
      %v1098 = vrot.slane %v1096, 4
      %v1099 = vor.u32 %v1098, %v1094
      %v1100 = vrot.slane %v1099, 4
      %v1102 = vshll.u32 %v969, 16
      %v1104 = vrot.slane %v1102, 5
      %v1105 = vsel %vm985, %v1100, %v1104
      %v1107 = vshrl.u32 %v942, 16
      %v1109 = vrot.slane %v1107, 4
      %v1110 = vshll.u32 %v942, 16
      %v1112 = vrot.slane %v1110, 5
      %v1113 = vor.u32 %v1109, %v1112
      %v1114 = vrot.slane %v1113, 4
      %v1116 = vshll.u32 %v943, 16
      %v1118 = vrot.slane %v1116, 5
      %v1119 = vsel %vm985, %v1114, %v1118
      %v1120 = vshrl.u32 %v943, 16
      %v1122 = vrot.slane %v1120, 4
      %v1123 = vor.u32 %v1122, %v1118
      %v1124 = vrot.slane %v1123, 4
      %v1126 = vshll.u32 %v970, 16
      %v1128 = vrot.slane %v1126, 5
      %v1129 = vsel %vm985, %v1124, %v1128
      %v1131 = vshrl.u32 %v944, 16
      %v1133 = vrot.slane %v1131, 4
      %v1134 = vshll.u32 %v944, 16
      %v1136 = vrot.slane %v1134, 5
      %v1137 = vor.u32 %v1133, %v1136
      %v1138 = vrot.slane %v1137, 4
      %v1140 = vshll.u32 %v945, 16
      %v1142 = vrot.slane %v1140, 5
      %v1143 = vsel %vm985, %v1138, %v1142
      %v1144 = vshrl.u32 %v945, 16
      %v1146 = vrot.slane %v1144, 4
      %v1147 = vor.u32 %v1146, %v1142
      %v1148 = vrot.slane %v1147, 4
      %v1150 = vshll.u32 %v971, 16
      %v1152 = vrot.slane %v1150, 5
      %v1153 = vsel %vm985, %v1148, %v1152
      %v1155 = vshrl.u32 %v946, 16
      %v1157 = vrot.slane %v1155, 4
      %v1158 = vshll.u32 %v946, 16
      %v1160 = vrot.slane %v1158, 5
      %v1161 = vor.u32 %v1157, %v1160
      %v1162 = vrot.slane %v1161, 4
      %v1164 = vshll.u32 %v947, 16
      %v1166 = vrot.slane %v1164, 5
      %v1167 = vsel %vm985, %v1162, %v1166
      %v1168 = vshrl.u32 %v947, 16
      %v1170 = vrot.slane %v1168, 4
      %v1171 = vor.u32 %v1170, %v1166
      %v1172 = vrot.slane %v1171, 4
      %v1174 = vshll.u32 %v972, 16
      %v1176 = vrot.slane %v1174, 5
      %v1177 = vsel %vm985, %v1172, %v1176
      %v1179 = vshrl.u32 %v948, 16
      %v1181 = vrot.slane %v1179, 4
      %v1182 = vshll.u32 %v948, 16
      %v1184 = vrot.slane %v1182, 5
      %v1185 = vor.u32 %v1181, %v1184
      %v1186 = vrot.slane %v1185, 4
      %v1188 = vshll.u32 %v949, 16
      %v1190 = vrot.slane %v1188, 5
      %v1191 = vsel %vm985, %v1186, %v1190
      %v1192 = vshrl.u32 %v949, 16
      %v1194 = vrot.slane %v1192, 4
      %v1195 = vor.u32 %v1194, %v1190
      %v1196 = vrot.slane %v1195, 4
      %v1198 = vshll.u32 %v973, 16
      %v1200 = vrot.slane %v1198, 5
      %v1201 = vsel %vm985, %v1196, %v1200
      %v1203 = vshrl.u32 %v950, 16
      %v1205 = vrot.slane %v1203, 4
      %v1206 = vshll.u32 %v950, 16
      %v1208 = vrot.slane %v1206, 5
      %v1209 = vor.u32 %v1205, %v1208
      %v1210 = vrot.slane %v1209, 4
      %v1212 = vshll.u32 %v951, 16
      %v1214 = vrot.slane %v1212, 5
      %v1215 = vsel %vm985, %v1210, %v1214
      %v1216 = vshrl.u32 %v951, 16
      %v1218 = vrot.slane %v1216, 4
      %v1219 = vor.u32 %v1218, %v1214
      %v1220 = vrot.slane %v1219, 4
      %v1222 = vshll.u32 %v974, 16
      %v1224 = vrot.slane %v1222, 5
      %v1225 = vsel %vm985, %v1220, %v1224
      %v1227 = vshrl.u32 %v952, 16
      %v1229 = vrot.slane %v1227, 4
      %v1230 = vshll.u32 %v952, 16
      %v1232 = vrot.slane %v1230, 5
      %v1233 = vor.u32 %v1229, %v1232
      %v1234 = vrot.slane %v1233, 4
      %v1236 = vshll.u32 %v953, 16
      %v1238 = vrot.slane %v1236, 5
      %v1239 = vsel %vm985, %v1234, %v1238
      %v1240 = vshrl.u32 %v953, 16
      %v1242 = vrot.slane %v1240, 4
      %v1243 = vor.u32 %v1242, %v1238
      %v1244 = vrot.slane %v1243, 4
      %v1246 = vshll.u32 %v975, 16
      %v1248 = vrot.slane %v1246, 5
      %v1249 = vsel %vm985, %v1244, %v1248
      %v1251 = vshrl.u32 %v954, 16
      %v1253 = vrot.slane %v1251, 4
      %v1254 = vshll.u32 %v954, 16
      %v1256 = vrot.slane %v1254, 5
      %v1257 = vor.u32 %v1253, %v1256
      %v1258 = vrot.slane %v1257, 4
      %v1260 = vshll.u32 %v955, 16
      %v1262 = vrot.slane %v1260, 5
      %v1263 = vsel %vm985, %v1258, %v1262
      %v1264 = vshrl.u32 %v955, 16
      %v1266 = vrot.slane %v1264, 4
      %v1267 = vor.u32 %v1266, %v1262
      %v1268 = vrot.slane %v1267, 4
      %v1270 = vshll.u32 %v976, 16
      %v1272 = vrot.slane %v1270, 5
      %v1273 = vsel %vm985, %v1268, %v1272
      %v1275 = vshrl.u32 %v956, 16
      %v1277 = vrot.slane %v1275, 4
      %v1278 = vshll.u32 %v956, 16
      %v1280 = vrot.slane %v1278, 5
      %v1281 = vor.u32 %v1277, %v1280
      %v1282 = vrot.slane %v1281, 4
      %v1284 = vshll.u32 %v957, 16
      %v1286 = vrot.slane %v1284, 5
      %v1287 = vsel %vm985, %v1282, %v1286
      %v1288 = vshrl.u32 %v957, 16
      %v1290 = vrot.slane %v1288, 4
      %v1291 = vor.u32 %v1290, %v1286
      %v1292 = vrot.slane %v1291, 4
      %v1294 = vshll.u32 %v977, 16
      %v1296 = vrot.slane %v1294, 5
      %v1297 = vsel %vm985, %v1292, %v1296
      %v1299 = vshrl.u32 %v958, 16
      %v1301 = vrot.slane %v1299, 4
      %v1302 = vshll.u32 %v958, 16
      %v1304 = vrot.slane %v1302, 5
      %v1305 = vor.u32 %v1301, %v1304
      %v1306 = vrot.slane %v1305, 4
      %v1308 = vshll.u32 %v959, 16
      %v1310 = vrot.slane %v1308, 5
      %v1311 = vsel %vm985, %v1306, %v1310
      %v1312 = vshrl.u32 %v959, 16
      %v1314 = vrot.slane %v1312, 4
      %v1315 = vor.u32 %v1314, %v1310
      %v1316 = vrot.slane %v1315, 4
      %v1318 = vshll.u32 %v978, 16
      %v1320 = vrot.slane %v1318, 5
      %v1321 = vsel %vm985, %v1316, %v1320
      %v1323 = vshrl.u32 %v960, 16
      %v1325 = vrot.slane %v1323, 4
      %v1326 = vshll.u32 %v960, 16
      %v1328 = vrot.slane %v1326, 5
      %v1329 = vor.u32 %v1325, %v1328
      %v1330 = vrot.slane %v1329, 4
      %v1332 = vshll.u32 %v961, 16
      %v1334 = vrot.slane %v1332, 5
      %v1335 = vsel %vm985, %v1330, %v1334
      %v1336 = vshrl.u32 %v961, 16
      %v1338 = vrot.slane %v1336, 4
      %v1339 = vor.u32 %v1338, %v1334
      %v1340 = vrot.slane %v1339, 4
      %v1342 = vshll.u32 %v979, 16
      %v1344 = vrot.slane %v1342, 5
      %v1345 = vsel %vm985, %v1340, %v1344
      %v1347 = vshrl.u32 %v962, 16
      %v1349 = vrot.slane %v1347, 4
      %v1350 = vshll.u32 %v962, 16
      %v1352 = vrot.slane %v1350, 5
      %v1353 = vor.u32 %v1349, %v1352
      %v1354 = vrot.slane %v1353, 4
      %v1356 = vshll.u32 %v963, 16
      %v1358 = vrot.slane %v1356, 5
      %v1359 = vsel %vm985, %v1354, %v1358
      %v1360 = vshrl.u32 %v963, 16
      %v1362 = vrot.slane %v1360, 4
      %v1363 = vor.u32 %v1362, %v1358
      %v1364 = vrot.slane %v1363, 4
      %v1366 = vshll.u32 %v980, 16
      %v1368 = vrot.slane %v1366, 5
      %v1369 = vsel %vm985, %v1364, %v1368
      %v1370 = vunpack.c.l.b16 %v999
      %v1371 = vunpack.c.l.b16 %v1009
      %v1372 = vunpack.c.l.b16 %v1023
      %v1373 = vunpack.c.l.b16 %v1033
      %v1374 = vunpack.c.l.b16 %v1047
      %v1375 = vunpack.c.l.b16 %v1057
      %v1376 = vunpack.c.l.b16 %v1071
      %v1377 = vunpack.c.l.b16 %v1081
      %v1378 = vunpack.c.l.b16 %v1095
      %v1379 = vunpack.c.l.b16 %v1105
      %v1380 = vunpack.c.l.b16 %v1119
      %v1381 = vunpack.c.l.b16 %v1129
      %v1382 = vunpack.c.l.b16 %v1143
      %v1383 = vunpack.c.l.b16 %v1153
      %v1384 = vunpack.c.l.b16 %v1167
      %v1385 = vunpack.c.l.b16 %v1177
      %v1386 = vunpack.c.l.b16 %v1191
      %v1387 = vunpack.c.l.b16 %v1201
      %v1388 = vunpack.c.l.b16 %v1215
      %v1389 = vunpack.c.l.b16 %v1225
      %v1390 = vunpack.c.l.b16 %v1239
      %v1391 = vunpack.c.l.b16 %v1249
      %v1392 = vunpack.c.l.b16 %v1263
      %v1393 = vunpack.c.l.b16 %v1273
      %v1394 = vunpack.c.l.b16 %v1287
      %v1395 = vunpack.c.l.b16 %v1297
      %v1396 = vunpack.c.l.b16 %v1311
      %v1397 = vunpack.c.l.b16 %v1321
      %v1398 = vunpack.c.l.b16 %v1335
      %v1399 = vunpack.c.l.b16 %v1345
      %v1400 = vunpack.c.l.b16 %v1359
      %v1401 = vunpack.c.l.b16 %v1369
      %v1402 = vpack.c.b16 %v1371, %v1370
      %v1403 = vpack.c.b16 %v1373, %v1372
      %v1404 = vpack.c.b16 %v1375, %v1374
      %v1405 = vpack.c.b16 %v1377, %v1376
      %v1406 = vpack.c.b16 %v1379, %v1378
      %v1407 = vpack.c.b16 %v1381, %v1380
      %v1408 = vpack.c.b16 %v1383, %v1382
      %v1409 = vpack.c.b16 %v1385, %v1384
      %v1410 = vpack.c.b16 %v1387, %v1386
      %v1411 = vpack.c.b16 %v1389, %v1388
      %v1412 = vpack.c.b16 %v1391, %v1390
      %v1413 = vpack.c.b16 %v1393, %v1392
      %v1414 = vpack.c.b16 %v1395, %v1394
      %v1415 = vpack.c.b16 %v1397, %v1396
      %v1416 = vpack.c.b16 %v1399, %v1398
      %v1417 = vpack.c.b16 %v1401, %v1400
      %vm1418 = vcmask 31744
      %v1420 = vsel %vm1418, %v1402, 0
      %v1423 = vsel %vm1418, %v1403, 0
      %v1426 = vsel %vm1418, %v1404, 0
      %v1429 = vsel %vm1418, %v1405, 0
      %v1432 = vsel %vm1418, %v1406, 0
      %v1435 = vsel %vm1418, %v1407, 0
      %v1438 = vsel %vm1418, %v1408, 0
      %v1441 = vsel %vm1418, %v1409, 0
      %v1444 = vsel %vm1418, %v1410, 0
      %v1447 = vsel %vm1418, %v1411, 0
      %v1450 = vsel %vm1418, %v1412, 0
      %v1453 = vsel %vm1418, %v1413, 0
      %v1456 = vsel %vm1418, %v1414, 0
      %v1459 = vsel %vm1418, %v1415, 0
      %v1462 = vsel %vm1418, %v1416, 0
      %v1465 = vsel %vm1418, %v1417, 0
      %vm1467 = vcmask 1041408
      %v1469 = vsel %vm1467, %v982, 0
      %1471 = vmatprep.subr.bf16.mxu0 0
      %1472 = vmatpush1.bf16.msra.mxu0 %v1469
      %1473 = vmatprep.subr.bf16.mxu0 0
      %1474 = vmatpush1.bf16.msra.mxu0 0
      %1475 = vmatprep.subr.bf16.mxu0 0
      %1476 = vmatpush1.bf16.msra.mxu0 0
      %1477 = vmatprep.subr.bf16.mxu0 0
      %1478 = vmatpush1.bf16.msra.mxu0 0
      %1479 = vmatprep.subr.bf16.mxu0 0
      %1480 = vmatpush1.bf16.msra.mxu0 0
      %1481 = vmatprep.subr.bf16.mxu0 0
      %1482 = vmatpush1.bf16.msra.mxu0 0
      %1483 = vmatprep.subr.bf16.mxu0 0
      %1484 = vmatpush1.bf16.msra.mxu0 0
      %1485 = vmatprep.subr.bf16.mxu0 0
      %1486 = vmatpush1.bf16.msra.mxu0 0
      %1487 = vmatprep.subr.bf16.mxu0 0
      %1488 = vmatpush1.bf16.msra.mxu0 0
      %1489 = vmatprep.subr.bf16.mxu0 0
      %1490 = vmatpush1.bf16.msra.mxu0 0
      %1491 = vmatprep.subr.bf16.mxu0 0
      %1492 = vmatpush1.bf16.msra.mxu0 0
      %1493 = vmatprep.subr.bf16.mxu0 0
      %1494 = vmatpush1.bf16.msra.mxu0 0
      %1495 = vmatprep.subr.bf16.mxu0 0
      %1496 = vmatpush1.bf16.msra.mxu0 0
      %1497 = vmatprep.subr.bf16.mxu0 0
      %1498 = vmatpush1.bf16.msra.mxu0 0
      %1499 = vmatprep.subr.bf16.mxu0 0
      %1500 = vmatpush1.bf16.msra.mxu0 0
      %1501 = vmatprep.subr.bf16.mxu0 0
      %1502 = vmatpush1.bf16.msra.mxu0 0
      %1503 = vmatprep.mubr.bf16.mxu0 0
      %1504 = vmatmul.mubr.bf16.gmra.mrb[0].mxu0 %v1420
      %v1505 = vpop.f32.mrb[0].mxu0
      %v1506 = vadd.f32 0.0, %v1505
      %v1507 = vpop.f32.mrb[0].mxu0
      %v1508 = vpop.f32.mrb[0].mxu0
      %v1509 = vadd.f32 0.0, %v1508
      %v1510 = vpop.f32.mrb[0].mxu0
      %1511 = vmatprep.mubr.bf16.mxu0 0
      %1512 = vmatmul.mubr.bf16.gmra.mrb[0].mxu0 %v1423
      %v1513 = vpop.f32.mrb[0].mxu0
      %v1514 = vadd.f32 0.0, %v1513
      %v1515 = vpop.f32.mrb[0].mxu0
      %v1516 = vpop.f32.mrb[0].mxu0
      %v1517 = vadd.f32 0.0, %v1516
      %v1518 = vpop.f32.mrb[0].mxu0
      %1519 = vmatprep.mubr.bf16.mxu0 0
      %1520 = vmatmul.mubr.bf16.gmra.mrb[0].mxu0 %v1426
      %v1521 = vpop.f32.mrb[0].mxu0
      %v1522 = vadd.f32 0.0, %v1521
      %v1523 = vpop.f32.mrb[0].mxu0
      %v1524 = vpop.f32.mrb[0].mxu0
      %v1525 = vadd.f32 0.0, %v1524
      %v1526 = vpop.f32.mrb[0].mxu0
      %1527 = vmatprep.mubr.bf16.mxu0 0
      %1528 = vmatmul.mubr.bf16.gmra.mrb[0].mxu0 %v1429
      %v1529 = vpop.f32.mrb[0].mxu0
      %v1530 = vadd.f32 0.0, %v1529
      %v1531 = vpop.f32.mrb[0].mxu0
      %v1532 = vpop.f32.mrb[0].mxu0
      %v1533 = vadd.f32 0.0, %v1532
      %v1534 = vpop.f32.mrb[0].mxu0
      %1535 = vmatprep.mubr.bf16.mxu0 0
      %1536 = vmatmul.mubr.bf16.gmra.mrb[0].mxu0 %v1432
      %v1537 = vpop.f32.mrb[0].mxu0
      %v1538 = vadd.f32 0.0, %v1537
      %v1539 = vpop.f32.mrb[0].mxu0
      %v1540 = vpop.f32.mrb[0].mxu0
      %v1541 = vadd.f32 0.0, %v1540
      %v1542 = vpop.f32.mrb[0].mxu0
      %1543 = vmatprep.mubr.bf16.mxu0 0
      %1544 = vmatmul.mubr.bf16.gmra.mrb[0].mxu0 %v1435
      %v1545 = vpop.f32.mrb[0].mxu0
      %v1546 = vadd.f32 0.0, %v1545
      %v1547 = vpop.f32.mrb[0].mxu0
      %v1548 = vpop.f32.mrb[0].mxu0
      %v1549 = vadd.f32 0.0, %v1548
      %v1550 = vpop.f32.mrb[0].mxu0
      %1551 = vmatprep.mubr.bf16.mxu0 0
      %1552 = vmatmul.mubr.bf16.gmra.mrb[0].mxu0 %v1438
      %v1553 = vpop.f32.mrb[0].mxu0
      %v1554 = vadd.f32 0.0, %v1553
      %v1555 = vpop.f32.mrb[0].mxu0
      %v1556 = vpop.f32.mrb[0].mxu0
      %v1557 = vadd.f32 0.0, %v1556
      %v1558 = vpop.f32.mrb[0].mxu0
      %1559 = vmatprep.mubr.bf16.mxu0 0
      %1560 = vmatmul.mubr.bf16.gmra.mrb[0].mxu0 %v1441
      %v1561 = vpop.f32.mrb[0].mxu0
      %v1562 = vadd.f32 0.0, %v1561
      %v1563 = vpop.f32.mrb[0].mxu0
      %v1564 = vpop.f32.mrb[0].mxu0
      %v1565 = vadd.f32 0.0, %v1564
      %v1566 = vpop.f32.mrb[0].mxu0
      %1567 = vmatprep.mubr.bf16.mxu0 0
      %1568 = vmatmul.mubr.bf16.gmra.mrb[0].mxu0 %v1444
      %v1569 = vpop.f32.mrb[0].mxu0
      %v1570 = vadd.f32 0.0, %v1569
      %v1571 = vpop.f32.mrb[0].mxu0
      %v1572 = vpop.f32.mrb[0].mxu0
      %v1573 = vadd.f32 0.0, %v1572
      %v1574 = vpop.f32.mrb[0].mxu0
      %1575 = vmatprep.mubr.bf16.mxu0 0
      %1576 = vmatmul.mubr.bf16.gmra.mrb[0].mxu0 %v1447
      %v1577 = vpop.f32.mrb[0].mxu0
      %v1578 = vadd.f32 0.0, %v1577
      %v1579 = vpop.f32.mrb[0].mxu0
      %v1580 = vpop.f32.mrb[0].mxu0
      %v1581 = vadd.f32 0.0, %v1580
      %v1582 = vpop.f32.mrb[0].mxu0
      %1583 = vmatprep.mubr.bf16.mxu0 0
      %1584 = vmatmul.mubr.bf16.gmra.mrb[0].mxu0 %v1450
      %v1585 = vpop.f32.mrb[0].mxu0
      %v1586 = vadd.f32 0.0, %v1585
      %v1587 = vpop.f32.mrb[0].mxu0
      %v1588 = vpop.f32.mrb[0].mxu0
      %v1589 = vadd.f32 0.0, %v1588
      %v1590 = vpop.f32.mrb[0].mxu0
      %1591 = vmatprep.mubr.bf16.mxu0 0
      %1592 = vmatmul.mubr.bf16.gmra.mrb[0].mxu0 %v1453
      %v1593 = vpop.f32.mrb[0].mxu0
      %v1594 = vadd.f32 0.0, %v1593
      %v1595 = vpop.f32.mrb[0].mxu0
      %v1596 = vpop.f32.mrb[0].mxu0
      %v1597 = vadd.f32 0.0, %v1596
      %v1598 = vpop.f32.mrb[0].mxu0
      %1599 = vmatprep.mubr.bf16.mxu0 0
      %1600 = vmatmul.mubr.bf16.gmra.mrb[0].mxu0 %v1456
      %v1601 = vpop.f32.mrb[0].mxu0
      %v1602 = vadd.f32 0.0, %v1601
      %v1603 = vpop.f32.mrb[0].mxu0
      %v1604 = vpop.f32.mrb[0].mxu0
      %v1605 = vadd.f32 0.0, %v1604
      %v1606 = vpop.f32.mrb[0].mxu0
      %1607 = vmatprep.mubr.bf16.mxu0 0
      %1608 = vmatmul.mubr.bf16.gmra.mrb[0].mxu0 %v1459
      %v1609 = vpop.f32.mrb[0].mxu0
      %v1610 = vadd.f32 0.0, %v1609
      %v1611 = vpop.f32.mrb[0].mxu0
      %v1612 = vpop.f32.mrb[0].mxu0
      %v1613 = vadd.f32 0.0, %v1612
      %v1614 = vpop.f32.mrb[0].mxu0
      %1615 = vmatprep.mubr.bf16.mxu0 0
      %1616 = vmatmul.mubr.bf16.gmra.mrb[0].mxu0 %v1462
      %v1617 = vpop.f32.mrb[0].mxu0
      %v1618 = vadd.f32 0.0, %v1617
      %v1619 = vpop.f32.mrb[0].mxu0
      %v1620 = vpop.f32.mrb[0].mxu0
      %v1621 = vadd.f32 0.0, %v1620
      %v1622 = vpop.f32.mrb[0].mxu0
      %1623 = vmatprep.mubr.bf16.mxu0 0
      %1624 = vmatmul.mubr.bf16.gmra.mrb[0].mxu0 %v1465
      %v1625 = vpop.f32.mrb[0].mxu0
      %v1626 = vadd.f32 0.0, %v1625
      %v1627 = vpop.f32.mrb[0].mxu0
      %v1628 = vpop.f32.mrb[0].mxu0
      %v1629 = vadd.f32 0.0, %v1628
      %v1630 = vpop.f32.mrb[0].mxu0
      %1631 = vdwg.mxu0
      %v1664 = vunpack.c.l.b16 %v932
      %v1665 = vunpack.c.l.b16 %v933
      %v1666 = vunpack.c.l.b16 %v934
      %v1667 = vunpack.c.l.b16 %v935
      %v1668 = vunpack.c.l.b16 %v936
      %v1669 = vunpack.c.l.b16 %v937
      %v1670 = vunpack.c.l.b16 %v938
      %v1671 = vunpack.c.l.b16 %v939
      %v1672 = vunpack.c.l.b16 %v940
      %v1673 = vunpack.c.l.b16 %v941
      %v1674 = vunpack.c.l.b16 %v942
      %v1675 = vunpack.c.l.b16 %v943
      %v1676 = vunpack.c.l.b16 %v944
      %v1677 = vunpack.c.l.b16 %v945
      %v1678 = vunpack.c.l.b16 %v946
      %v1679 = vunpack.c.l.b16 %v947
      %v1680 = vunpack.c.l.b16 %v948
      %v1681 = vunpack.c.l.b16 %v949
      %v1682 = vunpack.c.l.b16 %v950
      %v1683 = vunpack.c.l.b16 %v951
      %v1684 = vunpack.c.l.b16 %v952
      %v1685 = vunpack.c.l.b16 %v953
      %v1686 = vunpack.c.l.b16 %v954
      %v1687 = vunpack.c.l.b16 %v955
      %v1688 = vunpack.c.l.b16 %v956
      %v1689 = vunpack.c.l.b16 %v957
      %v1690 = vunpack.c.l.b16 %v958
      %v1691 = vunpack.c.l.b16 %v959
      %v1692 = vunpack.c.l.b16 %v960
      %v1693 = vunpack.c.l.b16 %v961
      %v1694 = vunpack.c.l.b16 %v962
      %v1695 = vunpack.c.l.b16 %v963
      %v1696 = vpack.c.b16 %v1665, %v1664
      %v1697 = vpack.c.b16 %v1667, %v1666
      %v1698 = vpack.c.b16 %v1669, %v1668
      %v1699 = vpack.c.b16 %v1671, %v1670
      %v1700 = vpack.c.b16 %v1673, %v1672
      %v1701 = vpack.c.b16 %v1675, %v1674
      %v1702 = vpack.c.b16 %v1677, %v1676
      %v1703 = vpack.c.b16 %v1679, %v1678
      %v1704 = vpack.c.b16 %v1681, %v1680
      %v1705 = vpack.c.b16 %v1683, %v1682
      %v1706 = vpack.c.b16 %v1685, %v1684
      %v1707 = vpack.c.b16 %v1687, %v1686
      %v1708 = vpack.c.b16 %v1689, %v1688
      %v1709 = vpack.c.b16 %v1691, %v1690
      %v1710 = vpack.c.b16 %v1693, %v1692
      %v1711 = vpack.c.b16 %v1695, %v1694
      %v1713 = vsel %vm1418, %v1696, 0
      %v1716 = vsel %vm1418, %v1697, 0
      %v1719 = vsel %vm1418, %v1698, 0
      %v1722 = vsel %vm1418, %v1699, 0
      %v1725 = vsel %vm1418, %v1700, 0
      %v1728 = vsel %vm1418, %v1701, 0
      %v1731 = vsel %vm1418, %v1702, 0
      %v1734 = vsel %vm1418, %v1703, 0
      %v1737 = vsel %vm1418, %v1704, 0
      %v1740 = vsel %vm1418, %v1705, 0
      %v1743 = vsel %vm1418, %v1706, 0
      %v1746 = vsel %vm1418, %v1707, 0
      %v1749 = vsel %vm1418, %v1708, 0
      %v1752 = vsel %vm1418, %v1709, 0
      %v1755 = vsel %vm1418, %v1710, 0
      %v1758 = vsel %vm1418, %v1711, 0
      %v1761 = vsel %vm1467, %v964, 0
      %1763 = vmatprep.subr.bf16.mxu0 0
      %1764 = vmatpush1.bf16.msra.mxu0 %v1761
      %1765 = vmatprep.subr.bf16.mxu0 0
      %1766 = vmatpush1.bf16.msra.mxu0 0
      %1767 = vmatprep.subr.bf16.mxu0 0
      %1768 = vmatpush1.bf16.msra.mxu0 0
      %1769 = vmatprep.subr.bf16.mxu0 0
      %1770 = vmatpush1.bf16.msra.mxu0 0
      %1771 = vmatprep.subr.bf16.mxu0 0
      %1772 = vmatpush1.bf16.msra.mxu0 0
      %1773 = vmatprep.subr.bf16.mxu0 0
      %1774 = vmatpush1.bf16.msra.mxu0 0
      %1775 = vmatprep.subr.bf16.mxu0 0
      %1776 = vmatpush1.bf16.msra.mxu0 0
      %1777 = vmatprep.subr.bf16.mxu0 0
      %1778 = vmatpush1.bf16.msra.mxu0 0
      %1779 = vmatprep.subr.bf16.mxu0 0
      %1780 = vmatpush1.bf16.msra.mxu0 0
      %1781 = vmatprep.subr.bf16.mxu0 0
      %1782 = vmatpush1.bf16.msra.mxu0 0
      %1783 = vmatprep.subr.bf16.mxu0 0
      %1784 = vmatpush1.bf16.msra.mxu0 0
      %1785 = vmatprep.subr.bf16.mxu0 0
      %1786 = vmatpush1.bf16.msra.mxu0 0
      %1787 = vmatprep.subr.bf16.mxu0 0
      %1788 = vmatpush1.bf16.msra.mxu0 0
      %1789 = vmatprep.subr.bf16.mxu0 0
      %1790 = vmatpush1.bf16.msra.mxu0 0
      %1791 = vmatprep.subr.bf16.mxu0 0
      %1792 = vmatpush1.bf16.msra.mxu0 0
      %1793 = vmatprep.subr.bf16.mxu0 0
      %1794 = vmatpush1.bf16.msra.mxu0 0
      %1795 = vmatprep.mubr.bf16.mxu0 0
      %1796 = vmatmul.mubr.bf16.gmra.mrb[0].mxu0 %v1713
      %v1797 = vpop.f32.mrb[0].mxu0
      %v1798 = vadd.f32 %v1506, %v1797
      %v1799 = vpop.f32.mrb[0].mxu0
      %v1800 = vpop.f32.mrb[0].mxu0
      %v1801 = vadd.f32 %v1509, %v1800
      %v1802 = vpop.f32.mrb[0].mxu0
      %1803 = vmatprep.mubr.bf16.mxu0 0
      %1804 = vmatmul.mubr.bf16.gmra.mrb[0].mxu0 %v1716
      %v1805 = vpop.f32.mrb[0].mxu0
      %v1806 = vadd.f32 %v1514, %v1805
      %v1807 = vpop.f32.mrb[0].mxu0
      %v1808 = vpop.f32.mrb[0].mxu0
      %v1809 = vadd.f32 %v1517, %v1808
      %v1810 = vpop.f32.mrb[0].mxu0
      %1811 = vmatprep.mubr.bf16.mxu0 0
      %1812 = vmatmul.mubr.bf16.gmra.mrb[0].mxu0 %v1719
      %v1813 = vpop.f32.mrb[0].mxu0
      %v1814 = vadd.f32 %v1522, %v1813
      %v1815 = vpop.f32.mrb[0].mxu0
      %v1816 = vpop.f32.mrb[0].mxu0
      %v1817 = vadd.f32 %v1525, %v1816
      %v1818 = vpop.f32.mrb[0].mxu0
      %1819 = vmatprep.mubr.bf16.mxu0 0
      %1820 = vmatmul.mubr.bf16.gmra.mrb[0].mxu0 %v1722
      %v1821 = vpop.f32.mrb[0].mxu0
      %v1822 = vadd.f32 %v1530, %v1821
      %v1823 = vpop.f32.mrb[0].mxu0
      %v1824 = vpop.f32.mrb[0].mxu0
      %v1825 = vadd.f32 %v1533, %v1824
      %v1826 = vpop.f32.mrb[0].mxu0
      %1827 = vmatprep.mubr.bf16.mxu0 0
      %1828 = vmatmul.mubr.bf16.gmra.mrb[0].mxu0 %v1725
      %v1829 = vpop.f32.mrb[0].mxu0
      %v1830 = vadd.f32 %v1538, %v1829
      %v1831 = vpop.f32.mrb[0].mxu0
      %v1832 = vpop.f32.mrb[0].mxu0
      %v1833 = vadd.f32 %v1541, %v1832
      %v1834 = vpop.f32.mrb[0].mxu0
      %1835 = vmatprep.mubr.bf16.mxu0 0
      %1836 = vmatmul.mubr.bf16.gmra.mrb[0].mxu0 %v1728
      %v1837 = vpop.f32.mrb[0].mxu0
      %v1838 = vadd.f32 %v1546, %v1837
      %v1839 = vpop.f32.mrb[0].mxu0
      %v1840 = vpop.f32.mrb[0].mxu0
      %v1841 = vadd.f32 %v1549, %v1840
      %v1842 = vpop.f32.mrb[0].mxu0
      %1843 = vmatprep.mubr.bf16.mxu0 0
      %1844 = vmatmul.mubr.bf16.gmra.mrb[0].mxu0 %v1731
      %v1845 = vpop.f32.mrb[0].mxu0
      %v1846 = vadd.f32 %v1554, %v1845
      %v1847 = vpop.f32.mrb[0].mxu0
      %v1848 = vpop.f32.mrb[0].mxu0
      %v1849 = vadd.f32 %v1557, %v1848
      %v1850 = vpop.f32.mrb[0].mxu0
      %1851 = vmatprep.mubr.bf16.mxu0 0
      %1852 = vmatmul.mubr.bf16.gmra.mrb[0].mxu0 %v1734
      %v1853 = vpop.f32.mrb[0].mxu0
      %v1854 = vadd.f32 %v1562, %v1853
      %v1855 = vpop.f32.mrb[0].mxu0
      %v1856 = vpop.f32.mrb[0].mxu0
      %v1857 = vadd.f32 %v1565, %v1856
      %v1858 = vpop.f32.mrb[0].mxu0
      %1859 = vmatprep.mubr.bf16.mxu0 0
      %1860 = vmatmul.mubr.bf16.gmra.mrb[0].mxu0 %v1737
      %v1861 = vpop.f32.mrb[0].mxu0
      %v1862 = vadd.f32 %v1570, %v1861
      %v1863 = vpop.f32.mrb[0].mxu0
      %v1864 = vpop.f32.mrb[0].mxu0
      %v1865 = vadd.f32 %v1573, %v1864
      %v1866 = vpop.f32.mrb[0].mxu0
      %1867 = vmatprep.mubr.bf16.mxu0 0
      %1868 = vmatmul.mubr.bf16.gmra.mrb[0].mxu0 %v1740
      %v1869 = vpop.f32.mrb[0].mxu0
      %v1870 = vadd.f32 %v1578, %v1869
      %v1871 = vpop.f32.mrb[0].mxu0
      %v1872 = vpop.f32.mrb[0].mxu0
      %v1873 = vadd.f32 %v1581, %v1872
      %v1874 = vpop.f32.mrb[0].mxu0
      %1875 = vmatprep.mubr.bf16.mxu0 0
      %1876 = vmatmul.mubr.bf16.gmra.mrb[0].mxu0 %v1743
      %v1877 = vpop.f32.mrb[0].mxu0
      %v1878 = vadd.f32 %v1586, %v1877
      %v1879 = vpop.f32.mrb[0].mxu0
      %v1880 = vpop.f32.mrb[0].mxu0
      %v1881 = vadd.f32 %v1589, %v1880
      %v1882 = vpop.f32.mrb[0].mxu0
      %1883 = vmatprep.mubr.bf16.mxu0 0
      %1884 = vmatmul.mubr.bf16.gmra.mrb[0].mxu0 %v1746
      %v1885 = vpop.f32.mrb[0].mxu0
      %v1886 = vadd.f32 %v1594, %v1885
      %v1887 = vpop.f32.mrb[0].mxu0
      %v1888 = vpop.f32.mrb[0].mxu0
      %v1889 = vadd.f32 %v1597, %v1888
      %v1890 = vpop.f32.mrb[0].mxu0
      %1891 = vmatprep.mubr.bf16.mxu0 0
      %1892 = vmatmul.mubr.bf16.gmra.mrb[0].mxu0 %v1749
      %v1893 = vpop.f32.mrb[0].mxu0
      %v1894 = vadd.f32 %v1602, %v1893
      %v1895 = vpop.f32.mrb[0].mxu0
      %v1896 = vpop.f32.mrb[0].mxu0
      %v1897 = vadd.f32 %v1605, %v1896
      %v1898 = vpop.f32.mrb[0].mxu0
      %1899 = vmatprep.mubr.bf16.mxu0 0
      %1900 = vmatmul.mubr.bf16.gmra.mrb[0].mxu0 %v1752
      %v1901 = vpop.f32.mrb[0].mxu0
      %v1902 = vadd.f32 %v1610, %v1901
      %v1903 = vpop.f32.mrb[0].mxu0
      %v1904 = vpop.f32.mrb[0].mxu0
      %v1905 = vadd.f32 %v1613, %v1904
      %v1906 = vpop.f32.mrb[0].mxu0
      %1907 = vmatprep.mubr.bf16.mxu0 0
      %1908 = vmatmul.mubr.bf16.gmra.mrb[0].mxu0 %v1755
      %v1909 = vpop.f32.mrb[0].mxu0
      %v1910 = vadd.f32 %v1618, %v1909
      %v1911 = vpop.f32.mrb[0].mxu0
      %v1912 = vpop.f32.mrb[0].mxu0
      %v1913 = vadd.f32 %v1621, %v1912
      %v1914 = vpop.f32.mrb[0].mxu0
      %1915 = vmatprep.mubr.bf16.mxu0 0
      %1916 = vmatmul.mubr.bf16.gmra.mrb[0].mxu0 %v1758
      %v1917 = vpop.f32.mrb[0].mxu0
      %v1918 = vadd.f32 %v1626, %v1917
      %v1919 = vpop.f32.mrb[0].mxu0
      %v1920 = vpop.f32.mrb[0].mxu0
      %v1921 = vadd.f32 %v1629, %v1920
      %v1922 = vpop.f32.mrb[0].mxu0
      %1923 = vdwg.mxu0
      %v1924 = vld [vmem:[#allocation2] sm:$0xe]
      %v1925 = vld [vmem:[#allocation2 + $0xc] sm:$0xe]
      %v1926 = vld [vmem:[#allocation2 + $0x18] sm:$0xe]
      %v1927 = vld [vmem:[#allocation2 + $0x24] sm:$0xe]
      %v1928 = vld [vmem:[#allocation2 + $0x30] sm:$0xe]
      %v1929 = vld [vmem:[#allocation2 + $0x3c] sm:$0xe]
      %v1930 = vld [vmem:[#allocation2 + $0x48] sm:$0xe]
      %v1931 = vld [vmem:[#allocation2 + $0x54] sm:$0xe]
      %v1932 = vld [vmem:[#allocation2 + $0x60] sm:$0xe]
      %v1933 = vld [vmem:[#allocation2 + $0x6c] sm:$0xe]
      %v1934 = vld [vmem:[#allocation2 + $0x78] sm:$0xe]
      %v1935 = vld [vmem:[#allocation2 + $0x84] sm:$0xe]
      %v1936 = vld [vmem:[#allocation2 + $0x90] sm:$0xe]
      %v1937 = vld [vmem:[#allocation2 + $0x9c] sm:$0xe]
      %v1938 = vld [vmem:[#allocation2 + $0xa8] sm:$0xe]
      %v1939 = vld [vmem:[#allocation2 + $0xb4] sm:$0xe]
      %s1940 = scalar_lea.vmem %s1, 4
      %v1941 = vld [vmem:[%s1940] sm:$0x3]
      %vm1974 = vcmask 1042432
      %vm1975 = vcmask 1046532
      %vm1976 = vmor %vm1974, %vm1975
      %v1977 = vrot.slane %v1924, 5
      %v1978 = vrot.slane %v1977, 4
      %v1979 = vrot.slane %v933, 5
      %v1980 = vsel %vm1976, %v1978, %v1979
      %v1981 = vrot.slane %v1979, 4
      %v1982 = vrot.slane %v965, 5
      %v1983 = vsel %vm1976, %v1981, %v1982
      %v1984 = vrot.slane %v1925, 5
      %v1985 = vrot.slane %v1984, 4
      %v1986 = vrot.slane %v935, 5
      %v1987 = vsel %vm1976, %v1985, %v1986
      %v1988 = vrot.slane %v1986, 4
      %v1989 = vrot.slane %v966, 5
      %v1990 = vsel %vm1976, %v1988, %v1989
      %v1991 = vrot.slane %v1926, 5
      %v1992 = vrot.slane %v1991, 4
      %v1993 = vrot.slane %v937, 5
      %v1994 = vsel %vm1976, %v1992, %v1993
      %v1995 = vrot.slane %v1993, 4
      %v1996 = vrot.slane %v967, 5
      %v1997 = vsel %vm1976, %v1995, %v1996
      %v1998 = vrot.slane %v1927, 5
      %v1999 = vrot.slane %v1998, 4
      %v2000 = vrot.slane %v939, 5
      %v2001 = vsel %vm1976, %v1999, %v2000
      %v2002 = vrot.slane %v2000, 4
      %v2003 = vrot.slane %v968, 5
      %v2004 = vsel %vm1976, %v2002, %v2003
      %v2005 = vrot.slane %v1928, 5
      %v2006 = vrot.slane %v2005, 4
      %v2007 = vrot.slane %v941, 5
      %v2008 = vsel %vm1976, %v2006, %v2007
      %v2009 = vrot.slane %v2007, 4
      %v2010 = vrot.slane %v969, 5
      %v2011 = vsel %vm1976, %v2009, %v2010
      %v2012 = vrot.slane %v1929, 5
      %v2013 = vrot.slane %v2012, 4
      %v2014 = vrot.slane %v943, 5
      %v2015 = vsel %vm1976, %v2013, %v2014
      %v2016 = vrot.slane %v2014, 4
      %v2017 = vrot.slane %v970, 5
      %v2018 = vsel %vm1976, %v2016, %v2017
      %v2019 = vrot.slane %v1930, 5
      %v2020 = vrot.slane %v2019, 4
      %v2021 = vrot.slane %v945, 5
      %v2022 = vsel %vm1976, %v2020, %v2021
      %v2023 = vrot.slane %v2021, 4
      %v2024 = vrot.slane %v971, 5
      %v2025 = vsel %vm1976, %v2023, %v2024
      %v2026 = vrot.slane %v1931, 5
      %v2027 = vrot.slane %v2026, 4
      %v2028 = vrot.slane %v947, 5
      %v2029 = vsel %vm1976, %v2027, %v2028
      %v2030 = vrot.slane %v2028, 4
      %v2031 = vrot.slane %v972, 5
      %v2032 = vsel %vm1976, %v2030, %v2031
      %v2033 = vrot.slane %v1932, 5
      %v2034 = vrot.slane %v2033, 4
      %v2035 = vrot.slane %v949, 5
      %v2036 = vsel %vm1976, %v2034, %v2035
      %v2037 = vrot.slane %v2035, 4
      %v2038 = vrot.slane %v973, 5
      %v2039 = vsel %vm1976, %v2037, %v2038
      %v2040 = vrot.slane %v1933, 5
      %v2041 = vrot.slane %v2040, 4
      %v2042 = vrot.slane %v951, 5
      %v2043 = vsel %vm1976, %v2041, %v2042
      %v2044 = vrot.slane %v2042, 4
      %v2045 = vrot.slane %v974, 5
      %v2046 = vsel %vm1976, %v2044, %v2045
      %v2047 = vrot.slane %v1934, 5
      %v2048 = vrot.slane %v2047, 4
      %v2049 = vrot.slane %v953, 5
      %v2050 = vsel %vm1976, %v2048, %v2049
      %v2051 = vrot.slane %v2049, 4
      %v2052 = vrot.slane %v975, 5
      %v2053 = vsel %vm1976, %v2051, %v2052
      %v2054 = vrot.slane %v1935, 5
      %v2055 = vrot.slane %v2054, 4
      %v2056 = vrot.slane %v955, 5
      %v2057 = vsel %vm1976, %v2055, %v2056
      %v2058 = vrot.slane %v2056, 4
      %v2059 = vrot.slane %v976, 5
      %v2060 = vsel %vm1976, %v2058, %v2059
      %v2061 = vrot.slane %v1936, 5
      %v2062 = vrot.slane %v2061, 4
      %v2063 = vrot.slane %v957, 5
      %v2064 = vsel %vm1976, %v2062, %v2063
      %v2065 = vrot.slane %v2063, 4
      %v2066 = vrot.slane %v977, 5
      %v2067 = vsel %vm1976, %v2065, %v2066
      %v2068 = vrot.slane %v1937, 5
      %v2069 = vrot.slane %v2068, 4
      %v2070 = vrot.slane %v959, 5
      %v2071 = vsel %vm1976, %v2069, %v2070
      %v2072 = vrot.slane %v2070, 4
      %v2073 = vrot.slane %v978, 5
      %v2074 = vsel %vm1976, %v2072, %v2073
      %v2075 = vrot.slane %v1938, 5
      %v2076 = vrot.slane %v2075, 4
      %v2077 = vrot.slane %v961, 5
      %v2078 = vsel %vm1976, %v2076, %v2077
      %v2079 = vrot.slane %v2077, 4
      %v2080 = vrot.slane %v979, 5
      %v2081 = vsel %vm1976, %v2079, %v2080
      %v2082 = vrot.slane %v1939, 5
      %v2083 = vrot.slane %v2082, 4
      %v2084 = vrot.slane %v963, 5
      %v2085 = vsel %vm1976, %v2083, %v2084
      %v2086 = vrot.slane %v2084, 4
      %v2087 = vrot.slane %v980, 5
      %v2088 = vsel %vm1976, %v2086, %v2087
      %v2089 = vunpack.c.l.b16 %v1980
      %v2090 = vunpack.c.l.b16 %v1983
      %v2091 = vunpack.c.l.b16 %v1987
      %v2092 = vunpack.c.l.b16 %v1990
      %v2093 = vunpack.c.l.b16 %v1994
      %v2094 = vunpack.c.l.b16 %v1997
      %v2095 = vunpack.c.l.b16 %v2001
      %v2096 = vunpack.c.l.b16 %v2004
      %v2097 = vunpack.c.l.b16 %v2008
      %v2098 = vunpack.c.l.b16 %v2011
      %v2099 = vunpack.c.l.b16 %v2015
      %v2100 = vunpack.c.l.b16 %v2018
      %v2101 = vunpack.c.l.b16 %v2022
      %v2102 = vunpack.c.l.b16 %v2025
      %v2103 = vunpack.c.l.b16 %v2029
      %v2104 = vunpack.c.l.b16 %v2032
      %v2105 = vunpack.c.l.b16 %v2036
      %v2106 = vunpack.c.l.b16 %v2039
      %v2107 = vunpack.c.l.b16 %v2043
      %v2108 = vunpack.c.l.b16 %v2046
      %v2109 = vunpack.c.l.b16 %v2050
      %v2110 = vunpack.c.l.b16 %v2053
      %v2111 = vunpack.c.l.b16 %v2057
      %v2112 = vunpack.c.l.b16 %v2060
      %v2113 = vunpack.c.l.b16 %v2064
      %v2114 = vunpack.c.l.b16 %v2067
      %v2115 = vunpack.c.l.b16 %v2071
      %v2116 = vunpack.c.l.b16 %v2074
      %v2117 = vunpack.c.l.b16 %v2078
      %v2118 = vunpack.c.l.b16 %v2081
      %v2119 = vunpack.c.l.b16 %v2085
      %v2120 = vunpack.c.l.b16 %v2088
      %v2121 = vpack.c.b16 %v2090, %v2089
      %v2122 = vpack.c.b16 %v2092, %v2091
      %v2123 = vpack.c.b16 %v2094, %v2093
      %v2124 = vpack.c.b16 %v2096, %v2095
      %v2125 = vpack.c.b16 %v2098, %v2097
      %v2126 = vpack.c.b16 %v2100, %v2099
      %v2127 = vpack.c.b16 %v2102, %v2101
      %v2128 = vpack.c.b16 %v2104, %v2103
      %v2129 = vpack.c.b16 %v2106, %v2105
      %v2130 = vpack.c.b16 %v2108, %v2107
      %v2131 = vpack.c.b16 %v2110, %v2109
      %v2132 = vpack.c.b16 %v2112, %v2111
      %v2133 = vpack.c.b16 %v2114, %v2113
      %v2134 = vpack.c.b16 %v2116, %v2115
      %v2135 = vpack.c.b16 %v2118, %v2117
      %v2136 = vpack.c.b16 %v2120, %v2119
      %v2138 = vsel %vm1418, %v2121, 0
      %v2141 = vsel %vm1418, %v2122, 0
      %v2144 = vsel %vm1418, %v2123, 0
      %v2147 = vsel %vm1418, %v2124, 0
      %v2150 = vsel %vm1418, %v2125, 0
      %v2153 = vsel %vm1418, %v2126, 0
      %v2156 = vsel %vm1418, %v2127, 0
      %v2159 = vsel %vm1418, %v2128, 0
      %v2162 = vsel %vm1418, %v2129, 0
      %v2165 = vsel %vm1418, %v2130, 0
      %v2168 = vsel %vm1418, %v2131, 0
      %v2171 = vsel %vm1418, %v2132, 0
      %v2174 = vsel %vm1418, %v2133, 0
      %v2177 = vsel %vm1418, %v2134, 0
      %v2180 = vsel %vm1418, %v2135, 0
      %v2183 = vsel %vm1418, %v2136, 0
      %v2186 = vsel %vm1467, %v1941, 0
      %2188 = vmatprep.subr.bf16.mxu0 0
      %2189 = vmatpush1.bf16.msra.mxu0 %v2186
      %2190 = vmatprep.subr.bf16.mxu0 0
      %2191 = vmatpush1.bf16.msra.mxu0 0
      %2192 = vmatprep.subr.bf16.mxu0 0
      %2193 = vmatpush1.bf16.msra.mxu0 0
      %2194 = vmatprep.subr.bf16.mxu0 0
      %2195 = vmatpush1.bf16.msra.mxu0 0
      %2196 = vmatprep.subr.bf16.mxu0 0
      %2197 = vmatpush1.bf16.msra.mxu0 0
      %2198 = vmatprep.subr.bf16.mxu0 0
      %2199 = vmatpush1.bf16.msra.mxu0 0
      %2200 = vmatprep.subr.bf16.mxu0 0
      %2201 = vmatpush1.bf16.msra.mxu0 0
      %2202 = vmatprep.subr.bf16.mxu0 0
      %2203 = vmatpush1.bf16.msra.mxu0 0
      %2204 = vmatprep.subr.bf16.mxu0 0
      %2205 = vmatpush1.bf16.msra.mxu0 0
      %2206 = vmatprep.subr.bf16.mxu0 0
      %2207 = vmatpush1.bf16.msra.mxu0 0
      %2208 = vmatprep.subr.bf16.mxu0 0
      %2209 = vmatpush1.bf16.msra.mxu0 0
      %2210 = vmatprep.subr.bf16.mxu0 0
      %2211 = vmatpush1.bf16.msra.mxu0 0
      %2212 = vmatprep.subr.bf16.mxu0 0
      %2213 = vmatpush1.bf16.msra.mxu0 0
      %2214 = vmatprep.subr.bf16.mxu0 0
      %2215 = vmatpush1.bf16.msra.mxu0 0
      %2216 = vmatprep.subr.bf16.mxu0 0
      %2217 = vmatpush1.bf16.msra.mxu0 0
      %2218 = vmatprep.subr.bf16.mxu0 0
      %2219 = vmatpush1.bf16.msra.mxu0 0
      %2220 = vmatprep.mubr.bf16.mxu0 0
      %2221 = vmatmul.mubr.bf16.gmra.mrb[0].mxu0 %v2138
      %v2222 = vpop.f32.mrb[0].mxu0
      %v2223 = vadd.f32 0.0, %v2222
      %v2224 = vpop.f32.mrb[0].mxu0
      %v2225 = vpop.f32.mrb[0].mxu0
      %v2226 = vadd.f32 0.0, %v2225
      %v2227 = vpop.f32.mrb[0].mxu0
      %2228 = vmatprep.mubr.bf16.mxu0 0
      %2229 = vmatmul.mubr.bf16.gmra.mrb[0].mxu0 %v2141
      %v2230 = vpop.f32.mrb[0].mxu0
      %v2231 = vadd.f32 0.0, %v2230
      %v2232 = vpop.f32.mrb[0].mxu0
      %v2233 = vpop.f32.mrb[0].mxu0
      %v2234 = vadd.f32 0.0, %v2233
      %v2235 = vpop.f32.mrb[0].mxu0
      %2236 = vmatprep.mubr.bf16.mxu0 0
      %2237 = vmatmul.mubr.bf16.gmra.mrb[0].mxu0 %v2144
      %v2238 = vpop.f32.mrb[0].mxu0
      %v2239 = vadd.f32 0.0, %v2238
      %v2240 = vpop.f32.mrb[0].mxu0
      %v2241 = vpop.f32.mrb[0].mxu0
      %v2242 = vadd.f32 0.0, %v2241
      %v2243 = vpop.f32.mrb[0].mxu0
      %2244 = vmatprep.mubr.bf16.mxu0 0
      %2245 = vmatmul.mubr.bf16.gmra.mrb[0].mxu0 %v2147
      %v2246 = vpop.f32.mrb[0].mxu0
      %v2247 = vadd.f32 0.0, %v2246
      %v2248 = vpop.f32.mrb[0].mxu0
      %v2249 = vpop.f32.mrb[0].mxu0
      %v2250 = vadd.f32 0.0, %v2249
      %v2251 = vpop.f32.mrb[0].mxu0
      %2252 = vmatprep.mubr.bf16.mxu0 0
      %2253 = vmatmul.mubr.bf16.gmra.mrb[0].mxu0 %v2150
      %v2254 = vpop.f32.mrb[0].mxu0
      %v2255 = vadd.f32 0.0, %v2254
      %v2256 = vpop.f32.mrb[0].mxu0
      %v2257 = vpop.f32.mrb[0].mxu0
      %v2258 = vadd.f32 0.0, %v2257
      %v2259 = vpop.f32.mrb[0].mxu0
      %2260 = vmatprep.mubr.bf16.mxu0 0
      %2261 = vmatmul.mubr.bf16.gmra.mrb[0].mxu0 %v2153
      %v2262 = vpop.f32.mrb[0].mxu0
      %v2263 = vadd.f32 0.0, %v2262
      %v2264 = vpop.f32.mrb[0].mxu0
      %v2265 = vpop.f32.mrb[0].mxu0
      %v2266 = vadd.f32 0.0, %v2265
      %v2267 = vpop.f32.mrb[0].mxu0
      %2268 = vmatprep.mubr.bf16.mxu0 0
      %2269 = vmatmul.mubr.bf16.gmra.mrb[0].mxu0 %v2156
      %v2270 = vpop.f32.mrb[0].mxu0
      %v2271 = vadd.f32 0.0, %v2270
      %v2272 = vpop.f32.mrb[0].mxu0
      %v2273 = vpop.f32.mrb[0].mxu0
      %v2274 = vadd.f32 0.0, %v2273
      %v2275 = vpop.f32.mrb[0].mxu0
      %2276 = vmatprep.mubr.bf16.mxu0 0
      %2277 = vmatmul.mubr.bf16.gmra.mrb[0].mxu0 %v2159
      %v2278 = vpop.f32.mrb[0].mxu0
      %v2279 = vadd.f32 0.0, %v2278
      %v2280 = vpop.f32.mrb[0].mxu0
      %v2281 = vpop.f32.mrb[0].mxu0
      %v2282 = vadd.f32 0.0, %v2281
      %v2283 = vpop.f32.mrb[0].mxu0
      %2284 = vmatprep.mubr.bf16.mxu0 0
      %2285 = vmatmul.mubr.bf16.gmra.mrb[0].mxu0 %v2162
      %v2286 = vpop.f32.mrb[0].mxu0
      %v2287 = vadd.f32 0.0, %v2286
      %v2288 = vpop.f32.mrb[0].mxu0
      %v2289 = vpop.f32.mrb[0].mxu0
      %v2290 = vadd.f32 0.0, %v2289
      %v2291 = vpop.f32.mrb[0].mxu0
      %2292 = vmatprep.mubr.bf16.mxu0 0
      %2293 = vmatmul.mubr.bf16.gmra.mrb[0].mxu0 %v2165
      %v2294 = vpop.f32.mrb[0].mxu0
      %v2295 = vadd.f32 0.0, %v2294
      %v2296 = vpop.f32.mrb[0].mxu0
      %v2297 = vpop.f32.mrb[0].mxu0
      %v2298 = vadd.f32 0.0, %v2297
      %v2299 = vpop.f32.mrb[0].mxu0
      %2300 = vmatprep.mubr.bf16.mxu0 0
      %2301 = vmatmul.mubr.bf16.gmra.mrb[0].mxu0 %v2168
      %v2302 = vpop.f32.mrb[0].mxu0
      %v2303 = vadd.f32 0.0, %v2302
      %v2304 = vpop.f32.mrb[0].mxu0
      %v2305 = vpop.f32.mrb[0].mxu0
      %v2306 = vadd.f32 0.0, %v2305
      %v2307 = vpop.f32.mrb[0].mxu0
      %2308 = vmatprep.mubr.bf16.mxu0 0
      %2309 = vmatmul.mubr.bf16.gmra.mrb[0].mxu0 %v2171
      %v2310 = vpop.f32.mrb[0].mxu0
      %v2311 = vadd.f32 0.0, %v2310
      %v2312 = vpop.f32.mrb[0].mxu0
      %v2313 = vpop.f32.mrb[0].mxu0
      %v2314 = vadd.f32 0.0, %v2313
      %v2315 = vpop.f32.mrb[0].mxu0
      %2316 = vmatprep.mubr.bf16.mxu0 0
      %2317 = vmatmul.mubr.bf16.gmra.mrb[0].mxu0 %v2174
      %v2318 = vpop.f32.mrb[0].mxu0
      %v2319 = vadd.f32 0.0, %v2318
      %v2320 = vpop.f32.mrb[0].mxu0
      %v2321 = vpop.f32.mrb[0].mxu0
      %v2322 = vadd.f32 0.0, %v2321
      %v2323 = vpop.f32.mrb[0].mxu0
      %2324 = vmatprep.mubr.bf16.mxu0 0
      %2325 = vmatmul.mubr.bf16.gmra.mrb[0].mxu0 %v2177
      %v2326 = vpop.f32.mrb[0].mxu0
      %v2327 = vadd.f32 0.0, %v2326
      %v2328 = vpop.f32.mrb[0].mxu0
      %v2329 = vpop.f32.mrb[0].mxu0
      %v2330 = vadd.f32 0.0, %v2329
      %v2331 = vpop.f32.mrb[0].mxu0
      %2332 = vmatprep.mubr.bf16.mxu0 0
      %2333 = vmatmul.mubr.bf16.gmra.mrb[0].mxu0 %v2180
      %v2334 = vpop.f32.mrb[0].mxu0
      %v2335 = vadd.f32 0.0, %v2334
      %v2336 = vpop.f32.mrb[0].mxu0
      %v2337 = vpop.f32.mrb[0].mxu0
      %v2338 = vadd.f32 0.0, %v2337
      %v2339 = vpop.f32.mrb[0].mxu0
      %2340 = vmatprep.mubr.bf16.mxu0 0
      %2341 = vmatmul.mubr.bf16.gmra.mrb[0].mxu0 %v2183
      %v2342 = vpop.f32.mrb[0].mxu0
      %v2343 = vadd.f32 0.0, %v2342
      %v2344 = vpop.f32.mrb[0].mxu0
      %v2345 = vpop.f32.mrb[0].mxu0
      %v2346 = vadd.f32 0.0, %v2345
      %v2347 = vpop.f32.mrb[0].mxu0
      %2348 = vdwg.mxu0
      %v2349 = vadd.f32 %v1798, %v2223
      %v2350 = vadd.f32 %v1801, %v2226
      %v2351 = vadd.f32 %v1806, %v2231
      %v2352 = vadd.f32 %v1809, %v2234
      %v2353 = vadd.f32 %v1814, %v2239
      %v2354 = vadd.f32 %v1817, %v2242
      %v2355 = vadd.f32 %v1822, %v2247
      %v2356 = vadd.f32 %v1825, %v2250
      %v2357 = vadd.f32 %v1830, %v2255
      %v2358 = vadd.f32 %v1833, %v2258
      %v2359 = vadd.f32 %v1838, %v2263
      %v2360 = vadd.f32 %v1841, %v2266
      %v2361 = vadd.f32 %v1846, %v2271
      %v2362 = vadd.f32 %v1849, %v2274
      %v2363 = vadd.f32 %v1854, %v2279
      %v2364 = vadd.f32 %v1857, %v2282
      %v2365 = vadd.f32 %v1862, %v2287
      %v2366 = vadd.f32 %v1865, %v2290
      %v2367 = vadd.f32 %v1870, %v2295
      %v2368 = vadd.f32 %v1873, %v2298
      %v2369 = vadd.f32 %v1878, %v2303
      %v2370 = vadd.f32 %v1881, %v2306
      %v2371 = vadd.f32 %v1886, %v2311
      %v2372 = vadd.f32 %v1889, %v2314
      %v2373 = vadd.f32 %v1894, %v2319
      %v2374 = vadd.f32 %v1897, %v2322
      %v2375 = vadd.f32 %v1902, %v2327
      %v2376 = vadd.f32 %v1905, %v2330
      %v2377 = vadd.f32 %v1910, %v2335
      %v2378 = vadd.f32 %v1913, %v2338
      %v2379 = vadd.f32 %v1918, %v2343
      %v2380 = vadd.f32 %v1921, %v2346
      %v2381 = vld [vmem:[%s817] sm:$0xf]
      %v2382 = vld [vmem:[%s817 + $0x4] sm:$0xf]
      %v2383 = vld [vmem:[%s817 + $0xc] sm:$0xf]
      %v2384 = vld [vmem:[%s817 + $0x10] sm:$0xf]
      %v2385 = vld [vmem:[%s817 + $0x18] sm:$0xf]
      %v2386 = vld [vmem:[%s817 + $0x1c] sm:$0xf]
      %v2387 = vld [vmem:[%s817 + $0x24] sm:$0xf]
      %v2388 = vld [vmem:[%s817 + $0x28] sm:$0xf]
      %v2389 = vld [vmem:[%s817 + $0x30] sm:$0xf]
      %v2390 = vld [vmem:[%s817 + $0x34] sm:$0xf]
      %v2391 = vld [vmem:[%s817 + $0x3c] sm:$0xf]
      %v2392 = vld [vmem:[%s817 + $0x40] sm:$0xf]
      %v2393 = vld [vmem:[%s817 + $0x48] sm:$0xf]
      %v2394 = vld [vmem:[%s817 + $0x4c] sm:$0xf]
      %v2395 = vld [vmem:[%s817 + $0x54] sm:$0xf]
      %v2396 = vld [vmem:[%s817 + $0x58] sm:$0xf]
      %v2397 = vld [vmem:[%s817 + $0x60] sm:$0xf]
      %v2398 = vld [vmem:[%s817 + $0x64] sm:$0xf]
      %v2399 = vld [vmem:[%s817 + $0x6c] sm:$0xf]
      %v2400 = vld [vmem:[%s817 + $0x70] sm:$0xf]
      %v2401 = vld [vmem:[%s817 + $0x78] sm:$0xf]
      %v2402 = vld [vmem:[%s817 + $0x7c] sm:$0xf]
      %v2403 = vld [vmem:[%s817 + $0x84] sm:$0xf]
      %v2404 = vld [vmem:[%s817 + $0x88] sm:$0xf]
      %v2405 = vld [vmem:[%s817 + $0x90] sm:$0xf]
      %v2406 = vld [vmem:[%s817 + $0x94] sm:$0xf]
      %v2407 = vld [vmem:[%s817 + $0x9c] sm:$0xf]
      %v2408 = vld [vmem:[%s817 + $0xa0] sm:$0xf]
      %v2409 = vld [vmem:[%s817 + $0xa8] sm:$0xf]
      %v2410 = vld [vmem:[%s817 + $0xac] sm:$0xf]
      %v2411 = vld [vmem:[%s817 + $0xb4] sm:$0xf]
      %v2412 = vld [vmem:[%s817 + $0xb8] sm:$0xf]
      %s2413 = scalar_lea.vmem %s1, 6
      %v2414 = vld [vmem:[%s2413] sm:$0x3]
      %v2447 = vunpack.c.l.b16 %v2381
      %v2448 = vunpack.c.l.b16 %v2382
      %v2449 = vunpack.c.l.b16 %v2383
      %v2450 = vunpack.c.l.b16 %v2384
      %v2451 = vunpack.c.l.b16 %v2385
      %v2452 = vunpack.c.l.b16 %v2386
      %v2453 = vunpack.c.l.b16 %v2387
      %v2454 = vunpack.c.l.b16 %v2388
      %v2455 = vunpack.c.l.b16 %v2389
      %v2456 = vunpack.c.l.b16 %v2390
      %v2457 = vunpack.c.l.b16 %v2391
      %v2458 = vunpack.c.l.b16 %v2392
      %v2459 = vunpack.c.l.b16 %v2393
      %v2460 = vunpack.c.l.b16 %v2394
      %v2461 = vunpack.c.l.b16 %v2395
      %v2462 = vunpack.c.l.b16 %v2396
      %v2463 = vunpack.c.l.b16 %v2397
      %v2464 = vunpack.c.l.b16 %v2398
      %v2465 = vunpack.c.l.b16 %v2399
      %v2466 = vunpack.c.l.b16 %v2400
      %v2467 = vunpack.c.l.b16 %v2401
      %v2468 = vunpack.c.l.b16 %v2402
      %v2469 = vunpack.c.l.b16 %v2403
      %v2470 = vunpack.c.l.b16 %v2404
      %v2471 = vunpack.c.l.b16 %v2405
      %v2472 = vunpack.c.l.b16 %v2406
      %v2473 = vunpack.c.l.b16 %v2407
      %v2474 = vunpack.c.l.b16 %v2408
      %v2475 = vunpack.c.l.b16 %v2409
      %v2476 = vunpack.c.l.b16 %v2410
      %v2477 = vunpack.c.l.b16 %v2411
      %v2478 = vunpack.c.l.b16 %v2412
      %v2479 = vpack.c.b16 %v2448, %v2447
      %v2480 = vpack.c.b16 %v2450, %v2449
      %v2481 = vpack.c.b16 %v2452, %v2451
      %v2482 = vpack.c.b16 %v2454, %v2453
      %v2483 = vpack.c.b16 %v2456, %v2455
      %v2484 = vpack.c.b16 %v2458, %v2457
      %v2485 = vpack.c.b16 %v2460, %v2459
      %v2486 = vpack.c.b16 %v2462, %v2461
      %v2487 = vpack.c.b16 %v2464, %v2463
      %v2488 = vpack.c.b16 %v2466, %v2465
      %v2489 = vpack.c.b16 %v2468, %v2467
      %v2490 = vpack.c.b16 %v2470, %v2469
      %v2491 = vpack.c.b16 %v2472, %v2471
      %v2492 = vpack.c.b16 %v2474, %v2473
      %v2493 = vpack.c.b16 %v2476, %v2475
      %v2494 = vpack.c.b16 %v2478, %v2477
      %v2496 = vsel %vm1418, %v2479, 0
      %v2499 = vsel %vm1418, %v2480, 0
      %v2502 = vsel %vm1418, %v2481, 0
      %v2505 = vsel %vm1418, %v2482, 0
      %v2508 = vsel %vm1418, %v2483, 0
      %v2511 = vsel %vm1418, %v2484, 0
      %v2514 = vsel %vm1418, %v2485, 0
      %v2517 = vsel %vm1418, %v2486, 0
      %v2520 = vsel %vm1418, %v2487, 0
      %v2523 = vsel %vm1418, %v2488, 0
      %v2526 = vsel %vm1418, %v2489, 0
      %v2529 = vsel %vm1418, %v2490, 0
      %v2532 = vsel %vm1418, %v2491, 0
      %v2535 = vsel %vm1418, %v2492, 0
      %v2538 = vsel %vm1418, %v2493, 0
      %v2541 = vsel %vm1418, %v2494, 0
      %v2544 = vsel %vm1467, %v2414, 0
      %2546 = vmatprep.subr.bf16.mxu0 0
      %2547 = vmatpush1.bf16.msra.mxu0 %v2544
      %2548 = vmatprep.subr.bf16.mxu0 0
      %2549 = vmatpush1.bf16.msra.mxu0 0
      %2550 = vmatprep.subr.bf16.mxu0 0
      %2551 = vmatpush1.bf16.msra.mxu0 0
      %2552 = vmatprep.subr.bf16.mxu0 0
      %2553 = vmatpush1.bf16.msra.mxu0 0
      %2554 = vmatprep.subr.bf16.mxu0 0
      %2555 = vmatpush1.bf16.msra.mxu0 0
      %2556 = vmatprep.subr.bf16.mxu0 0
      %2557 = vmatpush1.bf16.msra.mxu0 0
      %2558 = vmatprep.subr.bf16.mxu0 0
      %2559 = vmatpush1.bf16.msra.mxu0 0
      %2560 = vmatprep.subr.bf16.mxu0 0
      %2561 = vmatpush1.bf16.msra.mxu0 0
      %2562 = vmatprep.subr.bf16.mxu0 0
      %2563 = vmatpush1.bf16.msra.mxu0 0
      %2564 = vmatprep.subr.bf16.mxu0 0
      %2565 = vmatpush1.bf16.msra.mxu0 0
      %2566 = vmatprep.subr.bf16.mxu0 0
      %2567 = vmatpush1.bf16.msra.mxu0 0
      %2568 = vmatprep.subr.bf16.mxu0 0
      %2569 = vmatpush1.bf16.msra.mxu0 0
      %2570 = vmatprep.subr.bf16.mxu0 0
      %2571 = vmatpush1.bf16.msra.mxu0 0
      %2572 = vmatprep.subr.bf16.mxu0 0
      %2573 = vmatpush1.bf16.msra.mxu0 0
      %2574 = vmatprep.subr.bf16.mxu0 0
      %2575 = vmatpush1.bf16.msra.mxu0 0
      %2576 = vmatprep.subr.bf16.mxu0 0
      %2577 = vmatpush1.bf16.msra.mxu0 0
      %2578 = vmatprep.mubr.bf16.mxu0 0
      %2579 = vmatmul.mubr.bf16.gmra.mrb[0].mxu0 %v2496
      %v2580 = vpop.f32.mrb[0].mxu0
      %v2581 = vadd.f32 0.0, %v2580
      %v2582 = vpop.f32.mrb[0].mxu0
      %v2583 = vpop.f32.mrb[0].mxu0
      %v2584 = vadd.f32 0.0, %v2583
      %v2585 = vpop.f32.mrb[0].mxu0
      %2586 = vmatprep.mubr.bf16.mxu0 0
      %2587 = vmatmul.mubr.bf16.gmra.mrb[0].mxu0 %v2499
      %v2588 = vpop.f32.mrb[0].mxu0
      %v2589 = vadd.f32 0.0, %v2588
      %v2590 = vpop.f32.mrb[0].mxu0
      %v2591 = vpop.f32.mrb[0].mxu0
      %v2592 = vadd.f32 0.0, %v2591
      %v2593 = vpop.f32.mrb[0].mxu0
      %2594 = vmatprep.mubr.bf16.mxu0 0
      %2595 = vmatmul.mubr.bf16.gmra.mrb[0].mxu0 %v2502
      %v2596 = vpop.f32.mrb[0].mxu0
      %v2597 = vadd.f32 0.0, %v2596
      %v2598 = vpop.f32.mrb[0].mxu0
      %v2599 = vpop.f32.mrb[0].mxu0
      %v2600 = vadd.f32 0.0, %v2599
      %v2601 = vpop.f32.mrb[0].mxu0
      %2602 = vmatprep.mubr.bf16.mxu0 0
      %2603 = vmatmul.mubr.bf16.gmra.mrb[0].mxu0 %v2505
      %v2604 = vpop.f32.mrb[0].mxu0
      %v2605 = vadd.f32 0.0, %v2604
      %v2606 = vpop.f32.mrb[0].mxu0
      %v2607 = vpop.f32.mrb[0].mxu0
      %v2608 = vadd.f32 0.0, %v2607
      %v2609 = vpop.f32.mrb[0].mxu0
      %2610 = vmatprep.mubr.bf16.mxu0 0
      %2611 = vmatmul.mubr.bf16.gmra.mrb[0].mxu0 %v2508
      %v2612 = vpop.f32.mrb[0].mxu0
      %v2613 = vadd.f32 0.0, %v2612
      %v2614 = vpop.f32.mrb[0].mxu0
      %v2615 = vpop.f32.mrb[0].mxu0
      %v2616 = vadd.f32 0.0, %v2615
      %v2617 = vpop.f32.mrb[0].mxu0
      %2618 = vmatprep.mubr.bf16.mxu0 0
      %2619 = vmatmul.mubr.bf16.gmra.mrb[0].mxu0 %v2511
      %v2620 = vpop.f32.mrb[0].mxu0
      %v2621 = vadd.f32 0.0, %v2620
      %v2622 = vpop.f32.mrb[0].mxu0
      %v2623 = vpop.f32.mrb[0].mxu0
      %v2624 = vadd.f32 0.0, %v2623
      %v2625 = vpop.f32.mrb[0].mxu0
      %2626 = vmatprep.mubr.bf16.mxu0 0
      %2627 = vmatmul.mubr.bf16.gmra.mrb[0].mxu0 %v2514
      %v2628 = vpop.f32.mrb[0].mxu0
      %v2629 = vadd.f32 0.0, %v2628
      %v2630 = vpop.f32.mrb[0].mxu0
      %v2631 = vpop.f32.mrb[0].mxu0
      %v2632 = vadd.f32 0.0, %v2631
      %v2633 = vpop.f32.mrb[0].mxu0
      %2634 = vmatprep.mubr.bf16.mxu0 0
      %2635 = vmatmul.mubr.bf16.gmra.mrb[0].mxu0 %v2517
      %v2636 = vpop.f32.mrb[0].mxu0
      %v2637 = vadd.f32 0.0, %v2636
      %v2638 = vpop.f32.mrb[0].mxu0
      %v2639 = vpop.f32.mrb[0].mxu0
      %v2640 = vadd.f32 0.0, %v2639
      %v2641 = vpop.f32.mrb[0].mxu0
      %2642 = vmatprep.mubr.bf16.mxu0 0
      %2643 = vmatmul.mubr.bf16.gmra.mrb[0].mxu0 %v2520
      %v2644 = vpop.f32.mrb[0].mxu0
      %v2645 = vadd.f32 0.0, %v2644
      %v2646 = vpop.f32.mrb[0].mxu0
      %v2647 = vpop.f32.mrb[0].mxu0
      %v2648 = vadd.f32 0.0, %v2647
      %v2649 = vpop.f32.mrb[0].mxu0
      %2650 = vmatprep.mubr.bf16.mxu0 0
      %2651 = vmatmul.mubr.bf16.gmra.mrb[0].mxu0 %v2523
      %v2652 = vpop.f32.mrb[0].mxu0
      %v2653 = vadd.f32 0.0, %v2652
      %v2654 = vpop.f32.mrb[0].mxu0
      %v2655 = vpop.f32.mrb[0].mxu0
      %v2656 = vadd.f32 0.0, %v2655
      %v2657 = vpop.f32.mrb[0].mxu0
      %2658 = vmatprep.mubr.bf16.mxu0 0
      %2659 = vmatmul.mubr.bf16.gmra.mrb[0].mxu0 %v2526
      %v2660 = vpop.f32.mrb[0].mxu0
      %v2661 = vadd.f32 0.0, %v2660
      %v2662 = vpop.f32.mrb[0].mxu0
      %v2663 = vpop.f32.mrb[0].mxu0
      %v2664 = vadd.f32 0.0, %v2663
      %v2665 = vpop.f32.mrb[0].mxu0
      %2666 = vmatprep.mubr.bf16.mxu0 0
      %2667 = vmatmul.mubr.bf16.gmra.mrb[0].mxu0 %v2529
      %v2668 = vpop.f32.mrb[0].mxu0
      %v2669 = vadd.f32 0.0, %v2668
      %v2670 = vpop.f32.mrb[0].mxu0
      %v2671 = vpop.f32.mrb[0].mxu0
      %v2672 = vadd.f32 0.0, %v2671
      %v2673 = vpop.f32.mrb[0].mxu0
      %2674 = vmatprep.mubr.bf16.mxu0 0
      %2675 = vmatmul.mubr.bf16.gmra.mrb[0].mxu0 %v2532
      %v2676 = vpop.f32.mrb[0].mxu0
      %v2677 = vadd.f32 0.0, %v2676
      %v2678 = vpop.f32.mrb[0].mxu0
      %v2679 = vpop.f32.mrb[0].mxu0
      %v2680 = vadd.f32 0.0, %v2679
      %v2681 = vpop.f32.mrb[0].mxu0
      %2682 = vmatprep.mubr.bf16.mxu0 0
      %2683 = vmatmul.mubr.bf16.gmra.mrb[0].mxu0 %v2535
      %v2684 = vpop.f32.mrb[0].mxu0
      %v2685 = vadd.f32 0.0, %v2684
      %v2686 = vpop.f32.mrb[0].mxu0
      %v2687 = vpop.f32.mrb[0].mxu0
      %v2688 = vadd.f32 0.0, %v2687
      %v2689 = vpop.f32.mrb[0].mxu0
      %2690 = vmatprep.mubr.bf16.mxu0 0
      %2691 = vmatmul.mubr.bf16.gmra.mrb[0].mxu0 %v2538
      %v2692 = vpop.f32.mrb[0].mxu0
      %v2693 = vadd.f32 0.0, %v2692
      %v2694 = vpop.f32.mrb[0].mxu0
      %v2695 = vpop.f32.mrb[0].mxu0
      %v2696 = vadd.f32 0.0, %v2695
      %v2697 = vpop.f32.mrb[0].mxu0
      %2698 = vmatprep.mubr.bf16.mxu0 0
      %2699 = vmatmul.mubr.bf16.gmra.mrb[0].mxu0 %v2541
      %v2700 = vpop.f32.mrb[0].mxu0
      %v2701 = vadd.f32 0.0, %v2700
      %v2702 = vpop.f32.mrb[0].mxu0
      %v2703 = vpop.f32.mrb[0].mxu0
      %v2704 = vadd.f32 0.0, %v2703
      %v2705 = vpop.f32.mrb[0].mxu0
      %2706 = vdwg.mxu0
      %v2707 = vadd.f32 %v2349, %v2581
      %v2708 = vadd.f32 %v2350, %v2584
      %v2709 = vadd.f32 %v2351, %v2589
      %v2710 = vadd.f32 %v2352, %v2592
      %v2711 = vadd.f32 %v2353, %v2597
      %v2712 = vadd.f32 %v2354, %v2600
      %v2713 = vadd.f32 %v2355, %v2605
      %v2714 = vadd.f32 %v2356, %v2608
      %v2715 = vadd.f32 %v2357, %v2613
      %v2716 = vadd.f32 %v2358, %v2616
      %v2717 = vadd.f32 %v2359, %v2621
      %v2718 = vadd.f32 %v2360, %v2624
      %v2719 = vadd.f32 %v2361, %v2629
      %v2720 = vadd.f32 %v2362, %v2632
      %v2721 = vadd.f32 %v2363, %v2637
      %v2722 = vadd.f32 %v2364, %v2640
      %v2723 = vadd.f32 %v2365, %v2645
      %v2724 = vadd.f32 %v2366, %v2648
      %v2725 = vadd.f32 %v2367, %v2653
      %v2726 = vadd.f32 %v2368, %v2656
      %v2727 = vadd.f32 %v2369, %v2661
      %v2728 = vadd.f32 %v2370, %v2664
      %v2729 = vadd.f32 %v2371, %v2669
      %v2730 = vadd.f32 %v2372, %v2672
      %v2731 = vadd.f32 %v2373, %v2677
      %v2732 = vadd.f32 %v2374, %v2680
      %v2733 = vadd.f32 %v2375, %v2685
      %v2734 = vadd.f32 %v2376, %v2688
      %v2735 = vadd.f32 %v2377, %v2693
      %v2736 = vadd.f32 %v2378, %v2696
      %v2737 = vadd.f32 %v2379, %v2701
      %v2738 = vadd.f32 %v2380, %v2704
      %v2739 = vld [vmem:[%s817] sm:$0xf]
      %v2740 = vld [vmem:[%s817 + $0x4] sm:$0xf]
      %v2741 = vld [vmem:[%s817 + $0x8] sm:$0x1]
      %v2742 = vld [vmem:[%s817 + $0xc] sm:$0xf]
      %v2743 = vld [vmem:[%s817 + $0x10] sm:$0xf]
      %v2744 = vld [vmem:[%s817 + $0x14] sm:$0x1]
      %v2745 = vld [vmem:[%s817 + $0x18] sm:$0xf]
      %v2746 = vld [vmem:[%s817 + $0x1c] sm:$0xf]
      %v2747 = vld [vmem:[%s817 + $0x20] sm:$0x1]
      %v2748 = vld [vmem:[%s817 + $0x24] sm:$0xf]
      %v2749 = vld [vmem:[%s817 + $0x28] sm:$0xf]
      %v2750 = vld [vmem:[%s817 + $0x2c] sm:$0x1]
      %v2751 = vld [vmem:[%s817 + $0x30] sm:$0xf]
      %v2752 = vld [vmem:[%s817 + $0x34] sm:$0xf]
      %v2753 = vld [vmem:[%s817 + $0x38] sm:$0x1]
      %v2754 = vld [vmem:[%s817 + $0x3c] sm:$0xf]
      %v2755 = vld [vmem:[%s817 + $0x40] sm:$0xf]
      %v2756 = vld [vmem:[%s817 + $0x44] sm:$0x1]
      %v2757 = vld [vmem:[%s817 + $0x48] sm:$0xf]
      %v2758 = vld [vmem:[%s817 + $0x4c] sm:$0xf]
      %v2759 = vld [vmem:[%s817 + $0x50] sm:$0x1]
      %v2760 = vld [vmem:[%s817 + $0x54] sm:$0xf]
      %v2761 = vld [vmem:[%s817 + $0x58] sm:$0xf]
      %v2762 = vld [vmem:[%s817 + $0x5c] sm:$0x1]
      %v2763 = vld [vmem:[%s817 + $0x60] sm:$0xf]
      %v2764 = vld [vmem:[%s817 + $0x64] sm:$0xf]
      %v2765 = vld [vmem:[%s817 + $0x68] sm:$0x1]
      %v2766 = vld [vmem:[%s817 + $0x6c] sm:$0xf]
      %v2767 = vld [vmem:[%s817 + $0x70] sm:$0xf]
      %v2768 = vld [vmem:[%s817 + $0x74] sm:$0x1]
      %v2769 = vld [vmem:[%s817 + $0x78] sm:$0xf]
      %v2770 = vld [vmem:[%s817 + $0x7c] sm:$0xf]
      %v2771 = vld [vmem:[%s817 + $0x80] sm:$0x1]
      %v2772 = vld [vmem:[%s817 + $0x84] sm:$0xf]
      %v2773 = vld [vmem:[%s817 + $0x88] sm:$0xf]
      %v2774 = vld [vmem:[%s817 + $0x8c] sm:$0x1]
      %v2775 = vld [vmem:[%s817 + $0x90] sm:$0xf]
      %v2776 = vld [vmem:[%s817 + $0x94] sm:$0xf]
      %v2777 = vld [vmem:[%s817 + $0x98] sm:$0x1]
      %v2778 = vld [vmem:[%s817 + $0x9c] sm:$0xf]
      %v2779 = vld [vmem:[%s817 + $0xa0] sm:$0xf]
      %v2780 = vld [vmem:[%s817 + $0xa4] sm:$0x1]
      %v2781 = vld [vmem:[%s817 + $0xa8] sm:$0xf]
      %v2782 = vld [vmem:[%s817 + $0xac] sm:$0xf]
      %v2783 = vld [vmem:[%s817 + $0xb0] sm:$0x1]
      %v2784 = vld [vmem:[%s817 + $0xb4] sm:$0xf]
      %v2785 = vld [vmem:[%s817 + $0xb8] sm:$0xf]
      %v2786 = vld [vmem:[%s817 + $0xbc] sm:$0x1]
      %s2787 = scalar_lea.vmem %s1, 8
      %v2788 = vld [vmem:[%s2787] sm:$0x3]
      %v2790 = vshrl.u32 %v2739, 16
      %v2792 = vrot.slane %v2790, 4
      %v2793 = vshll.u32 %v2739, 16
      %v2795 = vrot.slane %v2793, 5
      %v2796 = vor.u32 %v2792, %v2795
      %v2797 = vrot.slane %v2796, 4
      %v2799 = vshll.u32 %v2740, 16
      %v2801 = vrot.slane %v2799, 5
      %v2802 = vsel %vm985, %v2797, %v2801
      %v2803 = vshrl.u32 %v2740, 16
      %v2805 = vrot.slane %v2803, 4
      %v2806 = vor.u32 %v2805, %v2801
      %v2807 = vrot.slane %v2806, 4
      %v2809 = vshll.u32 %v2741, 16
      %v2811 = vrot.slane %v2809, 5
      %v2812 = vsel %vm985, %v2807, %v2811
      %v2814 = vshrl.u32 %v2742, 16
      %v2816 = vrot.slane %v2814, 4
      %v2817 = vshll.u32 %v2742, 16
      %v2819 = vrot.slane %v2817, 5
      %v2820 = vor.u32 %v2816, %v2819
      %v2821 = vrot.slane %v2820, 4
      %v2823 = vshll.u32 %v2743, 16
      %v2825 = vrot.slane %v2823, 5
      %v2826 = vsel %vm985, %v2821, %v2825
      %v2827 = vshrl.u32 %v2743, 16
      %v2829 = vrot.slane %v2827, 4
      %v2830 = vor.u32 %v2829, %v2825
      %v2831 = vrot.slane %v2830, 4
      %v2833 = vshll.u32 %v2744, 16
      %v2835 = vrot.slane %v2833, 5
      %v2836 = vsel %vm985, %v2831, %v2835
      %v2838 = vshrl.u32 %v2745, 16
      %v2840 = vrot.slane %v2838, 4
      %v2841 = vshll.u32 %v2745, 16
      %v2843 = vrot.slane %v2841, 5
      %v2844 = vor.u32 %v2840, %v2843
      %v2845 = vrot.slane %v2844, 4
      %v2847 = vshll.u32 %v2746, 16
      %v2849 = vrot.slane %v2847, 5
      %v2850 = vsel %vm985, %v2845, %v2849
      %v2851 = vshrl.u32 %v2746, 16
      %v2853 = vrot.slane %v2851, 4
      %v2854 = vor.u32 %v2853, %v2849
      %v2855 = vrot.slane %v2854, 4
      %v2857 = vshll.u32 %v2747, 16
      %v2859 = vrot.slane %v2857, 5
      %v2860 = vsel %vm985, %v2855, %v2859
      %v2862 = vshrl.u32 %v2748, 16
      %v2864 = vrot.slane %v2862, 4
      %v2865 = vshll.u32 %v2748, 16
      %v2867 = vrot.slane %v2865, 5
      %v2868 = vor.u32 %v2864, %v2867
      %v2869 = vrot.slane %v2868, 4
      %v2871 = vshll.u32 %v2749, 16
      %v2873 = vrot.slane %v2871, 5
      %v2874 = vsel %vm985, %v2869, %v2873
      %v2875 = vshrl.u32 %v2749, 16
      %v2877 = vrot.slane %v2875, 4
      %v2878 = vor.u32 %v2877, %v2873
      %v2879 = vrot.slane %v2878, 4
      %v2881 = vshll.u32 %v2750, 16
      %v2883 = vrot.slane %v2881, 5
      %v2884 = vsel %vm985, %v2879, %v2883
      %v2886 = vshrl.u32 %v2751, 16
      %v2888 = vrot.slane %v2886, 4
      %v2889 = vshll.u32 %v2751, 16
      %v2891 = vrot.slane %v2889, 5
      %v2892 = vor.u32 %v2888, %v2891
      %v2893 = vrot.slane %v2892, 4
      %v2895 = vshll.u32 %v2752, 16
      %v2897 = vrot.slane %v2895, 5
      %v2898 = vsel %vm985, %v2893, %v2897
      %v2899 = vshrl.u32 %v2752, 16
      %v2901 = vrot.slane %v2899, 4
      %v2902 = vor.u32 %v2901, %v2897
      %v2903 = vrot.slane %v2902, 4
      %v2905 = vshll.u32 %v2753, 16
      %v2907 = vrot.slane %v2905, 5
      %v2908 = vsel %vm985, %v2903, %v2907
      %v2910 = vshrl.u32 %v2754, 16
      %v2912 = vrot.slane %v2910, 4
      %v2913 = vshll.u32 %v2754, 16
      %v2915 = vrot.slane %v2913, 5
      %v2916 = vor.u32 %v2912, %v2915
      %v2917 = vrot.slane %v2916, 4
      %v2919 = vshll.u32 %v2755, 16
      %v2921 = vrot.slane %v2919, 5
      %v2922 = vsel %vm985, %v2917, %v2921
      %v2923 = vshrl.u32 %v2755, 16
      %v2925 = vrot.slane %v2923, 4
      %v2926 = vor.u32 %v2925, %v2921
      %v2927 = vrot.slane %v2926, 4
      %v2929 = vshll.u32 %v2756, 16
      %v2931 = vrot.slane %v2929, 5
      %v2932 = vsel %vm985, %v2927, %v2931
      %v2934 = vshrl.u32 %v2757, 16
      %v2936 = vrot.slane %v2934, 4
      %v2937 = vshll.u32 %v2757, 16
      %v2939 = vrot.slane %v2937, 5
      %v2940 = vor.u32 %v2936, %v2939
      %v2941 = vrot.slane %v2940, 4
      %v2943 = vshll.u32 %v2758, 16
      %v2945 = vrot.slane %v2943, 5
      %v2946 = vsel %vm985, %v2941, %v2945
      %v2947 = vshrl.u32 %v2758, 16
      %v2949 = vrot.slane %v2947, 4
      %v2950 = vor.u32 %v2949, %v2945
      %v2951 = vrot.slane %v2950, 4
      %v2953 = vshll.u32 %v2759, 16
      %v2955 = vrot.slane %v2953, 5
      %v2956 = vsel %vm985, %v2951, %v2955
      %v2958 = vshrl.u32 %v2760, 16
      %v2960 = vrot.slane %v2958, 4
      %v2961 = vshll.u32 %v2760, 16
      %v2963 = vrot.slane %v2961, 5
      %v2964 = vor.u32 %v2960, %v2963
      %v2965 = vrot.slane %v2964, 4
      %v2967 = vshll.u32 %v2761, 16
      %v2969 = vrot.slane %v2967, 5
      %v2970 = vsel %vm985, %v2965, %v2969
      %v2971 = vshrl.u32 %v2761, 16
      %v2973 = vrot.slane %v2971, 4
      %v2974 = vor.u32 %v2973, %v2969
      %v2975 = vrot.slane %v2974, 4
      %v2977 = vshll.u32 %v2762, 16
      %v2979 = vrot.slane %v2977, 5
      %v2980 = vsel %vm985, %v2975, %v2979
      %v2982 = vshrl.u32 %v2763, 16
      %v2984 = vrot.slane %v2982, 4
      %v2985 = vshll.u32 %v2763, 16
      %v2987 = vrot.slane %v2985, 5
      %v2988 = vor.u32 %v2984, %v2987
      %v2989 = vrot.slane %v2988, 4
      %v2991 = vshll.u32 %v2764, 16
      %v2993 = vrot.slane %v2991, 5
      %v2994 = vsel %vm985, %v2989, %v2993
      %v2995 = vshrl.u32 %v2764, 16
      %v2997 = vrot.slane %v2995, 4
      %v2998 = vor.u32 %v2997, %v2993
      %v2999 = vrot.slane %v2998, 4
      %v3001 = vshll.u32 %v2765, 16
      %v3003 = vrot.slane %v3001, 5
      %v3004 = vsel %vm985, %v2999, %v3003
      %v3006 = vshrl.u32 %v2766, 16
      %v3008 = vrot.slane %v3006, 4
      %v3009 = vshll.u32 %v2766, 16
      %v3011 = vrot.slane %v3009, 5
      %v3012 = vor.u32 %v3008, %v3011
      %v3013 = vrot.slane %v3012, 4
      %v3015 = vshll.u32 %v2767, 16
      %v3017 = vrot.slane %v3015, 5
      %v3018 = vsel %vm985, %v3013, %v3017
      %v3019 = vshrl.u32 %v2767, 16
      %v3021 = vrot.slane %v3019, 4
      %v3022 = vor.u32 %v3021, %v3017
      %v3023 = vrot.slane %v3022, 4
      %v3025 = vshll.u32 %v2768, 16
      %v3027 = vrot.slane %v3025, 5
      %v3028 = vsel %vm985, %v3023, %v3027
      %v3030 = vshrl.u32 %v2769, 16
      %v3032 = vrot.slane %v3030, 4
      %v3033 = vshll.u32 %v2769, 16
      %v3035 = vrot.slane %v3033, 5
      %v3036 = vor.u32 %v3032, %v3035
      %v3037 = vrot.slane %v3036, 4
      %v3039 = vshll.u32 %v2770, 16
      %v3041 = vrot.slane %v3039, 5
      %v3042 = vsel %vm985, %v3037, %v3041
      %v3043 = vshrl.u32 %v2770, 16
      %v3045 = vrot.slane %v3043, 4
      %v3046 = vor.u32 %v3045, %v3041
      %v3047 = vrot.slane %v3046, 4
      %v3049 = vshll.u32 %v2771, 16
      %v3051 = vrot.slane %v3049, 5
      %v3052 = vsel %vm985, %v3047, %v3051
      %v3054 = vshrl.u32 %v2772, 16
      %v3056 = vrot.slane %v3054, 4
      %v3057 = vshll.u32 %v2772, 16
      %v3059 = vrot.slane %v3057, 5
      %v3060 = vor.u32 %v3056, %v3059
      %v3061 = vrot.slane %v3060, 4
      %v3063 = vshll.u32 %v2773, 16
      %v3065 = vrot.slane %v3063, 5
      %v3066 = vsel %vm985, %v3061, %v3065
      %v3067 = vshrl.u32 %v2773, 16
      %v3069 = vrot.slane %v3067, 4
      %v3070 = vor.u32 %v3069, %v3065
      %v3071 = vrot.slane %v3070, 4
      %v3073 = vshll.u32 %v2774, 16
      %v3075 = vrot.slane %v3073, 5
      %v3076 = vsel %vm985, %v3071, %v3075
      %v3078 = vshrl.u32 %v2775, 16
      %v3080 = vrot.slane %v3078, 4
      %v3081 = vshll.u32 %v2775, 16
      %v3083 = vrot.slane %v3081, 5
      %v3084 = vor.u32 %v3080, %v3083
      %v3085 = vrot.slane %v3084, 4
      %v3087 = vshll.u32 %v2776, 16
      %v3089 = vrot.slane %v3087, 5
      %v3090 = vsel %vm985, %v3085, %v3089
      %v3091 = vshrl.u32 %v2776, 16
      %v3093 = vrot.slane %v3091, 4
      %v3094 = vor.u32 %v3093, %v3089
      %v3095 = vrot.slane %v3094, 4
      %v3097 = vshll.u32 %v2777, 16
      %v3099 = vrot.slane %v3097, 5
      %v3100 = vsel %vm985, %v3095, %v3099
      %v3102 = vshrl.u32 %v2778, 16
      %v3104 = vrot.slane %v3102, 4
      %v3105 = vshll.u32 %v2778, 16
      %v3107 = vrot.slane %v3105, 5
      %v3108 = vor.u32 %v3104, %v3107
      %v3109 = vrot.slane %v3108, 4
      %v3111 = vshll.u32 %v2779, 16
      %v3113 = vrot.slane %v3111, 5
      %v3114 = vsel %vm985, %v3109, %v3113
      %v3115 = vshrl.u32 %v2779, 16
      %v3117 = vrot.slane %v3115, 4
      %v3118 = vor.u32 %v3117, %v3113
      %v3119 = vrot.slane %v3118, 4
      %v3121 = vshll.u32 %v2780, 16
      %v3123 = vrot.slane %v3121, 5
      %v3124 = vsel %vm985, %v3119, %v3123
      %v3126 = vshrl.u32 %v2781, 16
      %v3128 = vrot.slane %v3126, 4
      %v3129 = vshll.u32 %v2781, 16
      %v3131 = vrot.slane %v3129, 5
      %v3132 = vor.u32 %v3128, %v3131
      %v3133 = vrot.slane %v3132, 4
      %v3135 = vshll.u32 %v2782, 16
      %v3137 = vrot.slane %v3135, 5
      %v3138 = vsel %vm985, %v3133, %v3137
      %v3139 = vshrl.u32 %v2782, 16
      %v3141 = vrot.slane %v3139, 4
      %v3142 = vor.u32 %v3141, %v3137
      %v3143 = vrot.slane %v3142, 4
      %v3145 = vshll.u32 %v2783, 16
      %v3147 = vrot.slane %v3145, 5
      %v3148 = vsel %vm985, %v3143, %v3147
      %v3150 = vshrl.u32 %v2784, 16
      %v3152 = vrot.slane %v3150, 4
      %v3153 = vshll.u32 %v2784, 16
      %v3155 = vrot.slane %v3153, 5
      %v3156 = vor.u32 %v3152, %v3155
      %v3157 = vrot.slane %v3156, 4
      %v3159 = vshll.u32 %v2785, 16
      %v3161 = vrot.slane %v3159, 5
      %v3162 = vsel %vm985, %v3157, %v3161
      %v3163 = vshrl.u32 %v2785, 16
      %v3165 = vrot.slane %v3163, 4
      %v3166 = vor.u32 %v3165, %v3161
      %v3167 = vrot.slane %v3166, 4
      %v3169 = vshll.u32 %v2786, 16
      %v3171 = vrot.slane %v3169, 5
      %v3172 = vsel %vm985, %v3167, %v3171
      %v3173 = vunpack.c.l.b16 %v2802
      %v3174 = vunpack.c.l.b16 %v2812
      %v3175 = vunpack.c.l.b16 %v2826
      %v3176 = vunpack.c.l.b16 %v2836
      %v3177 = vunpack.c.l.b16 %v2850
      %v3178 = vunpack.c.l.b16 %v2860
      %v3179 = vunpack.c.l.b16 %v2874
      %v3180 = vunpack.c.l.b16 %v2884
      %v3181 = vunpack.c.l.b16 %v2898
      %v3182 = vunpack.c.l.b16 %v2908
      %v3183 = vunpack.c.l.b16 %v2922
      %v3184 = vunpack.c.l.b16 %v2932
      %v3185 = vunpack.c.l.b16 %v2946
      %v3186 = vunpack.c.l.b16 %v2956
      %v3187 = vunpack.c.l.b16 %v2970
      %v3188 = vunpack.c.l.b16 %v2980
      %v3189 = vunpack.c.l.b16 %v2994
      %v3190 = vunpack.c.l.b16 %v3004
      %v3191 = vunpack.c.l.b16 %v3018
      %v3192 = vunpack.c.l.b16 %v3028
      %v3193 = vunpack.c.l.b16 %v3042
      %v3194 = vunpack.c.l.b16 %v3052
      %v3195 = vunpack.c.l.b16 %v3066
      %v3196 = vunpack.c.l.b16 %v3076
      %v3197 = vunpack.c.l.b16 %v3090
      %v3198 = vunpack.c.l.b16 %v3100
      %v3199 = vunpack.c.l.b16 %v3114
      %v3200 = vunpack.c.l.b16 %v3124
      %v3201 = vunpack.c.l.b16 %v3138
      %v3202 = vunpack.c.l.b16 %v3148
      %v3203 = vunpack.c.l.b16 %v3162
      %v3204 = vunpack.c.l.b16 %v3172
      %v3205 = vpack.c.b16 %v3174, %v3173
      %v3206 = vpack.c.b16 %v3176, %v3175
      %v3207 = vpack.c.b16 %v3178, %v3177
      %v3208 = vpack.c.b16 %v3180, %v3179
      %v3209 = vpack.c.b16 %v3182, %v3181
      %v3210 = vpack.c.b16 %v3184, %v3183
      %v3211 = vpack.c.b16 %v3186, %v3185
      %v3212 = vpack.c.b16 %v3188, %v3187
      %v3213 = vpack.c.b16 %v3190, %v3189
      %v3214 = vpack.c.b16 %v3192, %v3191
      %v3215 = vpack.c.b16 %v3194, %v3193
      %v3216 = vpack.c.b16 %v3196, %v3195
      %v3217 = vpack.c.b16 %v3198, %v3197
      %v3218 = vpack.c.b16 %v3200, %v3199
      %v3219 = vpack.c.b16 %v3202, %v3201
      %v3220 = vpack.c.b16 %v3204, %v3203
      %v3222 = vsel %vm1418, %v3205, 0
      %v3225 = vsel %vm1418, %v3206, 0
      %v3228 = vsel %vm1418, %v3207, 0
      %v3231 = vsel %vm1418, %v3208, 0
      %v3234 = vsel %vm1418, %v3209, 0
      %v3237 = vsel %vm1418, %v3210, 0
      %v3240 = vsel %vm1418, %v3211, 0
      %v3243 = vsel %vm1418, %v3212, 0
      %v3246 = vsel %vm1418, %v3213, 0
      %v3249 = vsel %vm1418, %v3214, 0
      %v3252 = vsel %vm1418, %v3215, 0
      %v3255 = vsel %vm1418, %v3216, 0
      %v3258 = vsel %vm1418, %v3217, 0
      %v3261 = vsel %vm1418, %v3218, 0
      %v3264 = vsel %vm1418, %v3219, 0
      %v3267 = vsel %vm1418, %v3220, 0
      %v3270 = vsel %vm1467, %v2788, 0
      %3272 = vmatprep.subr.bf16.mxu0 0
      %3273 = vmatpush1.bf16.msra.mxu0 %v3270
      %3274 = vmatprep.subr.bf16.mxu0 0
      %3275 = vmatpush1.bf16.msra.mxu0 0
      %3276 = vmatprep.subr.bf16.mxu0 0
      %3277 = vmatpush1.bf16.msra.mxu0 0
      %3278 = vmatprep.subr.bf16.mxu0 0
      %3279 = vmatpush1.bf16.msra.mxu0 0
      %3280 = vmatprep.subr.bf16.mxu0 0
      %3281 = vmatpush1.bf16.msra.mxu0 0
      %3282 = vmatprep.subr.bf16.mxu0 0
      %3283 = vmatpush1.bf16.msra.mxu0 0
      %3284 = vmatprep.subr.bf16.mxu0 0
      %3285 = vmatpush1.bf16.msra.mxu0 0
      %3286 = vmatprep.subr.bf16.mxu0 0
      %3287 = vmatpush1.bf16.msra.mxu0 0
      %3288 = vmatprep.subr.bf16.mxu0 0
      %3289 = vmatpush1.bf16.msra.mxu0 0
      %3290 = vmatprep.subr.bf16.mxu0 0
      %3291 = vmatpush1.bf16.msra.mxu0 0
      %3292 = vmatprep.subr.bf16.mxu0 0
      %3293 = vmatpush1.bf16.msra.mxu0 0
      %3294 = vmatprep.subr.bf16.mxu0 0
      %3295 = vmatpush1.bf16.msra.mxu0 0
      %3296 = vmatprep.subr.bf16.mxu0 0
      %3297 = vmatpush1.bf16.msra.mxu0 0
      %3298 = vmatprep.subr.bf16.mxu0 0
      %3299 = vmatpush1.bf16.msra.mxu0 0
      %3300 = vmatprep.subr.bf16.mxu0 0
      %3301 = vmatpush1.bf16.msra.mxu0 0
      %3302 = vmatprep.subr.bf16.mxu0 0
      %3303 = vmatpush1.bf16.msra.mxu0 0
      %3304 = vmatprep.mubr.bf16.mxu0 0
      %3305 = vmatmul.mubr.bf16.gmra.mrb[0].mxu0 %v3222
      %v3306 = vpop.f32.mrb[0].mxu0
      %v3307 = vadd.f32 0.0, %v3306
      %v3308 = vpop.f32.mrb[0].mxu0
      %v3309 = vpop.f32.mrb[0].mxu0
      %v3310 = vadd.f32 0.0, %v3309
      %v3311 = vpop.f32.mrb[0].mxu0
      %3312 = vmatprep.mubr.bf16.mxu0 0
      %3313 = vmatmul.mubr.bf16.gmra.mrb[0].mxu0 %v3225
      %v3314 = vpop.f32.mrb[0].mxu0
      %v3315 = vadd.f32 0.0, %v3314
      %v3316 = vpop.f32.mrb[0].mxu0
      %v3317 = vpop.f32.mrb[0].mxu0
      %v3318 = vadd.f32 0.0, %v3317
      %v3319 = vpop.f32.mrb[0].mxu0
      %3320 = vmatprep.mubr.bf16.mxu0 0
      %3321 = vmatmul.mubr.bf16.gmra.mrb[0].mxu0 %v3228
      %v3322 = vpop.f32.mrb[0].mxu0
      %v3323 = vadd.f32 0.0, %v3322
      %v3324 = vpop.f32.mrb[0].mxu0
      %v3325 = vpop.f32.mrb[0].mxu0
      %v3326 = vadd.f32 0.0, %v3325
      %v3327 = vpop.f32.mrb[0].mxu0
      %3328 = vmatprep.mubr.bf16.mxu0 0
      %3329 = vmatmul.mubr.bf16.gmra.mrb[0].mxu0 %v3231
      %v3330 = vpop.f32.mrb[0].mxu0
      %v3331 = vadd.f32 0.0, %v3330
      %v3332 = vpop.f32.mrb[0].mxu0
      %v3333 = vpop.f32.mrb[0].mxu0
      %v3334 = vadd.f32 0.0, %v3333
      %v3335 = vpop.f32.mrb[0].mxu0
      %3336 = vmatprep.mubr.bf16.mxu0 0
      %3337 = vmatmul.mubr.bf16.gmra.mrb[0].mxu0 %v3234
      %v3338 = vpop.f32.mrb[0].mxu0
      %v3339 = vadd.f32 0.0, %v3338
      %v3340 = vpop.f32.mrb[0].mxu0
      %v3341 = vpop.f32.mrb[0].mxu0
      %v3342 = vadd.f32 0.0, %v3341
      %v3343 = vpop.f32.mrb[0].mxu0
      %3344 = vmatprep.mubr.bf16.mxu0 0
      %3345 = vmatmul.mubr.bf16.gmra.mrb[0].mxu0 %v3237
      %v3346 = vpop.f32.mrb[0].mxu0
      %v3347 = vadd.f32 0.0, %v3346
      %v3348 = vpop.f32.mrb[0].mxu0
      %v3349 = vpop.f32.mrb[0].mxu0
      %v3350 = vadd.f32 0.0, %v3349
      %v3351 = vpop.f32.mrb[0].mxu0
      %3352 = vmatprep.mubr.bf16.mxu0 0
      %3353 = vmatmul.mubr.bf16.gmra.mrb[0].mxu0 %v3240
      %v3354 = vpop.f32.mrb[0].mxu0
      %v3355 = vadd.f32 0.0, %v3354
      %v3356 = vpop.f32.mrb[0].mxu0
      %v3357 = vpop.f32.mrb[0].mxu0
      %v3358 = vadd.f32 0.0, %v3357
      %v3359 = vpop.f32.mrb[0].mxu0
      %3360 = vmatprep.mubr.bf16.mxu0 0
      %3361 = vmatmul.mubr.bf16.gmra.mrb[0].mxu0 %v3243
      %v3362 = vpop.f32.mrb[0].mxu0
      %v3363 = vadd.f32 0.0, %v3362
      %v3364 = vpop.f32.mrb[0].mxu0
      %v3365 = vpop.f32.mrb[0].mxu0
      %v3366 = vadd.f32 0.0, %v3365
      %v3367 = vpop.f32.mrb[0].mxu0
      %3368 = vmatprep.mubr.bf16.mxu0 0
      %3369 = vmatmul.mubr.bf16.gmra.mrb[0].mxu0 %v3246
      %v3370 = vpop.f32.mrb[0].mxu0
      %v3371 = vadd.f32 0.0, %v3370
      %v3372 = vpop.f32.mrb[0].mxu0
      %v3373 = vpop.f32.mrb[0].mxu0
      %v3374 = vadd.f32 0.0, %v3373
      %v3375 = vpop.f32.mrb[0].mxu0
      %3376 = vmatprep.mubr.bf16.mxu0 0
      %3377 = vmatmul.mubr.bf16.gmra.mrb[0].mxu0 %v3249
      %v3378 = vpop.f32.mrb[0].mxu0
      %v3379 = vadd.f32 0.0, %v3378
      %v3380 = vpop.f32.mrb[0].mxu0
      %v3381 = vpop.f32.mrb[0].mxu0
      %v3382 = vadd.f32 0.0, %v3381
      %v3383 = vpop.f32.mrb[0].mxu0
      %3384 = vmatprep.mubr.bf16.mxu0 0
      %3385 = vmatmul.mubr.bf16.gmra.mrb[0].mxu0 %v3252
      %v3386 = vpop.f32.mrb[0].mxu0
      %v3387 = vadd.f32 0.0, %v3386
      %v3388 = vpop.f32.mrb[0].mxu0
      %v3389 = vpop.f32.mrb[0].mxu0
      %v3390 = vadd.f32 0.0, %v3389
      %v3391 = vpop.f32.mrb[0].mxu0
      %3392 = vmatprep.mubr.bf16.mxu0 0
      %3393 = vmatmul.mubr.bf16.gmra.mrb[0].mxu0 %v3255
      %v3394 = vpop.f32.mrb[0].mxu0
      %v3395 = vadd.f32 0.0, %v3394
      %v3396 = vpop.f32.mrb[0].mxu0
      %v3397 = vpop.f32.mrb[0].mxu0
      %v3398 = vadd.f32 0.0, %v3397
      %v3399 = vpop.f32.mrb[0].mxu0
      %3400 = vmatprep.mubr.bf16.mxu0 0
      %3401 = vmatmul.mubr.bf16.gmra.mrb[0].mxu0 %v3258
      %v3402 = vpop.f32.mrb[0].mxu0
      %v3403 = vadd.f32 0.0, %v3402
      %v3404 = vpop.f32.mrb[0].mxu0
      %v3405 = vpop.f32.mrb[0].mxu0
      %v3406 = vadd.f32 0.0, %v3405
      %v3407 = vpop.f32.mrb[0].mxu0
      %3408 = vmatprep.mubr.bf16.mxu0 0
      %3409 = vmatmul.mubr.bf16.gmra.mrb[0].mxu0 %v3261
      %v3410 = vpop.f32.mrb[0].mxu0
      %v3411 = vadd.f32 0.0, %v3410
      %v3412 = vpop.f32.mrb[0].mxu0
      %v3413 = vpop.f32.mrb[0].mxu0
      %v3414 = vadd.f32 0.0, %v3413
      %v3415 = vpop.f32.mrb[0].mxu0
      %3416 = vmatprep.mubr.bf16.mxu0 0
      %3417 = vmatmul.mubr.bf16.gmra.mrb[0].mxu0 %v3264
      %v3418 = vpop.f32.mrb[0].mxu0
      %v3419 = vadd.f32 0.0, %v3418
      %v3420 = vpop.f32.mrb[0].mxu0
      %v3421 = vpop.f32.mrb[0].mxu0
      %v3422 = vadd.f32 0.0, %v3421
      %v3423 = vpop.f32.mrb[0].mxu0
      %3424 = vmatprep.mubr.bf16.mxu0 0
      %3425 = vmatmul.mubr.bf16.gmra.mrb[0].mxu0 %v3267
      %v3426 = vpop.f32.mrb[0].mxu0
      %v3427 = vadd.f32 0.0, %v3426
      %v3428 = vpop.f32.mrb[0].mxu0
      %v3429 = vpop.f32.mrb[0].mxu0
      %v3430 = vadd.f32 0.0, %v3429
      %v3431 = vpop.f32.mrb[0].mxu0
      %3432 = vdwg.mxu0
      %v3433 = vadd.f32 %v2707, %v3307
      %v3434 = vadd.f32 %v2708, %v3310
      %v3435 = vadd.f32 %v2709, %v3315
      %v3436 = vadd.f32 %v2710, %v3318
      %v3437 = vadd.f32 %v2711, %v3323
      %v3438 = vadd.f32 %v2712, %v3326
      %v3439 = vadd.f32 %v2713, %v3331
      %v3440 = vadd.f32 %v2714, %v3334
      %v3441 = vadd.f32 %v2715, %v3339
      %v3442 = vadd.f32 %v2716, %v3342
      %v3443 = vadd.f32 %v2717, %v3347
      %v3444 = vadd.f32 %v2718, %v3350
      %v3445 = vadd.f32 %v2719, %v3355
      %v3446 = vadd.f32 %v2720, %v3358
      %v3447 = vadd.f32 %v2721, %v3363
      %v3448 = vadd.f32 %v2722, %v3366
      %v3449 = vadd.f32 %v2723, %v3371
      %v3450 = vadd.f32 %v2724, %v3374
      %v3451 = vadd.f32 %v2725, %v3379
      %v3452 = vadd.f32 %v2726, %v3382
      %v3453 = vadd.f32 %v2727, %v3387
      %v3454 = vadd.f32 %v2728, %v3390
      %v3455 = vadd.f32 %v2729, %v3395
      %v3456 = vadd.f32 %v2730, %v3398
      %v3457 = vadd.f32 %v2731, %v3403
      %v3458 = vadd.f32 %v2732, %v3406
      %v3459 = vadd.f32 %v2733, %v3411
      %v3460 = vadd.f32 %v2734, %v3414
      %v3461 = vadd.f32 %v2735, %v3419
      %v3462 = vadd.f32 %v2736, %v3422
      %v3463 = vadd.f32 %v2737, %v3427
      %v3464 = vadd.f32 %v2738, %v3430
      %v3465 = vld [vmem:[%s817] sm:$0xe]
      %v3466 = vld [vmem:[%s817 + $0xc] sm:$0xe]
      %v3467 = vld [vmem:[%s817 + $0x18] sm:$0xe]
      %v3468 = vld [vmem:[%s817 + $0x24] sm:$0xe]
      %v3469 = vld [vmem:[%s817 + $0x30] sm:$0xe]
      %v3470 = vld [vmem:[%s817 + $0x3c] sm:$0xe]
      %v3471 = vld [vmem:[%s817 + $0x48] sm:$0xe]
      %v3472 = vld [vmem:[%s817 + $0x54] sm:$0xe]
      %v3473 = vld [vmem:[%s817 + $0x60] sm:$0xe]
      %v3474 = vld [vmem:[%s817 + $0x6c] sm:$0xe]
      %v3475 = vld [vmem:[%s817 + $0x78] sm:$0xe]
      %v3476 = vld [vmem:[%s817 + $0x84] sm:$0xe]
      %v3477 = vld [vmem:[%s817 + $0x90] sm:$0xe]
      %v3478 = vld [vmem:[%s817 + $0x9c] sm:$0xe]
      %v3479 = vld [vmem:[%s817 + $0xa8] sm:$0xe]
      %v3480 = vld [vmem:[%s817 + $0xb4] sm:$0xe]
      %s3481 = scalar_lea.vmem %s1, 10
      %v3482 = vld [vmem:[%s3481] sm:$0x3]
      %v3531 = vrot.slane %v3465, 5
      %v3532 = vrot.slane %v3531, 4
      %v3533 = vrot.slane %v2740, 5
      %v3534 = vsel %vm1976, %v3532, %v3533
      %v3535 = vrot.slane %v3533, 4
      %v3536 = vrot.slane %v2741, 5
      %v3537 = vsel %vm1976, %v3535, %v3536
      %v3538 = vrot.slane %v3466, 5
      %v3539 = vrot.slane %v3538, 4
      %v3540 = vrot.slane %v2743, 5
      %v3541 = vsel %vm1976, %v3539, %v3540
      %v3542 = vrot.slane %v3540, 4
      %v3543 = vrot.slane %v2744, 5
      %v3544 = vsel %vm1976, %v3542, %v3543
      %v3545 = vrot.slane %v3467, 5
      %v3546 = vrot.slane %v3545, 4
      %v3547 = vrot.slane %v2746, 5
      %v3548 = vsel %vm1976, %v3546, %v3547
      %v3549 = vrot.slane %v3547, 4
      %v3550 = vrot.slane %v2747, 5
      %v3551 = vsel %vm1976, %v3549, %v3550
      %v3552 = vrot.slane %v3468, 5
      %v3553 = vrot.slane %v3552, 4
      %v3554 = vrot.slane %v2749, 5
      %v3555 = vsel %vm1976, %v3553, %v3554
      %v3556 = vrot.slane %v3554, 4
      %v3557 = vrot.slane %v2750, 5
      %v3558 = vsel %vm1976, %v3556, %v3557
      %v3559 = vrot.slane %v3469, 5
      %v3560 = vrot.slane %v3559, 4
      %v3561 = vrot.slane %v2752, 5
      %v3562 = vsel %vm1976, %v3560, %v3561
      %v3563 = vrot.slane %v3561, 4
      %v3564 = vrot.slane %v2753, 5
      %v3565 = vsel %vm1976, %v3563, %v3564
      %v3566 = vrot.slane %v3470, 5
      %v3567 = vrot.slane %v3566, 4
      %v3568 = vrot.slane %v2755, 5
      %v3569 = vsel %vm1976, %v3567, %v3568
      %v3570 = vrot.slane %v3568, 4
      %v3571 = vrot.slane %v2756, 5
      %v3572 = vsel %vm1976, %v3570, %v3571
      %v3573 = vrot.slane %v3471, 5
      %v3574 = vrot.slane %v3573, 4
      %v3575 = vrot.slane %v2758, 5
      %v3576 = vsel %vm1976, %v3574, %v3575
      %v3577 = vrot.slane %v3575, 4
      %v3578 = vrot.slane %v2759, 5
      %v3579 = vsel %vm1976, %v3577, %v3578
      %v3580 = vrot.slane %v3472, 5
      %v3581 = vrot.slane %v3580, 4
      %v3582 = vrot.slane %v2761, 5
      %v3583 = vsel %vm1976, %v3581, %v3582
      %v3584 = vrot.slane %v3582, 4
      %v3585 = vrot.slane %v2762, 5
      %v3586 = vsel %vm1976, %v3584, %v3585
      %v3587 = vrot.slane %v3473, 5
      %v3588 = vrot.slane %v3587, 4
      %v3589 = vrot.slane %v2764, 5
      %v3590 = vsel %vm1976, %v3588, %v3589
      %v3591 = vrot.slane %v3589, 4
      %v3592 = vrot.slane %v2765, 5
      %v3593 = vsel %vm1976, %v3591, %v3592
      %v3594 = vrot.slane %v3474, 5
      %v3595 = vrot.slane %v3594, 4
      %v3596 = vrot.slane %v2767, 5
      %v3597 = vsel %vm1976, %v3595, %v3596
      %v3598 = vrot.slane %v3596, 4
      %v3599 = vrot.slane %v2768, 5
      %v3600 = vsel %vm1976, %v3598, %v3599
      %v3601 = vrot.slane %v3475, 5
      %v3602 = vrot.slane %v3601, 4
      %v3603 = vrot.slane %v2770, 5
      %v3604 = vsel %vm1976, %v3602, %v3603
      %v3605 = vrot.slane %v3603, 4
      %v3606 = vrot.slane %v2771, 5
      %v3607 = vsel %vm1976, %v3605, %v3606
      %v3608 = vrot.slane %v3476, 5
      %v3609 = vrot.slane %v3608, 4
      %v3610 = vrot.slane %v2773, 5
      %v3611 = vsel %vm1976, %v3609, %v3610
      %v3612 = vrot.slane %v3610, 4
      %v3613 = vrot.slane %v2774, 5
      %v3614 = vsel %vm1976, %v3612, %v3613
      %v3615 = vrot.slane %v3477, 5
      %v3616 = vrot.slane %v3615, 4
      %v3617 = vrot.slane %v2776, 5
      %v3618 = vsel %vm1976, %v3616, %v3617
      %v3619 = vrot.slane %v3617, 4
      %v3620 = vrot.slane %v2777, 5
      %v3621 = vsel %vm1976, %v3619, %v3620
      %v3622 = vrot.slane %v3478, 5
      %v3623 = vrot.slane %v3622, 4
      %v3624 = vrot.slane %v2779, 5
      %v3625 = vsel %vm1976, %v3623, %v3624
      %v3626 = vrot.slane %v3624, 4
      %v3627 = vrot.slane %v2780, 5
      %v3628 = vsel %vm1976, %v3626, %v3627
      %v3629 = vrot.slane %v3479, 5
      %v3630 = vrot.slane %v3629, 4
      %v3631 = vrot.slane %v2782, 5
      %v3632 = vsel %vm1976, %v3630, %v3631
      %v3633 = vrot.slane %v3631, 4
      %v3634 = vrot.slane %v2783, 5
      %v3635 = vsel %vm1976, %v3633, %v3634
      %v3636 = vrot.slane %v3480, 5
      %v3637 = vrot.slane %v3636, 4
      %v3638 = vrot.slane %v2785, 5
      %v3639 = vsel %vm1976, %v3637, %v3638
      %v3640 = vrot.slane %v3638, 4
      %v3641 = vrot.slane %v2786, 5
      %v3642 = vsel %vm1976, %v3640, %v3641
      %v3643 = vunpack.c.l.b16 %v3534
      %v3644 = vunpack.c.l.b16 %v3537
      %v3645 = vunpack.c.l.b16 %v3541
      %v3646 = vunpack.c.l.b16 %v3544
      %v3647 = vunpack.c.l.b16 %v3548
      %v3648 = vunpack.c.l.b16 %v3551
      %v3649 = vunpack.c.l.b16 %v3555
      %v3650 = vunpack.c.l.b16 %v3558
      %v3651 = vunpack.c.l.b16 %v3562
      %v3652 = vunpack.c.l.b16 %v3565
      %v3653 = vunpack.c.l.b16 %v3569
      %v3654 = vunpack.c.l.b16 %v3572
      %v3655 = vunpack.c.l.b16 %v3576
      %v3656 = vunpack.c.l.b16 %v3579
      %v3657 = vunpack.c.l.b16 %v3583
      %v3658 = vunpack.c.l.b16 %v3586
      %v3659 = vunpack.c.l.b16 %v3590
      %v3660 = vunpack.c.l.b16 %v3593
      %v3661 = vunpack.c.l.b16 %v3597
      %v3662 = vunpack.c.l.b16 %v3600
      %v3663 = vunpack.c.l.b16 %v3604
      %v3664 = vunpack.c.l.b16 %v3607
      %v3665 = vunpack.c.l.b16 %v3611
      %v3666 = vunpack.c.l.b16 %v3614
      %v3667 = vunpack.c.l.b16 %v3618
      %v3668 = vunpack.c.l.b16 %v3621
      %v3669 = vunpack.c.l.b16 %v3625
      %v3670 = vunpack.c.l.b16 %v3628
      %v3671 = vunpack.c.l.b16 %v3632
      %v3672 = vunpack.c.l.b16 %v3635
      %v3673 = vunpack.c.l.b16 %v3639
      %v3674 = vunpack.c.l.b16 %v3642
      %v3675 = vpack.c.b16 %v3644, %v3643
      %v3676 = vpack.c.b16 %v3646, %v3645
      %v3677 = vpack.c.b16 %v3648, %v3647
      %v3678 = vpack.c.b16 %v3650, %v3649
      %v3679 = vpack.c.b16 %v3652, %v3651
      %v3680 = vpack.c.b16 %v3654, %v3653
      %v3681 = vpack.c.b16 %v3656, %v3655
      %v3682 = vpack.c.b16 %v3658, %v3657
      %v3683 = vpack.c.b16 %v3660, %v3659
      %v3684 = vpack.c.b16 %v3662, %v3661
      %v3685 = vpack.c.b16 %v3664, %v3663
      %v3686 = vpack.c.b16 %v3666, %v3665
      %v3687 = vpack.c.b16 %v3668, %v3667
      %v3688 = vpack.c.b16 %v3670, %v3669
      %v3689 = vpack.c.b16 %v3672, %v3671
      %v3690 = vpack.c.b16 %v3674, %v3673
      %v3692 = vsel %vm1418, %v3675, 0
      %v3695 = vsel %vm1418, %v3676, 0
      %v3698 = vsel %vm1418, %v3677, 0
      %v3701 = vsel %vm1418, %v3678, 0
      %v3704 = vsel %vm1418, %v3679, 0
      %v3707 = vsel %vm1418, %v3680, 0
      %v3710 = vsel %vm1418, %v3681, 0
      %v3713 = vsel %vm1418, %v3682, 0
      %v3716 = vsel %vm1418, %v3683, 0
      %v3719 = vsel %vm1418, %v3684, 0
      %v3722 = vsel %vm1418, %v3685, 0
      %v3725 = vsel %vm1418, %v3686, 0
      %v3728 = vsel %vm1418, %v3687, 0
      %v3731 = vsel %vm1418, %v3688, 0
      %v3734 = vsel %vm1418, %v3689, 0
      %v3737 = vsel %vm1418, %v3690, 0
      %v3740 = vsel %vm1467, %v3482, 0
      %3742 = vmatprep.subr.bf16.mxu0 0
      %3743 = vmatpush1.bf16.msra.mxu0 %v3740
      %3744 = vmatprep.subr.bf16.mxu0 0
      %3745 = vmatpush1.bf16.msra.mxu0 0
      %3746 = vmatprep.subr.bf16.mxu0 0
      %3747 = vmatpush1.bf16.msra.mxu0 0
      %3748 = vmatprep.subr.bf16.mxu0 0
      %3749 = vmatpush1.bf16.msra.mxu0 0
      %3750 = vmatprep.subr.bf16.mxu0 0
      %3751 = vmatpush1.bf16.msra.mxu0 0
      %3752 = vmatprep.subr.bf16.mxu0 0
      %3753 = vmatpush1.bf16.msra.mxu0 0
      %3754 = vmatprep.subr.bf16.mxu0 0
      %3755 = vmatpush1.bf16.msra.mxu0 0
      %3756 = vmatprep.subr.bf16.mxu0 0
      %3757 = vmatpush1.bf16.msra.mxu0 0
      %3758 = vmatprep.subr.bf16.mxu0 0
      %3759 = vmatpush1.bf16.msra.mxu0 0
      %3760 = vmatprep.subr.bf16.mxu0 0
      %3761 = vmatpush1.bf16.msra.mxu0 0
      %3762 = vmatprep.subr.bf16.mxu0 0
      %3763 = vmatpush1.bf16.msra.mxu0 0
      %3764 = vmatprep.subr.bf16.mxu0 0
      %3765 = vmatpush1.bf16.msra.mxu0 0
      %3766 = vmatprep.subr.bf16.mxu0 0
      %3767 = vmatpush1.bf16.msra.mxu0 0
      %3768 = vmatprep.subr.bf16.mxu0 0
      %3769 = vmatpush1.bf16.msra.mxu0 0
      %3770 = vmatprep.subr.bf16.mxu0 0
      %3771 = vmatpush1.bf16.msra.mxu0 0
      %3772 = vmatprep.subr.bf16.mxu0 0
      %3773 = vmatpush1.bf16.msra.mxu0 0
      %3774 = vmatprep.mubr.bf16.mxu0 0
      %3775 = vmatmul.mubr.bf16.gmra.mrb[0].mxu0 %v3692
      %v3776 = vpop.f32.mrb[0].mxu0
      %v3777 = vadd.f32 0.0, %v3776
      %v3778 = vpop.f32.mrb[0].mxu0
      %v3779 = vpop.f32.mrb[0].mxu0
      %v3780 = vadd.f32 0.0, %v3779
      %v3781 = vpop.f32.mrb[0].mxu0
      %3782 = vmatprep.mubr.bf16.mxu0 0
      %3783 = vmatmul.mubr.bf16.gmra.mrb[0].mxu0 %v3695
      %v3784 = vpop.f32.mrb[0].mxu0
      %v3785 = vadd.f32 0.0, %v3784
      %v3786 = vpop.f32.mrb[0].mxu0
      %v3787 = vpop.f32.mrb[0].mxu0
      %v3788 = vadd.f32 0.0, %v3787
      %v3789 = vpop.f32.mrb[0].mxu0
      %3790 = vmatprep.mubr.bf16.mxu0 0
      %3791 = vmatmul.mubr.bf16.gmra.mrb[0].mxu0 %v3698
      %v3792 = vpop.f32.mrb[0].mxu0
      %v3793 = vadd.f32 0.0, %v3792
      %v3794 = vpop.f32.mrb[0].mxu0
      %v3795 = vpop.f32.mrb[0].mxu0
      %v3796 = vadd.f32 0.0, %v3795
      %v3797 = vpop.f32.mrb[0].mxu0
      %3798 = vmatprep.mubr.bf16.mxu0 0
      %3799 = vmatmul.mubr.bf16.gmra.mrb[0].mxu0 %v3701
      %v3800 = vpop.f32.mrb[0].mxu0
      %v3801 = vadd.f32 0.0, %v3800
      %v3802 = vpop.f32.mrb[0].mxu0
      %v3803 = vpop.f32.mrb[0].mxu0
      %v3804 = vadd.f32 0.0, %v3803
      %v3805 = vpop.f32.mrb[0].mxu0
      %3806 = vmatprep.mubr.bf16.mxu0 0
      %3807 = vmatmul.mubr.bf16.gmra.mrb[0].mxu0 %v3704
      %v3808 = vpop.f32.mrb[0].mxu0
      %v3809 = vadd.f32 0.0, %v3808
      %v3810 = vpop.f32.mrb[0].mxu0
      %v3811 = vpop.f32.mrb[0].mxu0
      %v3812 = vadd.f32 0.0, %v3811
      %v3813 = vpop.f32.mrb[0].mxu0
      %3814 = vmatprep.mubr.bf16.mxu0 0
      %3815 = vmatmul.mubr.bf16.gmra.mrb[0].mxu0 %v3707
      %v3816 = vpop.f32.mrb[0].mxu0
      %v3817 = vadd.f32 0.0, %v3816
      %v3818 = vpop.f32.mrb[0].mxu0
      %v3819 = vpop.f32.mrb[0].mxu0
      %v3820 = vadd.f32 0.0, %v3819
      %v3821 = vpop.f32.mrb[0].mxu0
      %3822 = vmatprep.mubr.bf16.mxu0 0
      %3823 = vmatmul.mubr.bf16.gmra.mrb[0].mxu0 %v3710
      %v3824 = vpop.f32.mrb[0].mxu0
      %v3825 = vadd.f32 0.0, %v3824
      %v3826 = vpop.f32.mrb[0].mxu0
      %v3827 = vpop.f32.mrb[0].mxu0
      %v3828 = vadd.f32 0.0, %v3827
      %v3829 = vpop.f32.mrb[0].mxu0
      %3830 = vmatprep.mubr.bf16.mxu0 0
      %3831 = vmatmul.mubr.bf16.gmra.mrb[0].mxu0 %v3713
      %v3832 = vpop.f32.mrb[0].mxu0
      %v3833 = vadd.f32 0.0, %v3832
      %v3834 = vpop.f32.mrb[0].mxu0
      %v3835 = vpop.f32.mrb[0].mxu0
      %v3836 = vadd.f32 0.0, %v3835
      %v3837 = vpop.f32.mrb[0].mxu0
      %3838 = vmatprep.mubr.bf16.mxu0 0
      %3839 = vmatmul.mubr.bf16.gmra.mrb[0].mxu0 %v3716
      %v3840 = vpop.f32.mrb[0].mxu0
      %v3841 = vadd.f32 0.0, %v3840
      %v3842 = vpop.f32.mrb[0].mxu0
      %v3843 = vpop.f32.mrb[0].mxu0
      %v3844 = vadd.f32 0.0, %v3843
      %v3845 = vpop.f32.mrb[0].mxu0
      %3846 = vmatprep.mubr.bf16.mxu0 0
      %3847 = vmatmul.mubr.bf16.gmra.mrb[0].mxu0 %v3719
      %v3848 = vpop.f32.mrb[0].mxu0
      %v3849 = vadd.f32 0.0, %v3848
      %v3850 = vpop.f32.mrb[0].mxu0
      %v3851 = vpop.f32.mrb[0].mxu0
      %v3852 = vadd.f32 0.0, %v3851
      %v3853 = vpop.f32.mrb[0].mxu0
      %3854 = vmatprep.mubr.bf16.mxu0 0
      %3855 = vmatmul.mubr.bf16.gmra.mrb[0].mxu0 %v3722
      %v3856 = vpop.f32.mrb[0].mxu0
      %v3857 = vadd.f32 0.0, %v3856
      %v3858 = vpop.f32.mrb[0].mxu0
      %v3859 = vpop.f32.mrb[0].mxu0
      %v3860 = vadd.f32 0.0, %v3859
      %v3861 = vpop.f32.mrb[0].mxu0
      %3862 = vmatprep.mubr.bf16.mxu0 0
      %3863 = vmatmul.mubr.bf16.gmra.mrb[0].mxu0 %v3725
      %v3864 = vpop.f32.mrb[0].mxu0
      %v3865 = vadd.f32 0.0, %v3864
      %v3866 = vpop.f32.mrb[0].mxu0
      %v3867 = vpop.f32.mrb[0].mxu0
      %v3868 = vadd.f32 0.0, %v3867
      %v3869 = vpop.f32.mrb[0].mxu0
      %3870 = vmatprep.mubr.bf16.mxu0 0
      %3871 = vmatmul.mubr.bf16.gmra.mrb[0].mxu0 %v3728
      %v3872 = vpop.f32.mrb[0].mxu0
      %v3873 = vadd.f32 0.0, %v3872
      %v3874 = vpop.f32.mrb[0].mxu0
      %v3875 = vpop.f32.mrb[0].mxu0
      %v3876 = vadd.f32 0.0, %v3875
      %v3877 = vpop.f32.mrb[0].mxu0
      %3878 = vmatprep.mubr.bf16.mxu0 0
      %3879 = vmatmul.mubr.bf16.gmra.mrb[0].mxu0 %v3731
      %v3880 = vpop.f32.mrb[0].mxu0
      %v3881 = vadd.f32 0.0, %v3880
      %v3882 = vpop.f32.mrb[0].mxu0
      %v3883 = vpop.f32.mrb[0].mxu0
      %v3884 = vadd.f32 0.0, %v3883
      %v3885 = vpop.f32.mrb[0].mxu0
      %3886 = vmatprep.mubr.bf16.mxu0 0
      %3887 = vmatmul.mubr.bf16.gmra.mrb[0].mxu0 %v3734
      %v3888 = vpop.f32.mrb[0].mxu0
      %v3889 = vadd.f32 0.0, %v3888
      %v3890 = vpop.f32.mrb[0].mxu0
      %v3891 = vpop.f32.mrb[0].mxu0
      %v3892 = vadd.f32 0.0, %v3891
      %v3893 = vpop.f32.mrb[0].mxu0
      %3894 = vmatprep.mubr.bf16.mxu0 0
      %3895 = vmatmul.mubr.bf16.gmra.mrb[0].mxu0 %v3737
      %v3896 = vpop.f32.mrb[0].mxu0
      %v3897 = vadd.f32 0.0, %v3896
      %v3898 = vpop.f32.mrb[0].mxu0
      %v3899 = vpop.f32.mrb[0].mxu0
      %v3900 = vadd.f32 0.0, %v3899
      %v3901 = vpop.f32.mrb[0].mxu0
      %3902 = vdwg.mxu0
      %v3903 = vadd.f32 %v3433, %v3777
      %v3904 = vadd.f32 %v3434, %v3780
      %v3905 = vadd.f32 %v3435, %v3785
      %v3906 = vadd.f32 %v3436, %v3788
      %v3907 = vadd.f32 %v3437, %v3793
      %v3908 = vadd.f32 %v3438, %v3796
      %v3909 = vadd.f32 %v3439, %v3801
      %v3910 = vadd.f32 %v3440, %v3804
      %v3911 = vadd.f32 %v3441, %v3809
      %v3912 = vadd.f32 %v3442, %v3812
      %v3913 = vadd.f32 %v3443, %v3817
      %v3914 = vadd.f32 %v3444, %v3820
      %v3915 = vadd.f32 %v3445, %v3825
      %v3916 = vadd.f32 %v3446, %v3828
      %v3917 = vadd.f32 %v3447, %v3833
      %v3918 = vadd.f32 %v3448, %v3836
      %v3919 = vadd.f32 %v3449, %v3841
      %v3920 = vadd.f32 %v3450, %v3844
      %v3921 = vadd.f32 %v3451, %v3849
      %v3922 = vadd.f32 %v3452, %v3852
      %v3923 = vadd.f32 %v3453, %v3857
      %v3924 = vadd.f32 %v3454, %v3860
      %v3925 = vadd.f32 %v3455, %v3865
      %v3926 = vadd.f32 %v3456, %v3868
      %v3927 = vadd.f32 %v3457, %v3873
      %v3928 = vadd.f32 %v3458, %v3876
      %v3929 = vadd.f32 %v3459, %v3881
      %v3930 = vadd.f32 %v3460, %v3884
      %v3931 = vadd.f32 %v3461, %v3889
      %v3932 = vadd.f32 %v3462, %v3892
      %v3933 = vadd.f32 %v3463, %v3897
      %v3934 = vadd.f32 %v3464, %v3900
      %s3935 = scalar_lea.vmem [#allocation2], 24
      %v3936 = vld [vmem:[%s3935] sm:$0xf]
      %v3937 = vld [vmem:[%s3935 + $0x4] sm:$0xf]
      %v3938 = vld [vmem:[%s3935 + $0xc] sm:$0xf]
      %v3939 = vld [vmem:[%s3935 + $0x10] sm:$0xf]
      %v3940 = vld [vmem:[%s3935 + $0x18] sm:$0xf]
      %v3941 = vld [vmem:[%s3935 + $0x1c] sm:$0xf]
      %v3942 = vld [vmem:[%s3935 + $0x24] sm:$0xf]
      %v3943 = vld [vmem:[%s3935 + $0x28] sm:$0xf]
      %v3944 = vld [vmem:[%s3935 + $0x30] sm:$0xf]
      %v3945 = vld [vmem:[%s3935 + $0x34] sm:$0xf]
      %v3946 = vld [vmem:[%s3935 + $0x3c] sm:$0xf]
      %v3947 = vld [vmem:[%s3935 + $0x40] sm:$0xf]
      %v3948 = vld [vmem:[%s3935 + $0x48] sm:$0xf]
      %v3949 = vld [vmem:[%s3935 + $0x4c] sm:$0xf]
      %v3950 = vld [vmem:[%s3935 + $0x54] sm:$0xf]
      %v3951 = vld [vmem:[%s3935 + $0x58] sm:$0xf]
      %v3952 = vld [vmem:[%s3935 + $0x60] sm:$0xf]
      %v3953 = vld [vmem:[%s3935 + $0x64] sm:$0xf]
      %v3954 = vld [vmem:[%s3935 + $0x6c] sm:$0xf]
      %v3955 = vld [vmem:[%s3935 + $0x70] sm:$0xf]
      %v3956 = vld [vmem:[%s3935 + $0x78] sm:$0xf]
      %v3957 = vld [vmem:[%s3935 + $0x7c] sm:$0xf]
      %v3958 = vld [vmem:[%s3935 + $0x84] sm:$0xf]
      %v3959 = vld [vmem:[%s3935 + $0x88] sm:$0xf]
      %v3960 = vld [vmem:[%s3935 + $0x90] sm:$0xf]
      %v3961 = vld [vmem:[%s3935 + $0x94] sm:$0xf]
      %v3962 = vld [vmem:[%s3935 + $0x9c] sm:$0xf]
      %v3963 = vld [vmem:[%s3935 + $0xa0] sm:$0xf]
      %v3964 = vld [vmem:[%s3935 + $0xa8] sm:$0xf]
      %v3965 = vld [vmem:[%s3935 + $0xac] sm:$0xf]
      %v3966 = vld [vmem:[%s3935 + $0xb4] sm:$0xf]
      %v3967 = vld [vmem:[%s3935 + $0xb8] sm:$0xf]
      %s3968 = scalar_lea.vmem %s1, 12
      %v3969 = vld [vmem:[%s3968] sm:$0x3]
      %v4002 = vunpack.c.l.b16 %v3936
      %v4003 = vunpack.c.l.b16 %v3937
      %v4004 = vunpack.c.l.b16 %v3938
      %v4005 = vunpack.c.l.b16 %v3939
      %v4006 = vunpack.c.l.b16 %v3940
      %v4007 = vunpack.c.l.b16 %v3941
      %v4008 = vunpack.c.l.b16 %v3942
      %v4009 = vunpack.c.l.b16 %v3943
      %v4010 = vunpack.c.l.b16 %v3944
      %v4011 = vunpack.c.l.b16 %v3945
      %v4012 = vunpack.c.l.b16 %v3946
      %v4013 = vunpack.c.l.b16 %v3947
      %v4014 = vunpack.c.l.b16 %v3948
      %v4015 = vunpack.c.l.b16 %v3949
      %v4016 = vunpack.c.l.b16 %v3950
      %v4017 = vunpack.c.l.b16 %v3951
      %v4018 = vunpack.c.l.b16 %v3952
      %v4019 = vunpack.c.l.b16 %v3953
      %v4020 = vunpack.c.l.b16 %v3954
      %v4021 = vunpack.c.l.b16 %v3955
      %v4022 = vunpack.c.l.b16 %v3956
      %v4023 = vunpack.c.l.b16 %v3957
      %v4024 = vunpack.c.l.b16 %v3958
      %v4025 = vunpack.c.l.b16 %v3959
      %v4026 = vunpack.c.l.b16 %v3960
      %v4027 = vunpack.c.l.b16 %v3961
      %v4028 = vunpack.c.l.b16 %v3962
      %v4029 = vunpack.c.l.b16 %v3963
      %v4030 = vunpack.c.l.b16 %v3964
      %v4031 = vunpack.c.l.b16 %v3965
      %v4032 = vunpack.c.l.b16 %v3966
      %v4033 = vunpack.c.l.b16 %v3967
      %v4034 = vpack.c.b16 %v4003, %v4002
      %v4035 = vpack.c.b16 %v4005, %v4004
      %v4036 = vpack.c.b16 %v4007, %v4006
      %v4037 = vpack.c.b16 %v4009, %v4008
      %v4038 = vpack.c.b16 %v4011, %v4010
      %v4039 = vpack.c.b16 %v4013, %v4012
      %v4040 = vpack.c.b16 %v4015, %v4014
      %v4041 = vpack.c.b16 %v4017, %v4016
      %v4042 = vpack.c.b16 %v4019, %v4018
      %v4043 = vpack.c.b16 %v4021, %v4020
      %v4044 = vpack.c.b16 %v4023, %v4022
      %v4045 = vpack.c.b16 %v4025, %v4024
      %v4046 = vpack.c.b16 %v4027, %v4026
      %v4047 = vpack.c.b16 %v4029, %v4028
      %v4048 = vpack.c.b16 %v4031, %v4030
      %v4049 = vpack.c.b16 %v4033, %v4032
      %v4051 = vsel %vm1418, %v4034, 0
      %v4054 = vsel %vm1418, %v4035, 0
      %v4057 = vsel %vm1418, %v4036, 0
      %v4060 = vsel %vm1418, %v4037, 0
      %v4063 = vsel %vm1418, %v4038, 0
      %v4066 = vsel %vm1418, %v4039, 0
      %v4069 = vsel %vm1418, %v4040, 0
      %v4072 = vsel %vm1418, %v4041, 0
      %v4075 = vsel %vm1418, %v4042, 0
      %v4078 = vsel %vm1418, %v4043, 0
      %v4081 = vsel %vm1418, %v4044, 0
      %v4084 = vsel %vm1418, %v4045, 0
      %v4087 = vsel %vm1418, %v4046, 0
      %v4090 = vsel %vm1418, %v4047, 0
      %v4093 = vsel %vm1418, %v4048, 0
      %v4096 = vsel %vm1418, %v4049, 0
      %v4099 = vsel %vm1467, %v3969, 0
      %4101 = vmatprep.subr.bf16.mxu0 0
      %4102 = vmatpush1.bf16.msra.mxu0 %v4099
      %4103 = vmatprep.subr.bf16.mxu0 0
      %4104 = vmatpush1.bf16.msra.mxu0 0
      %4105 = vmatprep.subr.bf16.mxu0 0
      %4106 = vmatpush1.bf16.msra.mxu0 0
      %4107 = vmatprep.subr.bf16.mxu0 0
      %4108 = vmatpush1.bf16.msra.mxu0 0
      %4109 = vmatprep.subr.bf16.mxu0 0
      %4110 = vmatpush1.bf16.msra.mxu0 0
      %4111 = vmatprep.subr.bf16.mxu0 0
      %4112 = vmatpush1.bf16.msra.mxu0 0
      %4113 = vmatprep.subr.bf16.mxu0 0
      %4114 = vmatpush1.bf16.msra.mxu0 0
      %4115 = vmatprep.subr.bf16.mxu0 0
      %4116 = vmatpush1.bf16.msra.mxu0 0
      %4117 = vmatprep.subr.bf16.mxu0 0
      %4118 = vmatpush1.bf16.msra.mxu0 0
      %4119 = vmatprep.subr.bf16.mxu0 0
      %4120 = vmatpush1.bf16.msra.mxu0 0
      %4121 = vmatprep.subr.bf16.mxu0 0
      %4122 = vmatpush1.bf16.msra.mxu0 0
      %4123 = vmatprep.subr.bf16.mxu0 0
      %4124 = vmatpush1.bf16.msra.mxu0 0
      %4125 = vmatprep.subr.bf16.mxu0 0
      %4126 = vmatpush1.bf16.msra.mxu0 0
      %4127 = vmatprep.subr.bf16.mxu0 0
      %4128 = vmatpush1.bf16.msra.mxu0 0
      %4129 = vmatprep.subr.bf16.mxu0 0
      %4130 = vmatpush1.bf16.msra.mxu0 0
      %4131 = vmatprep.subr.bf16.mxu0 0
      %4132 = vmatpush1.bf16.msra.mxu0 0
      %4133 = vmatprep.mubr.bf16.mxu0 0
      %4134 = vmatmul.mubr.bf16.gmra.mrb[0].mxu0 %v4051
      %v4135 = vpop.f32.mrb[0].mxu0
      %v4136 = vadd.f32 0.0, %v4135
      %v4137 = vpop.f32.mrb[0].mxu0
      %v4138 = vpop.f32.mrb[0].mxu0
      %v4139 = vadd.f32 0.0, %v4138
      %v4140 = vpop.f32.mrb[0].mxu0
      %4141 = vmatprep.mubr.bf16.mxu0 0
      %4142 = vmatmul.mubr.bf16.gmra.mrb[0].mxu0 %v4054
      %v4143 = vpop.f32.mrb[0].mxu0
      %v4144 = vadd.f32 0.0, %v4143
      %v4145 = vpop.f32.mrb[0].mxu0
      %v4146 = vpop.f32.mrb[0].mxu0
      %v4147 = vadd.f32 0.0, %v4146
      %v4148 = vpop.f32.mrb[0].mxu0
      %4149 = vmatprep.mubr.bf16.mxu0 0
      %4150 = vmatmul.mubr.bf16.gmra.mrb[0].mxu0 %v4057
      %v4151 = vpop.f32.mrb[0].mxu0
      %v4152 = vadd.f32 0.0, %v4151
      %v4153 = vpop.f32.mrb[0].mxu0
      %v4154 = vpop.f32.mrb[0].mxu0
      %v4155 = vadd.f32 0.0, %v4154
      %v4156 = vpop.f32.mrb[0].mxu0
      %4157 = vmatprep.mubr.bf16.mxu0 0
      %4158 = vmatmul.mubr.bf16.gmra.mrb[0].mxu0 %v4060
      %v4159 = vpop.f32.mrb[0].mxu0
      %v4160 = vadd.f32 0.0, %v4159
      %v4161 = vpop.f32.mrb[0].mxu0
      %v4162 = vpop.f32.mrb[0].mxu0
      %v4163 = vadd.f32 0.0, %v4162
      %v4164 = vpop.f32.mrb[0].mxu0
      %4165 = vmatprep.mubr.bf16.mxu0 0
      %4166 = vmatmul.mubr.bf16.gmra.mrb[0].mxu0 %v4063
      %v4167 = vpop.f32.mrb[0].mxu0
      %v4168 = vadd.f32 0.0, %v4167
      %v4169 = vpop.f32.mrb[0].mxu0
      %v4170 = vpop.f32.mrb[0].mxu0
      %v4171 = vadd.f32 0.0, %v4170
      %v4172 = vpop.f32.mrb[0].mxu0
      %4173 = vmatprep.mubr.bf16.mxu0 0
      %4174 = vmatmul.mubr.bf16.gmra.mrb[0].mxu0 %v4066
      %v4175 = vpop.f32.mrb[0].mxu0
      %v4176 = vadd.f32 0.0, %v4175
      %v4177 = vpop.f32.mrb[0].mxu0
      %v4178 = vpop.f32.mrb[0].mxu0
      %v4179 = vadd.f32 0.0, %v4178
      %v4180 = vpop.f32.mrb[0].mxu0
      %4181 = vmatprep.mubr.bf16.mxu0 0
      %4182 = vmatmul.mubr.bf16.gmra.mrb[0].mxu0 %v4069
      %v4183 = vpop.f32.mrb[0].mxu0
      %v4184 = vadd.f32 0.0, %v4183
      %v4185 = vpop.f32.mrb[0].mxu0
      %v4186 = vpop.f32.mrb[0].mxu0
      %v4187 = vadd.f32 0.0, %v4186
      %v4188 = vpop.f32.mrb[0].mxu0
      %4189 = vmatprep.mubr.bf16.mxu0 0
      %4190 = vmatmul.mubr.bf16.gmra.mrb[0].mxu0 %v4072
      %v4191 = vpop.f32.mrb[0].mxu0
      %v4192 = vadd.f32 0.0, %v4191
      %v4193 = vpop.f32.mrb[0].mxu0
      %v4194 = vpop.f32.mrb[0].mxu0
      %v4195 = vadd.f32 0.0, %v4194
      %v4196 = vpop.f32.mrb[0].mxu0
      %4197 = vmatprep.mubr.bf16.mxu0 0
      %4198 = vmatmul.mubr.bf16.gmra.mrb[0].mxu0 %v4075
      %v4199 = vpop.f32.mrb[0].mxu0
      %v4200 = vadd.f32 0.0, %v4199
      %v4201 = vpop.f32.mrb[0].mxu0
      %v4202 = vpop.f32.mrb[0].mxu0
      %v4203 = vadd.f32 0.0, %v4202
      %v4204 = vpop.f32.mrb[0].mxu0
      %4205 = vmatprep.mubr.bf16.mxu0 0
      %4206 = vmatmul.mubr.bf16.gmra.mrb[0].mxu0 %v4078
      %v4207 = vpop.f32.mrb[0].mxu0
      %v4208 = vadd.f32 0.0, %v4207
      %v4209 = vpop.f32.mrb[0].mxu0
      %v4210 = vpop.f32.mrb[0].mxu0
      %v4211 = vadd.f32 0.0, %v4210
      %v4212 = vpop.f32.mrb[0].mxu0
      %4213 = vmatprep.mubr.bf16.mxu0 0
      %4214 = vmatmul.mubr.bf16.gmra.mrb[0].mxu0 %v4081
      %v4215 = vpop.f32.mrb[0].mxu0
      %v4216 = vadd.f32 0.0, %v4215
      %v4217 = vpop.f32.mrb[0].mxu0
      %v4218 = vpop.f32.mrb[0].mxu0
      %v4219 = vadd.f32 0.0, %v4218
      %v4220 = vpop.f32.mrb[0].mxu0
      %4221 = vmatprep.mubr.bf16.mxu0 0
      %4222 = vmatmul.mubr.bf16.gmra.mrb[0].mxu0 %v4084
      %v4223 = vpop.f32.mrb[0].mxu0
      %v4224 = vadd.f32 0.0, %v4223
      %v4225 = vpop.f32.mrb[0].mxu0
      %v4226 = vpop.f32.mrb[0].mxu0
      %v4227 = vadd.f32 0.0, %v4226
      %v4228 = vpop.f32.mrb[0].mxu0
      %4229 = vmatprep.mubr.bf16.mxu0 0
      %4230 = vmatmul.mubr.bf16.gmra.mrb[0].mxu0 %v4087
      %v4231 = vpop.f32.mrb[0].mxu0
      %v4232 = vadd.f32 0.0, %v4231
      %v4233 = vpop.f32.mrb[0].mxu0
      %v4234 = vpop.f32.mrb[0].mxu0
      %v4235 = vadd.f32 0.0, %v4234
      %v4236 = vpop.f32.mrb[0].mxu0
      %4237 = vmatprep.mubr.bf16.mxu0 0
      %4238 = vmatmul.mubr.bf16.gmra.mrb[0].mxu0 %v4090
      %v4239 = vpop.f32.mrb[0].mxu0
      %v4240 = vadd.f32 0.0, %v4239
      %v4241 = vpop.f32.mrb[0].mxu0
      %v4242 = vpop.f32.mrb[0].mxu0
      %v4243 = vadd.f32 0.0, %v4242
      %v4244 = vpop.f32.mrb[0].mxu0
      %4245 = vmatprep.mubr.bf16.mxu0 0
      %4246 = vmatmul.mubr.bf16.gmra.mrb[0].mxu0 %v4093
      %v4247 = vpop.f32.mrb[0].mxu0
      %v4248 = vadd.f32 0.0, %v4247
      %v4249 = vpop.f32.mrb[0].mxu0
      %v4250 = vpop.f32.mrb[0].mxu0
      %v4251 = vadd.f32 0.0, %v4250
      %v4252 = vpop.f32.mrb[0].mxu0
      %4253 = vmatprep.mubr.bf16.mxu0 0
      %4254 = vmatmul.mubr.bf16.gmra.mrb[0].mxu0 %v4096
      %v4255 = vpop.f32.mrb[0].mxu0
      %v4256 = vadd.f32 0.0, %v4255
      %v4257 = vpop.f32.mrb[0].mxu0
      %v4258 = vpop.f32.mrb[0].mxu0
      %v4259 = vadd.f32 0.0, %v4258
      %v4260 = vpop.f32.mrb[0].mxu0
      %4261 = vdwg.mxu0
      %v4262 = vadd.f32 %v3903, %v4136
      %v4263 = vadd.f32 %v3904, %v4139
      %v4264 = vadd.f32 %v3905, %v4144
      %v4265 = vadd.f32 %v3906, %v4147
      %v4266 = vadd.f32 %v3907, %v4152
      %v4267 = vadd.f32 %v3908, %v4155
      %v4268 = vadd.f32 %v3909, %v4160
      %v4269 = vadd.f32 %v3910, %v4163
      %v4270 = vadd.f32 %v3911, %v4168
      %v4271 = vadd.f32 %v3912, %v4171
      %v4272 = vadd.f32 %v3913, %v4176
      %v4273 = vadd.f32 %v3914, %v4179
      %v4274 = vadd.f32 %v3915, %v4184
      %v4275 = vadd.f32 %v3916, %v4187
      %v4276 = vadd.f32 %v3917, %v4192
      %v4277 = vadd.f32 %v3918, %v4195
      %v4278 = vadd.f32 %v3919, %v4200
      %v4279 = vadd.f32 %v3920, %v4203
      %v4280 = vadd.f32 %v3921, %v4208
      %v4281 = vadd.f32 %v3922, %v4211
      %v4282 = vadd.f32 %v3923, %v4216
      %v4283 = vadd.f32 %v3924, %v4219
      %v4284 = vadd.f32 %v3925, %v4224
      %v4285 = vadd.f32 %v3926, %v4227
      %v4286 = vadd.f32 %v3927, %v4232
      %v4287 = vadd.f32 %v3928, %v4235
      %v4288 = vadd.f32 %v3929, %v4240
      %v4289 = vadd.f32 %v3930, %v4243
      %v4290 = vadd.f32 %v3931, %v4248
      %v4291 = vadd.f32 %v3932, %v4251
      %v4292 = vadd.f32 %v3933, %v4256
      %v4293 = vadd.f32 %v3934, %v4259
      %v4294 = vld [vmem:[%s3935] sm:$0xf]
      %v4295 = vld [vmem:[%s3935 + $0x4] sm:$0xf]
      %v4296 = vld [vmem:[%s3935 + $0x8] sm:$0x1]
      %v4297 = vld [vmem:[%s3935 + $0xc] sm:$0xf]
      %v4298 = vld [vmem:[%s3935 + $0x10] sm:$0xf]
      %v4299 = vld [vmem:[%s3935 + $0x14] sm:$0x1]
      %v4300 = vld [vmem:[%s3935 + $0x18] sm:$0xf]
      %v4301 = vld [vmem:[%s3935 + $0x1c] sm:$0xf]
      %v4302 = vld [vmem:[%s3935 + $0x20] sm:$0x1]
      %v4303 = vld [vmem:[%s3935 + $0x24] sm:$0xf]
      %v4304 = vld [vmem:[%s3935 + $0x28] sm:$0xf]
      %v4305 = vld [vmem:[%s3935 + $0x2c] sm:$0x1]
      %v4306 = vld [vmem:[%s3935 + $0x30] sm:$0xf]
      %v4307 = vld [vmem:[%s3935 + $0x34] sm:$0xf]
      %v4308 = vld [vmem:[%s3935 + $0x38] sm:$0x1]
      %v4309 = vld [vmem:[%s3935 + $0x3c] sm:$0xf]
      %v4310 = vld [vmem:[%s3935 + $0x40] sm:$0xf]
      %v4311 = vld [vmem:[%s3935 + $0x44] sm:$0x1]
      %v4312 = vld [vmem:[%s3935 + $0x48] sm:$0xf]
      %v4313 = vld [vmem:[%s3935 + $0x4c] sm:$0xf]
      %v4314 = vld [vmem:[%s3935 + $0x50] sm:$0x1]
      %v4315 = vld [vmem:[%s3935 + $0x54] sm:$0xf]
      %v4316 = vld [vmem:[%s3935 + $0x58] sm:$0xf]
      %v4317 = vld [vmem:[%s3935 + $0x5c] sm:$0x1]
      %v4318 = vld [vmem:[%s3935 + $0x60] sm:$0xf]
      %v4319 = vld [vmem:[%s3935 + $0x64] sm:$0xf]
      %v4320 = vld [vmem:[%s3935 + $0x68] sm:$0x1]
      %v4321 = vld [vmem:[%s3935 + $0x6c] sm:$0xf]
      %v4322 = vld [vmem:[%s3935 + $0x70] sm:$0xf]
      %v4323 = vld [vmem:[%s3935 + $0x74] sm:$0x1]
      %v4324 = vld [vmem:[%s3935 + $0x78] sm:$0xf]
      %v4325 = vld [vmem:[%s3935 + $0x7c] sm:$0xf]
      %v4326 = vld [vmem:[%s3935 + $0x80] sm:$0x1]
      %v4327 = vld [vmem:[%s3935 + $0x84] sm:$0xf]
      %v4328 = vld [vmem:[%s3935 + $0x88] sm:$0xf]
      %v4329 = vld [vmem:[%s3935 + $0x8c] sm:$0x1]
      %v4330 = vld [vmem:[%s3935 + $0x90] sm:$0xf]
      %v4331 = vld [vmem:[%s3935 + $0x94] sm:$0xf]
      %v4332 = vld [vmem:[%s3935 + $0x98] sm:$0x1]
      %v4333 = vld [vmem:[%s3935 + $0x9c] sm:$0xf]
      %v4334 = vld [vmem:[%s3935 + $0xa0] sm:$0xf]
      %v4335 = vld [vmem:[%s3935 + $0xa4] sm:$0x1]
      %v4336 = vld [vmem:[%s3935 + $0xa8] sm:$0xf]
      %v4337 = vld [vmem:[%s3935 + $0xac] sm:$0xf]
      %v4338 = vld [vmem:[%s3935 + $0xb0] sm:$0x1]
      %v4339 = vld [vmem:[%s3935 + $0xb4] sm:$0xf]
      %v4340 = vld [vmem:[%s3935 + $0xb8] sm:$0xf]
      %v4341 = vld [vmem:[%s3935 + $0xbc] sm:$0x1]
      %s4342 = scalar_lea.vmem %s1, 14
      %v4343 = vld [vmem:[%s4342] sm:$0x3]
      %v4345 = vshrl.u32 %v4294, 16
      %v4347 = vrot.slane %v4345, 4
      %v4348 = vshll.u32 %v4294, 16
      %v4350 = vrot.slane %v4348, 5
      %v4351 = vor.u32 %v4347, %v4350
      %v4352 = vrot.slane %v4351, 4
      %v4354 = vshll.u32 %v4295, 16
      %v4356 = vrot.slane %v4354, 5
      %v4357 = vsel %vm985, %v4352, %v4356
      %v4358 = vshrl.u32 %v4295, 16
      %v4360 = vrot.slane %v4358, 4
      %v4361 = vor.u32 %v4360, %v4356
      %v4362 = vrot.slane %v4361, 4
      %v4364 = vshll.u32 %v4296, 16
      %v4366 = vrot.slane %v4364, 5
      %v4367 = vsel %vm985, %v4362, %v4366
      %v4369 = vshrl.u32 %v4297, 16
      %v4371 = vrot.slane %v4369, 4
      %v4372 = vshll.u32 %v4297, 16
      %v4374 = vrot.slane %v4372, 5
      %v4375 = vor.u32 %v4371, %v4374
      %v4376 = vrot.slane %v4375, 4
      %v4378 = vshll.u32 %v4298, 16
      %v4380 = vrot.slane %v4378, 5
      %v4381 = vsel %vm985, %v4376, %v4380
      %v4382 = vshrl.u32 %v4298, 16
      %v4384 = vrot.slane %v4382, 4
      %v4385 = vor.u32 %v4384, %v4380
      %v4386 = vrot.slane %v4385, 4
      %v4388 = vshll.u32 %v4299, 16
      %v4390 = vrot.slane %v4388, 5
      %v4391 = vsel %vm985, %v4386, %v4390
      %v4393 = vshrl.u32 %v4300, 16
      %v4395 = vrot.slane %v4393, 4
      %v4396 = vshll.u32 %v4300, 16
      %v4398 = vrot.slane %v4396, 5
      %v4399 = vor.u32 %v4395, %v4398
      %v4400 = vrot.slane %v4399, 4
      %v4402 = vshll.u32 %v4301, 16
      %v4404 = vrot.slane %v4402, 5
      %v4405 = vsel %vm985, %v4400, %v4404
      %v4406 = vshrl.u32 %v4301, 16
      %v4408 = vrot.slane %v4406, 4
      %v4409 = vor.u32 %v4408, %v4404
      %v4410 = vrot.slane %v4409, 4
      %v4412 = vshll.u32 %v4302, 16
      %v4414 = vrot.slane %v4412, 5
      %v4415 = vsel %vm985, %v4410, %v4414
      %v4417 = vshrl.u32 %v4303, 16
      %v4419 = vrot.slane %v4417, 4
      %v4420 = vshll.u32 %v4303, 16
      %v4422 = vrot.slane %v4420, 5
      %v4423 = vor.u32 %v4419, %v4422
      %v4424 = vrot.slane %v4423, 4
      %v4426 = vshll.u32 %v4304, 16
      %v4428 = vrot.slane %v4426, 5
      %v4429 = vsel %vm985, %v4424, %v4428
      %v4430 = vshrl.u32 %v4304, 16
      %v4432 = vrot.slane %v4430, 4
      %v4433 = vor.u32 %v4432, %v4428
      %v4434 = vrot.slane %v4433, 4
      %v4436 = vshll.u32 %v4305, 16
      %v4438 = vrot.slane %v4436, 5
      %v4439 = vsel %vm985, %v4434, %v4438
      %v4441 = vshrl.u32 %v4306, 16
      %v4443 = vrot.slane %v4441, 4
      %v4444 = vshll.u32 %v4306, 16
      %v4446 = vrot.slane %v4444, 5
      %v4447 = vor.u32 %v4443, %v4446
      %v4448 = vrot.slane %v4447, 4
      %v4450 = vshll.u32 %v4307, 16
      %v4452 = vrot.slane %v4450, 5
      %v4453 = vsel %vm985, %v4448, %v4452
      %v4454 = vshrl.u32 %v4307, 16
      %v4456 = vrot.slane %v4454, 4
      %v4457 = vor.u32 %v4456, %v4452
      %v4458 = vrot.slane %v4457, 4
      %v4460 = vshll.u32 %v4308, 16
      %v4462 = vrot.slane %v4460, 5
      %v4463 = vsel %vm985, %v4458, %v4462
      %v4465 = vshrl.u32 %v4309, 16
      %v4467 = vrot.slane %v4465, 4
      %v4468 = vshll.u32 %v4309, 16
      %v4470 = vrot.slane %v4468, 5
      %v4471 = vor.u32 %v4467, %v4470
      %v4472 = vrot.slane %v4471, 4
      %v4474 = vshll.u32 %v4310, 16
      %v4476 = vrot.slane %v4474, 5
      %v4477 = vsel %vm985, %v4472, %v4476
      %v4478 = vshrl.u32 %v4310, 16
      %v4480 = vrot.slane %v4478, 4
      %v4481 = vor.u32 %v4480, %v4476
      %v4482 = vrot.slane %v4481, 4
      %v4484 = vshll.u32 %v4311, 16
      %v4486 = vrot.slane %v4484, 5
      %v4487 = vsel %vm985, %v4482, %v4486
      %v4489 = vshrl.u32 %v4312, 16
      %v4491 = vrot.slane %v4489, 4
      %v4492 = vshll.u32 %v4312, 16
      %v4494 = vrot.slane %v4492, 5
      %v4495 = vor.u32 %v4491, %v4494
      %v4496 = vrot.slane %v4495, 4
      %v4498 = vshll.u32 %v4313, 16
      %v4500 = vrot.slane %v4498, 5
      %v4501 = vsel %vm985, %v4496, %v4500
      %v4502 = vshrl.u32 %v4313, 16
      %v4504 = vrot.slane %v4502, 4
      %v4505 = vor.u32 %v4504, %v4500
      %v4506 = vrot.slane %v4505, 4
      %v4508 = vshll.u32 %v4314, 16
      %v4510 = vrot.slane %v4508, 5
      %v4511 = vsel %vm985, %v4506, %v4510
      %v4513 = vshrl.u32 %v4315, 16
      %v4515 = vrot.slane %v4513, 4
      %v4516 = vshll.u32 %v4315, 16
      %v4518 = vrot.slane %v4516, 5
      %v4519 = vor.u32 %v4515, %v4518
      %v4520 = vrot.slane %v4519, 4
      %v4522 = vshll.u32 %v4316, 16
      %v4524 = vrot.slane %v4522, 5
      %v4525 = vsel %vm985, %v4520, %v4524
      %v4526 = vshrl.u32 %v4316, 16
      %v4528 = vrot.slane %v4526, 4
      %v4529 = vor.u32 %v4528, %v4524
      %v4530 = vrot.slane %v4529, 4
      %v4532 = vshll.u32 %v4317, 16
      %v4534 = vrot.slane %v4532, 5
      %v4535 = vsel %vm985, %v4530, %v4534
      %v4537 = vshrl.u32 %v4318, 16
      %v4539 = vrot.slane %v4537, 4
      %v4540 = vshll.u32 %v4318, 16
      %v4542 = vrot.slane %v4540, 5
      %v4543 = vor.u32 %v4539, %v4542
      %v4544 = vrot.slane %v4543, 4
      %v4546 = vshll.u32 %v4319, 16
      %v4548 = vrot.slane %v4546, 5
      %v4549 = vsel %vm985, %v4544, %v4548
      %v4550 = vshrl.u32 %v4319, 16
      %v4552 = vrot.slane %v4550, 4
      %v4553 = vor.u32 %v4552, %v4548
      %v4554 = vrot.slane %v4553, 4
      %v4556 = vshll.u32 %v4320, 16
      %v4558 = vrot.slane %v4556, 5
      %v4559 = vsel %vm985, %v4554, %v4558
      %v4561 = vshrl.u32 %v4321, 16
      %v4563 = vrot.slane %v4561, 4
      %v4564 = vshll.u32 %v4321, 16
      %v4566 = vrot.slane %v4564, 5
      %v4567 = vor.u32 %v4563, %v4566
      %v4568 = vrot.slane %v4567, 4
      %v4570 = vshll.u32 %v4322, 16
      %v4572 = vrot.slane %v4570, 5
      %v4573 = vsel %vm985, %v4568, %v4572
      %v4574 = vshrl.u32 %v4322, 16
      %v4576 = vrot.slane %v4574, 4
      %v4577 = vor.u32 %v4576, %v4572
      %v4578 = vrot.slane %v4577, 4
      %v4580 = vshll.u32 %v4323, 16
      %v4582 = vrot.slane %v4580, 5
      %v4583 = vsel %vm985, %v4578, %v4582
      %v4585 = vshrl.u32 %v4324, 16
      %v4587 = vrot.slane %v4585, 4
      %v4588 = vshll.u32 %v4324, 16
      %v4590 = vrot.slane %v4588, 5
      %v4591 = vor.u32 %v4587, %v4590
      %v4592 = vrot.slane %v4591, 4
      %v4594 = vshll.u32 %v4325, 16
      %v4596 = vrot.slane %v4594, 5
      %v4597 = vsel %vm985, %v4592, %v4596
      %v4598 = vshrl.u32 %v4325, 16
      %v4600 = vrot.slane %v4598, 4
      %v4601 = vor.u32 %v4600, %v4596
      %v4602 = vrot.slane %v4601, 4
      %v4604 = vshll.u32 %v4326, 16
      %v4606 = vrot.slane %v4604, 5
      %v4607 = vsel %vm985, %v4602, %v4606
      %v4609 = vshrl.u32 %v4327, 16
      %v4611 = vrot.slane %v4609, 4
      %v4612 = vshll.u32 %v4327, 16
      %v4614 = vrot.slane %v4612, 5
      %v4615 = vor.u32 %v4611, %v4614
      %v4616 = vrot.slane %v4615, 4
      %v4618 = vshll.u32 %v4328, 16
      %v4620 = vrot.slane %v4618, 5
      %v4621 = vsel %vm985, %v4616, %v4620
      %v4622 = vshrl.u32 %v4328, 16
      %v4624 = vrot.slane %v4622, 4
      %v4625 = vor.u32 %v4624, %v4620
      %v4626 = vrot.slane %v4625, 4
      %v4628 = vshll.u32 %v4329, 16
      %v4630 = vrot.slane %v4628, 5
      %v4631 = vsel %vm985, %v4626, %v4630
      %v4633 = vshrl.u32 %v4330, 16
      %v4635 = vrot.slane %v4633, 4
      %v4636 = vshll.u32 %v4330, 16
      %v4638 = vrot.slane %v4636, 5
      %v4639 = vor.u32 %v4635, %v4638
      %v4640 = vrot.slane %v4639, 4
      %v4642 = vshll.u32 %v4331, 16
      %v4644 = vrot.slane %v4642, 5
      %v4645 = vsel %vm985, %v4640, %v4644
      %v4646 = vshrl.u32 %v4331, 16
      %v4648 = vrot.slane %v4646, 4
      %v4649 = vor.u32 %v4648, %v4644
      %v4650 = vrot.slane %v4649, 4
      %v4652 = vshll.u32 %v4332, 16
      %v4654 = vrot.slane %v4652, 5
      %v4655 = vsel %vm985, %v4650, %v4654
      %v4657 = vshrl.u32 %v4333, 16
      %v4659 = vrot.slane %v4657, 4
      %v4660 = vshll.u32 %v4333, 16
      %v4662 = vrot.slane %v4660, 5
      %v4663 = vor.u32 %v4659, %v4662
      %v4664 = vrot.slane %v4663, 4
      %v4666 = vshll.u32 %v4334, 16
      %v4668 = vrot.slane %v4666, 5
      %v4669 = vsel %vm985, %v4664, %v4668
      %v4670 = vshrl.u32 %v4334, 16
      %v4672 = vrot.slane %v4670, 4
      %v4673 = vor.u32 %v4672, %v4668
      %v4674 = vrot.slane %v4673, 4
      %v4676 = vshll.u32 %v4335, 16
      %v4678 = vrot.slane %v4676, 5
      %v4679 = vsel %vm985, %v4674, %v4678
      %v4681 = vshrl.u32 %v4336, 16
      %v4683 = vrot.slane %v4681, 4
      %v4684 = vshll.u32 %v4336, 16
      %v4686 = vrot.slane %v4684, 5
      %v4687 = vor.u32 %v4683, %v4686
      %v4688 = vrot.slane %v4687, 4
      %v4690 = vshll.u32 %v4337, 16
      %v4692 = vrot.slane %v4690, 5
      %v4693 = vsel %vm985, %v4688, %v4692
      %v4694 = vshrl.u32 %v4337, 16
      %v4696 = vrot.slane %v4694, 4
      %v4697 = vor.u32 %v4696, %v4692
      %v4698 = vrot.slane %v4697, 4
      %v4700 = vshll.u32 %v4338, 16
      %v4702 = vrot.slane %v4700, 5
      %v4703 = vsel %vm985, %v4698, %v4702
      %v4705 = vshrl.u32 %v4339, 16
      %v4707 = vrot.slane %v4705, 4
      %v4708 = vshll.u32 %v4339, 16
      %v4710 = vrot.slane %v4708, 5
      %v4711 = vor.u32 %v4707, %v4710
      %v4712 = vrot.slane %v4711, 4
      %v4714 = vshll.u32 %v4340, 16
      %v4716 = vrot.slane %v4714, 5
      %v4717 = vsel %vm985, %v4712, %v4716
      %v4718 = vshrl.u32 %v4340, 16
      %v4720 = vrot.slane %v4718, 4
      %v4721 = vor.u32 %v4720, %v4716
      %v4722 = vrot.slane %v4721, 4
      %v4724 = vshll.u32 %v4341, 16
      %v4726 = vrot.slane %v4724, 5
      %v4727 = vsel %vm985, %v4722, %v4726
      %v4728 = vunpack.c.l.b16 %v4357
      %v4729 = vunpack.c.l.b16 %v4367
      %v4730 = vunpack.c.l.b16 %v4381
      %v4731 = vunpack.c.l.b16 %v4391
      %v4732 = vunpack.c.l.b16 %v4405
      %v4733 = vunpack.c.l.b16 %v4415
      %v4734 = vunpack.c.l.b16 %v4429
      %v4735 = vunpack.c.l.b16 %v4439
      %v4736 = vunpack.c.l.b16 %v4453
      %v4737 = vunpack.c.l.b16 %v4463
      %v4738 = vunpack.c.l.b16 %v4477
      %v4739 = vunpack.c.l.b16 %v4487
      %v4740 = vunpack.c.l.b16 %v4501
      %v4741 = vunpack.c.l.b16 %v4511
      %v4742 = vunpack.c.l.b16 %v4525
      %v4743 = vunpack.c.l.b16 %v4535
      %v4744 = vunpack.c.l.b16 %v4549
      %v4745 = vunpack.c.l.b16 %v4559
      %v4746 = vunpack.c.l.b16 %v4573
      %v4747 = vunpack.c.l.b16 %v4583
      %v4748 = vunpack.c.l.b16 %v4597
      %v4749 = vunpack.c.l.b16 %v4607
      %v4750 = vunpack.c.l.b16 %v4621
      %v4751 = vunpack.c.l.b16 %v4631
      %v4752 = vunpack.c.l.b16 %v4645
      %v4753 = vunpack.c.l.b16 %v4655
      %v4754 = vunpack.c.l.b16 %v4669
      %v4755 = vunpack.c.l.b16 %v4679
      %v4756 = vunpack.c.l.b16 %v4693
      %v4757 = vunpack.c.l.b16 %v4703
      %v4758 = vunpack.c.l.b16 %v4717
      %v4759 = vunpack.c.l.b16 %v4727
      %v4760 = vpack.c.b16 %v4729, %v4728
      %v4761 = vpack.c.b16 %v4731, %v4730
      %v4762 = vpack.c.b16 %v4733, %v4732
      %v4763 = vpack.c.b16 %v4735, %v4734
      %v4764 = vpack.c.b16 %v4737, %v4736
      %v4765 = vpack.c.b16 %v4739, %v4738
      %v4766 = vpack.c.b16 %v4741, %v4740
      %v4767 = vpack.c.b16 %v4743, %v4742
      %v4768 = vpack.c.b16 %v4745, %v4744
      %v4769 = vpack.c.b16 %v4747, %v4746
      %v4770 = vpack.c.b16 %v4749, %v4748
      %v4771 = vpack.c.b16 %v4751, %v4750
      %v4772 = vpack.c.b16 %v4753, %v4752
      %v4773 = vpack.c.b16 %v4755, %v4754
      %v4774 = vpack.c.b16 %v4757, %v4756
      %v4775 = vpack.c.b16 %v4759, %v4758
      %v4777 = vsel %vm1418, %v4760, 0
      %v4780 = vsel %vm1418, %v4761, 0
      %v4783 = vsel %vm1418, %v4762, 0
      %v4786 = vsel %vm1418, %v4763, 0
      %v4789 = vsel %vm1418, %v4764, 0
      %v4792 = vsel %vm1418, %v4765, 0
      %v4795 = vsel %vm1418, %v4766, 0
      %v4798 = vsel %vm1418, %v4767, 0
      %v4801 = vsel %vm1418, %v4768, 0
      %v4804 = vsel %vm1418, %v4769, 0
      %v4807 = vsel %vm1418, %v4770, 0
      %v4810 = vsel %vm1418, %v4771, 0
      %v4813 = vsel %vm1418, %v4772, 0
      %v4816 = vsel %vm1418, %v4773, 0
      %v4819 = vsel %vm1418, %v4774, 0
      %v4822 = vsel %vm1418, %v4775, 0
      %v4825 = vsel %vm1467, %v4343, 0
      %4827 = vmatprep.subr.bf16.mxu0 0
      %4828 = vmatpush1.bf16.msra.mxu0 %v4825
      %4829 = vmatprep.subr.bf16.mxu0 0
      %4830 = vmatpush1.bf16.msra.mxu0 0
      %4831 = vmatprep.subr.bf16.mxu0 0
      %4832 = vmatpush1.bf16.msra.mxu0 0
      %4833 = vmatprep.subr.bf16.mxu0 0
      %4834 = vmatpush1.bf16.msra.mxu0 0
      %4835 = vmatprep.subr.bf16.mxu0 0
      %4836 = vmatpush1.bf16.msra.mxu0 0
      %4837 = vmatprep.subr.bf16.mxu0 0
      %4838 = vmatpush1.bf16.msra.mxu0 0
      %4839 = vmatprep.subr.bf16.mxu0 0
      %4840 = vmatpush1.bf16.msra.mxu0 0
      %4841 = vmatprep.subr.bf16.mxu0 0
      %4842 = vmatpush1.bf16.msra.mxu0 0
      %4843 = vmatprep.subr.bf16.mxu0 0
      %4844 = vmatpush1.bf16.msra.mxu0 0
      %4845 = vmatprep.subr.bf16.mxu0 0
      %4846 = vmatpush1.bf16.msra.mxu0 0
      %4847 = vmatprep.subr.bf16.mxu0 0
      %4848 = vmatpush1.bf16.msra.mxu0 0
      %4849 = vmatprep.subr.bf16.mxu0 0
      %4850 = vmatpush1.bf16.msra.mxu0 0
      %4851 = vmatprep.subr.bf16.mxu0 0
      %4852 = vmatpush1.bf16.msra.mxu0 0
      %4853 = vmatprep.subr.bf16.mxu0 0
      %4854 = vmatpush1.bf16.msra.mxu0 0
      %4855 = vmatprep.subr.bf16.mxu0 0
      %4856 = vmatpush1.bf16.msra.mxu0 0
      %4857 = vmatprep.subr.bf16.mxu0 0
      %4858 = vmatpush1.bf16.msra.mxu0 0
      %4859 = vmatprep.mubr.bf16.mxu0 0
      %4860 = vmatmul.mubr.bf16.gmra.mrb[0].mxu0 %v4777
      %v4861 = vpop.f32.mrb[0].mxu0
      %v4862 = vadd.f32 0.0, %v4861
      %v4863 = vpop.f32.mrb[0].mxu0
      %v4864 = vpop.f32.mrb[0].mxu0
      %v4865 = vadd.f32 0.0, %v4864
      %v4866 = vpop.f32.mrb[0].mxu0
      %4867 = vmatprep.mubr.bf16.mxu0 0
      %4868 = vmatmul.mubr.bf16.gmra.mrb[0].mxu0 %v4780
      %v4869 = vpop.f32.mrb[0].mxu0
      %v4870 = vadd.f32 0.0, %v4869
      %v4871 = vpop.f32.mrb[0].mxu0
      %v4872 = vpop.f32.mrb[0].mxu0
      %v4873 = vadd.f32 0.0, %v4872
      %v4874 = vpop.f32.mrb[0].mxu0
      %4875 = vmatprep.mubr.bf16.mxu0 0
      %4876 = vmatmul.mubr.bf16.gmra.mrb[0].mxu0 %v4783
      %v4877 = vpop.f32.mrb[0].mxu0
      %v4878 = vadd.f32 0.0, %v4877
      %v4879 = vpop.f32.mrb[0].mxu0
      %v4880 = vpop.f32.mrb[0].mxu0
      %v4881 = vadd.f32 0.0, %v4880
      %v4882 = vpop.f32.mrb[0].mxu0
      %4883 = vmatprep.mubr.bf16.mxu0 0
      %4884 = vmatmul.mubr.bf16.gmra.mrb[0].mxu0 %v4786
      %v4885 = vpop.f32.mrb[0].mxu0
      %v4886 = vadd.f32 0.0, %v4885
      %v4887 = vpop.f32.mrb[0].mxu0
      %v4888 = vpop.f32.mrb[0].mxu0
      %v4889 = vadd.f32 0.0, %v4888
      %v4890 = vpop.f32.mrb[0].mxu0
      %4891 = vmatprep.mubr.bf16.mxu0 0
      %4892 = vmatmul.mubr.bf16.gmra.mrb[0].mxu0 %v4789
      %v4893 = vpop.f32.mrb[0].mxu0
      %v4894 = vadd.f32 0.0, %v4893
      %v4895 = vpop.f32.mrb[0].mxu0
      %v4896 = vpop.f32.mrb[0].mxu0
      %v4897 = vadd.f32 0.0, %v4896
      %v4898 = vpop.f32.mrb[0].mxu0
      %4899 = vmatprep.mubr.bf16.mxu0 0
      %4900 = vmatmul.mubr.bf16.gmra.mrb[0].mxu0 %v4792
      %v4901 = vpop.f32.mrb[0].mxu0
      %v4902 = vadd.f32 0.0, %v4901
      %v4903 = vpop.f32.mrb[0].mxu0
      %v4904 = vpop.f32.mrb[0].mxu0
      %v4905 = vadd.f32 0.0, %v4904
      %v4906 = vpop.f32.mrb[0].mxu0
      %4907 = vmatprep.mubr.bf16.mxu0 0
      %4908 = vmatmul.mubr.bf16.gmra.mrb[0].mxu0 %v4795
      %v4909 = vpop.f32.mrb[0].mxu0
      %v4910 = vadd.f32 0.0, %v4909
      %v4911 = vpop.f32.mrb[0].mxu0
      %v4912 = vpop.f32.mrb[0].mxu0
      %v4913 = vadd.f32 0.0, %v4912
      %v4914 = vpop.f32.mrb[0].mxu0
      %4915 = vmatprep.mubr.bf16.mxu0 0
      %4916 = vmatmul.mubr.bf16.gmra.mrb[0].mxu0 %v4798
      %v4917 = vpop.f32.mrb[0].mxu0
      %v4918 = vadd.f32 0.0, %v4917
      %v4919 = vpop.f32.mrb[0].mxu0
      %v4920 = vpop.f32.mrb[0].mxu0
      %v4921 = vadd.f32 0.0, %v4920
      %v4922 = vpop.f32.mrb[0].mxu0
      %4923 = vmatprep.mubr.bf16.mxu0 0
      %4924 = vmatmul.mubr.bf16.gmra.mrb[0].mxu0 %v4801
      %v4925 = vpop.f32.mrb[0].mxu0
      %v4926 = vadd.f32 0.0, %v4925
      %v4927 = vpop.f32.mrb[0].mxu0
      %v4928 = vpop.f32.mrb[0].mxu0
      %v4929 = vadd.f32 0.0, %v4928
      %v4930 = vpop.f32.mrb[0].mxu0
      %4931 = vmatprep.mubr.bf16.mxu0 0
      %4932 = vmatmul.mubr.bf16.gmra.mrb[0].mxu0 %v4804
      %v4933 = vpop.f32.mrb[0].mxu0
      %v4934 = vadd.f32 0.0, %v4933
      %v4935 = vpop.f32.mrb[0].mxu0
      %v4936 = vpop.f32.mrb[0].mxu0
      %v4937 = vadd.f32 0.0, %v4936
      %v4938 = vpop.f32.mrb[0].mxu0
      %4939 = vmatprep.mubr.bf16.mxu0 0
      %4940 = vmatmul.mubr.bf16.gmra.mrb[0].mxu0 %v4807
      %v4941 = vpop.f32.mrb[0].mxu0
      %v4942 = vadd.f32 0.0, %v4941
      %v4943 = vpop.f32.mrb[0].mxu0
      %v4944 = vpop.f32.mrb[0].mxu0
      %v4945 = vadd.f32 0.0, %v4944
      %v4946 = vpop.f32.mrb[0].mxu0
      %4947 = vmatprep.mubr.bf16.mxu0 0
      %4948 = vmatmul.mubr.bf16.gmra.mrb[0].mxu0 %v4810
      %v4949 = vpop.f32.mrb[0].mxu0
      %v4950 = vadd.f32 0.0, %v4949
      %v4951 = vpop.f32.mrb[0].mxu0
      %v4952 = vpop.f32.mrb[0].mxu0
      %v4953 = vadd.f32 0.0, %v4952
      %v4954 = vpop.f32.mrb[0].mxu0
      %4955 = vmatprep.mubr.bf16.mxu0 0
      %4956 = vmatmul.mubr.bf16.gmra.mrb[0].mxu0 %v4813
      %v4957 = vpop.f32.mrb[0].mxu0
      %v4958 = vadd.f32 0.0, %v4957
      %v4959 = vpop.f32.mrb[0].mxu0
      %v4960 = vpop.f32.mrb[0].mxu0
      %v4961 = vadd.f32 0.0, %v4960
      %v4962 = vpop.f32.mrb[0].mxu0
      %4963 = vmatprep.mubr.bf16.mxu0 0
      %4964 = vmatmul.mubr.bf16.gmra.mrb[0].mxu0 %v4816
      %v4965 = vpop.f32.mrb[0].mxu0
      %v4966 = vadd.f32 0.0, %v4965
      %v4967 = vpop.f32.mrb[0].mxu0
      %v4968 = vpop.f32.mrb[0].mxu0
      %v4969 = vadd.f32 0.0, %v4968
      %v4970 = vpop.f32.mrb[0].mxu0
      %4971 = vmatprep.mubr.bf16.mxu0 0
      %4972 = vmatmul.mubr.bf16.gmra.mrb[0].mxu0 %v4819
      %v4973 = vpop.f32.mrb[0].mxu0
      %v4974 = vadd.f32 0.0, %v4973
      %v4975 = vpop.f32.mrb[0].mxu0
      %v4976 = vpop.f32.mrb[0].mxu0
      %v4977 = vadd.f32 0.0, %v4976
      %v4978 = vpop.f32.mrb[0].mxu0
      %4979 = vmatprep.mubr.bf16.mxu0 0
      %4980 = vmatmul.mubr.bf16.gmra.mrb[0].mxu0 %v4822
      %v4981 = vpop.f32.mrb[0].mxu0
      %v4982 = vadd.f32 0.0, %v4981
      %v4983 = vpop.f32.mrb[0].mxu0
      %v4984 = vpop.f32.mrb[0].mxu0
      %v4985 = vadd.f32 0.0, %v4984
      %v4986 = vpop.f32.mrb[0].mxu0
      %4987 = vdwg.mxu0
      %v4988 = vadd.f32 %v4262, %v4862
      %v4989 = vadd.f32 %v4263, %v4865
      %v4990 = vadd.f32 %v4264, %v4870
      %v4991 = vadd.f32 %v4265, %v4873
      %v4992 = vadd.f32 %v4266, %v4878
      %v4993 = vadd.f32 %v4267, %v4881
      %v4994 = vadd.f32 %v4268, %v4886
      %v4995 = vadd.f32 %v4269, %v4889
      %v4996 = vadd.f32 %v4270, %v4894
      %v4997 = vadd.f32 %v4271, %v4897
      %v4998 = vadd.f32 %v4272, %v4902
      %v4999 = vadd.f32 %v4273, %v4905
      %v5000 = vadd.f32 %v4274, %v4910
      %v5001 = vadd.f32 %v4275, %v4913
      %v5002 = vadd.f32 %v4276, %v4918
      %v5003 = vadd.f32 %v4277, %v4921
      %v5004 = vadd.f32 %v4278, %v4926
      %v5005 = vadd.f32 %v4279, %v4929
      %v5006 = vadd.f32 %v4280, %v4934
      %v5007 = vadd.f32 %v4281, %v4937
      %v5008 = vadd.f32 %v4282, %v4942
      %v5009 = vadd.f32 %v4283, %v4945
      %v5010 = vadd.f32 %v4284, %v4950
      %v5011 = vadd.f32 %v4285, %v4953
      %v5012 = vadd.f32 %v4286, %v4958
      %v5013 = vadd.f32 %v4287, %v4961
      %v5014 = vadd.f32 %v4288, %v4966
      %v5015 = vadd.f32 %v4289, %v4969
      %v5016 = vadd.f32 %v4290, %v4974
      %v5017 = vadd.f32 %v4291, %v4977
      %v5018 = vadd.f32 %v4292, %v4982
      %v5019 = vadd.f32 %v4293, %v4985
      %v5020 = vld [vmem:[%s3935] sm:$0xe]
      %v5021 = vld [vmem:[%s3935 + $0xc] sm:$0xe]
      %v5022 = vld [vmem:[%s3935 + $0x18] sm:$0xe]
      %v5023 = vld [vmem:[%s3935 + $0x24] sm:$0xe]
      %v5024 = vld [vmem:[%s3935 + $0x30] sm:$0xe]
      %v5025 = vld [vmem:[%s3935 + $0x3c] sm:$0xe]
      %v5026 = vld [vmem:[%s3935 + $0x48] sm:$0xe]
      %v5027 = vld [vmem:[%s3935 + $0x54] sm:$0xe]
      %v5028 = vld [vmem:[%s3935 + $0x60] sm:$0xe]
      %v5029 = vld [vmem:[%s3935 + $0x6c] sm:$0xe]
      %v5030 = vld [vmem:[%s3935 + $0x78] sm:$0xe]
      %v5031 = vld [vmem:[%s3935 + $0x84] sm:$0xe]
      %v5032 = vld [vmem:[%s3935 + $0x90] sm:$0xe]
      %v5033 = vld [vmem:[%s3935 + $0x9c] sm:$0xe]
      %v5034 = vld [vmem:[%s3935 + $0xa8] sm:$0xe]
      %v5035 = vld [vmem:[%s3935 + $0xb4] sm:$0xe]
      %s5036 = scalar_lea.vmem %s1, 16
      %v5037 = vld [vmem:[%s5036] sm:$0x3]
      %v5086 = vrot.slane %v5020, 5
      %v5087 = vrot.slane %v5086, 4
      %v5088 = vrot.slane %v4295, 5
      %v5089 = vsel %vm1976, %v5087, %v5088
      %v5090 = vrot.slane %v5088, 4
      %v5091 = vrot.slane %v4296, 5
      %v5092 = vsel %vm1976, %v5090, %v5091
      %v5093 = vrot.slane %v5021, 5
      %v5094 = vrot.slane %v5093, 4
      %v5095 = vrot.slane %v4298, 5
      %v5096 = vsel %vm1976, %v5094, %v5095
      %v5097 = vrot.slane %v5095, 4
      %v5098 = vrot.slane %v4299, 5
      %v5099 = vsel %vm1976, %v5097, %v5098
      %v5100 = vrot.slane %v5022, 5
      %v5101 = vrot.slane %v5100, 4
      %v5102 = vrot.slane %v4301, 5
      %v5103 = vsel %vm1976, %v5101, %v5102
      %v5104 = vrot.slane %v5102, 4
      %v5105 = vrot.slane %v4302, 5
      %v5106 = vsel %vm1976, %v5104, %v5105
      %v5107 = vrot.slane %v5023, 5
      %v5108 = vrot.slane %v5107, 4
      %v5109 = vrot.slane %v4304, 5
      %v5110 = vsel %vm1976, %v5108, %v5109
      %v5111 = vrot.slane %v5109, 4
      %v5112 = vrot.slane %v4305, 5
      %v5113 = vsel %vm1976, %v5111, %v5112
      %v5114 = vrot.slane %v5024, 5
      %v5115 = vrot.slane %v5114, 4
      %v5116 = vrot.slane %v4307, 5
      %v5117 = vsel %vm1976, %v5115, %v5116
      %v5118 = vrot.slane %v5116, 4
      %v5119 = vrot.slane %v4308, 5
      %v5120 = vsel %vm1976, %v5118, %v5119
      %v5121 = vrot.slane %v5025, 5
      %v5122 = vrot.slane %v5121, 4
      %v5123 = vrot.slane %v4310, 5
      %v5124 = vsel %vm1976, %v5122, %v5123
      %v5125 = vrot.slane %v5123, 4
      %v5126 = vrot.slane %v4311, 5
      %v5127 = vsel %vm1976, %v5125, %v5126
      %v5128 = vrot.slane %v5026, 5
      %v5129 = vrot.slane %v5128, 4
      %v5130 = vrot.slane %v4313, 5
      %v5131 = vsel %vm1976, %v5129, %v5130
      %v5132 = vrot.slane %v5130, 4
      %v5133 = vrot.slane %v4314, 5
      %v5134 = vsel %vm1976, %v5132, %v5133
      %v5135 = vrot.slane %v5027, 5
      %v5136 = vrot.slane %v5135, 4
      %v5137 = vrot.slane %v4316, 5
      %v5138 = vsel %vm1976, %v5136, %v5137
      %v5139 = vrot.slane %v5137, 4
      %v5140 = vrot.slane %v4317, 5
      %v5141 = vsel %vm1976, %v5139, %v5140
      %v5142 = vrot.slane %v5028, 5
      %v5143 = vrot.slane %v5142, 4
      %v5144 = vrot.slane %v4319, 5
      %v5145 = vsel %vm1976, %v5143, %v5144
      %v5146 = vrot.slane %v5144, 4
      %v5147 = vrot.slane %v4320, 5
      %v5148 = vsel %vm1976, %v5146, %v5147
      %v5149 = vrot.slane %v5029, 5
      %v5150 = vrot.slane %v5149, 4
      %v5151 = vrot.slane %v4322, 5
      %v5152 = vsel %vm1976, %v5150, %v5151
      %v5153 = vrot.slane %v5151, 4
      %v5154 = vrot.slane %v4323, 5
      %v5155 = vsel %vm1976, %v5153, %v5154
      %v5156 = vrot.slane %v5030, 5
      %v5157 = vrot.slane %v5156, 4
      %v5158 = vrot.slane %v4325, 5
      %v5159 = vsel %vm1976, %v5157, %v5158
      %v5160 = vrot.slane %v5158, 4
      %v5161 = vrot.slane %v4326, 5
      %v5162 = vsel %vm1976, %v5160, %v5161
      %v5163 = vrot.slane %v5031, 5
      %v5164 = vrot.slane %v5163, 4
      %v5165 = vrot.slane %v4328, 5
      %v5166 = vsel %vm1976, %v5164, %v5165
      %v5167 = vrot.slane %v5165, 4
      %v5168 = vrot.slane %v4329, 5
      %v5169 = vsel %vm1976, %v5167, %v5168
      %v5170 = vrot.slane %v5032, 5
      %v5171 = vrot.slane %v5170, 4
      %v5172 = vrot.slane %v4331, 5
      %v5173 = vsel %vm1976, %v5171, %v5172
      %v5174 = vrot.slane %v5172, 4
      %v5175 = vrot.slane %v4332, 5
      %v5176 = vsel %vm1976, %v5174, %v5175
      %v5177 = vrot.slane %v5033, 5
      %v5178 = vrot.slane %v5177, 4
      %v5179 = vrot.slane %v4334, 5
      %v5180 = vsel %vm1976, %v5178, %v5179
      %v5181 = vrot.slane %v5179, 4
      %v5182 = vrot.slane %v4335, 5
      %v5183 = vsel %vm1976, %v5181, %v5182
      %v5184 = vrot.slane %v5034, 5
      %v5185 = vrot.slane %v5184, 4
      %v5186 = vrot.slane %v4337, 5
      %v5187 = vsel %vm1976, %v5185, %v5186
      %v5188 = vrot.slane %v5186, 4
      %v5189 = vrot.slane %v4338, 5
      %v5190 = vsel %vm1976, %v5188, %v5189
      %v5191 = vrot.slane %v5035, 5
      %v5192 = vrot.slane %v5191, 4
      %v5193 = vrot.slane %v4340, 5
      %v5194 = vsel %vm1976, %v5192, %v5193
      %v5195 = vrot.slane %v5193, 4
      %v5196 = vrot.slane %v4341, 5
      %v5197 = vsel %vm1976, %v5195, %v5196
      %v5198 = vunpack.c.l.b16 %v5089
      %v5199 = vunpack.c.l.b16 %v5092
      %v5200 = vunpack.c.l.b16 %v5096
      %v5201 = vunpack.c.l.b16 %v5099
      %v5202 = vunpack.c.l.b16 %v5103
      %v5203 = vunpack.c.l.b16 %v5106
      %v5204 = vunpack.c.l.b16 %v5110
      %v5205 = vunpack.c.l.b16 %v5113
      %v5206 = vunpack.c.l.b16 %v5117
      %v5207 = vunpack.c.l.b16 %v5120
      %v5208 = vunpack.c.l.b16 %v5124
      %v5209 = vunpack.c.l.b16 %v5127
      %v5210 = vunpack.c.l.b16 %v5131
      %v5211 = vunpack.c.l.b16 %v5134
      %v5212 = vunpack.c.l.b16 %v5138
      %v5213 = vunpack.c.l.b16 %v5141
      %v5214 = vunpack.c.l.b16 %v5145
      %v5215 = vunpack.c.l.b16 %v5148
      %v5216 = vunpack.c.l.b16 %v5152
      %v5217 = vunpack.c.l.b16 %v5155
      %v5218 = vunpack.c.l.b16 %v5159
      %v5219 = vunpack.c.l.b16 %v5162
      %v5220 = vunpack.c.l.b16 %v5166
      %v5221 = vunpack.c.l.b16 %v5169
      %v5222 = vunpack.c.l.b16 %v5173
      %v5223 = vunpack.c.l.b16 %v5176
      %v5224 = vunpack.c.l.b16 %v5180
      %v5225 = vunpack.c.l.b16 %v5183
      %v5226 = vunpack.c.l.b16 %v5187
      %v5227 = vunpack.c.l.b16 %v5190
      %v5228 = vunpack.c.l.b16 %v5194
      %v5229 = vunpack.c.l.b16 %v5197
      %v5230 = vpack.c.b16 %v5199, %v5198
      %v5231 = vpack.c.b16 %v5201, %v5200
      %v5232 = vpack.c.b16 %v5203, %v5202
      %v5233 = vpack.c.b16 %v5205, %v5204
      %v5234 = vpack.c.b16 %v5207, %v5206
      %v5235 = vpack.c.b16 %v5209, %v5208
      %v5236 = vpack.c.b16 %v5211, %v5210
      %v5237 = vpack.c.b16 %v5213, %v5212
      %v5238 = vpack.c.b16 %v5215, %v5214
      %v5239 = vpack.c.b16 %v5217, %v5216
      %v5240 = vpack.c.b16 %v5219, %v5218
      %v5241 = vpack.c.b16 %v5221, %v5220
      %v5242 = vpack.c.b16 %v5223, %v5222
      %v5243 = vpack.c.b16 %v5225, %v5224
      %v5244 = vpack.c.b16 %v5227, %v5226
      %v5245 = vpack.c.b16 %v5229, %v5228
      %v5247 = vsel %vm1418, %v5230, 0
      %v5250 = vsel %vm1418, %v5231, 0
      %v5253 = vsel %vm1418, %v5232, 0
      %v5256 = vsel %vm1418, %v5233, 0
      %v5259 = vsel %vm1418, %v5234, 0
      %v5262 = vsel %vm1418, %v5235, 0
      %v5265 = vsel %vm1418, %v5236, 0
      %v5268 = vsel %vm1418, %v5237, 0
      %v5271 = vsel %vm1418, %v5238, 0
      %v5274 = vsel %vm1418, %v5239, 0
      %v5277 = vsel %vm1418, %v5240, 0
      %v5280 = vsel %vm1418, %v5241, 0
      %v5283 = vsel %vm1418, %v5242, 0
      %v5286 = vsel %vm1418, %v5243, 0
      %v5289 = vsel %vm1418, %v5244, 0
      %v5292 = vsel %vm1418, %v5245, 0
      %v5295 = vsel %vm1467, %v5037, 0
      %5297 = vmatprep.subr.bf16.mxu0 0
      %5298 = vmatpush1.bf16.msra.mxu0 %v5295
      %5299 = vmatprep.subr.bf16.mxu0 0
      %5300 = vmatpush1.bf16.msra.mxu0 0
      %5301 = vmatprep.subr.bf16.mxu0 0
      %5302 = vmatpush1.bf16.msra.mxu0 0
      %5303 = vmatprep.subr.bf16.mxu0 0
      %5304 = vmatpush1.bf16.msra.mxu0 0
      %5305 = vmatprep.subr.bf16.mxu0 0
      %5306 = vmatpush1.bf16.msra.mxu0 0
      %5307 = vmatprep.subr.bf16.mxu0 0
      %5308 = vmatpush1.bf16.msra.mxu0 0
      %5309 = vmatprep.subr.bf16.mxu0 0
      %5310 = vmatpush1.bf16.msra.mxu0 0
      %5311 = vmatprep.subr.bf16.mxu0 0
      %5312 = vmatpush1.bf16.msra.mxu0 0
      %5313 = vmatprep.subr.bf16.mxu0 0
      %5314 = vmatpush1.bf16.msra.mxu0 0
      %5315 = vmatprep.subr.bf16.mxu0 0
      %5316 = vmatpush1.bf16.msra.mxu0 0
      %5317 = vmatprep.subr.bf16.mxu0 0
      %5318 = vmatpush1.bf16.msra.mxu0 0
      %5319 = vmatprep.subr.bf16.mxu0 0
      %5320 = vmatpush1.bf16.msra.mxu0 0
      %5321 = vmatprep.subr.bf16.mxu0 0
      %5322 = vmatpush1.bf16.msra.mxu0 0
      %5323 = vmatprep.subr.bf16.mxu0 0
      %5324 = vmatpush1.bf16.msra.mxu0 0
      %5325 = vmatprep.subr.bf16.mxu0 0
      %5326 = vmatpush1.bf16.msra.mxu0 0
      %5327 = vmatprep.subr.bf16.mxu0 0
      %5328 = vmatpush1.bf16.msra.mxu0 0
      %5329 = vmatprep.mubr.bf16.mxu0 0
      %5330 = vmatmul.mubr.bf16.gmra.mrb[0].mxu0 %v5247
      %v5331 = vpop.f32.mrb[0].mxu0
      %v5332 = vadd.f32 0.0, %v5331
      %v5333 = vpop.f32.mrb[0].mxu0
      %v5334 = vpop.f32.mrb[0].mxu0
      %v5335 = vadd.f32 0.0, %v5334
      %v5336 = vpop.f32.mrb[0].mxu0
      %5337 = vmatprep.mubr.bf16.mxu0 0
      %5338 = vmatmul.mubr.bf16.gmra.mrb[0].mxu0 %v5250
      %v5339 = vpop.f32.mrb[0].mxu0
      %v5340 = vadd.f32 0.0, %v5339
      %v5341 = vpop.f32.mrb[0].mxu0
      %v5342 = vpop.f32.mrb[0].mxu0
      %v5343 = vadd.f32 0.0, %v5342
      %v5344 = vpop.f32.mrb[0].mxu0
      %5345 = vmatprep.mubr.bf16.mxu0 0
      %5346 = vmatmul.mubr.bf16.gmra.mrb[0].mxu0 %v5253
      %v5347 = vpop.f32.mrb[0].mxu0
      %v5348 = vadd.f32 0.0, %v5347
      %v5349 = vpop.f32.mrb[0].mxu0
      %v5350 = vpop.f32.mrb[0].mxu0
      %v5351 = vadd.f32 0.0, %v5350
      %v5352 = vpop.f32.mrb[0].mxu0
      %5353 = vmatprep.mubr.bf16.mxu0 0
      %5354 = vmatmul.mubr.bf16.gmra.mrb[0].mxu0 %v5256
      %v5355 = vpop.f32.mrb[0].mxu0
      %v5356 = vadd.f32 0.0, %v5355
      %v5357 = vpop.f32.mrb[0].mxu0
      %v5358 = vpop.f32.mrb[0].mxu0
      %v5359 = vadd.f32 0.0, %v5358
      %v5360 = vpop.f32.mrb[0].mxu0
      %5361 = vmatprep.mubr.bf16.mxu0 0
      %5362 = vmatmul.mubr.bf16.gmra.mrb[0].mxu0 %v5259
      %v5363 = vpop.f32.mrb[0].mxu0
      %v5364 = vadd.f32 0.0, %v5363
      %v5365 = vpop.f32.mrb[0].mxu0
      %v5366 = vpop.f32.mrb[0].mxu0
      %v5367 = vadd.f32 0.0, %v5366
      %v5368 = vpop.f32.mrb[0].mxu0
      %5369 = vmatprep.mubr.bf16.mxu0 0
      %5370 = vmatmul.mubr.bf16.gmra.mrb[0].mxu0 %v5262
      %v5371 = vpop.f32.mrb[0].mxu0
      %v5372 = vadd.f32 0.0, %v5371
      %v5373 = vpop.f32.mrb[0].mxu0
      %v5374 = vpop.f32.mrb[0].mxu0
      %v5375 = vadd.f32 0.0, %v5374
      %v5376 = vpop.f32.mrb[0].mxu0
      %5377 = vmatprep.mubr.bf16.mxu0 0
      %5378 = vmatmul.mubr.bf16.gmra.mrb[0].mxu0 %v5265
      %v5379 = vpop.f32.mrb[0].mxu0
      %v5380 = vadd.f32 0.0, %v5379
      %v5381 = vpop.f32.mrb[0].mxu0
      %v5382 = vpop.f32.mrb[0].mxu0
      %v5383 = vadd.f32 0.0, %v5382
      %v5384 = vpop.f32.mrb[0].mxu0
      %5385 = vmatprep.mubr.bf16.mxu0 0
      %5386 = vmatmul.mubr.bf16.gmra.mrb[0].mxu0 %v5268
      %v5387 = vpop.f32.mrb[0].mxu0
      %v5388 = vadd.f32 0.0, %v5387
      %v5389 = vpop.f32.mrb[0].mxu0
      %v5390 = vpop.f32.mrb[0].mxu0
      %v5391 = vadd.f32 0.0, %v5390
      %v5392 = vpop.f32.mrb[0].mxu0
      %5393 = vmatprep.mubr.bf16.mxu0 0
      %5394 = vmatmul.mubr.bf16.gmra.mrb[0].mxu0 %v5271
      %v5395 = vpop.f32.mrb[0].mxu0
      %v5396 = vadd.f32 0.0, %v5395
      %v5397 = vpop.f32.mrb[0].mxu0
      %v5398 = vpop.f32.mrb[0].mxu0
      %v5399 = vadd.f32 0.0, %v5398
      %v5400 = vpop.f32.mrb[0].mxu0
      %5401 = vmatprep.mubr.bf16.mxu0 0
      %5402 = vmatmul.mubr.bf16.gmra.mrb[0].mxu0 %v5274
      %v5403 = vpop.f32.mrb[0].mxu0
      %v5404 = vadd.f32 0.0, %v5403
      %v5405 = vpop.f32.mrb[0].mxu0
      %v5406 = vpop.f32.mrb[0].mxu0
      %v5407 = vadd.f32 0.0, %v5406
      %v5408 = vpop.f32.mrb[0].mxu0
      %5409 = vmatprep.mubr.bf16.mxu0 0
      %5410 = vmatmul.mubr.bf16.gmra.mrb[0].mxu0 %v5277
      %v5411 = vpop.f32.mrb[0].mxu0
      %v5412 = vadd.f32 0.0, %v5411
      %v5413 = vpop.f32.mrb[0].mxu0
      %v5414 = vpop.f32.mrb[0].mxu0
      %v5415 = vadd.f32 0.0, %v5414
      %v5416 = vpop.f32.mrb[0].mxu0
      %5417 = vmatprep.mubr.bf16.mxu0 0
      %5418 = vmatmul.mubr.bf16.gmra.mrb[0].mxu0 %v5280
      %v5419 = vpop.f32.mrb[0].mxu0
      %v5420 = vadd.f32 0.0, %v5419
      %v5421 = vpop.f32.mrb[0].mxu0
      %v5422 = vpop.f32.mrb[0].mxu0
      %v5423 = vadd.f32 0.0, %v5422
      %v5424 = vpop.f32.mrb[0].mxu0
      %5425 = vmatprep.mubr.bf16.mxu0 0
      %5426 = vmatmul.mubr.bf16.gmra.mrb[0].mxu0 %v5283
      %v5427 = vpop.f32.mrb[0].mxu0
      %v5428 = vadd.f32 0.0, %v5427
      %v5429 = vpop.f32.mrb[0].mxu0
      %v5430 = vpop.f32.mrb[0].mxu0
      %v5431 = vadd.f32 0.0, %v5430
      %v5432 = vpop.f32.mrb[0].mxu0
      %5433 = vmatprep.mubr.bf16.mxu0 0
      %5434 = vmatmul.mubr.bf16.gmra.mrb[0].mxu0 %v5286
      %v5435 = vpop.f32.mrb[0].mxu0
      %v5436 = vadd.f32 0.0, %v5435
      %v5437 = vpop.f32.mrb[0].mxu0
      %v5438 = vpop.f32.mrb[0].mxu0
      %v5439 = vadd.f32 0.0, %v5438
      %v5440 = vpop.f32.mrb[0].mxu0
      %5441 = vmatprep.mubr.bf16.mxu0 0
      %5442 = vmatmul.mubr.bf16.gmra.mrb[0].mxu0 %v5289
      %v5443 = vpop.f32.mrb[0].mxu0
      %v5444 = vadd.f32 0.0, %v5443
      %v5445 = vpop.f32.mrb[0].mxu0
      %v5446 = vpop.f32.mrb[0].mxu0
      %v5447 = vadd.f32 0.0, %v5446
      %v5448 = vpop.f32.mrb[0].mxu0
      %5449 = vmatprep.mubr.bf16.mxu0 0
      %5450 = vmatmul.mubr.bf16.gmra.mrb[0].mxu0 %v5292
      %v5451 = vpop.f32.mrb[0].mxu0
      %v5452 = vadd.f32 0.0, %v5451
      %v5453 = vpop.f32.mrb[0].mxu0
      %v5454 = vpop.f32.mrb[0].mxu0
      %v5455 = vadd.f32 0.0, %v5454
      %v5456 = vpop.f32.mrb[0].mxu0
      %5457 = vdwg.mxu0
      %v5458 = vadd.f32 %v4988, %v5332
      %v5459 = vadd.f32 %v4989, %v5335
      %v5460 = vadd.f32 %v4990, %v5340
      %v5461 = vadd.f32 %v4991, %v5343
      %v5462 = vadd.f32 %v4992, %v5348
      %v5463 = vadd.f32 %v4993, %v5351
      %v5464 = vadd.f32 %v4994, %v5356
      %v5465 = vadd.f32 %v4995, %v5359
      %v5466 = vadd.f32 %v4996, %v5364
      %v5467 = vadd.f32 %v4997, %v5367
      %v5468 = vadd.f32 %v4998, %v5372
      %v5469 = vadd.f32 %v4999, %v5375
      %v5470 = vadd.f32 %v5000, %v5380
      %v5471 = vadd.f32 %v5001, %v5383
      %v5472 = vadd.f32 %v5002, %v5388
      %v5473 = vadd.f32 %v5003, %v5391
      %v5474 = vadd.f32 %v5004, %v5396
      %v5475 = vadd.f32 %v5005, %v5399
      %v5476 = vadd.f32 %v5006, %v5404
      %v5477 = vadd.f32 %v5007, %v5407
      %v5478 = vadd.f32 %v5008, %v5412
      %v5479 = vadd.f32 %v5009, %v5415
      %v5480 = vadd.f32 %v5010, %v5420
      %v5481 = vadd.f32 %v5011, %v5423
      %v5482 = vadd.f32 %v5012, %v5428
      %v5483 = vadd.f32 %v5013, %v5431
      %v5484 = vadd.f32 %v5014, %v5436
      %v5485 = vadd.f32 %v5015, %v5439
      %v5486 = vadd.f32 %v5016, %v5444
      %v5487 = vadd.f32 %v5017, %v5447
      %v5488 = vadd.f32 %v5018, %v5452
      %v5489 = vadd.f32 %v5019, %v5455
      %v5490 = vld [vmem:[%s3] sm:$0x1]
      %v5492 = vlaneseq
      %v5493 = vshrl.u32 %v5492, 7
      %v5494 = vsub.s32 0, %v5493
      %v5495 = vrot.slane %v5490, %v5494
      %v5497 = vadd.f32 %v5458, %v5495
      %v5498 = vadd.f32 %v5459, %v5495
      %v5499 = vadd.f32 %v5460, %v5495
      %v5500 = vadd.f32 %v5461, %v5495
      %v5501 = vadd.f32 %v5462, %v5495
      %v5502 = vadd.f32 %v5463, %v5495
      %v5503 = vadd.f32 %v5464, %v5495
      %v5504 = vadd.f32 %v5465, %v5495
      %v5505 = vadd.f32 %v5466, %v5495
      %v5506 = vadd.f32 %v5467, %v5495
      %v5507 = vadd.f32 %v5468, %v5495
      %v5508 = vadd.f32 %v5469, %v5495
      %v5509 = vadd.f32 %v5470, %v5495
      %v5510 = vadd.f32 %v5471, %v5495
      %v5511 = vadd.f32 %v5472, %v5495
      %v5512 = vadd.f32 %v5473, %v5495
      %v5513 = vadd.f32 %v5474, %v5495
      %v5514 = vadd.f32 %v5475, %v5495
      %v5515 = vadd.f32 %v5476, %v5495
      %v5516 = vadd.f32 %v5477, %v5495
      %v5517 = vadd.f32 %v5478, %v5495
      %v5518 = vadd.f32 %v5479, %v5495
      %v5519 = vadd.f32 %v5480, %v5495
      %v5520 = vadd.f32 %v5481, %v5495
      %v5521 = vadd.f32 %v5482, %v5495
      %v5522 = vadd.f32 %v5483, %v5495
      %v5523 = vadd.f32 %v5484, %v5495
      %v5524 = vadd.f32 %v5485, %v5495
      %v5525 = vadd.f32 %v5486, %v5495
      %v5526 = vadd.f32 %v5487, %v5495
      %v5527 = vadd.f32 %v5488, %v5495
      %v5528 = vadd.f32 %v5489, %v5495
      %v5529 = vmax.f32 %v5497, 0.0
      %v5530 = vmax.f32 %v5498, 0.0
      %v5531 = vmax.f32 %v5499, 0.0
      %v5532 = vmax.f32 %v5500, 0.0
      %v5533 = vmax.f32 %v5501, 0.0
      %v5534 = vmax.f32 %v5502, 0.0
      %v5535 = vmax.f32 %v5503, 0.0
      %v5536 = vmax.f32 %v5504, 0.0
      %v5537 = vmax.f32 %v5505, 0.0
      %v5538 = vmax.f32 %v5506, 0.0
      %v5539 = vmax.f32 %v5507, 0.0
      %v5540 = vmax.f32 %v5508, 0.0
      %v5541 = vmax.f32 %v5509, 0.0
      %v5542 = vmax.f32 %v5510, 0.0
      %v5543 = vmax.f32 %v5511, 0.0
      %v5544 = vmax.f32 %v5512, 0.0
      %v5545 = vmax.f32 %v5513, 0.0
      %v5546 = vmax.f32 %v5514, 0.0
      %v5547 = vmax.f32 %v5515, 0.0
      %v5548 = vmax.f32 %v5516, 0.0
      %v5549 = vmax.f32 %v5517, 0.0
      %v5550 = vmax.f32 %v5518, 0.0
      %v5551 = vmax.f32 %v5519, 0.0
      %v5552 = vmax.f32 %v5520, 0.0
      %v5553 = vmax.f32 %v5521, 0.0
      %v5554 = vmax.f32 %v5522, 0.0
      %v5555 = vmax.f32 %v5523, 0.0
      %v5556 = vmax.f32 %v5524, 0.0
      %v5557 = vmax.f32 %v5525, 0.0
      %v5558 = vmax.f32 %v5526, 0.0
      %v5559 = vmax.f32 %v5527, 0.0
      %v5560 = vmax.f32 %v5528, 0.0
      %v5561 = vpack.c.bf16 %v5530, %v5529
      %v5562 = vpack.c.bf16 %v5532, %v5531
      %v5563 = vpack.c.bf16 %v5534, %v5533
      %v5564 = vpack.c.bf16 %v5536, %v5535
      %v5565 = vpack.c.bf16 %v5538, %v5537
      %v5566 = vpack.c.bf16 %v5540, %v5539
      %v5567 = vpack.c.bf16 %v5542, %v5541
      %v5568 = vpack.c.bf16 %v5544, %v5543
      %v5569 = vpack.c.bf16 %v5546, %v5545
      %v5570 = vpack.c.bf16 %v5548, %v5547
      %v5571 = vpack.c.bf16 %v5550, %v5549
      %v5572 = vpack.c.bf16 %v5552, %v5551
      %v5573 = vpack.c.bf16 %v5554, %v5553
      %v5574 = vpack.c.bf16 %v5556, %v5555
      %v5575 = vpack.c.bf16 %v5558, %v5557
      %v5576 = vpack.c.bf16 %v5560, %v5559
      %v5593 = vunpack.c.l.b16 %v5561
      %v5594 = vunpack.c.h.b16 %v5561
      %v5595 = vunpack.c.l.b16 %v5562
      %v5596 = vunpack.c.h.b16 %v5562
      %v5597 = vunpack.c.l.b16 %v5563
      %v5598 = vunpack.c.h.b16 %v5563
      %v5599 = vunpack.c.l.b16 %v5564
      %v5600 = vunpack.c.h.b16 %v5564
      %v5601 = vunpack.c.l.b16 %v5565
      %v5602 = vunpack.c.h.b16 %v5565
      %v5603 = vunpack.c.l.b16 %v5566
      %v5604 = vunpack.c.h.b16 %v5566
      %v5605 = vunpack.c.l.b16 %v5567
      %v5606 = vunpack.c.h.b16 %v5567
      %v5607 = vunpack.c.l.b16 %v5568
      %v5608 = vunpack.c.h.b16 %v5568
      %v5609 = vunpack.c.l.b16 %v5569
      %v5610 = vunpack.c.h.b16 %v5569
      %v5611 = vunpack.c.l.b16 %v5570
      %v5612 = vunpack.c.h.b16 %v5570
      %v5613 = vunpack.c.l.b16 %v5571
      %v5614 = vunpack.c.h.b16 %v5571
      %v5615 = vunpack.c.l.b16 %v5572
      %v5616 = vunpack.c.h.b16 %v5572
      %v5617 = vunpack.c.l.b16 %v5573
      %v5618 = vunpack.c.h.b16 %v5573
      %v5619 = vunpack.c.l.b16 %v5574
      %v5620 = vunpack.c.h.b16 %v5574
      %v5621 = vunpack.c.l.b16 %v5575
      %v5622 = vunpack.c.h.b16 %v5575
      %v5623 = vunpack.c.l.b16 %v5576
      %v5624 = vunpack.c.h.b16 %v5576
      %v5625 = vpack.c.b16 %v5593, %v5593
      %v5626 = vpack.c.b16 %v5594, %v5594
      %v5627 = vpack.c.b16 %v5595, %v5595
      %v5628 = vpack.c.b16 %v5596, %v5596
      %v5629 = vpack.c.b16 %v5597, %v5597
      %v5630 = vpack.c.b16 %v5598, %v5598
      %v5631 = vpack.c.b16 %v5599, %v5599
      %v5632 = vpack.c.b16 %v5600, %v5600
      %v5633 = vpack.c.b16 %v5601, %v5601
      %v5634 = vpack.c.b16 %v5602, %v5602
      %v5635 = vpack.c.b16 %v5603, %v5603
      %v5636 = vpack.c.b16 %v5604, %v5604
      %v5637 = vpack.c.b16 %v5605, %v5605
      %v5638 = vpack.c.b16 %v5606, %v5606
      %v5639 = vpack.c.b16 %v5607, %v5607
      %v5640 = vpack.c.b16 %v5608, %v5608
      %v5641 = vpack.c.b16 %v5609, %v5609
      %v5642 = vpack.c.b16 %v5610, %v5610
      %v5643 = vpack.c.b16 %v5611, %v5611
      %v5644 = vpack.c.b16 %v5612, %v5612
      %v5645 = vpack.c.b16 %v5613, %v5613
      %v5646 = vpack.c.b16 %v5614, %v5614
      %v5647 = vpack.c.b16 %v5615, %v5615
      %v5648 = vpack.c.b16 %v5616, %v5616
      %v5649 = vpack.c.b16 %v5617, %v5617
      %v5650 = vpack.c.b16 %v5618, %v5618
      %v5651 = vpack.c.b16 %v5619, %v5619
      %v5652 = vpack.c.b16 %v5620, %v5620
      %v5653 = vpack.c.b16 %v5621, %v5621
      %v5654 = vpack.c.b16 %v5622, %v5622
      %v5655 = vpack.c.b16 %v5623, %v5623
      %v5656 = vpack.c.b16 %v5624, %v5624
      %v5658 = vshrl.u32 %v5625, 16
      %v5660 = vrot.slane %v5658, 7
      %v5661 = vshll.u32 %v5625, 16
      %v5663 = vor.u32 %v5660, %v5661
      %v5664 = vrot.slane %v5660, 4
      %v5666 = vshrl.u32 %v5626, 16
      %v5668 = vrot.slane %v5666, 7
      %v5669 = vshll.u32 %v5626, 16
      %v5671 = vor.u32 %v5668, %v5669
      %v5672 = vsel %vm496, %v5664, %v5671
      %v5673 = vrot.slane %v5668, 4
      %v5675 = vshrl.u32 %v5627, 16
      %v5677 = vrot.slane %v5675, 7
      %v5678 = vshll.u32 %v5627, 16
      %v5680 = vor.u32 %v5677, %v5678
      %v5681 = vrot.slane %v5677, 4
      %v5683 = vshrl.u32 %v5628, 16
      %v5685 = vrot.slane %v5683, 7
      %v5686 = vshll.u32 %v5628, 16
      %v5688 = vor.u32 %v5685, %v5686
      %v5689 = vsel %vm496, %v5681, %v5688
      %v5690 = vrot.slane %v5685, 4
      %v5692 = vshrl.u32 %v5629, 16
      %v5694 = vrot.slane %v5692, 7
      %v5695 = vshll.u32 %v5629, 16
      %v5697 = vor.u32 %v5694, %v5695
      %v5698 = vrot.slane %v5694, 4
      %v5700 = vshrl.u32 %v5630, 16
      %v5702 = vrot.slane %v5700, 7
      %v5703 = vshll.u32 %v5630, 16
      %v5705 = vor.u32 %v5702, %v5703
      %v5706 = vsel %vm496, %v5698, %v5705
      %v5707 = vrot.slane %v5702, 4
      %v5709 = vshrl.u32 %v5631, 16
      %v5711 = vrot.slane %v5709, 7
      %v5712 = vshll.u32 %v5631, 16
      %v5714 = vor.u32 %v5711, %v5712
      %v5715 = vrot.slane %v5711, 4
      %v5717 = vshrl.u32 %v5632, 16
      %v5719 = vrot.slane %v5717, 7
      %v5720 = vshll.u32 %v5632, 16
      %v5722 = vor.u32 %v5719, %v5720
      %v5723 = vsel %vm496, %v5715, %v5722
      %v5724 = vrot.slane %v5719, 4
      %v5726 = vshrl.u32 %v5633, 16
      %v5728 = vrot.slane %v5726, 7
      %v5729 = vshll.u32 %v5633, 16
      %v5731 = vor.u32 %v5728, %v5729
      %v5732 = vrot.slane %v5728, 4
      %v5734 = vshrl.u32 %v5634, 16
      %v5736 = vrot.slane %v5734, 7
      %v5737 = vshll.u32 %v5634, 16
      %v5739 = vor.u32 %v5736, %v5737
      %v5740 = vsel %vm496, %v5732, %v5739
      %v5741 = vrot.slane %v5736, 4
      %v5743 = vshrl.u32 %v5635, 16
      %v5745 = vrot.slane %v5743, 7
      %v5746 = vshll.u32 %v5635, 16
      %v5748 = vor.u32 %v5745, %v5746
      %v5749 = vrot.slane %v5745, 4
      %v5751 = vshrl.u32 %v5636, 16
      %v5753 = vrot.slane %v5751, 7
      %v5754 = vshll.u32 %v5636, 16
      %v5756 = vor.u32 %v5753, %v5754
      %v5757 = vsel %vm496, %v5749, %v5756
      %v5758 = vrot.slane %v5753, 4
      %v5760 = vshrl.u32 %v5637, 16
      %v5762 = vrot.slane %v5760, 7
      %v5763 = vshll.u32 %v5637, 16
      %v5765 = vor.u32 %v5762, %v5763
      %v5766 = vrot.slane %v5762, 4
      %v5768 = vshrl.u32 %v5638, 16
      %v5770 = vrot.slane %v5768, 7
      %v5771 = vshll.u32 %v5638, 16
      %v5773 = vor.u32 %v5770, %v5771
      %v5774 = vsel %vm496, %v5766, %v5773
      %v5775 = vrot.slane %v5770, 4
      %v5777 = vshrl.u32 %v5639, 16
      %v5779 = vrot.slane %v5777, 7
      %v5780 = vshll.u32 %v5639, 16
      %v5782 = vor.u32 %v5779, %v5780
      %v5783 = vrot.slane %v5779, 4
      %v5785 = vshrl.u32 %v5640, 16
      %v5787 = vrot.slane %v5785, 7
      %v5788 = vshll.u32 %v5640, 16
      %v5790 = vor.u32 %v5787, %v5788
      %v5791 = vsel %vm496, %v5783, %v5790
      %v5792 = vrot.slane %v5787, 4
      %v5794 = vshrl.u32 %v5641, 16
      %v5796 = vrot.slane %v5794, 7
      %v5797 = vshll.u32 %v5641, 16
      %v5799 = vor.u32 %v5796, %v5797
      %v5800 = vrot.slane %v5796, 4
      %v5802 = vshrl.u32 %v5642, 16
      %v5804 = vrot.slane %v5802, 7
      %v5805 = vshll.u32 %v5642, 16
      %v5807 = vor.u32 %v5804, %v5805
      %v5808 = vsel %vm496, %v5800, %v5807
      %v5809 = vrot.slane %v5804, 4
      %v5811 = vshrl.u32 %v5643, 16
      %v5813 = vrot.slane %v5811, 7
      %v5814 = vshll.u32 %v5643, 16
      %v5816 = vor.u32 %v5813, %v5814
      %v5817 = vrot.slane %v5813, 4
      %v5819 = vshrl.u32 %v5644, 16
      %v5821 = vrot.slane %v5819, 7
      %v5822 = vshll.u32 %v5644, 16
      %v5824 = vor.u32 %v5821, %v5822
      %v5825 = vsel %vm496, %v5817, %v5824
      %v5826 = vrot.slane %v5821, 4
      %v5828 = vshrl.u32 %v5645, 16
      %v5830 = vrot.slane %v5828, 7
      %v5831 = vshll.u32 %v5645, 16
      %v5833 = vor.u32 %v5830, %v5831
      %v5834 = vrot.slane %v5830, 4
      %v5836 = vshrl.u32 %v5646, 16
      %v5838 = vrot.slane %v5836, 7
      %v5839 = vshll.u32 %v5646, 16
      %v5841 = vor.u32 %v5838, %v5839
      %v5842 = vsel %vm496, %v5834, %v5841
      %v5843 = vrot.slane %v5838, 4
      %v5845 = vshrl.u32 %v5647, 16
      %v5847 = vrot.slane %v5845, 7
      %v5848 = vshll.u32 %v5647, 16
      %v5850 = vor.u32 %v5847, %v5848
      %v5851 = vrot.slane %v5847, 4
      %v5853 = vshrl.u32 %v5648, 16
      %v5855 = vrot.slane %v5853, 7
      %v5856 = vshll.u32 %v5648, 16
      %v5858 = vor.u32 %v5855, %v5856
      %v5859 = vsel %vm496, %v5851, %v5858
      %v5860 = vrot.slane %v5855, 4
      %v5862 = vshrl.u32 %v5649, 16
      %v5864 = vrot.slane %v5862, 7
      %v5865 = vshll.u32 %v5649, 16
      %v5867 = vor.u32 %v5864, %v5865
      %v5868 = vrot.slane %v5864, 4
      %v5870 = vshrl.u32 %v5650, 16
      %v5872 = vrot.slane %v5870, 7
      %v5873 = vshll.u32 %v5650, 16
      %v5875 = vor.u32 %v5872, %v5873
      %v5876 = vsel %vm496, %v5868, %v5875
      %v5877 = vrot.slane %v5872, 4
      %v5879 = vshrl.u32 %v5651, 16
      %v5881 = vrot.slane %v5879, 7
      %v5882 = vshll.u32 %v5651, 16
      %v5884 = vor.u32 %v5881, %v5882
      %v5885 = vrot.slane %v5881, 4
      %v5887 = vshrl.u32 %v5652, 16
      %v5889 = vrot.slane %v5887, 7
      %v5890 = vshll.u32 %v5652, 16
      %v5892 = vor.u32 %v5889, %v5890
      %v5893 = vsel %vm496, %v5885, %v5892
      %v5894 = vrot.slane %v5889, 4
      %v5896 = vshrl.u32 %v5653, 16
      %v5898 = vrot.slane %v5896, 7
      %v5899 = vshll.u32 %v5653, 16
      %v5901 = vor.u32 %v5898, %v5899
      %v5902 = vrot.slane %v5898, 4
      %v5904 = vshrl.u32 %v5654, 16
      %v5906 = vrot.slane %v5904, 7
      %v5907 = vshll.u32 %v5654, 16
      %v5909 = vor.u32 %v5906, %v5907
      %v5910 = vsel %vm496, %v5902, %v5909
      %v5911 = vrot.slane %v5906, 4
      %v5913 = vshrl.u32 %v5655, 16
      %v5915 = vrot.slane %v5913, 7
      %v5916 = vshll.u32 %v5655, 16
      %v5918 = vor.u32 %v5915, %v5916
      %v5919 = vrot.slane %v5915, 4
      %v5921 = vshrl.u32 %v5656, 16
      %v5923 = vrot.slane %v5921, 7
      %v5924 = vshll.u32 %v5656, 16
      %v5926 = vor.u32 %v5923, %v5924
      %v5927 = vsel %vm496, %v5919, %v5926
      %v5928 = vrot.slane %v5923, 4
      %s5977 = scalar_lea.vmem [#allocation3], 12
      %v5978 = vld [vmem:[%s5977] sm:$0xf]
      %v5979 = vsel %vm819, %v5663, %v5978
      %5980 = vst [vmem:[%s5977] sm:$0xf] %v5979
      %5981 = vst.msk [vmem:[%s5977 + $0x4] sm:$0xf] %vm226, %v5672
      %v5982 = vld [vmem:[%s5977 + $0x8] sm:$0x1]
      %v5983 = vsel %vm237, %v5673, %v5982
      %5984 = vst [vmem:[%s5977 + $0x8] sm:$0x1] %v5983
      %v5985 = vld [vmem:[%s5977 + $0xc] sm:$0xf]
      %v5986 = vsel %vm819, %v5680, %v5985
      %5987 = vst [vmem:[%s5977 + $0xc] sm:$0xf] %v5986
      %5988 = vst.msk [vmem:[%s5977 + $0x10] sm:$0xf] %vm226, %v5689
      %v5989 = vld [vmem:[%s5977 + $0x14] sm:$0x1]
      %v5990 = vsel %vm237, %v5690, %v5989
      %5991 = vst [vmem:[%s5977 + $0x14] sm:$0x1] %v5990
      %v5992 = vld [vmem:[%s5977 + $0x18] sm:$0xf]
      %v5993 = vsel %vm819, %v5697, %v5992
      %5994 = vst [vmem:[%s5977 + $0x18] sm:$0xf] %v5993
      %5995 = vst.msk [vmem:[%s5977 + $0x1c] sm:$0xf] %vm226, %v5706
      %v5996 = vld [vmem:[%s5977 + $0x20] sm:$0x1]
      %v5997 = vsel %vm237, %v5707, %v5996
      %5998 = vst [vmem:[%s5977 + $0x20] sm:$0x1] %v5997
      %v5999 = vld [vmem:[%s5977 + $0x24] sm:$0xf]
      %v6000 = vsel %vm819, %v5714, %v5999
      %6001 = vst [vmem:[%s5977 + $0x24] sm:$0xf] %v6000
      %6002 = vst.msk [vmem:[%s5977 + $0x28] sm:$0xf] %vm226, %v5723
      %v6003 = vld [vmem:[%s5977 + $0x2c] sm:$0x1]
      %v6004 = vsel %vm237, %v5724, %v6003
      %6005 = vst [vmem:[%s5977 + $0x2c] sm:$0x1] %v6004
      %v6006 = vld [vmem:[%s5977 + $0x30] sm:$0xf]
      %v6007 = vsel %vm819, %v5731, %v6006
      %6008 = vst [vmem:[%s5977 + $0x30] sm:$0xf] %v6007
      %6009 = vst.msk [vmem:[%s5977 + $0x34] sm:$0xf] %vm226, %v5740
      %v6010 = vld [vmem:[%s5977 + $0x38] sm:$0x1]
      %v6011 = vsel %vm237, %v5741, %v6010
      %6012 = vst [vmem:[%s5977 + $0x38] sm:$0x1] %v6011
      %v6013 = vld [vmem:[%s5977 + $0x3c] sm:$0xf]
      %v6014 = vsel %vm819, %v5748, %v6013
      %6015 = vst [vmem:[%s5977 + $0x3c] sm:$0xf] %v6014
      %6016 = vst.msk [vmem:[%s5977 + $0x40] sm:$0xf] %vm226, %v5757
      %v6017 = vld [vmem:[%s5977 + $0x44] sm:$0x1]
      %v6018 = vsel %vm237, %v5758, %v6017
      %6019 = vst [vmem:[%s5977 + $0x44] sm:$0x1] %v6018
      %v6020 = vld [vmem:[%s5977 + $0x48] sm:$0xf]
      %v6021 = vsel %vm819, %v5765, %v6020
      %6022 = vst [vmem:[%s5977 + $0x48] sm:$0xf] %v6021
      %6023 = vst.msk [vmem:[%s5977 + $0x4c] sm:$0xf] %vm226, %v5774
      %v6024 = vld [vmem:[%s5977 + $0x50] sm:$0x1]
      %v6025 = vsel %vm237, %v5775, %v6024
      %6026 = vst [vmem:[%s5977 + $0x50] sm:$0x1] %v6025
      %v6027 = vld [vmem:[%s5977 + $0x54] sm:$0xf]
      %v6028 = vsel %vm819, %v5782, %v6027
      %6029 = vst [vmem:[%s5977 + $0x54] sm:$0xf] %v6028
      %6030 = vst.msk [vmem:[%s5977 + $0x58] sm:$0xf] %vm226, %v5791
      %v6031 = vld [vmem:[%s5977 + $0x5c] sm:$0x1]
      %v6032 = vsel %vm237, %v5792, %v6031
      %6033 = vst [vmem:[%s5977 + $0x5c] sm:$0x1] %v6032
      %v6034 = vld [vmem:[%s5977 + $0x60] sm:$0xf]
      %v6035 = vsel %vm819, %v5799, %v6034
      %6036 = vst [vmem:[%s5977 + $0x60] sm:$0xf] %v6035
      %6037 = vst.msk [vmem:[%s5977 + $0x64] sm:$0xf] %vm226, %v5808
      %v6038 = vld [vmem:[%s5977 + $0x68] sm:$0x1]
      %v6039 = vsel %vm237, %v5809, %v6038
      %6040 = vst [vmem:[%s5977 + $0x68] sm:$0x1] %v6039
      %v6041 = vld [vmem:[%s5977 + $0x6c] sm:$0xf]
      %v6042 = vsel %vm819, %v5816, %v6041
      %6043 = vst [vmem:[%s5977 + $0x6c] sm:$0xf] %v6042
      %6044 = vst.msk [vmem:[%s5977 + $0x70] sm:$0xf] %vm226, %v5825
      %v6045 = vld [vmem:[%s5977 + $0x74] sm:$0x1]
      %v6046 = vsel %vm237, %v5826, %v6045
      %6047 = vst [vmem:[%s5977 + $0x74] sm:$0x1] %v6046
      %v6048 = vld [vmem:[%s5977 + $0x78] sm:$0xf]
      %v6049 = vsel %vm819, %v5833, %v6048
      %6050 = vst [vmem:[%s5977 + $0x78] sm:$0xf] %v6049
      %6051 = vst.msk [vmem:[%s5977 + $0x7c] sm:$0xf] %vm226, %v5842
      %v6052 = vld [vmem:[%s5977 + $0x80] sm:$0x1]
      %v6053 = vsel %vm237, %v5843, %v6052
      %6054 = vst [vmem:[%s5977 + $0x80] sm:$0x1] %v6053
      %v6055 = vld [vmem:[%s5977 + $0x84] sm:$0xf]
      %v6056 = vsel %vm819, %v5850, %v6055
      %6057 = vst [vmem:[%s5977 + $0x84] sm:$0xf] %v6056
      %6058 = vst.msk [vmem:[%s5977 + $0x88] sm:$0xf] %vm226, %v5859
      %v6059 = vld [vmem:[%s5977 + $0x8c] sm:$0x1]
      %v6060 = vsel %vm237, %v5860, %v6059
      %6061 = vst [vmem:[%s5977 + $0x8c] sm:$0x1] %v6060
      %v6062 = vld [vmem:[%s5977 + $0x90] sm:$0xf]
      %v6063 = vsel %vm819, %v5867, %v6062
      %6064 = vst [vmem:[%s5977 + $0x90] sm:$0xf] %v6063
      %6065 = vst.msk [vmem:[%s5977 + $0x94] sm:$0xf] %vm226, %v5876
      %v6066 = vld [vmem:[%s5977 + $0x98] sm:$0x1]
      %v6067 = vsel %vm237, %v5877, %v6066
      %6068 = vst [vmem:[%s5977 + $0x98] sm:$0x1] %v6067
      %v6069 = vld [vmem:[%s5977 + $0x9c] sm:$0xf]
      %v6070 = vsel %vm819, %v5884, %v6069
      %6071 = vst [vmem:[%s5977 + $0x9c] sm:$0xf] %v6070
      %6072 = vst.msk [vmem:[%s5977 + $0xa0] sm:$0xf] %vm226, %v5893
      %v6073 = vld [vmem:[%s5977 + $0xa4] sm:$0x1]
      %v6074 = vsel %vm237, %v5894, %v6073
      %6075 = vst [vmem:[%s5977 + $0xa4] sm:$0x1] %v6074
      %v6076 = vld [vmem:[%s5977 + $0xa8] sm:$0xf]
      %v6077 = vsel %vm819, %v5901, %v6076
      %6078 = vst [vmem:[%s5977 + $0xa8] sm:$0xf] %v6077
      %6079 = vst.msk [vmem:[%s5977 + $0xac] sm:$0xf] %vm226, %v5910
      %v6080 = vld [vmem:[%s5977 + $0xb0] sm:$0x1]
      %v6081 = vsel %vm237, %v5911, %v6080
      %6082 = vst [vmem:[%s5977 + $0xb0] sm:$0x1] %v6081
      %v6083 = vld [vmem:[%s5977 + $0xb4] sm:$0xf]
      %v6084 = vsel %vm819, %v5918, %v6083
      %6085 = vst [vmem:[%s5977 + $0xb4] sm:$0xf] %v6084
      %6086 = vst.msk [vmem:[%s5977 + $0xb8] sm:$0xf] %vm226, %v5927
      %v6087 = vld [vmem:[%s5977 + $0xbc] sm:$0x1]
      %v6088 = vsel %vm237, %v5928, %v6087
      %6089 = vst [vmem:[%s5977 + $0xbc] sm:$0x1] %v6088
      %v6090 = vld [vmem:[#allocation3] sm:$0xf]
      %v6091 = vld [vmem:[#allocation3 + $0x4] sm:$0xf]
      %v6092 = vld [vmem:[#allocation3 + $0xc] sm:$0xf]
      %v6093 = vld [vmem:[#allocation3 + $0x10] sm:$0xf]
      %v6094 = vld [vmem:[#allocation3 + $0x18] sm:$0xf]
      %v6095 = vld [vmem:[#allocation3 + $0x1c] sm:$0xf]
      %v6096 = vld [vmem:[#allocation3 + $0x24] sm:$0xf]
      %v6097 = vld [vmem:[#allocation3 + $0x28] sm:$0xf]
      %v6098 = vld [vmem:[#allocation3 + $0x30] sm:$0xf]
      %v6099 = vld [vmem:[#allocation3 + $0x34] sm:$0xf]
      %v6100 = vld [vmem:[#allocation3 + $0x3c] sm:$0xf]
      %v6101 = vld [vmem:[#allocation3 + $0x40] sm:$0xf]
      %v6102 = vld [vmem:[#allocation3 + $0x48] sm:$0xf]
      %v6103 = vld [vmem:[#allocation3 + $0x4c] sm:$0xf]
      %v6104 = vld [vmem:[#allocation3 + $0x54] sm:$0xf]
      %v6105 = vld [vmem:[#allocation3 + $0x58] sm:$0xf]
      %v6106 = vld [vmem:[#allocation3 + $0x60] sm:$0xf]
      %v6107 = vld [vmem:[#allocation3 + $0x64] sm:$0xf]
      %v6108 = vld [vmem:[#allocation3 + $0x6c] sm:$0xf]
      %v6109 = vld [vmem:[#allocation3 + $0x70] sm:$0xf]
      %v6110 = vld [vmem:[#allocation3 + $0x78] sm:$0xf]
      %v6111 = vld [vmem:[#allocation3 + $0x7c] sm:$0xf]
      %v6112 = vld [vmem:[#allocation3 + $0x84] sm:$0xf]
      %v6113 = vld [vmem:[#allocation3 + $0x88] sm:$0xf]
      %v6114 = vld [vmem:[#allocation3 + $0x90] sm:$0xf]
      %v6115 = vld [vmem:[#allocation3 + $0x94] sm:$0xf]
      %v6116 = vld [vmem:[#allocation3 + $0x9c] sm:$0xf]
      %v6117 = vld [vmem:[#allocation3 + $0xa0] sm:$0xf]
      %v6118 = vld [vmem:[#allocation3 + $0xa8] sm:$0xf]
      %v6119 = vld [vmem:[#allocation3 + $0xac] sm:$0xf]
      %v6120 = vld [vmem:[#allocation3 + $0xb4] sm:$0xf]
      %v6121 = vld [vmem:[#allocation3 + $0xb8] sm:$0xf]
      %v6122 = vld [vmem:[%s2] sm:$0x3]
      %v6123 = vld [vmem:[#allocation3 + $0x8] sm:$0x1]
      %v6124 = vld [vmem:[#allocation3 + $0x14] sm:$0x1]
      %v6125 = vld [vmem:[#allocation3 + $0x20] sm:$0x1]
      %v6126 = vld [vmem:[#allocation3 + $0x2c] sm:$0x1]
      %v6127 = vld [vmem:[#allocation3 + $0x38] sm:$0x1]
      %v6128 = vld [vmem:[#allocation3 + $0x44] sm:$0x1]
      %v6129 = vld [vmem:[#allocation3 + $0x50] sm:$0x1]
      %v6130 = vld [vmem:[#allocation3 + $0x5c] sm:$0x1]
      %v6131 = vld [vmem:[#allocation3 + $0x68] sm:$0x1]
      %v6132 = vld [vmem:[#allocation3 + $0x74] sm:$0x1]
      %v6133 = vld [vmem:[#allocation3 + $0x80] sm:$0x1]
      %v6134 = vld [vmem:[#allocation3 + $0x8c] sm:$0x1]
      %v6135 = vld [vmem:[#allocation3 + $0x98] sm:$0x1]
      %v6136 = vld [vmem:[#allocation3 + $0xa4] sm:$0x1]
      %v6137 = vld [vmem:[#allocation3 + $0xb0] sm:$0x1]
      %v6138 = vld [vmem:[#allocation3 + $0xbc] sm:$0x1]
      %s6139 = scalar_lea.vmem %s2, 2
      %v6140 = vld [vmem:[%s6139] sm:$0x3]
      %v6142 = vshrl.u32 %v6090, 16
      %v6144 = vrot.slane %v6142, 4
      %v6145 = vshll.u32 %v6090, 16
      %v6147 = vrot.slane %v6145, 5
      %v6148 = vor.u32 %v6144, %v6147
      %v6149 = vrot.slane %v6148, 4
      %v6151 = vshll.u32 %v6091, 16
      %v6153 = vrot.slane %v6151, 5
      %v6154 = vsel %vm985, %v6149, %v6153
      %v6155 = vshrl.u32 %v6091, 16
      %v6157 = vrot.slane %v6155, 4
      %v6158 = vor.u32 %v6157, %v6153
      %v6159 = vrot.slane %v6158, 4
      %v6161 = vshll.u32 %v6123, 16
      %v6163 = vrot.slane %v6161, 5
      %v6164 = vsel %vm985, %v6159, %v6163
      %v6166 = vshrl.u32 %v6092, 16
      %v6168 = vrot.slane %v6166, 4
      %v6169 = vshll.u32 %v6092, 16
      %v6171 = vrot.slane %v6169, 5
      %v6172 = vor.u32 %v6168, %v6171
      %v6173 = vrot.slane %v6172, 4
      %v6175 = vshll.u32 %v6093, 16
      %v6177 = vrot.slane %v6175, 5
      %v6178 = vsel %vm985, %v6173, %v6177
      %v6179 = vshrl.u32 %v6093, 16
      %v6181 = vrot.slane %v6179, 4
      %v6182 = vor.u32 %v6181, %v6177
      %v6183 = vrot.slane %v6182, 4
      %v6185 = vshll.u32 %v6124, 16
      %v6187 = vrot.slane %v6185, 5
      %v6188 = vsel %vm985, %v6183, %v6187
      %v6190 = vshrl.u32 %v6094, 16
      %v6192 = vrot.slane %v6190, 4
      %v6193 = vshll.u32 %v6094, 16
      %v6195 = vrot.slane %v6193, 5
      %v6196 = vor.u32 %v6192, %v6195
      %v6197 = vrot.slane %v6196, 4
      %v6199 = vshll.u32 %v6095, 16
      %v6201 = vrot.slane %v6199, 5
      %v6202 = vsel %vm985, %v6197, %v6201
      %v6203 = vshrl.u32 %v6095, 16
      %v6205 = vrot.slane %v6203, 4
      %v6206 = vor.u32 %v6205, %v6201
      %v6207 = vrot.slane %v6206, 4
      %v6209 = vshll.u32 %v6125, 16
      %v6211 = vrot.slane %v6209, 5
      %v6212 = vsel %vm985, %v6207, %v6211
      %v6214 = vshrl.u32 %v6096, 16
      %v6216 = vrot.slane %v6214, 4
      %v6217 = vshll.u32 %v6096, 16
      %v6219 = vrot.slane %v6217, 5
      %v6220 = vor.u32 %v6216, %v6219
      %v6221 = vrot.slane %v6220, 4
      %v6223 = vshll.u32 %v6097, 16
      %v6225 = vrot.slane %v6223, 5
      %v6226 = vsel %vm985, %v6221, %v6225
      %v6227 = vshrl.u32 %v6097, 16
      %v6229 = vrot.slane %v6227, 4
      %v6230 = vor.u32 %v6229, %v6225
      %v6231 = vrot.slane %v6230, 4
      %v6233 = vshll.u32 %v6126, 16
      %v6235 = vrot.slane %v6233, 5
      %v6236 = vsel %vm985, %v6231, %v6235
      %v6238 = vshrl.u32 %v6098, 16
      %v6240 = vrot.slane %v6238, 4
      %v6241 = vshll.u32 %v6098, 16
      %v6243 = vrot.slane %v6241, 5
      %v6244 = vor.u32 %v6240, %v6243
      %v6245 = vrot.slane %v6244, 4
      %v6247 = vshll.u32 %v6099, 16
      %v6249 = vrot.slane %v6247, 5
      %v6250 = vsel %vm985, %v6245, %v6249
      %v6251 = vshrl.u32 %v6099, 16
      %v6253 = vrot.slane %v6251, 4
      %v6254 = vor.u32 %v6253, %v6249
      %v6255 = vrot.slane %v6254, 4
      %v6257 = vshll.u32 %v6127, 16
      %v6259 = vrot.slane %v6257, 5
      %v6260 = vsel %vm985, %v6255, %v6259
      %v6262 = vshrl.u32 %v6100, 16
      %v6264 = vrot.slane %v6262, 4
      %v6265 = vshll.u32 %v6100, 16
      %v6267 = vrot.slane %v6265, 5
      %v6268 = vor.u32 %v6264, %v6267
      %v6269 = vrot.slane %v6268, 4
      %v6271 = vshll.u32 %v6101, 16
      %v6273 = vrot.slane %v6271, 5
      %v6274 = vsel %vm985, %v6269, %v6273
      %v6275 = vshrl.u32 %v6101, 16
      %v6277 = vrot.slane %v6275, 4
      %v6278 = vor.u32 %v6277, %v6273
      %v6279 = vrot.slane %v6278, 4
      %v6281 = vshll.u32 %v6128, 16
      %v6283 = vrot.slane %v6281, 5
      %v6284 = vsel %vm985, %v6279, %v6283
      %v6286 = vshrl.u32 %v6102, 16
      %v6288 = vrot.slane %v6286, 4
      %v6289 = vshll.u32 %v6102, 16
      %v6291 = vrot.slane %v6289, 5
      %v6292 = vor.u32 %v6288, %v6291
      %v6293 = vrot.slane %v6292, 4
      %v6295 = vshll.u32 %v6103, 16
      %v6297 = vrot.slane %v6295, 5
      %v6298 = vsel %vm985, %v6293, %v6297
      %v6299 = vshrl.u32 %v6103, 16
      %v6301 = vrot.slane %v6299, 4
      %v6302 = vor.u32 %v6301, %v6297
      %v6303 = vrot.slane %v6302, 4
      %v6305 = vshll.u32 %v6129, 16
      %v6307 = vrot.slane %v6305, 5
      %v6308 = vsel %vm985, %v6303, %v6307
      %v6310 = vshrl.u32 %v6104, 16
      %v6312 = vrot.slane %v6310, 4
      %v6313 = vshll.u32 %v6104, 16
      %v6315 = vrot.slane %v6313, 5
      %v6316 = vor.u32 %v6312, %v6315
      %v6317 = vrot.slane %v6316, 4
      %v6319 = vshll.u32 %v6105, 16
      %v6321 = vrot.slane %v6319, 5
      %v6322 = vsel %vm985, %v6317, %v6321
      %v6323 = vshrl.u32 %v6105, 16
      %v6325 = vrot.slane %v6323, 4
      %v6326 = vor.u32 %v6325, %v6321
      %v6327 = vrot.slane %v6326, 4
      %v6329 = vshll.u32 %v6130, 16
      %v6331 = vrot.slane %v6329, 5
      %v6332 = vsel %vm985, %v6327, %v6331
      %v6334 = vshrl.u32 %v6106, 16
      %v6336 = vrot.slane %v6334, 4
      %v6337 = vshll.u32 %v6106, 16
      %v6339 = vrot.slane %v6337, 5
      %v6340 = vor.u32 %v6336, %v6339
      %v6341 = vrot.slane %v6340, 4
      %v6343 = vshll.u32 %v6107, 16
      %v6345 = vrot.slane %v6343, 5
      %v6346 = vsel %vm985, %v6341, %v6345
      %v6347 = vshrl.u32 %v6107, 16
      %v6349 = vrot.slane %v6347, 4
      %v6350 = vor.u32 %v6349, %v6345
      %v6351 = vrot.slane %v6350, 4
      %v6353 = vshll.u32 %v6131, 16
      %v6355 = vrot.slane %v6353, 5
      %v6356 = vsel %vm985, %v6351, %v6355
      %v6358 = vshrl.u32 %v6108, 16
      %v6360 = vrot.slane %v6358, 4
      %v6361 = vshll.u32 %v6108, 16
      %v6363 = vrot.slane %v6361, 5
      %v6364 = vor.u32 %v6360, %v6363
      %v6365 = vrot.slane %v6364, 4
      %v6367 = vshll.u32 %v6109, 16
      %v6369 = vrot.slane %v6367, 5
      %v6370 = vsel %vm985, %v6365, %v6369
      %v6371 = vshrl.u32 %v6109, 16
      %v6373 = vrot.slane %v6371, 4
      %v6374 = vor.u32 %v6373, %v6369
      %v6375 = vrot.slane %v6374, 4
      %v6377 = vshll.u32 %v6132, 16
      %v6379 = vrot.slane %v6377, 5
      %v6380 = vsel %vm985, %v6375, %v6379
      %v6382 = vshrl.u32 %v6110, 16
      %v6384 = vrot.slane %v6382, 4
      %v6385 = vshll.u32 %v6110, 16
      %v6387 = vrot.slane %v6385, 5
      %v6388 = vor.u32 %v6384, %v6387
      %v6389 = vrot.slane %v6388, 4
      %v6391 = vshll.u32 %v6111, 16
      %v6393 = vrot.slane %v6391, 5
      %v6394 = vsel %vm985, %v6389, %v6393
      %v6395 = vshrl.u32 %v6111, 16
      %v6397 = vrot.slane %v6395, 4
      %v6398 = vor.u32 %v6397, %v6393
      %v6399 = vrot.slane %v6398, 4
      %v6401 = vshll.u32 %v6133, 16
      %v6403 = vrot.slane %v6401, 5
      %v6404 = vsel %vm985, %v6399, %v6403
      %v6406 = vshrl.u32 %v6112, 16
      %v6408 = vrot.slane %v6406, 4
      %v6409 = vshll.u32 %v6112, 16
      %v6411 = vrot.slane %v6409, 5
      %v6412 = vor.u32 %v6408, %v6411
      %v6413 = vrot.slane %v6412, 4
      %v6415 = vshll.u32 %v6113, 16
      %v6417 = vrot.slane %v6415, 5
      %v6418 = vsel %vm985, %v6413, %v6417
      %v6419 = vshrl.u32 %v6113, 16
      %v6421 = vrot.slane %v6419, 4
      %v6422 = vor.u32 %v6421, %v6417
      %v6423 = vrot.slane %v6422, 4
      %v6425 = vshll.u32 %v6134, 16
      %v6427 = vrot.slane %v6425, 5
      %v6428 = vsel %vm985, %v6423, %v6427
      %v6430 = vshrl.u32 %v6114, 16
      %v6432 = vrot.slane %v6430, 4
      %v6433 = vshll.u32 %v6114, 16
      %v6435 = vrot.slane %v6433, 5
      %v6436 = vor.u32 %v6432, %v6435
      %v6437 = vrot.slane %v6436, 4
      %v6439 = vshll.u32 %v6115, 16
      %v6441 = vrot.slane %v6439, 5
      %v6442 = vsel %vm985, %v6437, %v6441
      %v6443 = vshrl.u32 %v6115, 16
      %v6445 = vrot.slane %v6443, 4
      %v6446 = vor.u32 %v6445, %v6441
      %v6447 = vrot.slane %v6446, 4
      %v6449 = vshll.u32 %v6135, 16
      %v6451 = vrot.slane %v6449, 5
      %v6452 = vsel %vm985, %v6447, %v6451
      %v6454 = vshrl.u32 %v6116, 16
      %v6456 = vrot.slane %v6454, 4
      %v6457 = vshll.u32 %v6116, 16
      %v6459 = vrot.slane %v6457, 5
      %v6460 = vor.u32 %v6456, %v6459
      %v6461 = vrot.slane %v6460, 4
      %v6463 = vshll.u32 %v6117, 16
      %v6465 = vrot.slane %v6463, 5
      %v6466 = vsel %vm985, %v6461, %v6465
      %v6467 = vshrl.u32 %v6117, 16
      %v6469 = vrot.slane %v6467, 4
      %v6470 = vor.u32 %v6469, %v6465
      %v6471 = vrot.slane %v6470, 4
      %v6473 = vshll.u32 %v6136, 16
      %v6475 = vrot.slane %v6473, 5
      %v6476 = vsel %vm985, %v6471, %v6475
      %v6478 = vshrl.u32 %v6118, 16
      %v6480 = vrot.slane %v6478, 4
      %v6481 = vshll.u32 %v6118, 16
      %v6483 = vrot.slane %v6481, 5
      %v6484 = vor.u32 %v6480, %v6483
      %v6485 = vrot.slane %v6484, 4
      %v6487 = vshll.u32 %v6119, 16
      %v6489 = vrot.slane %v6487, 5
      %v6490 = vsel %vm985, %v6485, %v6489
      %v6491 = vshrl.u32 %v6119, 16
      %v6493 = vrot.slane %v6491, 4
      %v6494 = vor.u32 %v6493, %v6489
      %v6495 = vrot.slane %v6494, 4
      %v6497 = vshll.u32 %v6137, 16
      %v6499 = vrot.slane %v6497, 5
      %v6500 = vsel %vm985, %v6495, %v6499
      %v6502 = vshrl.u32 %v6120, 16
      %v6504 = vrot.slane %v6502, 4
      %v6505 = vshll.u32 %v6120, 16
      %v6507 = vrot.slane %v6505, 5
      %v6508 = vor.u32 %v6504, %v6507
      %v6509 = vrot.slane %v6508, 4
      %v6511 = vshll.u32 %v6121, 16
      %v6513 = vrot.slane %v6511, 5
      %v6514 = vsel %vm985, %v6509, %v6513
      %v6515 = vshrl.u32 %v6121, 16
      %v6517 = vrot.slane %v6515, 4
      %v6518 = vor.u32 %v6517, %v6513
      %v6519 = vrot.slane %v6518, 4
      %v6521 = vshll.u32 %v6138, 16
      %v6523 = vrot.slane %v6521, 5
      %v6524 = vsel %vm985, %v6519, %v6523
      %v6525 = vunpack.c.l.b16 %v6154
      %v6526 = vunpack.c.l.b16 %v6164
      %v6527 = vunpack.c.l.b16 %v6178
      %v6528 = vunpack.c.l.b16 %v6188
      %v6529 = vunpack.c.l.b16 %v6202
      %v6530 = vunpack.c.l.b16 %v6212
      %v6531 = vunpack.c.l.b16 %v6226
      %v6532 = vunpack.c.l.b16 %v6236
      %v6533 = vunpack.c.l.b16 %v6250
      %v6534 = vunpack.c.l.b16 %v6260
      %v6535 = vunpack.c.l.b16 %v6274
      %v6536 = vunpack.c.l.b16 %v6284
      %v6537 = vunpack.c.l.b16 %v6298
      %v6538 = vunpack.c.l.b16 %v6308
      %v6539 = vunpack.c.l.b16 %v6322
      %v6540 = vunpack.c.l.b16 %v6332
      %v6541 = vunpack.c.l.b16 %v6346
      %v6542 = vunpack.c.l.b16 %v6356
      %v6543 = vunpack.c.l.b16 %v6370
      %v6544 = vunpack.c.l.b16 %v6380
      %v6545 = vunpack.c.l.b16 %v6394
      %v6546 = vunpack.c.l.b16 %v6404
      %v6547 = vunpack.c.l.b16 %v6418
      %v6548 = vunpack.c.l.b16 %v6428
      %v6549 = vunpack.c.l.b16 %v6442
      %v6550 = vunpack.c.l.b16 %v6452
      %v6551 = vunpack.c.l.b16 %v6466
      %v6552 = vunpack.c.l.b16 %v6476
      %v6553 = vunpack.c.l.b16 %v6490
      %v6554 = vunpack.c.l.b16 %v6500
      %v6555 = vunpack.c.l.b16 %v6514
      %v6556 = vunpack.c.l.b16 %v6524
      %v6557 = vpack.c.b16 %v6526, %v6525
      %v6558 = vpack.c.b16 %v6528, %v6527
      %v6559 = vpack.c.b16 %v6530, %v6529
      %v6560 = vpack.c.b16 %v6532, %v6531
      %v6561 = vpack.c.b16 %v6534, %v6533
      %v6562 = vpack.c.b16 %v6536, %v6535
      %v6563 = vpack.c.b16 %v6538, %v6537
      %v6564 = vpack.c.b16 %v6540, %v6539
      %v6565 = vpack.c.b16 %v6542, %v6541
      %v6566 = vpack.c.b16 %v6544, %v6543
      %v6567 = vpack.c.b16 %v6546, %v6545
      %v6568 = vpack.c.b16 %v6548, %v6547
      %v6569 = vpack.c.b16 %v6550, %v6549
      %v6570 = vpack.c.b16 %v6552, %v6551
      %v6571 = vpack.c.b16 %v6554, %v6553
      %v6572 = vpack.c.b16 %v6556, %v6555
      %v6574 = vsel %vm1418, %v6557, 0
      %v6577 = vsel %vm1418, %v6558, 0
      %v6580 = vsel %vm1418, %v6559, 0
      %v6583 = vsel %vm1418, %v6560, 0
      %v6586 = vsel %vm1418, %v6561, 0
      %v6589 = vsel %vm1418, %v6562, 0
      %v6592 = vsel %vm1418, %v6563, 0
      %v6595 = vsel %vm1418, %v6564, 0
      %v6598 = vsel %vm1418, %v6565, 0
      %v6601 = vsel %vm1418, %v6566, 0
      %v6604 = vsel %vm1418, %v6567, 0
      %v6607 = vsel %vm1418, %v6568, 0
      %v6610 = vsel %vm1418, %v6569, 0
      %v6613 = vsel %vm1418, %v6570, 0
      %v6616 = vsel %vm1418, %v6571, 0
      %v6619 = vsel %vm1418, %v6572, 0
      %v6622 = vsel %vm1467, %v6140, 0
      %6624 = vmatprep.subr.bf16.mxu0 0
      %6625 = vmatpush1.bf16.msra.mxu0 %v6622
      %6626 = vmatprep.subr.bf16.mxu0 0
      %6627 = vmatpush1.bf16.msra.mxu0 0
      %6628 = vmatprep.subr.bf16.mxu0 0
      %6629 = vmatpush1.bf16.msra.mxu0 0
      %6630 = vmatprep.subr.bf16.mxu0 0
      %6631 = vmatpush1.bf16.msra.mxu0 0
      %6632 = vmatprep.subr.bf16.mxu0 0
      %6633 = vmatpush1.bf16.msra.mxu0 0
      %6634 = vmatprep.subr.bf16.mxu0 0
      %6635 = vmatpush1.bf16.msra.mxu0 0
      %6636 = vmatprep.subr.bf16.mxu0 0
      %6637 = vmatpush1.bf16.msra.mxu0 0
      %6638 = vmatprep.subr.bf16.mxu0 0
      %6639 = vmatpush1.bf16.msra.mxu0 0
      %6640 = vmatprep.subr.bf16.mxu0 0
      %6641 = vmatpush1.bf16.msra.mxu0 0
      %6642 = vmatprep.subr.bf16.mxu0 0
      %6643 = vmatpush1.bf16.msra.mxu0 0
      %6644 = vmatprep.subr.bf16.mxu0 0
      %6645 = vmatpush1.bf16.msra.mxu0 0
      %6646 = vmatprep.subr.bf16.mxu0 0
      %6647 = vmatpush1.bf16.msra.mxu0 0
      %6648 = vmatprep.subr.bf16.mxu0 0
      %6649 = vmatpush1.bf16.msra.mxu0 0
      %6650 = vmatprep.subr.bf16.mxu0 0
      %6651 = vmatpush1.bf16.msra.mxu0 0
      %6652 = vmatprep.subr.bf16.mxu0 0
      %6653 = vmatpush1.bf16.msra.mxu0 0
      %6654 = vmatprep.subr.bf16.mxu0 0
      %6655 = vmatpush1.bf16.msra.mxu0 0
      %6656 = vmatprep.mubr.bf16.mxu0 0
      %6657 = vmatmul.mubr.bf16.gmra.mrb[0].mxu0 %v6574
      %v6658 = vpop.f32.mrb[0].mxu0
      %v6659 = vadd.f32 0.0, %v6658
      %v6660 = vpop.f32.mrb[0].mxu0
      %v6661 = vpop.f32.mrb[0].mxu0
      %v6662 = vadd.f32 0.0, %v6661
      %v6663 = vpop.f32.mrb[0].mxu0
      %6664 = vmatprep.mubr.bf16.mxu0 0
      %6665 = vmatmul.mubr.bf16.gmra.mrb[0].mxu0 %v6577
      %v6666 = vpop.f32.mrb[0].mxu0
      %v6667 = vadd.f32 0.0, %v6666
      %v6668 = vpop.f32.mrb[0].mxu0
      %v6669 = vpop.f32.mrb[0].mxu0
      %v6670 = vadd.f32 0.0, %v6669
      %v6671 = vpop.f32.mrb[0].mxu0
      %6672 = vmatprep.mubr.bf16.mxu0 0
      %6673 = vmatmul.mubr.bf16.gmra.mrb[0].mxu0 %v6580
      %v6674 = vpop.f32.mrb[0].mxu0
      %v6675 = vadd.f32 0.0, %v6674
      %v6676 = vpop.f32.mrb[0].mxu0
      %v6677 = vpop.f32.mrb[0].mxu0
      %v6678 = vadd.f32 0.0, %v6677
      %v6679 = vpop.f32.mrb[0].mxu0
      %6680 = vmatprep.mubr.bf16.mxu0 0
      %6681 = vmatmul.mubr.bf16.gmra.mrb[0].mxu0 %v6583
      %v6682 = vpop.f32.mrb[0].mxu0
      %v6683 = vadd.f32 0.0, %v6682
      %v6684 = vpop.f32.mrb[0].mxu0
      %v6685 = vpop.f32.mrb[0].mxu0
      %v6686 = vadd.f32 0.0, %v6685
      %v6687 = vpop.f32.mrb[0].mxu0
      %6688 = vmatprep.mubr.bf16.mxu0 0
      %6689 = vmatmul.mubr.bf16.gmra.mrb[0].mxu0 %v6586
      %v6690 = vpop.f32.mrb[0].mxu0
      %v6691 = vadd.f32 0.0, %v6690
      %v6692 = vpop.f32.mrb[0].mxu0
      %v6693 = vpop.f32.mrb[0].mxu0
      %v6694 = vadd.f32 0.0, %v6693
      %v6695 = vpop.f32.mrb[0].mxu0
      %6696 = vmatprep.mubr.bf16.mxu0 0
      %6697 = vmatmul.mubr.bf16.gmra.mrb[0].mxu0 %v6589
      %v6698 = vpop.f32.mrb[0].mxu0
      %v6699 = vadd.f32 0.0, %v6698
      %v6700 = vpop.f32.mrb[0].mxu0
      %v6701 = vpop.f32.mrb[0].mxu0
      %v6702 = vadd.f32 0.0, %v6701
      %v6703 = vpop.f32.mrb[0].mxu0
      %6704 = vmatprep.mubr.bf16.mxu0 0
      %6705 = vmatmul.mubr.bf16.gmra.mrb[0].mxu0 %v6592
      %v6706 = vpop.f32.mrb[0].mxu0
      %v6707 = vadd.f32 0.0, %v6706
      %v6708 = vpop.f32.mrb[0].mxu0
      %v6709 = vpop.f32.mrb[0].mxu0
      %v6710 = vadd.f32 0.0, %v6709
      %v6711 = vpop.f32.mrb[0].mxu0
      %6712 = vmatprep.mubr.bf16.mxu0 0
      %6713 = vmatmul.mubr.bf16.gmra.mrb[0].mxu0 %v6595
      %v6714 = vpop.f32.mrb[0].mxu0
      %v6715 = vadd.f32 0.0, %v6714
      %v6716 = vpop.f32.mrb[0].mxu0
      %v6717 = vpop.f32.mrb[0].mxu0
      %v6718 = vadd.f32 0.0, %v6717
      %v6719 = vpop.f32.mrb[0].mxu0
      %6720 = vmatprep.mubr.bf16.mxu0 0
      %6721 = vmatmul.mubr.bf16.gmra.mrb[0].mxu0 %v6598
      %v6722 = vpop.f32.mrb[0].mxu0
      %v6723 = vadd.f32 0.0, %v6722
      %v6724 = vpop.f32.mrb[0].mxu0
      %v6725 = vpop.f32.mrb[0].mxu0
      %v6726 = vadd.f32 0.0, %v6725
      %v6727 = vpop.f32.mrb[0].mxu0
      %6728 = vmatprep.mubr.bf16.mxu0 0
      %6729 = vmatmul.mubr.bf16.gmra.mrb[0].mxu0 %v6601
      %v6730 = vpop.f32.mrb[0].mxu0
      %v6731 = vadd.f32 0.0, %v6730
      %v6732 = vpop.f32.mrb[0].mxu0
      %v6733 = vpop.f32.mrb[0].mxu0
      %v6734 = vadd.f32 0.0, %v6733
      %v6735 = vpop.f32.mrb[0].mxu0
      %6736 = vmatprep.mubr.bf16.mxu0 0
      %6737 = vmatmul.mubr.bf16.gmra.mrb[0].mxu0 %v6604
      %v6738 = vpop.f32.mrb[0].mxu0
      %v6739 = vadd.f32 0.0, %v6738
      %v6740 = vpop.f32.mrb[0].mxu0
      %v6741 = vpop.f32.mrb[0].mxu0
      %v6742 = vadd.f32 0.0, %v6741
      %v6743 = vpop.f32.mrb[0].mxu0
      %6744 = vmatprep.mubr.bf16.mxu0 0
      %6745 = vmatmul.mubr.bf16.gmra.mrb[0].mxu0 %v6607
      %v6746 = vpop.f32.mrb[0].mxu0
      %v6747 = vadd.f32 0.0, %v6746
      %v6748 = vpop.f32.mrb[0].mxu0
      %v6749 = vpop.f32.mrb[0].mxu0
      %v6750 = vadd.f32 0.0, %v6749
      %v6751 = vpop.f32.mrb[0].mxu0
      %6752 = vmatprep.mubr.bf16.mxu0 0
      %6753 = vmatmul.mubr.bf16.gmra.mrb[0].mxu0 %v6610
      %v6754 = vpop.f32.mrb[0].mxu0
      %v6755 = vadd.f32 0.0, %v6754
      %v6756 = vpop.f32.mrb[0].mxu0
      %v6757 = vpop.f32.mrb[0].mxu0
      %v6758 = vadd.f32 0.0, %v6757
      %v6759 = vpop.f32.mrb[0].mxu0
      %6760 = vmatprep.mubr.bf16.mxu0 0
      %6761 = vmatmul.mubr.bf16.gmra.mrb[0].mxu0 %v6613
      %v6762 = vpop.f32.mrb[0].mxu0
      %v6763 = vadd.f32 0.0, %v6762
      %v6764 = vpop.f32.mrb[0].mxu0
      %v6765 = vpop.f32.mrb[0].mxu0
      %v6766 = vadd.f32 0.0, %v6765
      %v6767 = vpop.f32.mrb[0].mxu0
      %6768 = vmatprep.mubr.bf16.mxu0 0
      %6769 = vmatmul.mubr.bf16.gmra.mrb[0].mxu0 %v6616
      %v6770 = vpop.f32.mrb[0].mxu0
      %v6771 = vadd.f32 0.0, %v6770
      %v6772 = vpop.f32.mrb[0].mxu0
      %v6773 = vpop.f32.mrb[0].mxu0
      %v6774 = vadd.f32 0.0, %v6773
      %v6775 = vpop.f32.mrb[0].mxu0
      %6776 = vmatprep.mubr.bf16.mxu0 0
      %6777 = vmatmul.mubr.bf16.gmra.mrb[0].mxu0 %v6619
      %v6778 = vpop.f32.mrb[0].mxu0
      %v6779 = vadd.f32 0.0, %v6778
      %v6780 = vpop.f32.mrb[0].mxu0
      %v6781 = vpop.f32.mrb[0].mxu0
      %v6782 = vadd.f32 0.0, %v6781
      %v6783 = vpop.f32.mrb[0].mxu0
      %6784 = vdwg.mxu0
      %v6817 = vunpack.c.l.b16 %v6090
      %v6818 = vunpack.c.l.b16 %v6091
      %v6819 = vunpack.c.l.b16 %v6092
      %v6820 = vunpack.c.l.b16 %v6093
      %v6821 = vunpack.c.l.b16 %v6094
      %v6822 = vunpack.c.l.b16 %v6095
      %v6823 = vunpack.c.l.b16 %v6096
      %v6824 = vunpack.c.l.b16 %v6097
      %v6825 = vunpack.c.l.b16 %v6098
      %v6826 = vunpack.c.l.b16 %v6099
      %v6827 = vunpack.c.l.b16 %v6100
      %v6828 = vunpack.c.l.b16 %v6101
      %v6829 = vunpack.c.l.b16 %v6102
      %v6830 = vunpack.c.l.b16 %v6103
      %v6831 = vunpack.c.l.b16 %v6104
      %v6832 = vunpack.c.l.b16 %v6105
      %v6833 = vunpack.c.l.b16 %v6106
      %v6834 = vunpack.c.l.b16 %v6107
      %v6835 = vunpack.c.l.b16 %v6108
      %v6836 = vunpack.c.l.b16 %v6109
      %v6837 = vunpack.c.l.b16 %v6110
      %v6838 = vunpack.c.l.b16 %v6111
      %v6839 = vunpack.c.l.b16 %v6112
      %v6840 = vunpack.c.l.b16 %v6113
      %v6841 = vunpack.c.l.b16 %v6114
      %v6842 = vunpack.c.l.b16 %v6115
      %v6843 = vunpack.c.l.b16 %v6116
      %v6844 = vunpack.c.l.b16 %v6117
      %v6845 = vunpack.c.l.b16 %v6118
      %v6846 = vunpack.c.l.b16 %v6119
      %v6847 = vunpack.c.l.b16 %v6120
      %v6848 = vunpack.c.l.b16 %v6121
      %v6849 = vpack.c.b16 %v6818, %v6817
      %v6850 = vpack.c.b16 %v6820, %v6819
      %v6851 = vpack.c.b16 %v6822, %v6821
      %v6852 = vpack.c.b16 %v6824, %v6823
      %v6853 = vpack.c.b16 %v6826, %v6825
      %v6854 = vpack.c.b16 %v6828, %v6827
      %v6855 = vpack.c.b16 %v6830, %v6829
      %v6856 = vpack.c.b16 %v6832, %v6831
      %v6857 = vpack.c.b16 %v6834, %v6833
      %v6858 = vpack.c.b16 %v6836, %v6835
      %v6859 = vpack.c.b16 %v6838, %v6837
      %v6860 = vpack.c.b16 %v6840, %v6839
      %v6861 = vpack.c.b16 %v6842, %v6841
      %v6862 = vpack.c.b16 %v6844, %v6843
      %v6863 = vpack.c.b16 %v6846, %v6845
      %v6864 = vpack.c.b16 %v6848, %v6847
      %v6866 = vsel %vm1418, %v6849, 0
      %v6869 = vsel %vm1418, %v6850, 0
      %v6872 = vsel %vm1418, %v6851, 0
      %v6875 = vsel %vm1418, %v6852, 0
      %v6878 = vsel %vm1418, %v6853, 0
      %v6881 = vsel %vm1418, %v6854, 0
      %v6884 = vsel %vm1418, %v6855, 0
      %v6887 = vsel %vm1418, %v6856, 0
      %v6890 = vsel %vm1418, %v6857, 0
      %v6893 = vsel %vm1418, %v6858, 0
      %v6896 = vsel %vm1418, %v6859, 0
      %v6899 = vsel %vm1418, %v6860, 0
      %v6902 = vsel %vm1418, %v6861, 0
      %v6905 = vsel %vm1418, %v6862, 0
      %v6908 = vsel %vm1418, %v6863, 0
      %v6911 = vsel %vm1418, %v6864, 0
      %v6914 = vsel %vm1467, %v6122, 0
      %6916 = vmatprep.subr.bf16.mxu0 0
      %6917 = vmatpush1.bf16.msra.mxu0 %v6914
      %6918 = vmatprep.subr.bf16.mxu0 0
      %6919 = vmatpush1.bf16.msra.mxu0 0
      %6920 = vmatprep.subr.bf16.mxu0 0
      %6921 = vmatpush1.bf16.msra.mxu0 0
      %6922 = vmatprep.subr.bf16.mxu0 0
      %6923 = vmatpush1.bf16.msra.mxu0 0
      %6924 = vmatprep.subr.bf16.mxu0 0
      %6925 = vmatpush1.bf16.msra.mxu0 0
      %6926 = vmatprep.subr.bf16.mxu0 0
      %6927 = vmatpush1.bf16.msra.mxu0 0
      %6928 = vmatprep.subr.bf16.mxu0 0
      %6929 = vmatpush1.bf16.msra.mxu0 0
      %6930 = vmatprep.subr.bf16.mxu0 0
      %6931 = vmatpush1.bf16.msra.mxu0 0
      %6932 = vmatprep.subr.bf16.mxu0 0
      %6933 = vmatpush1.bf16.msra.mxu0 0
      %6934 = vmatprep.subr.bf16.mxu0 0
      %6935 = vmatpush1.bf16.msra.mxu0 0
      %6936 = vmatprep.subr.bf16.mxu0 0
      %6937 = vmatpush1.bf16.msra.mxu0 0
      %6938 = vmatprep.subr.bf16.mxu0 0
      %6939 = vmatpush1.bf16.msra.mxu0 0
      %6940 = vmatprep.subr.bf16.mxu0 0
      %6941 = vmatpush1.bf16.msra.mxu0 0
      %6942 = vmatprep.subr.bf16.mxu0 0
      %6943 = vmatpush1.bf16.msra.mxu0 0
      %6944 = vmatprep.subr.bf16.mxu0 0
      %6945 = vmatpush1.bf16.msra.mxu0 0
      %6946 = vmatprep.subr.bf16.mxu0 0
      %6947 = vmatpush1.bf16.msra.mxu0 0
      %6948 = vmatprep.mubr.bf16.mxu0 0
      %6949 = vmatmul.mubr.bf16.gmra.mrb[0].mxu0 %v6866
      %v6950 = vpop.f32.mrb[0].mxu0
      %v6951 = vadd.f32 %v6659, %v6950
      %v6952 = vpop.f32.mrb[0].mxu0
      %v6953 = vpop.f32.mrb[0].mxu0
      %v6954 = vadd.f32 %v6662, %v6953
      %v6955 = vpop.f32.mrb[0].mxu0
      %6956 = vmatprep.mubr.bf16.mxu0 0
      %6957 = vmatmul.mubr.bf16.gmra.mrb[0].mxu0 %v6869
      %v6958 = vpop.f32.mrb[0].mxu0
      %v6959 = vadd.f32 %v6667, %v6958
      %v6960 = vpop.f32.mrb[0].mxu0
      %v6961 = vpop.f32.mrb[0].mxu0
      %v6962 = vadd.f32 %v6670, %v6961
      %v6963 = vpop.f32.mrb[0].mxu0
      %6964 = vmatprep.mubr.bf16.mxu0 0
      %6965 = vmatmul.mubr.bf16.gmra.mrb[0].mxu0 %v6872
      %v6966 = vpop.f32.mrb[0].mxu0
      %v6967 = vadd.f32 %v6675, %v6966
      %v6968 = vpop.f32.mrb[0].mxu0
      %v6969 = vpop.f32.mrb[0].mxu0
      %v6970 = vadd.f32 %v6678, %v6969
      %v6971 = vpop.f32.mrb[0].mxu0
      %6972 = vmatprep.mubr.bf16.mxu0 0
      %6973 = vmatmul.mubr.bf16.gmra.mrb[0].mxu0 %v6875
      %v6974 = vpop.f32.mrb[0].mxu0
      %v6975 = vadd.f32 %v6683, %v6974
      %v6976 = vpop.f32.mrb[0].mxu0
      %v6977 = vpop.f32.mrb[0].mxu0
      %v6978 = vadd.f32 %v6686, %v6977
      %v6979 = vpop.f32.mrb[0].mxu0
      %6980 = vmatprep.mubr.bf16.mxu0 0
      %6981 = vmatmul.mubr.bf16.gmra.mrb[0].mxu0 %v6878
      %v6982 = vpop.f32.mrb[0].mxu0
      %v6983 = vadd.f32 %v6691, %v6982
      %v6984 = vpop.f32.mrb[0].mxu0
      %v6985 = vpop.f32.mrb[0].mxu0
      %v6986 = vadd.f32 %v6694, %v6985
      %v6987 = vpop.f32.mrb[0].mxu0
      %6988 = vmatprep.mubr.bf16.mxu0 0
      %6989 = vmatmul.mubr.bf16.gmra.mrb[0].mxu0 %v6881
      %v6990 = vpop.f32.mrb[0].mxu0
      %v6991 = vadd.f32 %v6699, %v6990
      %v6992 = vpop.f32.mrb[0].mxu0
      %v6993 = vpop.f32.mrb[0].mxu0
      %v6994 = vadd.f32 %v6702, %v6993
      %v6995 = vpop.f32.mrb[0].mxu0
      %6996 = vmatprep.mubr.bf16.mxu0 0
      %6997 = vmatmul.mubr.bf16.gmra.mrb[0].mxu0 %v6884
      %v6998 = vpop.f32.mrb[0].mxu0
      %v6999 = vadd.f32 %v6707, %v6998
      %v7000 = vpop.f32.mrb[0].mxu0
      %v7001 = vpop.f32.mrb[0].mxu0
      %v7002 = vadd.f32 %v6710, %v7001
      %v7003 = vpop.f32.mrb[0].mxu0
      %7004 = vmatprep.mubr.bf16.mxu0 0
      %7005 = vmatmul.mubr.bf16.gmra.mrb[0].mxu0 %v6887
      %v7006 = vpop.f32.mrb[0].mxu0
      %v7007 = vadd.f32 %v6715, %v7006
      %v7008 = vpop.f32.mrb[0].mxu0
      %v7009 = vpop.f32.mrb[0].mxu0
      %v7010 = vadd.f32 %v6718, %v7009
      %v7011 = vpop.f32.mrb[0].mxu0
      %7012 = vmatprep.mubr.bf16.mxu0 0
      %7013 = vmatmul.mubr.bf16.gmra.mrb[0].mxu0 %v6890
      %v7014 = vpop.f32.mrb[0].mxu0
      %v7015 = vadd.f32 %v6723, %v7014
      %v7016 = vpop.f32.mrb[0].mxu0
      %v7017 = vpop.f32.mrb[0].mxu0
      %v7018 = vadd.f32 %v6726, %v7017
      %v7019 = vpop.f32.mrb[0].mxu0
      %7020 = vmatprep.mubr.bf16.mxu0 0
      %7021 = vmatmul.mubr.bf16.gmra.mrb[0].mxu0 %v6893
      %v7022 = vpop.f32.mrb[0].mxu0
      %v7023 = vadd.f32 %v6731, %v7022
      %v7024 = vpop.f32.mrb[0].mxu0
      %v7025 = vpop.f32.mrb[0].mxu0
      %v7026 = vadd.f32 %v6734, %v7025
      %v7027 = vpop.f32.mrb[0].mxu0
      %7028 = vmatprep.mubr.bf16.mxu0 0
      %7029 = vmatmul.mubr.bf16.gmra.mrb[0].mxu0 %v6896
      %v7030 = vpop.f32.mrb[0].mxu0
      %v7031 = vadd.f32 %v6739, %v7030
      %v7032 = vpop.f32.mrb[0].mxu0
      %v7033 = vpop.f32.mrb[0].mxu0
      %v7034 = vadd.f32 %v6742, %v7033
      %v7035 = vpop.f32.mrb[0].mxu0
      %7036 = vmatprep.mubr.bf16.mxu0 0
      %7037 = vmatmul.mubr.bf16.gmra.mrb[0].mxu0 %v6899
      %v7038 = vpop.f32.mrb[0].mxu0
      %v7039 = vadd.f32 %v6747, %v7038
      %v7040 = vpop.f32.mrb[0].mxu0
      %v7041 = vpop.f32.mrb[0].mxu0
      %v7042 = vadd.f32 %v6750, %v7041
      %v7043 = vpop.f32.mrb[0].mxu0
      %7044 = vmatprep.mubr.bf16.mxu0 0
      %7045 = vmatmul.mubr.bf16.gmra.mrb[0].mxu0 %v6902
      %v7046 = vpop.f32.mrb[0].mxu0
      %v7047 = vadd.f32 %v6755, %v7046
      %v7048 = vpop.f32.mrb[0].mxu0
      %v7049 = vpop.f32.mrb[0].mxu0
      %v7050 = vadd.f32 %v6758, %v7049
      %v7051 = vpop.f32.mrb[0].mxu0
      %7052 = vmatprep.mubr.bf16.mxu0 0
      %7053 = vmatmul.mubr.bf16.gmra.mrb[0].mxu0 %v6905
      %v7054 = vpop.f32.mrb[0].mxu0
      %v7055 = vadd.f32 %v6763, %v7054
      %v7056 = vpop.f32.mrb[0].mxu0
      %v7057 = vpop.f32.mrb[0].mxu0
      %v7058 = vadd.f32 %v6766, %v7057
      %v7059 = vpop.f32.mrb[0].mxu0
      %7060 = vmatprep.mubr.bf16.mxu0 0
      %7061 = vmatmul.mubr.bf16.gmra.mrb[0].mxu0 %v6908
      %v7062 = vpop.f32.mrb[0].mxu0
      %v7063 = vadd.f32 %v6771, %v7062
      %v7064 = vpop.f32.mrb[0].mxu0
      %v7065 = vpop.f32.mrb[0].mxu0
      %v7066 = vadd.f32 %v6774, %v7065
      %v7067 = vpop.f32.mrb[0].mxu0
      %7068 = vmatprep.mubr.bf16.mxu0 0
      %7069 = vmatmul.mubr.bf16.gmra.mrb[0].mxu0 %v6911
      %v7070 = vpop.f32.mrb[0].mxu0
      %v7071 = vadd.f32 %v6779, %v7070
      %v7072 = vpop.f32.mrb[0].mxu0
      %v7073 = vpop.f32.mrb[0].mxu0
      %v7074 = vadd.f32 %v6782, %v7073
      %v7075 = vpop.f32.mrb[0].mxu0
      %7076 = vdwg.mxu0
      %v7077 = vld [vmem:[#allocation3] sm:$0xe]
      %v7078 = vld [vmem:[#allocation3 + $0xc] sm:$0xe]
      %v7079 = vld [vmem:[#allocation3 + $0x18] sm:$0xe]
      %v7080 = vld [vmem:[#allocation3 + $0x24] sm:$0xe]
      %v7081 = vld [vmem:[#allocation3 + $0x30] sm:$0xe]
      %v7082 = vld [vmem:[#allocation3 + $0x3c] sm:$0xe]
      %v7083 = vld [vmem:[#allocation3 + $0x48] sm:$0xe]
      %v7084 = vld [vmem:[#allocation3 + $0x54] sm:$0xe]
      %v7085 = vld [vmem:[#allocation3 + $0x60] sm:$0xe]
      %v7086 = vld [vmem:[#allocation3 + $0x6c] sm:$0xe]
      %v7087 = vld [vmem:[#allocation3 + $0x78] sm:$0xe]
      %v7088 = vld [vmem:[#allocation3 + $0x84] sm:$0xe]
      %v7089 = vld [vmem:[#allocation3 + $0x90] sm:$0xe]
      %v7090 = vld [vmem:[#allocation3 + $0x9c] sm:$0xe]
      %v7091 = vld [vmem:[#allocation3 + $0xa8] sm:$0xe]
      %v7092 = vld [vmem:[#allocation3 + $0xb4] sm:$0xe]
      %s7093 = scalar_lea.vmem %s2, 4
      %v7094 = vld [vmem:[%s7093] sm:$0x3]
      %v7127 = vrot.slane %v7077, 5
      %v7128 = vrot.slane %v7127, 4
      %v7129 = vrot.slane %v6091, 5
      %v7130 = vsel %vm1976, %v7128, %v7129
      %v7131 = vrot.slane %v7129, 4
      %v7132 = vrot.slane %v6123, 5
      %v7133 = vsel %vm1976, %v7131, %v7132
      %v7134 = vrot.slane %v7078, 5
      %v7135 = vrot.slane %v7134, 4
      %v7136 = vrot.slane %v6093, 5
      %v7137 = vsel %vm1976, %v7135, %v7136
      %v7138 = vrot.slane %v7136, 4
      %v7139 = vrot.slane %v6124, 5
      %v7140 = vsel %vm1976, %v7138, %v7139
      %v7141 = vrot.slane %v7079, 5
      %v7142 = vrot.slane %v7141, 4
      %v7143 = vrot.slane %v6095, 5
      %v7144 = vsel %vm1976, %v7142, %v7143
      %v7145 = vrot.slane %v7143, 4
      %v7146 = vrot.slane %v6125, 5
      %v7147 = vsel %vm1976, %v7145, %v7146
      %v7148 = vrot.slane %v7080, 5
      %v7149 = vrot.slane %v7148, 4
      %v7150 = vrot.slane %v6097, 5
      %v7151 = vsel %vm1976, %v7149, %v7150
      %v7152 = vrot.slane %v7150, 4
      %v7153 = vrot.slane %v6126, 5
      %v7154 = vsel %vm1976, %v7152, %v7153
      %v7155 = vrot.slane %v7081, 5
      %v7156 = vrot.slane %v7155, 4
      %v7157 = vrot.slane %v6099, 5
      %v7158 = vsel %vm1976, %v7156, %v7157
      %v7159 = vrot.slane %v7157, 4
      %v7160 = vrot.slane %v6127, 5
      %v7161 = vsel %vm1976, %v7159, %v7160
      %v7162 = vrot.slane %v7082, 5
      %v7163 = vrot.slane %v7162, 4
      %v7164 = vrot.slane %v6101, 5
      %v7165 = vsel %vm1976, %v7163, %v7164
      %v7166 = vrot.slane %v7164, 4
      %v7167 = vrot.slane %v6128, 5
      %v7168 = vsel %vm1976, %v7166, %v7167
      %v7169 = vrot.slane %v7083, 5
      %v7170 = vrot.slane %v7169, 4
      %v7171 = vrot.slane %v6103, 5
      %v7172 = vsel %vm1976, %v7170, %v7171
      %v7173 = vrot.slane %v7171, 4
      %v7174 = vrot.slane %v6129, 5
      %v7175 = vsel %vm1976, %v7173, %v7174
      %v7176 = vrot.slane %v7084, 5
      %v7177 = vrot.slane %v7176, 4
      %v7178 = vrot.slane %v6105, 5
      %v7179 = vsel %vm1976, %v7177, %v7178
      %v7180 = vrot.slane %v7178, 4
      %v7181 = vrot.slane %v6130, 5
      %v7182 = vsel %vm1976, %v7180, %v7181
      %v7183 = vrot.slane %v7085, 5
      %v7184 = vrot.slane %v7183, 4
      %v7185 = vrot.slane %v6107, 5
      %v7186 = vsel %vm1976, %v7184, %v7185
      %v7187 = vrot.slane %v7185, 4
      %v7188 = vrot.slane %v6131, 5
      %v7189 = vsel %vm1976, %v7187, %v7188
      %v7190 = vrot.slane %v7086, 5
      %v7191 = vrot.slane %v7190, 4
      %v7192 = vrot.slane %v6109, 5
      %v7193 = vsel %vm1976, %v7191, %v7192
      %v7194 = vrot.slane %v7192, 4
      %v7195 = vrot.slane %v6132, 5
      %v7196 = vsel %vm1976, %v7194, %v7195
      %v7197 = vrot.slane %v7087, 5
      %v7198 = vrot.slane %v7197, 4
      %v7199 = vrot.slane %v6111, 5
      %v7200 = vsel %vm1976, %v7198, %v7199
      %v7201 = vrot.slane %v7199, 4
      %v7202 = vrot.slane %v6133, 5
      %v7203 = vsel %vm1976, %v7201, %v7202
      %v7204 = vrot.slane %v7088, 5
      %v7205 = vrot.slane %v7204, 4
      %v7206 = vrot.slane %v6113, 5
      %v7207 = vsel %vm1976, %v7205, %v7206
      %v7208 = vrot.slane %v7206, 4
      %v7209 = vrot.slane %v6134, 5
      %v7210 = vsel %vm1976, %v7208, %v7209
      %v7211 = vrot.slane %v7089, 5
      %v7212 = vrot.slane %v7211, 4
      %v7213 = vrot.slane %v6115, 5
      %v7214 = vsel %vm1976, %v7212, %v7213
      %v7215 = vrot.slane %v7213, 4
      %v7216 = vrot.slane %v6135, 5
      %v7217 = vsel %vm1976, %v7215, %v7216
      %v7218 = vrot.slane %v7090, 5
      %v7219 = vrot.slane %v7218, 4
      %v7220 = vrot.slane %v6117, 5
      %v7221 = vsel %vm1976, %v7219, %v7220
      %v7222 = vrot.slane %v7220, 4
      %v7223 = vrot.slane %v6136, 5
      %v7224 = vsel %vm1976, %v7222, %v7223
      %v7225 = vrot.slane %v7091, 5
      %v7226 = vrot.slane %v7225, 4
      %v7227 = vrot.slane %v6119, 5
      %v7228 = vsel %vm1976, %v7226, %v7227
      %v7229 = vrot.slane %v7227, 4
      %v7230 = vrot.slane %v6137, 5
      %v7231 = vsel %vm1976, %v7229, %v7230
      %v7232 = vrot.slane %v7092, 5
      %v7233 = vrot.slane %v7232, 4
      %v7234 = vrot.slane %v6121, 5
      %v7235 = vsel %vm1976, %v7233, %v7234
      %v7236 = vrot.slane %v7234, 4
      %v7237 = vrot.slane %v6138, 5
      %v7238 = vsel %vm1976, %v7236, %v7237
      %v7239 = vunpack.c.l.b16 %v7130
      %v7240 = vunpack.c.l.b16 %v7133
      %v7241 = vunpack.c.l.b16 %v7137
      %v7242 = vunpack.c.l.b16 %v7140
      %v7243 = vunpack.c.l.b16 %v7144
      %v7244 = vunpack.c.l.b16 %v7147
      %v7245 = vunpack.c.l.b16 %v7151
      %v7246 = vunpack.c.l.b16 %v7154
      %v7247 = vunpack.c.l.b16 %v7158
      %v7248 = vunpack.c.l.b16 %v7161
      %v7249 = vunpack.c.l.b16 %v7165
      %v7250 = vunpack.c.l.b16 %v7168
      %v7251 = vunpack.c.l.b16 %v7172
      %v7252 = vunpack.c.l.b16 %v7175
      %v7253 = vunpack.c.l.b16 %v7179
      %v7254 = vunpack.c.l.b16 %v7182
      %v7255 = vunpack.c.l.b16 %v7186
      %v7256 = vunpack.c.l.b16 %v7189
      %v7257 = vunpack.c.l.b16 %v7193
      %v7258 = vunpack.c.l.b16 %v7196
      %v7259 = vunpack.c.l.b16 %v7200
      %v7260 = vunpack.c.l.b16 %v7203
      %v7261 = vunpack.c.l.b16 %v7207
      %v7262 = vunpack.c.l.b16 %v7210
      %v7263 = vunpack.c.l.b16 %v7214
      %v7264 = vunpack.c.l.b16 %v7217
      %v7265 = vunpack.c.l.b16 %v7221
      %v7266 = vunpack.c.l.b16 %v7224
      %v7267 = vunpack.c.l.b16 %v7228
      %v7268 = vunpack.c.l.b16 %v7231
      %v7269 = vunpack.c.l.b16 %v7235
      %v7270 = vunpack.c.l.b16 %v7238
      %v7271 = vpack.c.b16 %v7240, %v7239
      %v7272 = vpack.c.b16 %v7242, %v7241
      %v7273 = vpack.c.b16 %v7244, %v7243
      %v7274 = vpack.c.b16 %v7246, %v7245
      %v7275 = vpack.c.b16 %v7248, %v7247
      %v7276 = vpack.c.b16 %v7250, %v7249
      %v7277 = vpack.c.b16 %v7252, %v7251
      %v7278 = vpack.c.b16 %v7254, %v7253
      %v7279 = vpack.c.b16 %v7256, %v7255
      %v7280 = vpack.c.b16 %v7258, %v7257
      %v7281 = vpack.c.b16 %v7260, %v7259
      %v7282 = vpack.c.b16 %v7262, %v7261
      %v7283 = vpack.c.b16 %v7264, %v7263
      %v7284 = vpack.c.b16 %v7266, %v7265
      %v7285 = vpack.c.b16 %v7268, %v7267
      %v7286 = vpack.c.b16 %v7270, %v7269
      %v7288 = vsel %vm1418, %v7271, 0
      %v7291 = vsel %vm1418, %v7272, 0
      %v7294 = vsel %vm1418, %v7273, 0
      %v7297 = vsel %vm1418, %v7274, 0
      %v7300 = vsel %vm1418, %v7275, 0
      %v7303 = vsel %vm1418, %v7276, 0
      %v7306 = vsel %vm1418, %v7277, 0
      %v7309 = vsel %vm1418, %v7278, 0
      %v7312 = vsel %vm1418, %v7279, 0
      %v7315 = vsel %vm1418, %v7280, 0
      %v7318 = vsel %vm1418, %v7281, 0
      %v7321 = vsel %vm1418, %v7282, 0
      %v7324 = vsel %vm1418, %v7283, 0
      %v7327 = vsel %vm1418, %v7284, 0
      %v7330 = vsel %vm1418, %v7285, 0
      %v7333 = vsel %vm1418, %v7286, 0
      %v7336 = vsel %vm1467, %v7094, 0
      %7338 = vmatprep.subr.bf16.mxu0 0
      %7339 = vmatpush1.bf16.msra.mxu0 %v7336
      %7340 = vmatprep.subr.bf16.mxu0 0
      %7341 = vmatpush1.bf16.msra.mxu0 0
      %7342 = vmatprep.subr.bf16.mxu0 0
      %7343 = vmatpush1.bf16.msra.mxu0 0
      %7344 = vmatprep.subr.bf16.mxu0 0
      %7345 = vmatpush1.bf16.msra.mxu0 0
      %7346 = vmatprep.subr.bf16.mxu0 0
      %7347 = vmatpush1.bf16.msra.mxu0 0
      %7348 = vmatprep.subr.bf16.mxu0 0
      %7349 = vmatpush1.bf16.msra.mxu0 0
      %7350 = vmatprep.subr.bf16.mxu0 0
      %7351 = vmatpush1.bf16.msra.mxu0 0
      %7352 = vmatprep.subr.bf16.mxu0 0
      %7353 = vmatpush1.bf16.msra.mxu0 0
      %7354 = vmatprep.subr.bf16.mxu0 0
      %7355 = vmatpush1.bf16.msra.mxu0 0
      %7356 = vmatprep.subr.bf16.mxu0 0
      %7357 = vmatpush1.bf16.msra.mxu0 0
      %7358 = vmatprep.subr.bf16.mxu0 0
      %7359 = vmatpush1.bf16.msra.mxu0 0
      %7360 = vmatprep.subr.bf16.mxu0 0
      %7361 = vmatpush1.bf16.msra.mxu0 0
      %7362 = vmatprep.subr.bf16.mxu0 0
      %7363 = vmatpush1.bf16.msra.mxu0 0
      %7364 = vmatprep.subr.bf16.mxu0 0
      %7365 = vmatpush1.bf16.msra.mxu0 0
      %7366 = vmatprep.subr.bf16.mxu0 0
      %7367 = vmatpush1.bf16.msra.mxu0 0
      %7368 = vmatprep.subr.bf16.mxu0 0
      %7369 = vmatpush1.bf16.msra.mxu0 0
      %7370 = vmatprep.mubr.bf16.mxu0 0
      %7371 = vmatmul.mubr.bf16.gmra.mrb[0].mxu0 %v7288
      %v7372 = vpop.f32.mrb[0].mxu0
      %v7373 = vadd.f32 0.0, %v7372
      %v7374 = vpop.f32.mrb[0].mxu0
      %v7375 = vpop.f32.mrb[0].mxu0
      %v7376 = vadd.f32 0.0, %v7375
      %v7377 = vpop.f32.mrb[0].mxu0
      %7378 = vmatprep.mubr.bf16.mxu0 0
      %7379 = vmatmul.mubr.bf16.gmra.mrb[0].mxu0 %v7291
      %v7380 = vpop.f32.mrb[0].mxu0
      %v7381 = vadd.f32 0.0, %v7380
      %v7382 = vpop.f32.mrb[0].mxu0
      %v7383 = vpop.f32.mrb[0].mxu0
      %v7384 = vadd.f32 0.0, %v7383
      %v7385 = vpop.f32.mrb[0].mxu0
      %7386 = vmatprep.mubr.bf16.mxu0 0
      %7387 = vmatmul.mubr.bf16.gmra.mrb[0].mxu0 %v7294
      %v7388 = vpop.f32.mrb[0].mxu0
      %v7389 = vadd.f32 0.0, %v7388
      %v7390 = vpop.f32.mrb[0].mxu0
      %v7391 = vpop.f32.mrb[0].mxu0
      %v7392 = vadd.f32 0.0, %v7391
      %v7393 = vpop.f32.mrb[0].mxu0
      %7394 = vmatprep.mubr.bf16.mxu0 0
      %7395 = vmatmul.mubr.bf16.gmra.mrb[0].mxu0 %v7297
      %v7396 = vpop.f32.mrb[0].mxu0
      %v7397 = vadd.f32 0.0, %v7396
      %v7398 = vpop.f32.mrb[0].mxu0
      %v7399 = vpop.f32.mrb[0].mxu0
      %v7400 = vadd.f32 0.0, %v7399
      %v7401 = vpop.f32.mrb[0].mxu0
      %7402 = vmatprep.mubr.bf16.mxu0 0
      %7403 = vmatmul.mubr.bf16.gmra.mrb[0].mxu0 %v7300
      %v7404 = vpop.f32.mrb[0].mxu0
      %v7405 = vadd.f32 0.0, %v7404
      %v7406 = vpop.f32.mrb[0].mxu0
      %v7407 = vpop.f32.mrb[0].mxu0
      %v7408 = vadd.f32 0.0, %v7407
      %v7409 = vpop.f32.mrb[0].mxu0
      %7410 = vmatprep.mubr.bf16.mxu0 0
      %7411 = vmatmul.mubr.bf16.gmra.mrb[0].mxu0 %v7303
      %v7412 = vpop.f32.mrb[0].mxu0
      %v7413 = vadd.f32 0.0, %v7412
      %v7414 = vpop.f32.mrb[0].mxu0
      %v7415 = vpop.f32.mrb[0].mxu0
      %v7416 = vadd.f32 0.0, %v7415
      %v7417 = vpop.f32.mrb[0].mxu0
      %7418 = vmatprep.mubr.bf16.mxu0 0
      %7419 = vmatmul.mubr.bf16.gmra.mrb[0].mxu0 %v7306
      %v7420 = vpop.f32.mrb[0].mxu0
      %v7421 = vadd.f32 0.0, %v7420
      %v7422 = vpop.f32.mrb[0].mxu0
      %v7423 = vpop.f32.mrb[0].mxu0
      %v7424 = vadd.f32 0.0, %v7423
      %v7425 = vpop.f32.mrb[0].mxu0
      %7426 = vmatprep.mubr.bf16.mxu0 0
      %7427 = vmatmul.mubr.bf16.gmra.mrb[0].mxu0 %v7309
      %v7428 = vpop.f32.mrb[0].mxu0
      %v7429 = vadd.f32 0.0, %v7428
      %v7430 = vpop.f32.mrb[0].mxu0
      %v7431 = vpop.f32.mrb[0].mxu0
      %v7432 = vadd.f32 0.0, %v7431
      %v7433 = vpop.f32.mrb[0].mxu0
      %7434 = vmatprep.mubr.bf16.mxu0 0
      %7435 = vmatmul.mubr.bf16.gmra.mrb[0].mxu0 %v7312
      %v7436 = vpop.f32.mrb[0].mxu0
      %v7437 = vadd.f32 0.0, %v7436
      %v7438 = vpop.f32.mrb[0].mxu0
      %v7439 = vpop.f32.mrb[0].mxu0
      %v7440 = vadd.f32 0.0, %v7439
      %v7441 = vpop.f32.mrb[0].mxu0
      %7442 = vmatprep.mubr.bf16.mxu0 0
      %7443 = vmatmul.mubr.bf16.gmra.mrb[0].mxu0 %v7315
      %v7444 = vpop.f32.mrb[0].mxu0
      %v7445 = vadd.f32 0.0, %v7444
      %v7446 = vpop.f32.mrb[0].mxu0
      %v7447 = vpop.f32.mrb[0].mxu0
      %v7448 = vadd.f32 0.0, %v7447
      %v7449 = vpop.f32.mrb[0].mxu0
      %7450 = vmatprep.mubr.bf16.mxu0 0
      %7451 = vmatmul.mubr.bf16.gmra.mrb[0].mxu0 %v7318
      %v7452 = vpop.f32.mrb[0].mxu0
      %v7453 = vadd.f32 0.0, %v7452
      %v7454 = vpop.f32.mrb[0].mxu0
      %v7455 = vpop.f32.mrb[0].mxu0
      %v7456 = vadd.f32 0.0, %v7455
      %v7457 = vpop.f32.mrb[0].mxu0
      %7458 = vmatprep.mubr.bf16.mxu0 0
      %7459 = vmatmul.mubr.bf16.gmra.mrb[0].mxu0 %v7321
      %v7460 = vpop.f32.mrb[0].mxu0
      %v7461 = vadd.f32 0.0, %v7460
      %v7462 = vpop.f32.mrb[0].mxu0
      %v7463 = vpop.f32.mrb[0].mxu0
      %v7464 = vadd.f32 0.0, %v7463
      %v7465 = vpop.f32.mrb[0].mxu0
      %7466 = vmatprep.mubr.bf16.mxu0 0
      %7467 = vmatmul.mubr.bf16.gmra.mrb[0].mxu0 %v7324
      %v7468 = vpop.f32.mrb[0].mxu0
      %v7469 = vadd.f32 0.0, %v7468
      %v7470 = vpop.f32.mrb[0].mxu0
      %v7471 = vpop.f32.mrb[0].mxu0
      %v7472 = vadd.f32 0.0, %v7471
      %v7473 = vpop.f32.mrb[0].mxu0
      %7474 = vmatprep.mubr.bf16.mxu0 0
      %7475 = vmatmul.mubr.bf16.gmra.mrb[0].mxu0 %v7327
      %v7476 = vpop.f32.mrb[0].mxu0
      %v7477 = vadd.f32 0.0, %v7476
      %v7478 = vpop.f32.mrb[0].mxu0
      %v7479 = vpop.f32.mrb[0].mxu0
      %v7480 = vadd.f32 0.0, %v7479
      %v7481 = vpop.f32.mrb[0].mxu0
      %7482 = vmatprep.mubr.bf16.mxu0 0
      %7483 = vmatmul.mubr.bf16.gmra.mrb[0].mxu0 %v7330
      %v7484 = vpop.f32.mrb[0].mxu0
      %v7485 = vadd.f32 0.0, %v7484
      %v7486 = vpop.f32.mrb[0].mxu0
      %v7487 = vpop.f32.mrb[0].mxu0
      %v7488 = vadd.f32 0.0, %v7487
      %v7489 = vpop.f32.mrb[0].mxu0
      %7490 = vmatprep.mubr.bf16.mxu0 0
      %7491 = vmatmul.mubr.bf16.gmra.mrb[0].mxu0 %v7333
      %v7492 = vpop.f32.mrb[0].mxu0
      %v7493 = vadd.f32 0.0, %v7492
      %v7494 = vpop.f32.mrb[0].mxu0
      %v7495 = vpop.f32.mrb[0].mxu0
      %v7496 = vadd.f32 0.0, %v7495
      %v7497 = vpop.f32.mrb[0].mxu0
      %7498 = vdwg.mxu0
      %v7499 = vadd.f32 %v6951, %v7373
      %v7500 = vadd.f32 %v6954, %v7376
      %v7501 = vadd.f32 %v6959, %v7381
      %v7502 = vadd.f32 %v6962, %v7384
      %v7503 = vadd.f32 %v6967, %v7389
      %v7504 = vadd.f32 %v6970, %v7392
      %v7505 = vadd.f32 %v6975, %v7397
      %v7506 = vadd.f32 %v6978, %v7400
      %v7507 = vadd.f32 %v6983, %v7405
      %v7508 = vadd.f32 %v6986, %v7408
      %v7509 = vadd.f32 %v6991, %v7413
      %v7510 = vadd.f32 %v6994, %v7416
      %v7511 = vadd.f32 %v6999, %v7421
      %v7512 = vadd.f32 %v7002, %v7424
      %v7513 = vadd.f32 %v7007, %v7429
      %v7514 = vadd.f32 %v7010, %v7432
      %v7515 = vadd.f32 %v7015, %v7437
      %v7516 = vadd.f32 %v7018, %v7440
      %v7517 = vadd.f32 %v7023, %v7445
      %v7518 = vadd.f32 %v7026, %v7448
      %v7519 = vadd.f32 %v7031, %v7453
      %v7520 = vadd.f32 %v7034, %v7456
      %v7521 = vadd.f32 %v7039, %v7461
      %v7522 = vadd.f32 %v7042, %v7464
      %v7523 = vadd.f32 %v7047, %v7469
      %v7524 = vadd.f32 %v7050, %v7472
      %v7525 = vadd.f32 %v7055, %v7477
      %v7526 = vadd.f32 %v7058, %v7480
      %v7527 = vadd.f32 %v7063, %v7485
      %v7528 = vadd.f32 %v7066, %v7488
      %v7529 = vadd.f32 %v7071, %v7493
      %v7530 = vadd.f32 %v7074, %v7496
      %v7531 = vld [vmem:[%s5977] sm:$0xf]
      %v7532 = vld [vmem:[%s5977 + $0x4] sm:$0xf]
      %v7533 = vld [vmem:[%s5977 + $0xc] sm:$0xf]
      %v7534 = vld [vmem:[%s5977 + $0x10] sm:$0xf]
      %v7535 = vld [vmem:[%s5977 + $0x18] sm:$0xf]
      %v7536 = vld [vmem:[%s5977 + $0x1c] sm:$0xf]
      %v7537 = vld [vmem:[%s5977 + $0x24] sm:$0xf]
      %v7538 = vld [vmem:[%s5977 + $0x28] sm:$0xf]
      %v7539 = vld [vmem:[%s5977 + $0x30] sm:$0xf]
      %v7540 = vld [vmem:[%s5977 + $0x34] sm:$0xf]
      %v7541 = vld [vmem:[%s5977 + $0x3c] sm:$0xf]
      %v7542 = vld [vmem:[%s5977 + $0x40] sm:$0xf]
      %v7543 = vld [vmem:[%s5977 + $0x48] sm:$0xf]
      %v7544 = vld [vmem:[%s5977 + $0x4c] sm:$0xf]
      %v7545 = vld [vmem:[%s5977 + $0x54] sm:$0xf]
      %v7546 = vld [vmem:[%s5977 + $0x58] sm:$0xf]
      %v7547 = vld [vmem:[%s5977 + $0x60] sm:$0xf]
      %v7548 = vld [vmem:[%s5977 + $0x64] sm:$0xf]
      %v7549 = vld [vmem:[%s5977 + $0x6c] sm:$0xf]
      %v7550 = vld [vmem:[%s5977 + $0x70] sm:$0xf]
      %v7551 = vld [vmem:[%s5977 + $0x78] sm:$0xf]
      %v7552 = vld [vmem:[%s5977 + $0x7c] sm:$0xf]
      %v7553 = vld [vmem:[%s5977 + $0x84] sm:$0xf]
      %v7554 = vld [vmem:[%s5977 + $0x88] sm:$0xf]
      %v7555 = vld [vmem:[%s5977 + $0x90] sm:$0xf]
      %v7556 = vld [vmem:[%s5977 + $0x94] sm:$0xf]
      %v7557 = vld [vmem:[%s5977 + $0x9c] sm:$0xf]
      %v7558 = vld [vmem:[%s5977 + $0xa0] sm:$0xf]
      %v7559 = vld [vmem:[%s5977 + $0xa8] sm:$0xf]
      %v7560 = vld [vmem:[%s5977 + $0xac] sm:$0xf]
      %v7561 = vld [vmem:[%s5977 + $0xb4] sm:$0xf]
      %v7562 = vld [vmem:[%s5977 + $0xb8] sm:$0xf]
      %s7563 = scalar_lea.vmem %s2, 6
      %v7564 = vld [vmem:[%s7563] sm:$0x3]
      %v7597 = vunpack.c.l.b16 %v7531
      %v7598 = vunpack.c.l.b16 %v7532
      %v7599 = vunpack.c.l.b16 %v7533
      %v7600 = vunpack.c.l.b16 %v7534
      %v7601 = vunpack.c.l.b16 %v7535
      %v7602 = vunpack.c.l.b16 %v7536
      %v7603 = vunpack.c.l.b16 %v7537
      %v7604 = vunpack.c.l.b16 %v7538
      %v7605 = vunpack.c.l.b16 %v7539
      %v7606 = vunpack.c.l.b16 %v7540
      %v7607 = vunpack.c.l.b16 %v7541
      %v7608 = vunpack.c.l.b16 %v7542
      %v7609 = vunpack.c.l.b16 %v7543
      %v7610 = vunpack.c.l.b16 %v7544
      %v7611 = vunpack.c.l.b16 %v7545
      %v7612 = vunpack.c.l.b16 %v7546
      %v7613 = vunpack.c.l.b16 %v7547
      %v7614 = vunpack.c.l.b16 %v7548
      %v7615 = vunpack.c.l.b16 %v7549
      %v7616 = vunpack.c.l.b16 %v7550
      %v7617 = vunpack.c.l.b16 %v7551
      %v7618 = vunpack.c.l.b16 %v7552
      %v7619 = vunpack.c.l.b16 %v7553
      %v7620 = vunpack.c.l.b16 %v7554
      %v7621 = vunpack.c.l.b16 %v7555
      %v7622 = vunpack.c.l.b16 %v7556
      %v7623 = vunpack.c.l.b16 %v7557
      %v7624 = vunpack.c.l.b16 %v7558
      %v7625 = vunpack.c.l.b16 %v7559
      %v7626 = vunpack.c.l.b16 %v7560
      %v7627 = vunpack.c.l.b16 %v7561
      %v7628 = vunpack.c.l.b16 %v7562
      %v7629 = vpack.c.b16 %v7598, %v7597
      %v7630 = vpack.c.b16 %v7600, %v7599
      %v7631 = vpack.c.b16 %v7602, %v7601
      %v7632 = vpack.c.b16 %v7604, %v7603
      %v7633 = vpack.c.b16 %v7606, %v7605
      %v7634 = vpack.c.b16 %v7608, %v7607
      %v7635 = vpack.c.b16 %v7610, %v7609
      %v7636 = vpack.c.b16 %v7612, %v7611
      %v7637 = vpack.c.b16 %v7614, %v7613
      %v7638 = vpack.c.b16 %v7616, %v7615
      %v7639 = vpack.c.b16 %v7618, %v7617
      %v7640 = vpack.c.b16 %v7620, %v7619
      %v7641 = vpack.c.b16 %v7622, %v7621
      %v7642 = vpack.c.b16 %v7624, %v7623
      %v7643 = vpack.c.b16 %v7626, %v7625
      %v7644 = vpack.c.b16 %v7628, %v7627
      %v7646 = vsel %vm1418, %v7629, 0
      %v7649 = vsel %vm1418, %v7630, 0
      %v7652 = vsel %vm1418, %v7631, 0
      %v7655 = vsel %vm1418, %v7632, 0
      %v7658 = vsel %vm1418, %v7633, 0
      %v7661 = vsel %vm1418, %v7634, 0
      %v7664 = vsel %vm1418, %v7635, 0
      %v7667 = vsel %vm1418, %v7636, 0
      %v7670 = vsel %vm1418, %v7637, 0
      %v7673 = vsel %vm1418, %v7638, 0
      %v7676 = vsel %vm1418, %v7639, 0
      %v7679 = vsel %vm1418, %v7640, 0
      %v7682 = vsel %vm1418, %v7641, 0
      %v7685 = vsel %vm1418, %v7642, 0
      %v7688 = vsel %vm1418, %v7643, 0
      %v7691 = vsel %vm1418, %v7644, 0
      %v7694 = vsel %vm1467, %v7564, 0
      %7696 = vmatprep.subr.bf16.mxu0 0
      %7697 = vmatpush1.bf16.msra.mxu0 %v7694
      %7698 = vmatprep.subr.bf16.mxu0 0
      %7699 = vmatpush1.bf16.msra.mxu0 0
      %7700 = vmatprep.subr.bf16.mxu0 0
      %7701 = vmatpush1.bf16.msra.mxu0 0
      %7702 = vmatprep.subr.bf16.mxu0 0
      %7703 = vmatpush1.bf16.msra.mxu0 0
      %7704 = vmatprep.subr.bf16.mxu0 0
      %7705 = vmatpush1.bf16.msra.mxu0 0
      %7706 = vmatprep.subr.bf16.mxu0 0
      %7707 = vmatpush1.bf16.msra.mxu0 0
      %7708 = vmatprep.subr.bf16.mxu0 0
      %7709 = vmatpush1.bf16.msra.mxu0 0
      %7710 = vmatprep.subr.bf16.mxu0 0
      %7711 = vmatpush1.bf16.msra.mxu0 0
      %7712 = vmatprep.subr.bf16.mxu0 0
      %7713 = vmatpush1.bf16.msra.mxu0 0
      %7714 = vmatprep.subr.bf16.mxu0 0
      %7715 = vmatpush1.bf16.msra.mxu0 0
      %7716 = vmatprep.subr.bf16.mxu0 0
      %7717 = vmatpush1.bf16.msra.mxu0 0
      %7718 = vmatprep.subr.bf16.mxu0 0
      %7719 = vmatpush1.bf16.msra.mxu0 0
      %7720 = vmatprep.subr.bf16.mxu0 0
      %7721 = vmatpush1.bf16.msra.mxu0 0
      %7722 = vmatprep.subr.bf16.mxu0 0
      %7723 = vmatpush1.bf16.msra.mxu0 0
      %7724 = vmatprep.subr.bf16.mxu0 0
      %7725 = vmatpush1.bf16.msra.mxu0 0
      %7726 = vmatprep.subr.bf16.mxu0 0
      %7727 = vmatpush1.bf16.msra.mxu0 0
      %7728 = vmatprep.mubr.bf16.mxu0 0
      %7729 = vmatmul.mubr.bf16.gmra.mrb[0].mxu0 %v7646
      %v7730 = vpop.f32.mrb[0].mxu0
      %v7731 = vadd.f32 0.0, %v7730
      %v7732 = vpop.f32.mrb[0].mxu0
      %v7733 = vpop.f32.mrb[0].mxu0
      %v7734 = vadd.f32 0.0, %v7733
      %v7735 = vpop.f32.mrb[0].mxu0
      %7736 = vmatprep.mubr.bf16.mxu0 0
      %7737 = vmatmul.mubr.bf16.gmra.mrb[0].mxu0 %v7649
      %v7738 = vpop.f32.mrb[0].mxu0
      %v7739 = vadd.f32 0.0, %v7738
      %v7740 = vpop.f32.mrb[0].mxu0
      %v7741 = vpop.f32.mrb[0].mxu0
      %v7742 = vadd.f32 0.0, %v7741
      %v7743 = vpop.f32.mrb[0].mxu0
      %7744 = vmatprep.mubr.bf16.mxu0 0
      %7745 = vmatmul.mubr.bf16.gmra.mrb[0].mxu0 %v7652
      %v7746 = vpop.f32.mrb[0].mxu0
      %v7747 = vadd.f32 0.0, %v7746
      %v7748 = vpop.f32.mrb[0].mxu0
      %v7749 = vpop.f32.mrb[0].mxu0
      %v7750 = vadd.f32 0.0, %v7749
      %v7751 = vpop.f32.mrb[0].mxu0
      %7752 = vmatprep.mubr.bf16.mxu0 0
      %7753 = vmatmul.mubr.bf16.gmra.mrb[0].mxu0 %v7655
      %v7754 = vpop.f32.mrb[0].mxu0
      %v7755 = vadd.f32 0.0, %v7754
      %v7756 = vpop.f32.mrb[0].mxu0
      %v7757 = vpop.f32.mrb[0].mxu0
      %v7758 = vadd.f32 0.0, %v7757
      %v7759 = vpop.f32.mrb[0].mxu0
      %7760 = vmatprep.mubr.bf16.mxu0 0
      %7761 = vmatmul.mubr.bf16.gmra.mrb[0].mxu0 %v7658
      %v7762 = vpop.f32.mrb[0].mxu0
      %v7763 = vadd.f32 0.0, %v7762
      %v7764 = vpop.f32.mrb[0].mxu0
      %v7765 = vpop.f32.mrb[0].mxu0
      %v7766 = vadd.f32 0.0, %v7765
      %v7767 = vpop.f32.mrb[0].mxu0
      %7768 = vmatprep.mubr.bf16.mxu0 0
      %7769 = vmatmul.mubr.bf16.gmra.mrb[0].mxu0 %v7661
      %v7770 = vpop.f32.mrb[0].mxu0
      %v7771 = vadd.f32 0.0, %v7770
      %v7772 = vpop.f32.mrb[0].mxu0
      %v7773 = vpop.f32.mrb[0].mxu0
      %v7774 = vadd.f32 0.0, %v7773
      %v7775 = vpop.f32.mrb[0].mxu0
      %7776 = vmatprep.mubr.bf16.mxu0 0
      %7777 = vmatmul.mubr.bf16.gmra.mrb[0].mxu0 %v7664
      %v7778 = vpop.f32.mrb[0].mxu0
      %v7779 = vadd.f32 0.0, %v7778
      %v7780 = vpop.f32.mrb[0].mxu0
      %v7781 = vpop.f32.mrb[0].mxu0
      %v7782 = vadd.f32 0.0, %v7781
      %v7783 = vpop.f32.mrb[0].mxu0
      %7784 = vmatprep.mubr.bf16.mxu0 0
      %7785 = vmatmul.mubr.bf16.gmra.mrb[0].mxu0 %v7667
      %v7786 = vpop.f32.mrb[0].mxu0
      %v7787 = vadd.f32 0.0, %v7786
      %v7788 = vpop.f32.mrb[0].mxu0
      %v7789 = vpop.f32.mrb[0].mxu0
      %v7790 = vadd.f32 0.0, %v7789
      %v7791 = vpop.f32.mrb[0].mxu0
      %7792 = vmatprep.mubr.bf16.mxu0 0
      %7793 = vmatmul.mubr.bf16.gmra.mrb[0].mxu0 %v7670
      %v7794 = vpop.f32.mrb[0].mxu0
      %v7795 = vadd.f32 0.0, %v7794
      %v7796 = vpop.f32.mrb[0].mxu0
      %v7797 = vpop.f32.mrb[0].mxu0
      %v7798 = vadd.f32 0.0, %v7797
      %v7799 = vpop.f32.mrb[0].mxu0
      %7800 = vmatprep.mubr.bf16.mxu0 0
      %7801 = vmatmul.mubr.bf16.gmra.mrb[0].mxu0 %v7673
      %v7802 = vpop.f32.mrb[0].mxu0
      %v7803 = vadd.f32 0.0, %v7802
      %v7804 = vpop.f32.mrb[0].mxu0
      %v7805 = vpop.f32.mrb[0].mxu0
      %v7806 = vadd.f32 0.0, %v7805
      %v7807 = vpop.f32.mrb[0].mxu0
      %7808 = vmatprep.mubr.bf16.mxu0 0
      %7809 = vmatmul.mubr.bf16.gmra.mrb[0].mxu0 %v7676
      %v7810 = vpop.f32.mrb[0].mxu0
      %v7811 = vadd.f32 0.0, %v7810
      %v7812 = vpop.f32.mrb[0].mxu0
      %v7813 = vpop.f32.mrb[0].mxu0
      %v7814 = vadd.f32 0.0, %v7813
      %v7815 = vpop.f32.mrb[0].mxu0
      %7816 = vmatprep.mubr.bf16.mxu0 0
      %7817 = vmatmul.mubr.bf16.gmra.mrb[0].mxu0 %v7679
      %v7818 = vpop.f32.mrb[0].mxu0
      %v7819 = vadd.f32 0.0, %v7818
      %v7820 = vpop.f32.mrb[0].mxu0
      %v7821 = vpop.f32.mrb[0].mxu0
      %v7822 = vadd.f32 0.0, %v7821
      %v7823 = vpop.f32.mrb[0].mxu0
      %7824 = vmatprep.mubr.bf16.mxu0 0
      %7825 = vmatmul.mubr.bf16.gmra.mrb[0].mxu0 %v7682
      %v7826 = vpop.f32.mrb[0].mxu0
      %v7827 = vadd.f32 0.0, %v7826
      %v7828 = vpop.f32.mrb[0].mxu0
      %v7829 = vpop.f32.mrb[0].mxu0
      %v7830 = vadd.f32 0.0, %v7829
      %v7831 = vpop.f32.mrb[0].mxu0
      %7832 = vmatprep.mubr.bf16.mxu0 0
      %7833 = vmatmul.mubr.bf16.gmra.mrb[0].mxu0 %v7685
      %v7834 = vpop.f32.mrb[0].mxu0
      %v7835 = vadd.f32 0.0, %v7834
      %v7836 = vpop.f32.mrb[0].mxu0
      %v7837 = vpop.f32.mrb[0].mxu0
      %v7838 = vadd.f32 0.0, %v7837
      %v7839 = vpop.f32.mrb[0].mxu0
      %7840 = vmatprep.mubr.bf16.mxu0 0
      %7841 = vmatmul.mubr.bf16.gmra.mrb[0].mxu0 %v7688
      %v7842 = vpop.f32.mrb[0].mxu0
      %v7843 = vadd.f32 0.0, %v7842
      %v7844 = vpop.f32.mrb[0].mxu0
      %v7845 = vpop.f32.mrb[0].mxu0
      %v7846 = vadd.f32 0.0, %v7845
      %v7847 = vpop.f32.mrb[0].mxu0
      %7848 = vmatprep.mubr.bf16.mxu0 0
      %7849 = vmatmul.mubr.bf16.gmra.mrb[0].mxu0 %v7691
      %v7850 = vpop.f32.mrb[0].mxu0
      %v7851 = vadd.f32 0.0, %v7850
      %v7852 = vpop.f32.mrb[0].mxu0
      %v7853 = vpop.f32.mrb[0].mxu0
      %v7854 = vadd.f32 0.0, %v7853
      %v7855 = vpop.f32.mrb[0].mxu0
      %7856 = vdwg.mxu0
      %v7857 = vadd.f32 %v7499, %v7731
      %v7858 = vadd.f32 %v7500, %v7734
      %v7859 = vadd.f32 %v7501, %v7739
      %v7860 = vadd.f32 %v7502, %v7742
      %v7861 = vadd.f32 %v7503, %v7747
      %v7862 = vadd.f32 %v7504, %v7750
      %v7863 = vadd.f32 %v7505, %v7755
      %v7864 = vadd.f32 %v7506, %v7758
      %v7865 = vadd.f32 %v7507, %v7763
      %v7866 = vadd.f32 %v7508, %v7766
      %v7867 = vadd.f32 %v7509, %v7771
      %v7868 = vadd.f32 %v7510, %v7774
      %v7869 = vadd.f32 %v7511, %v7779
      %v7870 = vadd.f32 %v7512, %v7782
      %v7871 = vadd.f32 %v7513, %v7787
      %v7872 = vadd.f32 %v7514, %v7790
      %v7873 = vadd.f32 %v7515, %v7795
      %v7874 = vadd.f32 %v7516, %v7798
      %v7875 = vadd.f32 %v7517, %v7803
      %v7876 = vadd.f32 %v7518, %v7806
      %v7877 = vadd.f32 %v7519, %v7811
      %v7878 = vadd.f32 %v7520, %v7814
      %v7879 = vadd.f32 %v7521, %v7819
      %v7880 = vadd.f32 %v7522, %v7822
      %v7881 = vadd.f32 %v7523, %v7827
      %v7882 = vadd.f32 %v7524, %v7830
      %v7883 = vadd.f32 %v7525, %v7835
      %v7884 = vadd.f32 %v7526, %v7838
      %v7885 = vadd.f32 %v7527, %v7843
      %v7886 = vadd.f32 %v7528, %v7846
      %v7887 = vadd.f32 %v7529, %v7851
      %v7888 = vadd.f32 %v7530, %v7854
      %v7889 = vld [vmem:[%s5977] sm:$0xf]
      %v7890 = vld [vmem:[%s5977 + $0x4] sm:$0xf]
      %v7891 = vld [vmem:[%s5977 + $0x8] sm:$0x1]
      %v7892 = vld [vmem:[%s5977 + $0xc] sm:$0xf]
      %v7893 = vld [vmem:[%s5977 + $0x10] sm:$0xf]
      %v7894 = vld [vmem:[%s5977 + $0x14] sm:$0x1]
      %v7895 = vld [vmem:[%s5977 + $0x18] sm:$0xf]
      %v7896 = vld [vmem:[%s5977 + $0x1c] sm:$0xf]
      %v7897 = vld [vmem:[%s5977 + $0x20] sm:$0x1]
      %v7898 = vld [vmem:[%s5977 + $0x24] sm:$0xf]
      %v7899 = vld [vmem:[%s5977 + $0x28] sm:$0xf]
      %v7900 = vld [vmem:[%s5977 + $0x2c] sm:$0x1]
      %v7901 = vld [vmem:[%s5977 + $0x30] sm:$0xf]
      %v7902 = vld [vmem:[%s5977 + $0x34] sm:$0xf]
      %v7903 = vld [vmem:[%s5977 + $0x38] sm:$0x1]
      %v7904 = vld [vmem:[%s5977 + $0x3c] sm:$0xf]
      %v7905 = vld [vmem:[%s5977 + $0x40] sm:$0xf]
      %v7906 = vld [vmem:[%s5977 + $0x44] sm:$0x1]
      %v7907 = vld [vmem:[%s5977 + $0x48] sm:$0xf]
      %v7908 = vld [vmem:[%s5977 + $0x4c] sm:$0xf]
      %v7909 = vld [vmem:[%s5977 + $0x50] sm:$0x1]
      %v7910 = vld [vmem:[%s5977 + $0x54] sm:$0xf]
      %v7911 = vld [vmem:[%s5977 + $0x58] sm:$0xf]
      %v7912 = vld [vmem:[%s5977 + $0x5c] sm:$0x1]
      %v7913 = vld [vmem:[%s5977 + $0x60] sm:$0xf]
      %v7914 = vld [vmem:[%s5977 + $0x64] sm:$0xf]
      %v7915 = vld [vmem:[%s5977 + $0x68] sm:$0x1]
      %v7916 = vld [vmem:[%s5977 + $0x6c] sm:$0xf]
      %v7917 = vld [vmem:[%s5977 + $0x70] sm:$0xf]
      %v7918 = vld [vmem:[%s5977 + $0x74] sm:$0x1]
      %v7919 = vld [vmem:[%s5977 + $0x78] sm:$0xf]
      %v7920 = vld [vmem:[%s5977 + $0x7c] sm:$0xf]
      %v7921 = vld [vmem:[%s5977 + $0x80] sm:$0x1]
      %v7922 = vld [vmem:[%s5977 + $0x84] sm:$0xf]
      %v7923 = vld [vmem:[%s5977 + $0x88] sm:$0xf]
      %v7924 = vld [vmem:[%s5977 + $0x8c] sm:$0x1]
      %v7925 = vld [vmem:[%s5977 + $0x90] sm:$0xf]
      %v7926 = vld [vmem:[%s5977 + $0x94] sm:$0xf]
      %v7927 = vld [vmem:[%s5977 + $0x98] sm:$0x1]
      %v7928 = vld [vmem:[%s5977 + $0x9c] sm:$0xf]
      %v7929 = vld [vmem:[%s5977 + $0xa0] sm:$0xf]
      %v7930 = vld [vmem:[%s5977 + $0xa4] sm:$0x1]
      %v7931 = vld [vmem:[%s5977 + $0xa8] sm:$0xf]
      %v7932 = vld [vmem:[%s5977 + $0xac] sm:$0xf]
      %v7933 = vld [vmem:[%s5977 + $0xb0] sm:$0x1]
      %v7934 = vld [vmem:[%s5977 + $0xb4] sm:$0xf]
      %v7935 = vld [vmem:[%s5977 + $0xb8] sm:$0xf]
      %v7936 = vld [vmem:[%s5977 + $0xbc] sm:$0x1]
      %s7937 = scalar_lea.vmem %s2, 8
      %v7938 = vld [vmem:[%s7937] sm:$0x3]
      %v7940 = vshrl.u32 %v7889, 16
      %v7942 = vrot.slane %v7940, 4
      %v7943 = vshll.u32 %v7889, 16
      %v7945 = vrot.slane %v7943, 5
      %v7946 = vor.u32 %v7942, %v7945
      %v7947 = vrot.slane %v7946, 4
      %v7949 = vshll.u32 %v7890, 16
      %v7951 = vrot.slane %v7949, 5
      %v7952 = vsel %vm985, %v7947, %v7951
      %v7953 = vshrl.u32 %v7890, 16
      %v7955 = vrot.slane %v7953, 4
      %v7956 = vor.u32 %v7955, %v7951
      %v7957 = vrot.slane %v7956, 4
      %v7959 = vshll.u32 %v7891, 16
      %v7961 = vrot.slane %v7959, 5
      %v7962 = vsel %vm985, %v7957, %v7961
      %v7964 = vshrl.u32 %v7892, 16
      %v7966 = vrot.slane %v7964, 4
      %v7967 = vshll.u32 %v7892, 16
      %v7969 = vrot.slane %v7967, 5
      %v7970 = vor.u32 %v7966, %v7969
      %v7971 = vrot.slane %v7970, 4
      %v7973 = vshll.u32 %v7893, 16
      %v7975 = vrot.slane %v7973, 5
      %v7976 = vsel %vm985, %v7971, %v7975
      %v7977 = vshrl.u32 %v7893, 16
      %v7979 = vrot.slane %v7977, 4
      %v7980 = vor.u32 %v7979, %v7975
      %v7981 = vrot.slane %v7980, 4
      %v7983 = vshll.u32 %v7894, 16
      %v7985 = vrot.slane %v7983, 5
      %v7986 = vsel %vm985, %v7981, %v7985
      %v7988 = vshrl.u32 %v7895, 16
      %v7990 = vrot.slane %v7988, 4
      %v7991 = vshll.u32 %v7895, 16
      %v7993 = vrot.slane %v7991, 5
      %v7994 = vor.u32 %v7990, %v7993
      %v7995 = vrot.slane %v7994, 4
      %v7997 = vshll.u32 %v7896, 16
      %v7999 = vrot.slane %v7997, 5
      %v8000 = vsel %vm985, %v7995, %v7999
      %v8001 = vshrl.u32 %v7896, 16
      %v8003 = vrot.slane %v8001, 4
      %v8004 = vor.u32 %v8003, %v7999
      %v8005 = vrot.slane %v8004, 4
      %v8007 = vshll.u32 %v7897, 16
      %v8009 = vrot.slane %v8007, 5
      %v8010 = vsel %vm985, %v8005, %v8009
      %v8012 = vshrl.u32 %v7898, 16
      %v8014 = vrot.slane %v8012, 4
      %v8015 = vshll.u32 %v7898, 16
      %v8017 = vrot.slane %v8015, 5
      %v8018 = vor.u32 %v8014, %v8017
      %v8019 = vrot.slane %v8018, 4
      %v8021 = vshll.u32 %v7899, 16
      %v8023 = vrot.slane %v8021, 5
      %v8024 = vsel %vm985, %v8019, %v8023
      %v8025 = vshrl.u32 %v7899, 16
      %v8027 = vrot.slane %v8025, 4
      %v8028 = vor.u32 %v8027, %v8023
      %v8029 = vrot.slane %v8028, 4
      %v8031 = vshll.u32 %v7900, 16
      %v8033 = vrot.slane %v8031, 5
      %v8034 = vsel %vm985, %v8029, %v8033
      %v8036 = vshrl.u32 %v7901, 16
      %v8038 = vrot.slane %v8036, 4
      %v8039 = vshll.u32 %v7901, 16
      %v8041 = vrot.slane %v8039, 5
      %v8042 = vor.u32 %v8038, %v8041
      %v8043 = vrot.slane %v8042, 4
      %v8045 = vshll.u32 %v7902, 16
      %v8047 = vrot.slane %v8045, 5
      %v8048 = vsel %vm985, %v8043, %v8047
      %v8049 = vshrl.u32 %v7902, 16
      %v8051 = vrot.slane %v8049, 4
      %v8052 = vor.u32 %v8051, %v8047
      %v8053 = vrot.slane %v8052, 4
      %v8055 = vshll.u32 %v7903, 16
      %v8057 = vrot.slane %v8055, 5
      %v8058 = vsel %vm985, %v8053, %v8057
      %v8060 = vshrl.u32 %v7904, 16
      %v8062 = vrot.slane %v8060, 4
      %v8063 = vshll.u32 %v7904, 16
      %v8065 = vrot.slane %v8063, 5
      %v8066 = vor.u32 %v8062, %v8065
      %v8067 = vrot.slane %v8066, 4
      %v8069 = vshll.u32 %v7905, 16
      %v8071 = vrot.slane %v8069, 5
      %v8072 = vsel %vm985, %v8067, %v8071
      %v8073 = vshrl.u32 %v7905, 16
      %v8075 = vrot.slane %v8073, 4
      %v8076 = vor.u32 %v8075, %v8071
      %v8077 = vrot.slane %v8076, 4
      %v8079 = vshll.u32 %v7906, 16
      %v8081 = vrot.slane %v8079, 5
      %v8082 = vsel %vm985, %v8077, %v8081
      %v8084 = vshrl.u32 %v7907, 16
      %v8086 = vrot.slane %v8084, 4
      %v8087 = vshll.u32 %v7907, 16
      %v8089 = vrot.slane %v8087, 5
      %v8090 = vor.u32 %v8086, %v8089
      %v8091 = vrot.slane %v8090, 4
      %v8093 = vshll.u32 %v7908, 16
      %v8095 = vrot.slane %v8093, 5
      %v8096 = vsel %vm985, %v8091, %v8095
      %v8097 = vshrl.u32 %v7908, 16
      %v8099 = vrot.slane %v8097, 4
      %v8100 = vor.u32 %v8099, %v8095
      %v8101 = vrot.slane %v8100, 4
      %v8103 = vshll.u32 %v7909, 16
      %v8105 = vrot.slane %v8103, 5
      %v8106 = vsel %vm985, %v8101, %v8105
      %v8108 = vshrl.u32 %v7910, 16
      %v8110 = vrot.slane %v8108, 4
      %v8111 = vshll.u32 %v7910, 16
      %v8113 = vrot.slane %v8111, 5
      %v8114 = vor.u32 %v8110, %v8113
      %v8115 = vrot.slane %v8114, 4
      %v8117 = vshll.u32 %v7911, 16
      %v8119 = vrot.slane %v8117, 5
      %v8120 = vsel %vm985, %v8115, %v8119
      %v8121 = vshrl.u32 %v7911, 16
      %v8123 = vrot.slane %v8121, 4
      %v8124 = vor.u32 %v8123, %v8119
      %v8125 = vrot.slane %v8124, 4
      %v8127 = vshll.u32 %v7912, 16
      %v8129 = vrot.slane %v8127, 5
      %v8130 = vsel %vm985, %v8125, %v8129
      %v8132 = vshrl.u32 %v7913, 16
      %v8134 = vrot.slane %v8132, 4
      %v8135 = vshll.u32 %v7913, 16
      %v8137 = vrot.slane %v8135, 5
      %v8138 = vor.u32 %v8134, %v8137
      %v8139 = vrot.slane %v8138, 4
      %v8141 = vshll.u32 %v7914, 16
      %v8143 = vrot.slane %v8141, 5
      %v8144 = vsel %vm985, %v8139, %v8143
      %v8145 = vshrl.u32 %v7914, 16
      %v8147 = vrot.slane %v8145, 4
      %v8148 = vor.u32 %v8147, %v8143
      %v8149 = vrot.slane %v8148, 4
      %v8151 = vshll.u32 %v7915, 16
      %v8153 = vrot.slane %v8151, 5
      %v8154 = vsel %vm985, %v8149, %v8153
      %v8156 = vshrl.u32 %v7916, 16
      %v8158 = vrot.slane %v8156, 4
      %v8159 = vshll.u32 %v7916, 16
      %v8161 = vrot.slane %v8159, 5
      %v8162 = vor.u32 %v8158, %v8161
      %v8163 = vrot.slane %v8162, 4
      %v8165 = vshll.u32 %v7917, 16
      %v8167 = vrot.slane %v8165, 5
      %v8168 = vsel %vm985, %v8163, %v8167
      %v8169 = vshrl.u32 %v7917, 16
      %v8171 = vrot.slane %v8169, 4
      %v8172 = vor.u32 %v8171, %v8167
      %v8173 = vrot.slane %v8172, 4
      %v8175 = vshll.u32 %v7918, 16
      %v8177 = vrot.slane %v8175, 5
      %v8178 = vsel %vm985, %v8173, %v8177
      %v8180 = vshrl.u32 %v7919, 16
      %v8182 = vrot.slane %v8180, 4
      %v8183 = vshll.u32 %v7919, 16
      %v8185 = vrot.slane %v8183, 5
      %v8186 = vor.u32 %v8182, %v8185
      %v8187 = vrot.slane %v8186, 4
      %v8189 = vshll.u32 %v7920, 16
      %v8191 = vrot.slane %v8189, 5
      %v8192 = vsel %vm985, %v8187, %v8191
      %v8193 = vshrl.u32 %v7920, 16
      %v8195 = vrot.slane %v8193, 4
      %v8196 = vor.u32 %v8195, %v8191
      %v8197 = vrot.slane %v8196, 4
      %v8199 = vshll.u32 %v7921, 16
      %v8201 = vrot.slane %v8199, 5
      %v8202 = vsel %vm985, %v8197, %v8201
      %v8204 = vshrl.u32 %v7922, 16
      %v8206 = vrot.slane %v8204, 4
      %v8207 = vshll.u32 %v7922, 16
      %v8209 = vrot.slane %v8207, 5
      %v8210 = vor.u32 %v8206, %v8209
      %v8211 = vrot.slane %v8210, 4
      %v8213 = vshll.u32 %v7923, 16
      %v8215 = vrot.slane %v8213, 5
      %v8216 = vsel %vm985, %v8211, %v8215
      %v8217 = vshrl.u32 %v7923, 16
      %v8219 = vrot.slane %v8217, 4
      %v8220 = vor.u32 %v8219, %v8215
      %v8221 = vrot.slane %v8220, 4
      %v8223 = vshll.u32 %v7924, 16
      %v8225 = vrot.slane %v8223, 5
      %v8226 = vsel %vm985, %v8221, %v8225
      %v8228 = vshrl.u32 %v7925, 16
      %v8230 = vrot.slane %v8228, 4
      %v8231 = vshll.u32 %v7925, 16
      %v8233 = vrot.slane %v8231, 5
      %v8234 = vor.u32 %v8230, %v8233
      %v8235 = vrot.slane %v8234, 4
      %v8237 = vshll.u32 %v7926, 16
      %v8239 = vrot.slane %v8237, 5
      %v8240 = vsel %vm985, %v8235, %v8239
      %v8241 = vshrl.u32 %v7926, 16
      %v8243 = vrot.slane %v8241, 4
      %v8244 = vor.u32 %v8243, %v8239
      %v8245 = vrot.slane %v8244, 4
      %v8247 = vshll.u32 %v7927, 16
      %v8249 = vrot.slane %v8247, 5
      %v8250 = vsel %vm985, %v8245, %v8249
      %v8252 = vshrl.u32 %v7928, 16
      %v8254 = vrot.slane %v8252, 4
      %v8255 = vshll.u32 %v7928, 16
      %v8257 = vrot.slane %v8255, 5
      %v8258 = vor.u32 %v8254, %v8257
      %v8259 = vrot.slane %v8258, 4
      %v8261 = vshll.u32 %v7929, 16
      %v8263 = vrot.slane %v8261, 5
      %v8264 = vsel %vm985, %v8259, %v8263
      %v8265 = vshrl.u32 %v7929, 16
      %v8267 = vrot.slane %v8265, 4
      %v8268 = vor.u32 %v8267, %v8263
      %v8269 = vrot.slane %v8268, 4
      %v8271 = vshll.u32 %v7930, 16
      %v8273 = vrot.slane %v8271, 5
      %v8274 = vsel %vm985, %v8269, %v8273
      %v8276 = vshrl.u32 %v7931, 16
      %v8278 = vrot.slane %v8276, 4
      %v8279 = vshll.u32 %v7931, 16
      %v8281 = vrot.slane %v8279, 5
      %v8282 = vor.u32 %v8278, %v8281
      %v8283 = vrot.slane %v8282, 4
      %v8285 = vshll.u32 %v7932, 16
      %v8287 = vrot.slane %v8285, 5
      %v8288 = vsel %vm985, %v8283, %v8287
      %v8289 = vshrl.u32 %v7932, 16
      %v8291 = vrot.slane %v8289, 4
      %v8292 = vor.u32 %v8291, %v8287
      %v8293 = vrot.slane %v8292, 4
      %v8295 = vshll.u32 %v7933, 16
      %v8297 = vrot.slane %v8295, 5
      %v8298 = vsel %vm985, %v8293, %v8297
      %v8300 = vshrl.u32 %v7934, 16
      %v8302 = vrot.slane %v8300, 4
      %v8303 = vshll.u32 %v7934, 16
      %v8305 = vrot.slane %v8303, 5
      %v8306 = vor.u32 %v8302, %v8305
      %v8307 = vrot.slane %v8306, 4
      %v8309 = vshll.u32 %v7935, 16
      %v8311 = vrot.slane %v8309, 5
      %v8312 = vsel %vm985, %v8307, %v8311
      %v8313 = vshrl.u32 %v7935, 16
      %v8315 = vrot.slane %v8313, 4
      %v8316 = vor.u32 %v8315, %v8311
      %v8317 = vrot.slane %v8316, 4
      %v8319 = vshll.u32 %v7936, 16
      %v8321 = vrot.slane %v8319, 5
      %v8322 = vsel %vm985, %v8317, %v8321
      %v8323 = vunpack.c.l.b16 %v7952
      %v8324 = vunpack.c.l.b16 %v7962
      %v8325 = vunpack.c.l.b16 %v7976
      %v8326 = vunpack.c.l.b16 %v7986
      %v8327 = vunpack.c.l.b16 %v8000
      %v8328 = vunpack.c.l.b16 %v8010
      %v8329 = vunpack.c.l.b16 %v8024
      %v8330 = vunpack.c.l.b16 %v8034
      %v8331 = vunpack.c.l.b16 %v8048
      %v8332 = vunpack.c.l.b16 %v8058
      %v8333 = vunpack.c.l.b16 %v8072
      %v8334 = vunpack.c.l.b16 %v8082
      %v8335 = vunpack.c.l.b16 %v8096
      %v8336 = vunpack.c.l.b16 %v8106
      %v8337 = vunpack.c.l.b16 %v8120
      %v8338 = vunpack.c.l.b16 %v8130
      %v8339 = vunpack.c.l.b16 %v8144
      %v8340 = vunpack.c.l.b16 %v8154
      %v8341 = vunpack.c.l.b16 %v8168
      %v8342 = vunpack.c.l.b16 %v8178
      %v8343 = vunpack.c.l.b16 %v8192
      %v8344 = vunpack.c.l.b16 %v8202
      %v8345 = vunpack.c.l.b16 %v8216
      %v8346 = vunpack.c.l.b16 %v8226
      %v8347 = vunpack.c.l.b16 %v8240
      %v8348 = vunpack.c.l.b16 %v8250
      %v8349 = vunpack.c.l.b16 %v8264
      %v8350 = vunpack.c.l.b16 %v8274
      %v8351 = vunpack.c.l.b16 %v8288
      %v8352 = vunpack.c.l.b16 %v8298
      %v8353 = vunpack.c.l.b16 %v8312
      %v8354 = vunpack.c.l.b16 %v8322
      %v8355 = vpack.c.b16 %v8324, %v8323
      %v8356 = vpack.c.b16 %v8326, %v8325
      %v8357 = vpack.c.b16 %v8328, %v8327
      %v8358 = vpack.c.b16 %v8330, %v8329
      %v8359 = vpack.c.b16 %v8332, %v8331
      %v8360 = vpack.c.b16 %v8334, %v8333
      %v8361 = vpack.c.b16 %v8336, %v8335
      %v8362 = vpack.c.b16 %v8338, %v8337
      %v8363 = vpack.c.b16 %v8340, %v8339
      %v8364 = vpack.c.b16 %v8342, %v8341
      %v8365 = vpack.c.b16 %v8344, %v8343
      %v8366 = vpack.c.b16 %v8346, %v8345
      %v8367 = vpack.c.b16 %v8348, %v8347
      %v8368 = vpack.c.b16 %v8350, %v8349
      %v8369 = vpack.c.b16 %v8352, %v8351
      %v8370 = vpack.c.b16 %v8354, %v8353
      %v8372 = vsel %vm1418, %v8355, 0
      %v8375 = vsel %vm1418, %v8356, 0
      %v8378 = vsel %vm1418, %v8357, 0
      %v8381 = vsel %vm1418, %v8358, 0
      %v8384 = vsel %vm1418, %v8359, 0
      %v8387 = vsel %vm1418, %v8360, 0
      %v8390 = vsel %vm1418, %v8361, 0
      %v8393 = vsel %vm1418, %v8362, 0
      %v8396 = vsel %vm1418, %v8363, 0
      %v8399 = vsel %vm1418, %v8364, 0
      %v8402 = vsel %vm1418, %v8365, 0
      %v8405 = vsel %vm1418, %v8366, 0
      %v8408 = vsel %vm1418, %v8367, 0
      %v8411 = vsel %vm1418, %v8368, 0
      %v8414 = vsel %vm1418, %v8369, 0
      %v8417 = vsel %vm1418, %v8370, 0
      %v8420 = vsel %vm1467, %v7938, 0
      %8422 = vmatprep.subr.bf16.mxu0 0
      %8423 = vmatpush1.bf16.msra.mxu0 %v8420
      %8424 = vmatprep.subr.bf16.mxu0 0
      %8425 = vmatpush1.bf16.msra.mxu0 0
      %8426 = vmatprep.subr.bf16.mxu0 0
      %8427 = vmatpush1.bf16.msra.mxu0 0
      %8428 = vmatprep.subr.bf16.mxu0 0
      %8429 = vmatpush1.bf16.msra.mxu0 0
      %8430 = vmatprep.subr.bf16.mxu0 0
      %8431 = vmatpush1.bf16.msra.mxu0 0
      %8432 = vmatprep.subr.bf16.mxu0 0
      %8433 = vmatpush1.bf16.msra.mxu0 0
      %8434 = vmatprep.subr.bf16.mxu0 0
      %8435 = vmatpush1.bf16.msra.mxu0 0
      %8436 = vmatprep.subr.bf16.mxu0 0
      %8437 = vmatpush1.bf16.msra.mxu0 0
      %8438 = vmatprep.subr.bf16.mxu0 0
      %8439 = vmatpush1.bf16.msra.mxu0 0
      %8440 = vmatprep.subr.bf16.mxu0 0
      %8441 = vmatpush1.bf16.msra.mxu0 0
      %8442 = vmatprep.subr.bf16.mxu0 0
      %8443 = vmatpush1.bf16.msra.mxu0 0
      %8444 = vmatprep.subr.bf16.mxu0 0
      %8445 = vmatpush1.bf16.msra.mxu0 0
      %8446 = vmatprep.subr.bf16.mxu0 0
      %8447 = vmatpush1.bf16.msra.mxu0 0
      %8448 = vmatprep.subr.bf16.mxu0 0
      %8449 = vmatpush1.bf16.msra.mxu0 0
      %8450 = vmatprep.subr.bf16.mxu0 0
      %8451 = vmatpush1.bf16.msra.mxu0 0
      %8452 = vmatprep.subr.bf16.mxu0 0
      %8453 = vmatpush1.bf16.msra.mxu0 0
      %8454 = vmatprep.mubr.bf16.mxu0 0
      %8455 = vmatmul.mubr.bf16.gmra.mrb[0].mxu0 %v8372
      %v8456 = vpop.f32.mrb[0].mxu0
      %v8457 = vadd.f32 0.0, %v8456
      %v8458 = vpop.f32.mrb[0].mxu0
      %v8459 = vpop.f32.mrb[0].mxu0
      %v8460 = vadd.f32 0.0, %v8459
      %v8461 = vpop.f32.mrb[0].mxu0
      %8462 = vmatprep.mubr.bf16.mxu0 0
      %8463 = vmatmul.mubr.bf16.gmra.mrb[0].mxu0 %v8375
      %v8464 = vpop.f32.mrb[0].mxu0
      %v8465 = vadd.f32 0.0, %v8464
      %v8466 = vpop.f32.mrb[0].mxu0
      %v8467 = vpop.f32.mrb[0].mxu0
      %v8468 = vadd.f32 0.0, %v8467
      %v8469 = vpop.f32.mrb[0].mxu0
      %8470 = vmatprep.mubr.bf16.mxu0 0
      %8471 = vmatmul.mubr.bf16.gmra.mrb[0].mxu0 %v8378
      %v8472 = vpop.f32.mrb[0].mxu0
      %v8473 = vadd.f32 0.0, %v8472
      %v8474 = vpop.f32.mrb[0].mxu0
      %v8475 = vpop.f32.mrb[0].mxu0
      %v8476 = vadd.f32 0.0, %v8475
      %v8477 = vpop.f32.mrb[0].mxu0
      %8478 = vmatprep.mubr.bf16.mxu0 0
      %8479 = vmatmul.mubr.bf16.gmra.mrb[0].mxu0 %v8381
      %v8480 = vpop.f32.mrb[0].mxu0
      %v8481 = vadd.f32 0.0, %v8480
      %v8482 = vpop.f32.mrb[0].mxu0
      %v8483 = vpop.f32.mrb[0].mxu0
      %v8484 = vadd.f32 0.0, %v8483
      %v8485 = vpop.f32.mrb[0].mxu0
      %8486 = vmatprep.mubr.bf16.mxu0 0
      %8487 = vmatmul.mubr.bf16.gmra.mrb[0].mxu0 %v8384
      %v8488 = vpop.f32.mrb[0].mxu0
      %v8489 = vadd.f32 0.0, %v8488
      %v8490 = vpop.f32.mrb[0].mxu0
      %v8491 = vpop.f32.mrb[0].mxu0
      %v8492 = vadd.f32 0.0, %v8491
      %v8493 = vpop.f32.mrb[0].mxu0
      %8494 = vmatprep.mubr.bf16.mxu0 0
      %8495 = vmatmul.mubr.bf16.gmra.mrb[0].mxu0 %v8387
      %v8496 = vpop.f32.mrb[0].mxu0
      %v8497 = vadd.f32 0.0, %v8496
      %v8498 = vpop.f32.mrb[0].mxu0
      %v8499 = vpop.f32.mrb[0].mxu0
      %v8500 = vadd.f32 0.0, %v8499
      %v8501 = vpop.f32.mrb[0].mxu0
      %8502 = vmatprep.mubr.bf16.mxu0 0
      %8503 = vmatmul.mubr.bf16.gmra.mrb[0].mxu0 %v8390
      %v8504 = vpop.f32.mrb[0].mxu0
      %v8505 = vadd.f32 0.0, %v8504
      %v8506 = vpop.f32.mrb[0].mxu0
      %v8507 = vpop.f32.mrb[0].mxu0
      %v8508 = vadd.f32 0.0, %v8507
      %v8509 = vpop.f32.mrb[0].mxu0
      %8510 = vmatprep.mubr.bf16.mxu0 0
      %8511 = vmatmul.mubr.bf16.gmra.mrb[0].mxu0 %v8393
      %v8512 = vpop.f32.mrb[0].mxu0
      %v8513 = vadd.f32 0.0, %v8512
      %v8514 = vpop.f32.mrb[0].mxu0
      %v8515 = vpop.f32.mrb[0].mxu0
      %v8516 = vadd.f32 0.0, %v8515
      %v8517 = vpop.f32.mrb[0].mxu0
      %8518 = vmatprep.mubr.bf16.mxu0 0
      %8519 = vmatmul.mubr.bf16.gmra.mrb[0].mxu0 %v8396
      %v8520 = vpop.f32.mrb[0].mxu0
      %v8521 = vadd.f32 0.0, %v8520
      %v8522 = vpop.f32.mrb[0].mxu0
      %v8523 = vpop.f32.mrb[0].mxu0
      %v8524 = vadd.f32 0.0, %v8523
      %v8525 = vpop.f32.mrb[0].mxu0
      %8526 = vmatprep.mubr.bf16.mxu0 0
      %8527 = vmatmul.mubr.bf16.gmra.mrb[0].mxu0 %v8399
      %v8528 = vpop.f32.mrb[0].mxu0
      %v8529 = vadd.f32 0.0, %v8528
      %v8530 = vpop.f32.mrb[0].mxu0
      %v8531 = vpop.f32.mrb[0].mxu0
      %v8532 = vadd.f32 0.0, %v8531
      %v8533 = vpop.f32.mrb[0].mxu0
      %8534 = vmatprep.mubr.bf16.mxu0 0
      %8535 = vmatmul.mubr.bf16.gmra.mrb[0].mxu0 %v8402
      %v8536 = vpop.f32.mrb[0].mxu0
      %v8537 = vadd.f32 0.0, %v8536
      %v8538 = vpop.f32.mrb[0].mxu0
      %v8539 = vpop.f32.mrb[0].mxu0
      %v8540 = vadd.f32 0.0, %v8539
      %v8541 = vpop.f32.mrb[0].mxu0
      %8542 = vmatprep.mubr.bf16.mxu0 0
      %8543 = vmatmul.mubr.bf16.gmra.mrb[0].mxu0 %v8405
      %v8544 = vpop.f32.mrb[0].mxu0
      %v8545 = vadd.f32 0.0, %v8544
      %v8546 = vpop.f32.mrb[0].mxu0
      %v8547 = vpop.f32.mrb[0].mxu0
      %v8548 = vadd.f32 0.0, %v8547
      %v8549 = vpop.f32.mrb[0].mxu0
      %8550 = vmatprep.mubr.bf16.mxu0 0
      %8551 = vmatmul.mubr.bf16.gmra.mrb[0].mxu0 %v8408
      %v8552 = vpop.f32.mrb[0].mxu0
      %v8553 = vadd.f32 0.0, %v8552
      %v8554 = vpop.f32.mrb[0].mxu0
      %v8555 = vpop.f32.mrb[0].mxu0
      %v8556 = vadd.f32 0.0, %v8555
      %v8557 = vpop.f32.mrb[0].mxu0
      %8558 = vmatprep.mubr.bf16.mxu0 0
      %8559 = vmatmul.mubr.bf16.gmra.mrb[0].mxu0 %v8411
      %v8560 = vpop.f32.mrb[0].mxu0
      %v8561 = vadd.f32 0.0, %v8560
      %v8562 = vpop.f32.mrb[0].mxu0
      %v8563 = vpop.f32.mrb[0].mxu0
      %v8564 = vadd.f32 0.0, %v8563
      %v8565 = vpop.f32.mrb[0].mxu0
      %8566 = vmatprep.mubr.bf16.mxu0 0
      %8567 = vmatmul.mubr.bf16.gmra.mrb[0].mxu0 %v8414
      %v8568 = vpop.f32.mrb[0].mxu0
      %v8569 = vadd.f32 0.0, %v8568
      %v8570 = vpop.f32.mrb[0].mxu0
      %v8571 = vpop.f32.mrb[0].mxu0
      %v8572 = vadd.f32 0.0, %v8571
      %v8573 = vpop.f32.mrb[0].mxu0
      %8574 = vmatprep.mubr.bf16.mxu0 0
      %8575 = vmatmul.mubr.bf16.gmra.mrb[0].mxu0 %v8417
      %v8576 = vpop.f32.mrb[0].mxu0
      %v8577 = vadd.f32 0.0, %v8576
      %v8578 = vpop.f32.mrb[0].mxu0
      %v8579 = vpop.f32.mrb[0].mxu0
      %v8580 = vadd.f32 0.0, %v8579
      %v8581 = vpop.f32.mrb[0].mxu0
      %8582 = vdwg.mxu0
      %v8583 = vadd.f32 %v7857, %v8457
      %v8584 = vadd.f32 %v7858, %v8460
      %v8585 = vadd.f32 %v7859, %v8465
      %v8586 = vadd.f32 %v7860, %v8468
      %v8587 = vadd.f32 %v7861, %v8473
      %v8588 = vadd.f32 %v7862, %v8476
      %v8589 = vadd.f32 %v7863, %v8481
      %v8590 = vadd.f32 %v7864, %v8484
      %v8591 = vadd.f32 %v7865, %v8489
      %v8592 = vadd.f32 %v7866, %v8492
      %v8593 = vadd.f32 %v7867, %v8497
      %v8594 = vadd.f32 %v7868, %v8500
      %v8595 = vadd.f32 %v7869, %v8505
      %v8596 = vadd.f32 %v7870, %v8508
      %v8597 = vadd.f32 %v7871, %v8513
      %v8598 = vadd.f32 %v7872, %v8516
      %v8599 = vadd.f32 %v7873, %v8521
      %v8600 = vadd.f32 %v7874, %v8524
      %v8601 = vadd.f32 %v7875, %v8529
      %v8602 = vadd.f32 %v7876, %v8532
      %v8603 = vadd.f32 %v7877, %v8537
      %v8604 = vadd.f32 %v7878, %v8540
      %v8605 = vadd.f32 %v7879, %v8545
      %v8606 = vadd.f32 %v7880, %v8548
      %v8607 = vadd.f32 %v7881, %v8553
      %v8608 = vadd.f32 %v7882, %v8556
      %v8609 = vadd.f32 %v7883, %v8561
      %v8610 = vadd.f32 %v7884, %v8564
      %v8611 = vadd.f32 %v7885, %v8569
      %v8612 = vadd.f32 %v7886, %v8572
      %v8613 = vadd.f32 %v7887, %v8577
      %v8614 = vadd.f32 %v7888, %v8580
      %v8615 = vld [vmem:[%s5977] sm:$0xe]
      %v8616 = vld [vmem:[%s5977 + $0xc] sm:$0xe]
      %v8617 = vld [vmem:[%s5977 + $0x18] sm:$0xe]
      %v8618 = vld [vmem:[%s5977 + $0x24] sm:$0xe]
      %v8619 = vld [vmem:[%s5977 + $0x30] sm:$0xe]
      %v8620 = vld [vmem:[%s5977 + $0x3c] sm:$0xe]
      %v8621 = vld [vmem:[%s5977 + $0x48] sm:$0xe]
      %v8622 = vld [vmem:[%s5977 + $0x54] sm:$0xe]
      %v8623 = vld [vmem:[%s5977 + $0x60] sm:$0xe]
      %v8624 = vld [vmem:[%s5977 + $0x6c] sm:$0xe]
      %v8625 = vld [vmem:[%s5977 + $0x78] sm:$0xe]
      %v8626 = vld [vmem:[%s5977 + $0x84] sm:$0xe]
      %v8627 = vld [vmem:[%s5977 + $0x90] sm:$0xe]
      %v8628 = vld [vmem:[%s5977 + $0x9c] sm:$0xe]
      %v8629 = vld [vmem:[%s5977 + $0xa8] sm:$0xe]
      %v8630 = vld [vmem:[%s5977 + $0xb4] sm:$0xe]
      %s8631 = scalar_lea.vmem %s2, 10
      %v8632 = vld [vmem:[%s8631] sm:$0x3]
      %v8681 = vrot.slane %v8615, 5
      %v8682 = vrot.slane %v8681, 4
      %v8683 = vrot.slane %v7890, 5
      %v8684 = vsel %vm1976, %v8682, %v8683
      %v8685 = vrot.slane %v8683, 4
      %v8686 = vrot.slane %v7891, 5
      %v8687 = vsel %vm1976, %v8685, %v8686
      %v8688 = vrot.slane %v8616, 5
      %v8689 = vrot.slane %v8688, 4
      %v8690 = vrot.slane %v7893, 5
      %v8691 = vsel %vm1976, %v8689, %v8690
      %v8692 = vrot.slane %v8690, 4
      %v8693 = vrot.slane %v7894, 5
      %v8694 = vsel %vm1976, %v8692, %v8693
      %v8695 = vrot.slane %v8617, 5
      %v8696 = vrot.slane %v8695, 4
      %v8697 = vrot.slane %v7896, 5
      %v8698 = vsel %vm1976, %v8696, %v8697
      %v8699 = vrot.slane %v8697, 4
      %v8700 = vrot.slane %v7897, 5
      %v8701 = vsel %vm1976, %v8699, %v8700
      %v8702 = vrot.slane %v8618, 5
      %v8703 = vrot.slane %v8702, 4
      %v8704 = vrot.slane %v7899, 5
      %v8705 = vsel %vm1976, %v8703, %v8704
      %v8706 = vrot.slane %v8704, 4
      %v8707 = vrot.slane %v7900, 5
      %v8708 = vsel %vm1976, %v8706, %v8707
      %v8709 = vrot.slane %v8619, 5
      %v8710 = vrot.slane %v8709, 4
      %v8711 = vrot.slane %v7902, 5
      %v8712 = vsel %vm1976, %v8710, %v8711
      %v8713 = vrot.slane %v8711, 4
      %v8714 = vrot.slane %v7903, 5
      %v8715 = vsel %vm1976, %v8713, %v8714
      %v8716 = vrot.slane %v8620, 5
      %v8717 = vrot.slane %v8716, 4
      %v8718 = vrot.slane %v7905, 5
      %v8719 = vsel %vm1976, %v8717, %v8718
      %v8720 = vrot.slane %v8718, 4
      %v8721 = vrot.slane %v7906, 5
      %v8722 = vsel %vm1976, %v8720, %v8721
      %v8723 = vrot.slane %v8621, 5
      %v8724 = vrot.slane %v8723, 4
      %v8725 = vrot.slane %v7908, 5
      %v8726 = vsel %vm1976, %v8724, %v8725
      %v8727 = vrot.slane %v8725, 4
      %v8728 = vrot.slane %v7909, 5
      %v8729 = vsel %vm1976, %v8727, %v8728
      %v8730 = vrot.slane %v8622, 5
      %v8731 = vrot.slane %v8730, 4
      %v8732 = vrot.slane %v7911, 5
      %v8733 = vsel %vm1976, %v8731, %v8732
      %v8734 = vrot.slane %v8732, 4
      %v8735 = vrot.slane %v7912, 5
      %v8736 = vsel %vm1976, %v8734, %v8735
      %v8737 = vrot.slane %v8623, 5
      %v8738 = vrot.slane %v8737, 4
      %v8739 = vrot.slane %v7914, 5
      %v8740 = vsel %vm1976, %v8738, %v8739
      %v8741 = vrot.slane %v8739, 4
      %v8742 = vrot.slane %v7915, 5
      %v8743 = vsel %vm1976, %v8741, %v8742
      %v8744 = vrot.slane %v8624, 5
      %v8745 = vrot.slane %v8744, 4
      %v8746 = vrot.slane %v7917, 5
      %v8747 = vsel %vm1976, %v8745, %v8746
      %v8748 = vrot.slane %v8746, 4
      %v8749 = vrot.slane %v7918, 5
      %v8750 = vsel %vm1976, %v8748, %v8749
      %v8751 = vrot.slane %v8625, 5
      %v8752 = vrot.slane %v8751, 4
      %v8753 = vrot.slane %v7920, 5
      %v8754 = vsel %vm1976, %v8752, %v8753
      %v8755 = vrot.slane %v8753, 4
      %v8756 = vrot.slane %v7921, 5
      %v8757 = vsel %vm1976, %v8755, %v8756
      %v8758 = vrot.slane %v8626, 5
      %v8759 = vrot.slane %v8758, 4
      %v8760 = vrot.slane %v7923, 5
      %v8761 = vsel %vm1976, %v8759, %v8760
      %v8762 = vrot.slane %v8760, 4
      %v8763 = vrot.slane %v7924, 5
      %v8764 = vsel %vm1976, %v8762, %v8763
      %v8765 = vrot.slane %v8627, 5
      %v8766 = vrot.slane %v8765, 4
      %v8767 = vrot.slane %v7926, 5
      %v8768 = vsel %vm1976, %v8766, %v8767
      %v8769 = vrot.slane %v8767, 4
      %v8770 = vrot.slane %v7927, 5
      %v8771 = vsel %vm1976, %v8769, %v8770
      %v8772 = vrot.slane %v8628, 5
      %v8773 = vrot.slane %v8772, 4
      %v8774 = vrot.slane %v7929, 5
      %v8775 = vsel %vm1976, %v8773, %v8774
      %v8776 = vrot.slane %v8774, 4
      %v8777 = vrot.slane %v7930, 5
      %v8778 = vsel %vm1976, %v8776, %v8777
      %v8779 = vrot.slane %v8629, 5
      %v8780 = vrot.slane %v8779, 4
      %v8781 = vrot.slane %v7932, 5
      %v8782 = vsel %vm1976, %v8780, %v8781
      %v8783 = vrot.slane %v8781, 4
      %v8784 = vrot.slane %v7933, 5
      %v8785 = vsel %vm1976, %v8783, %v8784
      %v8786 = vrot.slane %v8630, 5
      %v8787 = vrot.slane %v8786, 4
      %v8788 = vrot.slane %v7935, 5
      %v8789 = vsel %vm1976, %v8787, %v8788
      %v8790 = vrot.slane %v8788, 4
      %v8791 = vrot.slane %v7936, 5
      %v8792 = vsel %vm1976, %v8790, %v8791
      %v8793 = vunpack.c.l.b16 %v8684
      %v8794 = vunpack.c.l.b16 %v8687
      %v8795 = vunpack.c.l.b16 %v8691
      %v8796 = vunpack.c.l.b16 %v8694
      %v8797 = vunpack.c.l.b16 %v8698
      %v8798 = vunpack.c.l.b16 %v8701
      %v8799 = vunpack.c.l.b16 %v8705
      %v8800 = vunpack.c.l.b16 %v8708
      %v8801 = vunpack.c.l.b16 %v8712
      %v8802 = vunpack.c.l.b16 %v8715
      %v8803 = vunpack.c.l.b16 %v8719
      %v8804 = vunpack.c.l.b16 %v8722
      %v8805 = vunpack.c.l.b16 %v8726
      %v8806 = vunpack.c.l.b16 %v8729
      %v8807 = vunpack.c.l.b16 %v8733
      %v8808 = vunpack.c.l.b16 %v8736
      %v8809 = vunpack.c.l.b16 %v8740
      %v8810 = vunpack.c.l.b16 %v8743
      %v8811 = vunpack.c.l.b16 %v8747
      %v8812 = vunpack.c.l.b16 %v8750
      %v8813 = vunpack.c.l.b16 %v8754
      %v8814 = vunpack.c.l.b16 %v8757
      %v8815 = vunpack.c.l.b16 %v8761
      %v8816 = vunpack.c.l.b16 %v8764
      %v8817 = vunpack.c.l.b16 %v8768
      %v8818 = vunpack.c.l.b16 %v8771
      %v8819 = vunpack.c.l.b16 %v8775
      %v8820 = vunpack.c.l.b16 %v8778
      %v8821 = vunpack.c.l.b16 %v8782
      %v8822 = vunpack.c.l.b16 %v8785
      %v8823 = vunpack.c.l.b16 %v8789
      %v8824 = vunpack.c.l.b16 %v8792
      %v8825 = vpack.c.b16 %v8794, %v8793
      %v8826 = vpack.c.b16 %v8796, %v8795
      %v8827 = vpack.c.b16 %v8798, %v8797
      %v8828 = vpack.c.b16 %v8800, %v8799
      %v8829 = vpack.c.b16 %v8802, %v8801
      %v8830 = vpack.c.b16 %v8804, %v8803
      %v8831 = vpack.c.b16 %v8806, %v8805
      %v8832 = vpack.c.b16 %v8808, %v8807
      %v8833 = vpack.c.b16 %v8810, %v8809
      %v8834 = vpack.c.b16 %v8812, %v8811
      %v8835 = vpack.c.b16 %v8814, %v8813
      %v8836 = vpack.c.b16 %v8816, %v8815
      %v8837 = vpack.c.b16 %v8818, %v8817
      %v8838 = vpack.c.b16 %v8820, %v8819
      %v8839 = vpack.c.b16 %v8822, %v8821
      %v8840 = vpack.c.b16 %v8824, %v8823
      %v8842 = vsel %vm1418, %v8825, 0
      %v8845 = vsel %vm1418, %v8826, 0
      %v8848 = vsel %vm1418, %v8827, 0
      %v8851 = vsel %vm1418, %v8828, 0
      %v8854 = vsel %vm1418, %v8829, 0
      %v8857 = vsel %vm1418, %v8830, 0
      %v8860 = vsel %vm1418, %v8831, 0
      %v8863 = vsel %vm1418, %v8832, 0
      %v8866 = vsel %vm1418, %v8833, 0
      %v8869 = vsel %vm1418, %v8834, 0
      %v8872 = vsel %vm1418, %v8835, 0
      %v8875 = vsel %vm1418, %v8836, 0
      %v8878 = vsel %vm1418, %v8837, 0
      %v8881 = vsel %vm1418, %v8838, 0
      %v8884 = vsel %vm1418, %v8839, 0
      %v8887 = vsel %vm1418, %v8840, 0
      %v8890 = vsel %vm1467, %v8632, 0
      %8892 = vmatprep.subr.bf16.mxu0 0
      %8893 = vmatpush1.bf16.msra.mxu0 %v8890
      %8894 = vmatprep.subr.bf16.mxu0 0
      %8895 = vmatpush1.bf16.msra.mxu0 0
      %8896 = vmatprep.subr.bf16.mxu0 0
      %8897 = vmatpush1.bf16.msra.mxu0 0
      %8898 = vmatprep.subr.bf16.mxu0 0
      %8899 = vmatpush1.bf16.msra.mxu0 0
      %8900 = vmatprep.subr.bf16.mxu0 0
      %8901 = vmatpush1.bf16.msra.mxu0 0
      %8902 = vmatprep.subr.bf16.mxu0 0
      %8903 = vmatpush1.bf16.msra.mxu0 0
      %8904 = vmatprep.subr.bf16.mxu0 0
      %8905 = vmatpush1.bf16.msra.mxu0 0
      %8906 = vmatprep.subr.bf16.mxu0 0
      %8907 = vmatpush1.bf16.msra.mxu0 0
      %8908 = vmatprep.subr.bf16.mxu0 0
      %8909 = vmatpush1.bf16.msra.mxu0 0
      %8910 = vmatprep.subr.bf16.mxu0 0
      %8911 = vmatpush1.bf16.msra.mxu0 0
      %8912 = vmatprep.subr.bf16.mxu0 0
      %8913 = vmatpush1.bf16.msra.mxu0 0
      %8914 = vmatprep.subr.bf16.mxu0 0
      %8915 = vmatpush1.bf16.msra.mxu0 0
      %8916 = vmatprep.subr.bf16.mxu0 0
      %8917 = vmatpush1.bf16.msra.mxu0 0
      %8918 = vmatprep.subr.bf16.mxu0 0
      %8919 = vmatpush1.bf16.msra.mxu0 0
      %8920 = vmatprep.subr.bf16.mxu0 0
      %8921 = vmatpush1.bf16.msra.mxu0 0
      %8922 = vmatprep.subr.bf16.mxu0 0
      %8923 = vmatpush1.bf16.msra.mxu0 0
      %8924 = vmatprep.mubr.bf16.mxu0 0
      %8925 = vmatmul.mubr.bf16.gmra.mrb[0].mxu0 %v8842
      %v8926 = vpop.f32.mrb[0].mxu0
      %v8927 = vadd.f32 0.0, %v8926
      %v8928 = vpop.f32.mrb[0].mxu0
      %v8929 = vpop.f32.mrb[0].mxu0
      %v8930 = vadd.f32 0.0, %v8929
      %v8931 = vpop.f32.mrb[0].mxu0
      %8932 = vmatprep.mubr.bf16.mxu0 0
      %8933 = vmatmul.mubr.bf16.gmra.mrb[0].mxu0 %v8845
      %v8934 = vpop.f32.mrb[0].mxu0
      %v8935 = vadd.f32 0.0, %v8934
      %v8936 = vpop.f32.mrb[0].mxu0
      %v8937 = vpop.f32.mrb[0].mxu0
      %v8938 = vadd.f32 0.0, %v8937
      %v8939 = vpop.f32.mrb[0].mxu0
      %8940 = vmatprep.mubr.bf16.mxu0 0
      %8941 = vmatmul.mubr.bf16.gmra.mrb[0].mxu0 %v8848
      %v8942 = vpop.f32.mrb[0].mxu0
      %v8943 = vadd.f32 0.0, %v8942
      %v8944 = vpop.f32.mrb[0].mxu0
      %v8945 = vpop.f32.mrb[0].mxu0
      %v8946 = vadd.f32 0.0, %v8945
      %v8947 = vpop.f32.mrb[0].mxu0
      %8948 = vmatprep.mubr.bf16.mxu0 0
      %8949 = vmatmul.mubr.bf16.gmra.mrb[0].mxu0 %v8851
      %v8950 = vpop.f32.mrb[0].mxu0
      %v8951 = vadd.f32 0.0, %v8950
      %v8952 = vpop.f32.mrb[0].mxu0
      %v8953 = vpop.f32.mrb[0].mxu0
      %v8954 = vadd.f32 0.0, %v8953
      %v8955 = vpop.f32.mrb[0].mxu0
      %8956 = vmatprep.mubr.bf16.mxu0 0
      %8957 = vmatmul.mubr.bf16.gmra.mrb[0].mxu0 %v8854
      %v8958 = vpop.f32.mrb[0].mxu0
      %v8959 = vadd.f32 0.0, %v8958
      %v8960 = vpop.f32.mrb[0].mxu0
      %v8961 = vpop.f32.mrb[0].mxu0
      %v8962 = vadd.f32 0.0, %v8961
      %v8963 = vpop.f32.mrb[0].mxu0
      %8964 = vmatprep.mubr.bf16.mxu0 0
      %8965 = vmatmul.mubr.bf16.gmra.mrb[0].mxu0 %v8857
      %v8966 = vpop.f32.mrb[0].mxu0
      %v8967 = vadd.f32 0.0, %v8966
      %v8968 = vpop.f32.mrb[0].mxu0
      %v8969 = vpop.f32.mrb[0].mxu0
      %v8970 = vadd.f32 0.0, %v8969
      %v8971 = vpop.f32.mrb[0].mxu0
      %8972 = vmatprep.mubr.bf16.mxu0 0
      %8973 = vmatmul.mubr.bf16.gmra.mrb[0].mxu0 %v8860
      %v8974 = vpop.f32.mrb[0].mxu0
      %v8975 = vadd.f32 0.0, %v8974
      %v8976 = vpop.f32.mrb[0].mxu0
      %v8977 = vpop.f32.mrb[0].mxu0
      %v8978 = vadd.f32 0.0, %v8977
      %v8979 = vpop.f32.mrb[0].mxu0
      %8980 = vmatprep.mubr.bf16.mxu0 0
      %8981 = vmatmul.mubr.bf16.gmra.mrb[0].mxu0 %v8863
      %v8982 = vpop.f32.mrb[0].mxu0
      %v8983 = vadd.f32 0.0, %v8982
      %v8984 = vpop.f32.mrb[0].mxu0
      %v8985 = vpop.f32.mrb[0].mxu0
      %v8986 = vadd.f32 0.0, %v8985
      %v8987 = vpop.f32.mrb[0].mxu0
      %8988 = vmatprep.mubr.bf16.mxu0 0
      %8989 = vmatmul.mubr.bf16.gmra.mrb[0].mxu0 %v8866
      %v8990 = vpop.f32.mrb[0].mxu0
      %v8991 = vadd.f32 0.0, %v8990
      %v8992 = vpop.f32.mrb[0].mxu0
      %v8993 = vpop.f32.mrb[0].mxu0
      %v8994 = vadd.f32 0.0, %v8993
      %v8995 = vpop.f32.mrb[0].mxu0
      %8996 = vmatprep.mubr.bf16.mxu0 0
      %8997 = vmatmul.mubr.bf16.gmra.mrb[0].mxu0 %v8869
      %v8998 = vpop.f32.mrb[0].mxu0
      %v8999 = vadd.f32 0.0, %v8998
      %v9000 = vpop.f32.mrb[0].mxu0
      %v9001 = vpop.f32.mrb[0].mxu0
      %v9002 = vadd.f32 0.0, %v9001
      %v9003 = vpop.f32.mrb[0].mxu0
      %9004 = vmatprep.mubr.bf16.mxu0 0
      %9005 = vmatmul.mubr.bf16.gmra.mrb[0].mxu0 %v8872
      %v9006 = vpop.f32.mrb[0].mxu0
      %v9007 = vadd.f32 0.0, %v9006
      %v9008 = vpop.f32.mrb[0].mxu0
      %v9009 = vpop.f32.mrb[0].mxu0
      %v9010 = vadd.f32 0.0, %v9009
      %v9011 = vpop.f32.mrb[0].mxu0
      %9012 = vmatprep.mubr.bf16.mxu0 0
      %9013 = vmatmul.mubr.bf16.gmra.mrb[0].mxu0 %v8875
      %v9014 = vpop.f32.mrb[0].mxu0
      %v9015 = vadd.f32 0.0, %v9014
      %v9016 = vpop.f32.mrb[0].mxu0
      %v9017 = vpop.f32.mrb[0].mxu0
      %v9018 = vadd.f32 0.0, %v9017
      %v9019 = vpop.f32.mrb[0].mxu0
      %9020 = vmatprep.mubr.bf16.mxu0 0
      %9021 = vmatmul.mubr.bf16.gmra.mrb[0].mxu0 %v8878
      %v9022 = vpop.f32.mrb[0].mxu0
      %v9023 = vadd.f32 0.0, %v9022
      %v9024 = vpop.f32.mrb[0].mxu0
      %v9025 = vpop.f32.mrb[0].mxu0
      %v9026 = vadd.f32 0.0, %v9025
      %v9027 = vpop.f32.mrb[0].mxu0
      %9028 = vmatprep.mubr.bf16.mxu0 0
      %9029 = vmatmul.mubr.bf16.gmra.mrb[0].mxu0 %v8881
      %v9030 = vpop.f32.mrb[0].mxu0
      %v9031 = vadd.f32 0.0, %v9030
      %v9032 = vpop.f32.mrb[0].mxu0
      %v9033 = vpop.f32.mrb[0].mxu0
      %v9034 = vadd.f32 0.0, %v9033
      %v9035 = vpop.f32.mrb[0].mxu0
      %9036 = vmatprep.mubr.bf16.mxu0 0
      %9037 = vmatmul.mubr.bf16.gmra.mrb[0].mxu0 %v8884
      %v9038 = vpop.f32.mrb[0].mxu0
      %v9039 = vadd.f32 0.0, %v9038
      %v9040 = vpop.f32.mrb[0].mxu0
      %v9041 = vpop.f32.mrb[0].mxu0
      %v9042 = vadd.f32 0.0, %v9041
      %v9043 = vpop.f32.mrb[0].mxu0
      %9044 = vmatprep.mubr.bf16.mxu0 0
      %9045 = vmatmul.mubr.bf16.gmra.mrb[0].mxu0 %v8887
      %v9046 = vpop.f32.mrb[0].mxu0
      %v9047 = vadd.f32 0.0, %v9046
      %v9048 = vpop.f32.mrb[0].mxu0
      %v9049 = vpop.f32.mrb[0].mxu0
      %v9050 = vadd.f32 0.0, %v9049
      %v9051 = vpop.f32.mrb[0].mxu0
      %9052 = vdwg.mxu0
      %v9053 = vadd.f32 %v8583, %v8927
      %v9054 = vadd.f32 %v8584, %v8930
      %v9055 = vadd.f32 %v8585, %v8935
      %v9056 = vadd.f32 %v8586, %v8938
      %v9057 = vadd.f32 %v8587, %v8943
      %v9058 = vadd.f32 %v8588, %v8946
      %v9059 = vadd.f32 %v8589, %v8951
      %v9060 = vadd.f32 %v8590, %v8954
      %v9061 = vadd.f32 %v8591, %v8959
      %v9062 = vadd.f32 %v8592, %v8962
      %v9063 = vadd.f32 %v8593, %v8967
      %v9064 = vadd.f32 %v8594, %v8970
      %v9065 = vadd.f32 %v8595, %v8975
      %v9066 = vadd.f32 %v8596, %v8978
      %v9067 = vadd.f32 %v8597, %v8983
      %v9068 = vadd.f32 %v8598, %v8986
      %v9069 = vadd.f32 %v8599, %v8991
      %v9070 = vadd.f32 %v8600, %v8994
      %v9071 = vadd.f32 %v8601, %v8999
      %v9072 = vadd.f32 %v8602, %v9002
      %v9073 = vadd.f32 %v8603, %v9007
      %v9074 = vadd.f32 %v8604, %v9010
      %v9075 = vadd.f32 %v8605, %v9015
      %v9076 = vadd.f32 %v8606, %v9018
      %v9077 = vadd.f32 %v8607, %v9023
      %v9078 = vadd.f32 %v8608, %v9026
      %v9079 = vadd.f32 %v8609, %v9031
      %v9080 = vadd.f32 %v8610, %v9034
      %v9081 = vadd.f32 %v8611, %v9039
      %v9082 = vadd.f32 %v8612, %v9042
      %v9083 = vadd.f32 %v8613, %v9047
      %v9084 = vadd.f32 %v8614, %v9050
      %s9085 = scalar_lea.vmem [#allocation3], 24
      %v9086 = vld [vmem:[%s9085] sm:$0xf]
      %v9087 = vld [vmem:[%s9085 + $0x4] sm:$0xf]
      %v9088 = vld [vmem:[%s9085 + $0xc] sm:$0xf]
      %v9089 = vld [vmem:[%s9085 + $0x10] sm:$0xf]
      %v9090 = vld [vmem:[%s9085 + $0x18] sm:$0xf]
      %v9091 = vld [vmem:[%s9085 + $0x1c] sm:$0xf]
      %v9092 = vld [vmem:[%s9085 + $0x24] sm:$0xf]
      %v9093 = vld [vmem:[%s9085 + $0x28] sm:$0xf]
      %v9094 = vld [vmem:[%s9085 + $0x30] sm:$0xf]
      %v9095 = vld [vmem:[%s9085 + $0x34] sm:$0xf]
      %v9096 = vld [vmem:[%s9085 + $0x3c] sm:$0xf]
      %v9097 = vld [vmem:[%s9085 + $0x40] sm:$0xf]
      %v9098 = vld [vmem:[%s9085 + $0x48] sm:$0xf]
      %v9099 = vld [vmem:[%s9085 + $0x4c] sm:$0xf]
      %v9100 = vld [vmem:[%s9085 + $0x54] sm:$0xf]
      %v9101 = vld [vmem:[%s9085 + $0x58] sm:$0xf]
      %v9102 = vld [vmem:[%s9085 + $0x60] sm:$0xf]
      %v9103 = vld [vmem:[%s9085 + $0x64] sm:$0xf]
      %v9104 = vld [vmem:[%s9085 + $0x6c] sm:$0xf]
      %v9105 = vld [vmem:[%s9085 + $0x70] sm:$0xf]
      %v9106 = vld [vmem:[%s9085 + $0x78] sm:$0xf]
      %v9107 = vld [vmem:[%s9085 + $0x7c] sm:$0xf]
      %v9108 = vld [vmem:[%s9085 + $0x84] sm:$0xf]
      %v9109 = vld [vmem:[%s9085 + $0x88] sm:$0xf]
      %v9110 = vld [vmem:[%s9085 + $0x90] sm:$0xf]
      %v9111 = vld [vmem:[%s9085 + $0x94] sm:$0xf]
      %v9112 = vld [vmem:[%s9085 + $0x9c] sm:$0xf]
      %v9113 = vld [vmem:[%s9085 + $0xa0] sm:$0xf]
      %v9114 = vld [vmem:[%s9085 + $0xa8] sm:$0xf]
      %v9115 = vld [vmem:[%s9085 + $0xac] sm:$0xf]
      %v9116 = vld [vmem:[%s9085 + $0xb4] sm:$0xf]
      %v9117 = vld [vmem:[%s9085 + $0xb8] sm:$0xf]
      %s9118 = scalar_lea.vmem %s2, 12
      %v9119 = vld [vmem:[%s9118] sm:$0x3]
      %v9152 = vunpack.c.l.b16 %v9086
      %v9153 = vunpack.c.l.b16 %v9087
      %v9154 = vunpack.c.l.b16 %v9088
      %v9155 = vunpack.c.l.b16 %v9089
      %v9156 = vunpack.c.l.b16 %v9090
      %v9157 = vunpack.c.l.b16 %v9091
      %v9158 = vunpack.c.l.b16 %v9092
      %v9159 = vunpack.c.l.b16 %v9093
      %v9160 = vunpack.c.l.b16 %v9094
      %v9161 = vunpack.c.l.b16 %v9095
      %v9162 = vunpack.c.l.b16 %v9096
      %v9163 = vunpack.c.l.b16 %v9097
      %v9164 = vunpack.c.l.b16 %v9098
      %v9165 = vunpack.c.l.b16 %v9099
      %v9166 = vunpack.c.l.b16 %v9100
      %v9167 = vunpack.c.l.b16 %v9101
      %v9168 = vunpack.c.l.b16 %v9102
      %v9169 = vunpack.c.l.b16 %v9103
      %v9170 = vunpack.c.l.b16 %v9104
      %v9171 = vunpack.c.l.b16 %v9105
      %v9172 = vunpack.c.l.b16 %v9106
      %v9173 = vunpack.c.l.b16 %v9107
      %v9174 = vunpack.c.l.b16 %v9108
      %v9175 = vunpack.c.l.b16 %v9109
      %v9176 = vunpack.c.l.b16 %v9110
      %v9177 = vunpack.c.l.b16 %v9111
      %v9178 = vunpack.c.l.b16 %v9112
      %v9179 = vunpack.c.l.b16 %v9113
      %v9180 = vunpack.c.l.b16 %v9114
      %v9181 = vunpack.c.l.b16 %v9115
      %v9182 = vunpack.c.l.b16 %v9116
      %v9183 = vunpack.c.l.b16 %v9117
      %v9184 = vpack.c.b16 %v9153, %v9152
      %v9185 = vpack.c.b16 %v9155, %v9154
      %v9186 = vpack.c.b16 %v9157, %v9156
      %v9187 = vpack.c.b16 %v9159, %v9158
      %v9188 = vpack.c.b16 %v9161, %v9160
      %v9189 = vpack.c.b16 %v9163, %v9162
      %v9190 = vpack.c.b16 %v9165, %v9164
      %v9191 = vpack.c.b16 %v9167, %v9166
      %v9192 = vpack.c.b16 %v9169, %v9168
      %v9193 = vpack.c.b16 %v9171, %v9170
      %v9194 = vpack.c.b16 %v9173, %v9172
      %v9195 = vpack.c.b16 %v9175, %v9174
      %v9196 = vpack.c.b16 %v9177, %v9176
      %v9197 = vpack.c.b16 %v9179, %v9178
      %v9198 = vpack.c.b16 %v9181, %v9180
      %v9199 = vpack.c.b16 %v9183, %v9182
      %v9201 = vsel %vm1418, %v9184, 0
      %v9204 = vsel %vm1418, %v9185, 0
      %v9207 = vsel %vm1418, %v9186, 0
      %v9210 = vsel %vm1418, %v9187, 0
      %v9213 = vsel %vm1418, %v9188, 0
      %v9216 = vsel %vm1418, %v9189, 0
      %v9219 = vsel %vm1418, %v9190, 0
      %v9222 = vsel %vm1418, %v9191, 0
      %v9225 = vsel %vm1418, %v9192, 0
      %v9228 = vsel %vm1418, %v9193, 0
      %v9231 = vsel %vm1418, %v9194, 0
      %v9234 = vsel %vm1418, %v9195, 0
      %v9237 = vsel %vm1418, %v9196, 0
      %v9240 = vsel %vm1418, %v9197, 0
      %v9243 = vsel %vm1418, %v9198, 0
      %v9246 = vsel %vm1418, %v9199, 0
      %v9249 = vsel %vm1467, %v9119, 0
      %9251 = vmatprep.subr.bf16.mxu0 0
      %9252 = vmatpush1.bf16.msra.mxu0 %v9249
      %9253 = vmatprep.subr.bf16.mxu0 0
      %9254 = vmatpush1.bf16.msra.mxu0 0
      %9255 = vmatprep.subr.bf16.mxu0 0
      %9256 = vmatpush1.bf16.msra.mxu0 0
      %9257 = vmatprep.subr.bf16.mxu0 0
      %9258 = vmatpush1.bf16.msra.mxu0 0
      %9259 = vmatprep.subr.bf16.mxu0 0
      %9260 = vmatpush1.bf16.msra.mxu0 0
      %9261 = vmatprep.subr.bf16.mxu0 0
      %9262 = vmatpush1.bf16.msra.mxu0 0
      %9263 = vmatprep.subr.bf16.mxu0 0
      %9264 = vmatpush1.bf16.msra.mxu0 0
      %9265 = vmatprep.subr.bf16.mxu0 0
      %9266 = vmatpush1.bf16.msra.mxu0 0
      %9267 = vmatprep.subr.bf16.mxu0 0
      %9268 = vmatpush1.bf16.msra.mxu0 0
      %9269 = vmatprep.subr.bf16.mxu0 0
      %9270 = vmatpush1.bf16.msra.mxu0 0
      %9271 = vmatprep.subr.bf16.mxu0 0
      %9272 = vmatpush1.bf16.msra.mxu0 0
      %9273 = vmatprep.subr.bf16.mxu0 0
      %9274 = vmatpush1.bf16.msra.mxu0 0
      %9275 = vmatprep.subr.bf16.mxu0 0
      %9276 = vmatpush1.bf16.msra.mxu0 0
      %9277 = vmatprep.subr.bf16.mxu0 0
      %9278 = vmatpush1.bf16.msra.mxu0 0
      %9279 = vmatprep.subr.bf16.mxu0 0
      %9280 = vmatpush1.bf16.msra.mxu0 0
      %9281 = vmatprep.subr.bf16.mxu0 0
      %9282 = vmatpush1.bf16.msra.mxu0 0
      %9283 = vmatprep.mubr.bf16.mxu0 0
      %9284 = vmatmul.mubr.bf16.gmra.mrb[0].mxu0 %v9201
      %v9285 = vpop.f32.mrb[0].mxu0
      %v9286 = vadd.f32 0.0, %v9285
      %v9287 = vpop.f32.mrb[0].mxu0
      %v9288 = vpop.f32.mrb[0].mxu0
      %v9289 = vadd.f32 0.0, %v9288
      %v9290 = vpop.f32.mrb[0].mxu0
      %9291 = vmatprep.mubr.bf16.mxu0 0
      %9292 = vmatmul.mubr.bf16.gmra.mrb[0].mxu0 %v9204
      %v9293 = vpop.f32.mrb[0].mxu0
      %v9294 = vadd.f32 0.0, %v9293
      %v9295 = vpop.f32.mrb[0].mxu0
      %v9296 = vpop.f32.mrb[0].mxu0
      %v9297 = vadd.f32 0.0, %v9296
      %v9298 = vpop.f32.mrb[0].mxu0
      %9299 = vmatprep.mubr.bf16.mxu0 0
      %9300 = vmatmul.mubr.bf16.gmra.mrb[0].mxu0 %v9207
      %v9301 = vpop.f32.mrb[0].mxu0
      %v9302 = vadd.f32 0.0, %v9301
      %v9303 = vpop.f32.mrb[0].mxu0
      %v9304 = vpop.f32.mrb[0].mxu0
      %v9305 = vadd.f32 0.0, %v9304
      %v9306 = vpop.f32.mrb[0].mxu0
      %9307 = vmatprep.mubr.bf16.mxu0 0
      %9308 = vmatmul.mubr.bf16.gmra.mrb[0].mxu0 %v9210
      %v9309 = vpop.f32.mrb[0].mxu0
      %v9310 = vadd.f32 0.0, %v9309
      %v9311 = vpop.f32.mrb[0].mxu0
      %v9312 = vpop.f32.mrb[0].mxu0
      %v9313 = vadd.f32 0.0, %v9312
      %v9314 = vpop.f32.mrb[0].mxu0
      %9315 = vmatprep.mubr.bf16.mxu0 0
      %9316 = vmatmul.mubr.bf16.gmra.mrb[0].mxu0 %v9213
      %v9317 = vpop.f32.mrb[0].mxu0
      %v9318 = vadd.f32 0.0, %v9317
      %v9319 = vpop.f32.mrb[0].mxu0
      %v9320 = vpop.f32.mrb[0].mxu0
      %v9321 = vadd.f32 0.0, %v9320
      %v9322 = vpop.f32.mrb[0].mxu0
      %9323 = vmatprep.mubr.bf16.mxu0 0
      %9324 = vmatmul.mubr.bf16.gmra.mrb[0].mxu0 %v9216
      %v9325 = vpop.f32.mrb[0].mxu0
      %v9326 = vadd.f32 0.0, %v9325
      %v9327 = vpop.f32.mrb[0].mxu0
      %v9328 = vpop.f32.mrb[0].mxu0
      %v9329 = vadd.f32 0.0, %v9328
      %v9330 = vpop.f32.mrb[0].mxu0
      %9331 = vmatprep.mubr.bf16.mxu0 0
      %9332 = vmatmul.mubr.bf16.gmra.mrb[0].mxu0 %v9219
      %v9333 = vpop.f32.mrb[0].mxu0
      %v9334 = vadd.f32 0.0, %v9333
      %v9335 = vpop.f32.mrb[0].mxu0
      %v9336 = vpop.f32.mrb[0].mxu0
      %v9337 = vadd.f32 0.0, %v9336
      %v9338 = vpop.f32.mrb[0].mxu0
      %9339 = vmatprep.mubr.bf16.mxu0 0
      %9340 = vmatmul.mubr.bf16.gmra.mrb[0].mxu0 %v9222
      %v9341 = vpop.f32.mrb[0].mxu0
      %v9342 = vadd.f32 0.0, %v9341
      %v9343 = vpop.f32.mrb[0].mxu0
      %v9344 = vpop.f32.mrb[0].mxu0
      %v9345 = vadd.f32 0.0, %v9344
      %v9346 = vpop.f32.mrb[0].mxu0
      %9347 = vmatprep.mubr.bf16.mxu0 0
      %9348 = vmatmul.mubr.bf16.gmra.mrb[0].mxu0 %v9225
      %v9349 = vpop.f32.mrb[0].mxu0
      %v9350 = vadd.f32 0.0, %v9349
      %v9351 = vpop.f32.mrb[0].mxu0
      %v9352 = vpop.f32.mrb[0].mxu0
      %v9353 = vadd.f32 0.0, %v9352
      %v9354 = vpop.f32.mrb[0].mxu0
      %9355 = vmatprep.mubr.bf16.mxu0 0
      %9356 = vmatmul.mubr.bf16.gmra.mrb[0].mxu0 %v9228
      %v9357 = vpop.f32.mrb[0].mxu0
      %v9358 = vadd.f32 0.0, %v9357
      %v9359 = vpop.f32.mrb[0].mxu0
      %v9360 = vpop.f32.mrb[0].mxu0
      %v9361 = vadd.f32 0.0, %v9360
      %v9362 = vpop.f32.mrb[0].mxu0
      %9363 = vmatprep.mubr.bf16.mxu0 0
      %9364 = vmatmul.mubr.bf16.gmra.mrb[0].mxu0 %v9231
      %v9365 = vpop.f32.mrb[0].mxu0
      %v9366 = vadd.f32 0.0, %v9365
      %v9367 = vpop.f32.mrb[0].mxu0
      %v9368 = vpop.f32.mrb[0].mxu0
      %v9369 = vadd.f32 0.0, %v9368
      %v9370 = vpop.f32.mrb[0].mxu0
      %9371 = vmatprep.mubr.bf16.mxu0 0
      %9372 = vmatmul.mubr.bf16.gmra.mrb[0].mxu0 %v9234
      %v9373 = vpop.f32.mrb[0].mxu0
      %v9374 = vadd.f32 0.0, %v9373
      %v9375 = vpop.f32.mrb[0].mxu0
      %v9376 = vpop.f32.mrb[0].mxu0
      %v9377 = vadd.f32 0.0, %v9376
      %v9378 = vpop.f32.mrb[0].mxu0
      %9379 = vmatprep.mubr.bf16.mxu0 0
      %9380 = vmatmul.mubr.bf16.gmra.mrb[0].mxu0 %v9237
      %v9381 = vpop.f32.mrb[0].mxu0
      %v9382 = vadd.f32 0.0, %v9381
      %v9383 = vpop.f32.mrb[0].mxu0
      %v9384 = vpop.f32.mrb[0].mxu0
      %v9385 = vadd.f32 0.0, %v9384
      %v9386 = vpop.f32.mrb[0].mxu0
      %9387 = vmatprep.mubr.bf16.mxu0 0
      %9388 = vmatmul.mubr.bf16.gmra.mrb[0].mxu0 %v9240
      %v9389 = vpop.f32.mrb[0].mxu0
      %v9390 = vadd.f32 0.0, %v9389
      %v9391 = vpop.f32.mrb[0].mxu0
      %v9392 = vpop.f32.mrb[0].mxu0
      %v9393 = vadd.f32 0.0, %v9392
      %v9394 = vpop.f32.mrb[0].mxu0
      %9395 = vmatprep.mubr.bf16.mxu0 0
      %9396 = vmatmul.mubr.bf16.gmra.mrb[0].mxu0 %v9243
      %v9397 = vpop.f32.mrb[0].mxu0
      %v9398 = vadd.f32 0.0, %v9397
      %v9399 = vpop.f32.mrb[0].mxu0
      %v9400 = vpop.f32.mrb[0].mxu0
      %v9401 = vadd.f32 0.0, %v9400
      %v9402 = vpop.f32.mrb[0].mxu0
      %9403 = vmatprep.mubr.bf16.mxu0 0
      %9404 = vmatmul.mubr.bf16.gmra.mrb[0].mxu0 %v9246
      %v9405 = vpop.f32.mrb[0].mxu0
      %v9406 = vadd.f32 0.0, %v9405
      %v9407 = vpop.f32.mrb[0].mxu0
      %v9408 = vpop.f32.mrb[0].mxu0
      %v9409 = vadd.f32 0.0, %v9408
      %v9410 = vpop.f32.mrb[0].mxu0
      %9411 = vdwg.mxu0
      %v9412 = vadd.f32 %v9053, %v9286
      %v9413 = vadd.f32 %v9054, %v9289
      %v9414 = vadd.f32 %v9055, %v9294
      %v9415 = vadd.f32 %v9056, %v9297
      %v9416 = vadd.f32 %v9057, %v9302
      %v9417 = vadd.f32 %v9058, %v9305
      %v9418 = vadd.f32 %v9059, %v9310
      %v9419 = vadd.f32 %v9060, %v9313
      %v9420 = vadd.f32 %v9061, %v9318
      %v9421 = vadd.f32 %v9062, %v9321
      %v9422 = vadd.f32 %v9063, %v9326
      %v9423 = vadd.f32 %v9064, %v9329
      %v9424 = vadd.f32 %v9065, %v9334
      %v9425 = vadd.f32 %v9066, %v9337
      %v9426 = vadd.f32 %v9067, %v9342
      %v9427 = vadd.f32 %v9068, %v9345
      %v9428 = vadd.f32 %v9069, %v9350
      %v9429 = vadd.f32 %v9070, %v9353
      %v9430 = vadd.f32 %v9071, %v9358
      %v9431 = vadd.f32 %v9072, %v9361
      %v9432 = vadd.f32 %v9073, %v9366
      %v9433 = vadd.f32 %v9074, %v9369
      %v9434 = vadd.f32 %v9075, %v9374
      %v9435 = vadd.f32 %v9076, %v9377
      %v9436 = vadd.f32 %v9077, %v9382
      %v9437 = vadd.f32 %v9078, %v9385
      %v9438 = vadd.f32 %v9079, %v9390
      %v9439 = vadd.f32 %v9080, %v9393
      %v9440 = vadd.f32 %v9081, %v9398
      %v9441 = vadd.f32 %v9082, %v9401
      %v9442 = vadd.f32 %v9083, %v9406
      %v9443 = vadd.f32 %v9084, %v9409
      %v9444 = vld [vmem:[%s9085] sm:$0xf]
      %v9445 = vld [vmem:[%s9085 + $0x4] sm:$0xf]
      %v9446 = vld [vmem:[%s9085 + $0x8] sm:$0x1]
      %v9447 = vld [vmem:[%s9085 + $0xc] sm:$0xf]
      %v9448 = vld [vmem:[%s9085 + $0x10] sm:$0xf]
      %v9449 = vld [vmem:[%s9085 + $0x14] sm:$0x1]
      %v9450 = vld [vmem:[%s9085 + $0x18] sm:$0xf]
      %v9451 = vld [vmem:[%s9085 + $0x1c] sm:$0xf]
      %v9452 = vld [vmem:[%s9085 + $0x20] sm:$0x1]
      %v9453 = vld [vmem:[%s9085 + $0x24] sm:$0xf]
      %v9454 = vld [vmem:[%s9085 + $0x28] sm:$0xf]
      %v9455 = vld [vmem:[%s9085 + $0x2c] sm:$0x1]
      %v9456 = vld [vmem:[%s9085 + $0x30] sm:$0xf]
      %v9457 = vld [vmem:[%s9085 + $0x34] sm:$0xf]
      %v9458 = vld [vmem:[%s9085 + $0x38] sm:$0x1]
      %v9459 = vld [vmem:[%s9085 + $0x3c] sm:$0xf]
      %v9460 = vld [vmem:[%s9085 + $0x40] sm:$0xf]
      %v9461 = vld [vmem:[%s9085 + $0x44] sm:$0x1]
      %v9462 = vld [vmem:[%s9085 + $0x48] sm:$0xf]
      %v9463 = vld [vmem:[%s9085 + $0x4c] sm:$0xf]
      %v9464 = vld [vmem:[%s9085 + $0x50] sm:$0x1]
      %v9465 = vld [vmem:[%s9085 + $0x54] sm:$0xf]
      %v9466 = vld [vmem:[%s9085 + $0x58] sm:$0xf]
      %v9467 = vld [vmem:[%s9085 + $0x5c] sm:$0x1]
      %v9468 = vld [vmem:[%s9085 + $0x60] sm:$0xf]
      %v9469 = vld [vmem:[%s9085 + $0x64] sm:$0xf]
      %v9470 = vld [vmem:[%s9085 + $0x68] sm:$0x1]
      %v9471 = vld [vmem:[%s9085 + $0x6c] sm:$0xf]
      %v9472 = vld [vmem:[%s9085 + $0x70] sm:$0xf]
      %v9473 = vld [vmem:[%s9085 + $0x74] sm:$0x1]
      %v9474 = vld [vmem:[%s9085 + $0x78] sm:$0xf]
      %v9475 = vld [vmem:[%s9085 + $0x7c] sm:$0xf]
      %v9476 = vld [vmem:[%s9085 + $0x80] sm:$0x1]
      %v9477 = vld [vmem:[%s9085 + $0x84] sm:$0xf]
      %v9478 = vld [vmem:[%s9085 + $0x88] sm:$0xf]
      %v9479 = vld [vmem:[%s9085 + $0x8c] sm:$0x1]
      %v9480 = vld [vmem:[%s9085 + $0x90] sm:$0xf]
      %v9481 = vld [vmem:[%s9085 + $0x94] sm:$0xf]
      %v9482 = vld [vmem:[%s9085 + $0x98] sm:$0x1]
      %v9483 = vld [vmem:[%s9085 + $0x9c] sm:$0xf]
      %v9484 = vld [vmem:[%s9085 + $0xa0] sm:$0xf]
      %v9485 = vld [vmem:[%s9085 + $0xa4] sm:$0x1]
      %v9486 = vld [vmem:[%s9085 + $0xa8] sm:$0xf]
      %v9487 = vld [vmem:[%s9085 + $0xac] sm:$0xf]
      %v9488 = vld [vmem:[%s9085 + $0xb0] sm:$0x1]
      %v9489 = vld [vmem:[%s9085 + $0xb4] sm:$0xf]
      %v9490 = vld [vmem:[%s9085 + $0xb8] sm:$0xf]
      %v9491 = vld [vmem:[%s9085 + $0xbc] sm:$0x1]
      %s9492 = scalar_lea.vmem %s2, 14
      %v9493 = vld [vmem:[%s9492] sm:$0x3]
      %v9495 = vshrl.u32 %v9444, 16
      %v9497 = vrot.slane %v9495, 4
      %v9498 = vshll.u32 %v9444, 16
      %v9500 = vrot.slane %v9498, 5
      %v9501 = vor.u32 %v9497, %v9500
      %v9502 = vrot.slane %v9501, 4
      %v9504 = vshll.u32 %v9445, 16
      %v9506 = vrot.slane %v9504, 5
      %v9507 = vsel %vm985, %v9502, %v9506
      %v9508 = vshrl.u32 %v9445, 16
      %v9510 = vrot.slane %v9508, 4
      %v9511 = vor.u32 %v9510, %v9506
      %v9512 = vrot.slane %v9511, 4
      %v9514 = vshll.u32 %v9446, 16
      %v9516 = vrot.slane %v9514, 5
      %v9517 = vsel %vm985, %v9512, %v9516
      %v9519 = vshrl.u32 %v9447, 16
      %v9521 = vrot.slane %v9519, 4
      %v9522 = vshll.u32 %v9447, 16
      %v9524 = vrot.slane %v9522, 5
      %v9525 = vor.u32 %v9521, %v9524
      %v9526 = vrot.slane %v9525, 4
      %v9528 = vshll.u32 %v9448, 16
      %v9530 = vrot.slane %v9528, 5
      %v9531 = vsel %vm985, %v9526, %v9530
      %v9532 = vshrl.u32 %v9448, 16
      %v9534 = vrot.slane %v9532, 4
      %v9535 = vor.u32 %v9534, %v9530
      %v9536 = vrot.slane %v9535, 4
      %v9538 = vshll.u32 %v9449, 16
      %v9540 = vrot.slane %v9538, 5
      %v9541 = vsel %vm985, %v9536, %v9540
      %v9543 = vshrl.u32 %v9450, 16
      %v9545 = vrot.slane %v9543, 4
      %v9546 = vshll.u32 %v9450, 16
      %v9548 = vrot.slane %v9546, 5
      %v9549 = vor.u32 %v9545, %v9548
      %v9550 = vrot.slane %v9549, 4
      %v9552 = vshll.u32 %v9451, 16
      %v9554 = vrot.slane %v9552, 5
      %v9555 = vsel %vm985, %v9550, %v9554
      %v9556 = vshrl.u32 %v9451, 16
      %v9558 = vrot.slane %v9556, 4
      %v9559 = vor.u32 %v9558, %v9554
      %v9560 = vrot.slane %v9559, 4
      %v9562 = vshll.u32 %v9452, 16
      %v9564 = vrot.slane %v9562, 5
      %v9565 = vsel %vm985, %v9560, %v9564
      %v9567 = vshrl.u32 %v9453, 16
      %v9569 = vrot.slane %v9567, 4
      %v9570 = vshll.u32 %v9453, 16
      %v9572 = vrot.slane %v9570, 5
      %v9573 = vor.u32 %v9569, %v9572
      %v9574 = vrot.slane %v9573, 4
      %v9576 = vshll.u32 %v9454, 16
      %v9578 = vrot.slane %v9576, 5
      %v9579 = vsel %vm985, %v9574, %v9578
      %v9580 = vshrl.u32 %v9454, 16
      %v9582 = vrot.slane %v9580, 4
      %v9583 = vor.u32 %v9582, %v9578
      %v9584 = vrot.slane %v9583, 4
      %v9586 = vshll.u32 %v9455, 16
      %v9588 = vrot.slane %v9586, 5
      %v9589 = vsel %vm985, %v9584, %v9588
      %v9591 = vshrl.u32 %v9456, 16
      %v9593 = vrot.slane %v9591, 4
      %v9594 = vshll.u32 %v9456, 16
      %v9596 = vrot.slane %v9594, 5
      %v9597 = vor.u32 %v9593, %v9596
      %v9598 = vrot.slane %v9597, 4
      %v9600 = vshll.u32 %v9457, 16
      %v9602 = vrot.slane %v9600, 5
      %v9603 = vsel %vm985, %v9598, %v9602
      %v9604 = vshrl.u32 %v9457, 16
      %v9606 = vrot.slane %v9604, 4
      %v9607 = vor.u32 %v9606, %v9602
      %v9608 = vrot.slane %v9607, 4
      %v9610 = vshll.u32 %v9458, 16
      %v9612 = vrot.slane %v9610, 5
      %v9613 = vsel %vm985, %v9608, %v9612
      %v9615 = vshrl.u32 %v9459, 16
      %v9617 = vrot.slane %v9615, 4
      %v9618 = vshll.u32 %v9459, 16
      %v9620 = vrot.slane %v9618, 5
      %v9621 = vor.u32 %v9617, %v9620
      %v9622 = vrot.slane %v9621, 4
      %v9624 = vshll.u32 %v9460, 16
      %v9626 = vrot.slane %v9624, 5
      %v9627 = vsel %vm985, %v9622, %v9626
      %v9628 = vshrl.u32 %v9460, 16
      %v9630 = vrot.slane %v9628, 4
      %v9631 = vor.u32 %v9630, %v9626
      %v9632 = vrot.slane %v9631, 4
      %v9634 = vshll.u32 %v9461, 16
      %v9636 = vrot.slane %v9634, 5
      %v9637 = vsel %vm985, %v9632, %v9636
      %v9639 = vshrl.u32 %v9462, 16
      %v9641 = vrot.slane %v9639, 4
      %v9642 = vshll.u32 %v9462, 16
      %v9644 = vrot.slane %v9642, 5
      %v9645 = vor.u32 %v9641, %v9644
      %v9646 = vrot.slane %v9645, 4
      %v9648 = vshll.u32 %v9463, 16
      %v9650 = vrot.slane %v9648, 5
      %v9651 = vsel %vm985, %v9646, %v9650
      %v9652 = vshrl.u32 %v9463, 16
      %v9654 = vrot.slane %v9652, 4
      %v9655 = vor.u32 %v9654, %v9650
      %v9656 = vrot.slane %v9655, 4
      %v9658 = vshll.u32 %v9464, 16
      %v9660 = vrot.slane %v9658, 5
      %v9661 = vsel %vm985, %v9656, %v9660
      %v9663 = vshrl.u32 %v9465, 16
      %v9665 = vrot.slane %v9663, 4
      %v9666 = vshll.u32 %v9465, 16
      %v9668 = vrot.slane %v9666, 5
      %v9669 = vor.u32 %v9665, %v9668
      %v9670 = vrot.slane %v9669, 4
      %v9672 = vshll.u32 %v9466, 16
      %v9674 = vrot.slane %v9672, 5
      %v9675 = vsel %vm985, %v9670, %v9674
      %v9676 = vshrl.u32 %v9466, 16
      %v9678 = vrot.slane %v9676, 4
      %v9679 = vor.u32 %v9678, %v9674
      %v9680 = vrot.slane %v9679, 4
      %v9682 = vshll.u32 %v9467, 16
      %v9684 = vrot.slane %v9682, 5
      %v9685 = vsel %vm985, %v9680, %v9684
      %v9687 = vshrl.u32 %v9468, 16
      %v9689 = vrot.slane %v9687, 4
      %v9690 = vshll.u32 %v9468, 16
      %v9692 = vrot.slane %v9690, 5
      %v9693 = vor.u32 %v9689, %v9692
      %v9694 = vrot.slane %v9693, 4
      %v9696 = vshll.u32 %v9469, 16
      %v9698 = vrot.slane %v9696, 5
      %v9699 = vsel %vm985, %v9694, %v9698
      %v9700 = vshrl.u32 %v9469, 16
      %v9702 = vrot.slane %v9700, 4
      %v9703 = vor.u32 %v9702, %v9698
      %v9704 = vrot.slane %v9703, 4
      %v9706 = vshll.u32 %v9470, 16
      %v9708 = vrot.slane %v9706, 5
      %v9709 = vsel %vm985, %v9704, %v9708
      %v9711 = vshrl.u32 %v9471, 16
      %v9713 = vrot.slane %v9711, 4
      %v9714 = vshll.u32 %v9471, 16
      %v9716 = vrot.slane %v9714, 5
      %v9717 = vor.u32 %v9713, %v9716
      %v9718 = vrot.slane %v9717, 4
      %v9720 = vshll.u32 %v9472, 16
      %v9722 = vrot.slane %v9720, 5
      %v9723 = vsel %vm985, %v9718, %v9722
      %v9724 = vshrl.u32 %v9472, 16
      %v9726 = vrot.slane %v9724, 4
      %v9727 = vor.u32 %v9726, %v9722
      %v9728 = vrot.slane %v9727, 4
      %v9730 = vshll.u32 %v9473, 16
      %v9732 = vrot.slane %v9730, 5
      %v9733 = vsel %vm985, %v9728, %v9732
      %v9735 = vshrl.u32 %v9474, 16
      %v9737 = vrot.slane %v9735, 4
      %v9738 = vshll.u32 %v9474, 16
      %v9740 = vrot.slane %v9738, 5
      %v9741 = vor.u32 %v9737, %v9740
      %v9742 = vrot.slane %v9741, 4
      %v9744 = vshll.u32 %v9475, 16
      %v9746 = vrot.slane %v9744, 5
      %v9747 = vsel %vm985, %v9742, %v9746
      %v9748 = vshrl.u32 %v9475, 16
      %v9750 = vrot.slane %v9748, 4
      %v9751 = vor.u32 %v9750, %v9746
      %v9752 = vrot.slane %v9751, 4
      %v9754 = vshll.u32 %v9476, 16
      %v9756 = vrot.slane %v9754, 5
      %v9757 = vsel %vm985, %v9752, %v9756
      %v9759 = vshrl.u32 %v9477, 16
      %v9761 = vrot.slane %v9759, 4
      %v9762 = vshll.u32 %v9477, 16
      %v9764 = vrot.slane %v9762, 5
      %v9765 = vor.u32 %v9761, %v9764
      %v9766 = vrot.slane %v9765, 4
      %v9768 = vshll.u32 %v9478, 16
      %v9770 = vrot.slane %v9768, 5
      %v9771 = vsel %vm985, %v9766, %v9770
      %v9772 = vshrl.u32 %v9478, 16
      %v9774 = vrot.slane %v9772, 4
      %v9775 = vor.u32 %v9774, %v9770
      %v9776 = vrot.slane %v9775, 4
      %v9778 = vshll.u32 %v9479, 16
      %v9780 = vrot.slane %v9778, 5
      %v9781 = vsel %vm985, %v9776, %v9780
      %v9783 = vshrl.u32 %v9480, 16
      %v9785 = vrot.slane %v9783, 4
      %v9786 = vshll.u32 %v9480, 16
      %v9788 = vrot.slane %v9786, 5
      %v9789 = vor.u32 %v9785, %v9788
      %v9790 = vrot.slane %v9789, 4
      %v9792 = vshll.u32 %v9481, 16
      %v9794 = vrot.slane %v9792, 5
      %v9795 = vsel %vm985, %v9790, %v9794
      %v9796 = vshrl.u32 %v9481, 16
      %v9798 = vrot.slane %v9796, 4
      %v9799 = vor.u32 %v9798, %v9794
      %v9800 = vrot.slane %v9799, 4
      %v9802 = vshll.u32 %v9482, 16
      %v9804 = vrot.slane %v9802, 5
      %v9805 = vsel %vm985, %v9800, %v9804
      %v9807 = vshrl.u32 %v9483, 16
      %v9809 = vrot.slane %v9807, 4
      %v9810 = vshll.u32 %v9483, 16
      %v9812 = vrot.slane %v9810, 5
      %v9813 = vor.u32 %v9809, %v9812
      %v9814 = vrot.slane %v9813, 4
      %v9816 = vshll.u32 %v9484, 16
      %v9818 = vrot.slane %v9816, 5
      %v9819 = vsel %vm985, %v9814, %v9818
      %v9820 = vshrl.u32 %v9484, 16
      %v9822 = vrot.slane %v9820, 4
      %v9823 = vor.u32 %v9822, %v9818
      %v9824 = vrot.slane %v9823, 4
      %v9826 = vshll.u32 %v9485, 16
      %v9828 = vrot.slane %v9826, 5
      %v9829 = vsel %vm985, %v9824, %v9828
      %v9831 = vshrl.u32 %v9486, 16
      %v9833 = vrot.slane %v9831, 4
      %v9834 = vshll.u32 %v9486, 16
      %v9836 = vrot.slane %v9834, 5
      %v9837 = vor.u32 %v9833, %v9836
      %v9838 = vrot.slane %v9837, 4
      %v9840 = vshll.u32 %v9487, 16
      %v9842 = vrot.slane %v9840, 5
      %v9843 = vsel %vm985, %v9838, %v9842
      %v9844 = vshrl.u32 %v9487, 16
      %v9846 = vrot.slane %v9844, 4
      %v9847 = vor.u32 %v9846, %v9842
      %v9848 = vrot.slane %v9847, 4
      %v9850 = vshll.u32 %v9488, 16
      %v9852 = vrot.slane %v9850, 5
      %v9853 = vsel %vm985, %v9848, %v9852
      %v9855 = vshrl.u32 %v9489, 16
      %v9857 = vrot.slane %v9855, 4
      %v9858 = vshll.u32 %v9489, 16
      %v9860 = vrot.slane %v9858, 5
      %v9861 = vor.u32 %v9857, %v9860
      %v9862 = vrot.slane %v9861, 4
      %v9864 = vshll.u32 %v9490, 16
      %v9866 = vrot.slane %v9864, 5
      %v9867 = vsel %vm985, %v9862, %v9866
      %v9868 = vshrl.u32 %v9490, 16
      %v9870 = vrot.slane %v9868, 4
      %v9871 = vor.u32 %v9870, %v9866
      %v9872 = vrot.slane %v9871, 4
      %v9874 = vshll.u32 %v9491, 16
      %v9876 = vrot.slane %v9874, 5
      %v9877 = vsel %vm985, %v9872, %v9876
      %v9878 = vunpack.c.l.b16 %v9507
      %v9879 = vunpack.c.l.b16 %v9517
      %v9880 = vunpack.c.l.b16 %v9531
      %v9881 = vunpack.c.l.b16 %v9541
      %v9882 = vunpack.c.l.b16 %v9555
      %v9883 = vunpack.c.l.b16 %v9565
      %v9884 = vunpack.c.l.b16 %v9579
      %v9885 = vunpack.c.l.b16 %v9589
      %v9886 = vunpack.c.l.b16 %v9603
      %v9887 = vunpack.c.l.b16 %v9613
      %v9888 = vunpack.c.l.b16 %v9627
      %v9889 = vunpack.c.l.b16 %v9637
      %v9890 = vunpack.c.l.b16 %v9651
      %v9891 = vunpack.c.l.b16 %v9661
      %v9892 = vunpack.c.l.b16 %v9675
      %v9893 = vunpack.c.l.b16 %v9685
      %v9894 = vunpack.c.l.b16 %v9699
      %v9895 = vunpack.c.l.b16 %v9709
      %v9896 = vunpack.c.l.b16 %v9723
      %v9897 = vunpack.c.l.b16 %v9733
      %v9898 = vunpack.c.l.b16 %v9747
      %v9899 = vunpack.c.l.b16 %v9757
      %v9900 = vunpack.c.l.b16 %v9771
      %v9901 = vunpack.c.l.b16 %v9781
      %v9902 = vunpack.c.l.b16 %v9795
      %v9903 = vunpack.c.l.b16 %v9805
      %v9904 = vunpack.c.l.b16 %v9819
      %v9905 = vunpack.c.l.b16 %v9829
      %v9906 = vunpack.c.l.b16 %v9843
      %v9907 = vunpack.c.l.b16 %v9853
      %v9908 = vunpack.c.l.b16 %v9867
      %v9909 = vunpack.c.l.b16 %v9877
      %v9910 = vpack.c.b16 %v9879, %v9878
      %v9911 = vpack.c.b16 %v9881, %v9880
      %v9912 = vpack.c.b16 %v9883, %v9882
      %v9913 = vpack.c.b16 %v9885, %v9884
      %v9914 = vpack.c.b16 %v9887, %v9886
      %v9915 = vpack.c.b16 %v9889, %v9888
      %v9916 = vpack.c.b16 %v9891, %v9890
      %v9917 = vpack.c.b16 %v9893, %v9892
      %v9918 = vpack.c.b16 %v9895, %v9894
      %v9919 = vpack.c.b16 %v9897, %v9896
      %v9920 = vpack.c.b16 %v9899, %v9898
      %v9921 = vpack.c.b16 %v9901, %v9900
      %v9922 = vpack.c.b16 %v9903, %v9902
      %v9923 = vpack.c.b16 %v9905, %v9904
      %v9924 = vpack.c.b16 %v9907, %v9906
      %v9925 = vpack.c.b16 %v9909, %v9908
      %v9927 = vsel %vm1418, %v9910, 0
      %v9930 = vsel %vm1418, %v9911, 0
      %v9933 = vsel %vm1418, %v9912, 0
      %v9936 = vsel %vm1418, %v9913, 0
      %v9939 = vsel %vm1418, %v9914, 0
      %v9942 = vsel %vm1418, %v9915, 0
      %v9945 = vsel %vm1418, %v9916, 0
      %v9948 = vsel %vm1418, %v9917, 0
      %v9951 = vsel %vm1418, %v9918, 0
      %v9954 = vsel %vm1418, %v9919, 0
      %v9957 = vsel %vm1418, %v9920, 0
      %v9960 = vsel %vm1418, %v9921, 0
      %v9963 = vsel %vm1418, %v9922, 0
      %v9966 = vsel %vm1418, %v9923, 0
      %v9969 = vsel %vm1418, %v9924, 0
      %v9972 = vsel %vm1418, %v9925, 0
      %v9975 = vsel %vm1467, %v9493, 0
      %9977 = vmatprep.subr.bf16.mxu0 0
      %9978 = vmatpush1.bf16.msra.mxu0 %v9975
      %9979 = vmatprep.subr.bf16.mxu0 0
      %9980 = vmatpush1.bf16.msra.mxu0 0
      %9981 = vmatprep.subr.bf16.mxu0 0
      %9982 = vmatpush1.bf16.msra.mxu0 0
      %9983 = vmatprep.subr.bf16.mxu0 0
      %9984 = vmatpush1.bf16.msra.mxu0 0
      %9985 = vmatprep.subr.bf16.mxu0 0
      %9986 = vmatpush1.bf16.msra.mxu0 0
      %9987 = vmatprep.subr.bf16.mxu0 0
      %9988 = vmatpush1.bf16.msra.mxu0 0
      %9989 = vmatprep.subr.bf16.mxu0 0
      %9990 = vmatpush1.bf16.msra.mxu0 0
      %9991 = vmatprep.subr.bf16.mxu0 0
      %9992 = vmatpush1.bf16.msra.mxu0 0
      %9993 = vmatprep.subr.bf16.mxu0 0
      %9994 = vmatpush1.bf16.msra.mxu0 0
      %9995 = vmatprep.subr.bf16.mxu0 0
      %9996 = vmatpush1.bf16.msra.mxu0 0
      %9997 = vmatprep.subr.bf16.mxu0 0
      %9998 = vmatpush1.bf16.msra.mxu0 0
      %9999 = vmatprep.subr.bf16.mxu0 0
      %10000 = vmatpush1.bf16.msra.mxu0 0
      %10001 = vmatprep.subr.bf16.mxu0 0
      %10002 = vmatpush1.bf16.msra.mxu0 0
      %10003 = vmatprep.subr.bf16.mxu0 0
      %10004 = vmatpush1.bf16.msra.mxu0 0
      %10005 = vmatprep.subr.bf16.mxu0 0
      %10006 = vmatpush1.bf16.msra.mxu0 0
      %10007 = vmatprep.subr.bf16.mxu0 0
      %10008 = vmatpush1.bf16.msra.mxu0 0
      %10009 = vmatprep.mubr.bf16.mxu0 0
      %10010 = vmatmul.mubr.bf16.gmra.mrb[0].mxu0 %v9927
      %v10011 = vpop.f32.mrb[0].mxu0
      %v10012 = vadd.f32 0.0, %v10011
      %v10013 = vpop.f32.mrb[0].mxu0
      %v10014 = vpop.f32.mrb[0].mxu0
      %v10015 = vadd.f32 0.0, %v10014
      %v10016 = vpop.f32.mrb[0].mxu0
      %10017 = vmatprep.mubr.bf16.mxu0 0
      %10018 = vmatmul.mubr.bf16.gmra.mrb[0].mxu0 %v9930
      %v10019 = vpop.f32.mrb[0].mxu0
      %v10020 = vadd.f32 0.0, %v10019
      %v10021 = vpop.f32.mrb[0].mxu0
      %v10022 = vpop.f32.mrb[0].mxu0
      %v10023 = vadd.f32 0.0, %v10022
      %v10024 = vpop.f32.mrb[0].mxu0
      %10025 = vmatprep.mubr.bf16.mxu0 0
      %10026 = vmatmul.mubr.bf16.gmra.mrb[0].mxu0 %v9933
      %v10027 = vpop.f32.mrb[0].mxu0
      %v10028 = vadd.f32 0.0, %v10027
      %v10029 = vpop.f32.mrb[0].mxu0
      %v10030 = vpop.f32.mrb[0].mxu0
      %v10031 = vadd.f32 0.0, %v10030
      %v10032 = vpop.f32.mrb[0].mxu0
      %10033 = vmatprep.mubr.bf16.mxu0 0
      %10034 = vmatmul.mubr.bf16.gmra.mrb[0].mxu0 %v9936
      %v10035 = vpop.f32.mrb[0].mxu0
      %v10036 = vadd.f32 0.0, %v10035
      %v10037 = vpop.f32.mrb[0].mxu0
      %v10038 = vpop.f32.mrb[0].mxu0
      %v10039 = vadd.f32 0.0, %v10038
      %v10040 = vpop.f32.mrb[0].mxu0
      %10041 = vmatprep.mubr.bf16.mxu0 0
      %10042 = vmatmul.mubr.bf16.gmra.mrb[0].mxu0 %v9939
      %v10043 = vpop.f32.mrb[0].mxu0
      %v10044 = vadd.f32 0.0, %v10043
      %v10045 = vpop.f32.mrb[0].mxu0
      %v10046 = vpop.f32.mrb[0].mxu0
      %v10047 = vadd.f32 0.0, %v10046
      %v10048 = vpop.f32.mrb[0].mxu0
      %10049 = vmatprep.mubr.bf16.mxu0 0
      %10050 = vmatmul.mubr.bf16.gmra.mrb[0].mxu0 %v9942
      %v10051 = vpop.f32.mrb[0].mxu0
      %v10052 = vadd.f32 0.0, %v10051
      %v10053 = vpop.f32.mrb[0].mxu0
      %v10054 = vpop.f32.mrb[0].mxu0
      %v10055 = vadd.f32 0.0, %v10054
      %v10056 = vpop.f32.mrb[0].mxu0
      %10057 = vmatprep.mubr.bf16.mxu0 0
      %10058 = vmatmul.mubr.bf16.gmra.mrb[0].mxu0 %v9945
      %v10059 = vpop.f32.mrb[0].mxu0
      %v10060 = vadd.f32 0.0, %v10059
      %v10061 = vpop.f32.mrb[0].mxu0
      %v10062 = vpop.f32.mrb[0].mxu0
      %v10063 = vadd.f32 0.0, %v10062
      %v10064 = vpop.f32.mrb[0].mxu0
      %10065 = vmatprep.mubr.bf16.mxu0 0
      %10066 = vmatmul.mubr.bf16.gmra.mrb[0].mxu0 %v9948
      %v10067 = vpop.f32.mrb[0].mxu0
      %v10068 = vadd.f32 0.0, %v10067
      %v10069 = vpop.f32.mrb[0].mxu0
      %v10070 = vpop.f32.mrb[0].mxu0
      %v10071 = vadd.f32 0.0, %v10070
      %v10072 = vpop.f32.mrb[0].mxu0
      %10073 = vmatprep.mubr.bf16.mxu0 0
      %10074 = vmatmul.mubr.bf16.gmra.mrb[0].mxu0 %v9951
      %v10075 = vpop.f32.mrb[0].mxu0
      %v10076 = vadd.f32 0.0, %v10075
      %v10077 = vpop.f32.mrb[0].mxu0
      %v10078 = vpop.f32.mrb[0].mxu0
      %v10079 = vadd.f32 0.0, %v10078
      %v10080 = vpop.f32.mrb[0].mxu0
      %10081 = vmatprep.mubr.bf16.mxu0 0
      %10082 = vmatmul.mubr.bf16.gmra.mrb[0].mxu0 %v9954
      %v10083 = vpop.f32.mrb[0].mxu0
      %v10084 = vadd.f32 0.0, %v10083
      %v10085 = vpop.f32.mrb[0].mxu0
      %v10086 = vpop.f32.mrb[0].mxu0
      %v10087 = vadd.f32 0.0, %v10086
      %v10088 = vpop.f32.mrb[0].mxu0
      %10089 = vmatprep.mubr.bf16.mxu0 0
      %10090 = vmatmul.mubr.bf16.gmra.mrb[0].mxu0 %v9957
      %v10091 = vpop.f32.mrb[0].mxu0
      %v10092 = vadd.f32 0.0, %v10091
      %v10093 = vpop.f32.mrb[0].mxu0
      %v10094 = vpop.f32.mrb[0].mxu0
      %v10095 = vadd.f32 0.0, %v10094
      %v10096 = vpop.f32.mrb[0].mxu0
      %10097 = vmatprep.mubr.bf16.mxu0 0
      %10098 = vmatmul.mubr.bf16.gmra.mrb[0].mxu0 %v9960
      %v10099 = vpop.f32.mrb[0].mxu0
      %v10100 = vadd.f32 0.0, %v10099
      %v10101 = vpop.f32.mrb[0].mxu0
      %v10102 = vpop.f32.mrb[0].mxu0
      %v10103 = vadd.f32 0.0, %v10102
      %v10104 = vpop.f32.mrb[0].mxu0
      %10105 = vmatprep.mubr.bf16.mxu0 0
      %10106 = vmatmul.mubr.bf16.gmra.mrb[0].mxu0 %v9963
      %v10107 = vpop.f32.mrb[0].mxu0
      %v10108 = vadd.f32 0.0, %v10107
      %v10109 = vpop.f32.mrb[0].mxu0
      %v10110 = vpop.f32.mrb[0].mxu0
      %v10111 = vadd.f32 0.0, %v10110
      %v10112 = vpop.f32.mrb[0].mxu0
      %10113 = vmatprep.mubr.bf16.mxu0 0
      %10114 = vmatmul.mubr.bf16.gmra.mrb[0].mxu0 %v9966
      %v10115 = vpop.f32.mrb[0].mxu0
      %v10116 = vadd.f32 0.0, %v10115
      %v10117 = vpop.f32.mrb[0].mxu0
      %v10118 = vpop.f32.mrb[0].mxu0
      %v10119 = vadd.f32 0.0, %v10118
      %v10120 = vpop.f32.mrb[0].mxu0
      %10121 = vmatprep.mubr.bf16.mxu0 0
      %10122 = vmatmul.mubr.bf16.gmra.mrb[0].mxu0 %v9969
      %v10123 = vpop.f32.mrb[0].mxu0
      %v10124 = vadd.f32 0.0, %v10123
      %v10125 = vpop.f32.mrb[0].mxu0
      %v10126 = vpop.f32.mrb[0].mxu0
      %v10127 = vadd.f32 0.0, %v10126
      %v10128 = vpop.f32.mrb[0].mxu0
      %10129 = vmatprep.mubr.bf16.mxu0 0
      %10130 = vmatmul.mubr.bf16.gmra.mrb[0].mxu0 %v9972
      %v10131 = vpop.f32.mrb[0].mxu0
      %v10132 = vadd.f32 0.0, %v10131
      %v10133 = vpop.f32.mrb[0].mxu0
      %v10134 = vpop.f32.mrb[0].mxu0
      %v10135 = vadd.f32 0.0, %v10134
      %v10136 = vpop.f32.mrb[0].mxu0
      %10137 = vdwg.mxu0
      %v10138 = vadd.f32 %v9412, %v10012
      %v10139 = vadd.f32 %v9413, %v10015
      %v10140 = vadd.f32 %v9414, %v10020
      %v10141 = vadd.f32 %v9415, %v10023
      %v10142 = vadd.f32 %v9416, %v10028
      %v10143 = vadd.f32 %v9417, %v10031
      %v10144 = vadd.f32 %v9418, %v10036
      %v10145 = vadd.f32 %v9419, %v10039
      %v10146 = vadd.f32 %v9420, %v10044
      %v10147 = vadd.f32 %v9421, %v10047
      %v10148 = vadd.f32 %v9422, %v10052
      %v10149 = vadd.f32 %v9423, %v10055
      %v10150 = vadd.f32 %v9424, %v10060
      %v10151 = vadd.f32 %v9425, %v10063
      %v10152 = vadd.f32 %v9426, %v10068
      %v10153 = vadd.f32 %v9427, %v10071
      %v10154 = vadd.f32 %v9428, %v10076
      %v10155 = vadd.f32 %v9429, %v10079
      %v10156 = vadd.f32 %v9430, %v10084
      %v10157 = vadd.f32 %v9431, %v10087
      %v10158 = vadd.f32 %v9432, %v10092
      %v10159 = vadd.f32 %v9433, %v10095
      %v10160 = vadd.f32 %v9434, %v10100
      %v10161 = vadd.f32 %v9435, %v10103
      %v10162 = vadd.f32 %v9436, %v10108
      %v10163 = vadd.f32 %v9437, %v10111
      %v10164 = vadd.f32 %v9438, %v10116
      %v10165 = vadd.f32 %v9439, %v10119
      %v10166 = vadd.f32 %v9440, %v10124
      %v10167 = vadd.f32 %v9441, %v10127
      %v10168 = vadd.f32 %v9442, %v10132
      %v10169 = vadd.f32 %v9443, %v10135
      %v10170 = vld [vmem:[%s9085] sm:$0xe]
      %v10171 = vld [vmem:[%s9085 + $0xc] sm:$0xe]
      %v10172 = vld [vmem:[%s9085 + $0x18] sm:$0xe]
      %v10173 = vld [vmem:[%s9085 + $0x24] sm:$0xe]
      %v10174 = vld [vmem:[%s9085 + $0x30] sm:$0xe]
      %v10175 = vld [vmem:[%s9085 + $0x3c] sm:$0xe]
      %v10176 = vld [vmem:[%s9085 + $0x48] sm:$0xe]
      %v10177 = vld [vmem:[%s9085 + $0x54] sm:$0xe]
      %v10178 = vld [vmem:[%s9085 + $0x60] sm:$0xe]
      %v10179 = vld [vmem:[%s9085 + $0x6c] sm:$0xe]
      %v10180 = vld [vmem:[%s9085 + $0x78] sm:$0xe]
      %v10181 = vld [vmem:[%s9085 + $0x84] sm:$0xe]
      %v10182 = vld [vmem:[%s9085 + $0x90] sm:$0xe]
      %v10183 = vld [vmem:[%s9085 + $0x9c] sm:$0xe]
      %v10184 = vld [vmem:[%s9085 + $0xa8] sm:$0xe]
      %v10185 = vld [vmem:[%s9085 + $0xb4] sm:$0xe]
      %s10186 = scalar_lea.vmem %s2, 16
      %v10187 = vld [vmem:[%s10186] sm:$0x3]
      %v10236 = vrot.slane %v10170, 5
      %v10237 = vrot.slane %v10236, 4
      %v10238 = vrot.slane %v9445, 5
      %v10239 = vsel %vm1976, %v10237, %v10238
      %v10240 = vrot.slane %v10238, 4
      %v10241 = vrot.slane %v9446, 5
      %v10242 = vsel %vm1976, %v10240, %v10241
      %v10243 = vrot.slane %v10171, 5
      %v10244 = vrot.slane %v10243, 4
      %v10245 = vrot.slane %v9448, 5
      %v10246 = vsel %vm1976, %v10244, %v10245
      %v10247 = vrot.slane %v10245, 4
      %v10248 = vrot.slane %v9449, 5
      %v10249 = vsel %vm1976, %v10247, %v10248
      %v10250 = vrot.slane %v10172, 5
      %v10251 = vrot.slane %v10250, 4
      %v10252 = vrot.slane %v9451, 5
      %v10253 = vsel %vm1976, %v10251, %v10252
      %v10254 = vrot.slane %v10252, 4
      %v10255 = vrot.slane %v9452, 5
      %v10256 = vsel %vm1976, %v10254, %v10255
      %v10257 = vrot.slane %v10173, 5
      %v10258 = vrot.slane %v10257, 4
      %v10259 = vrot.slane %v9454, 5
      %v10260 = vsel %vm1976, %v10258, %v10259
      %v10261 = vrot.slane %v10259, 4
      %v10262 = vrot.slane %v9455, 5
      %v10263 = vsel %vm1976, %v10261, %v10262
      %v10264 = vrot.slane %v10174, 5
      %v10265 = vrot.slane %v10264, 4
      %v10266 = vrot.slane %v9457, 5
      %v10267 = vsel %vm1976, %v10265, %v10266
      %v10268 = vrot.slane %v10266, 4
      %v10269 = vrot.slane %v9458, 5
      %v10270 = vsel %vm1976, %v10268, %v10269
      %v10271 = vrot.slane %v10175, 5
      %v10272 = vrot.slane %v10271, 4
      %v10273 = vrot.slane %v9460, 5
      %v10274 = vsel %vm1976, %v10272, %v10273
      %v10275 = vrot.slane %v10273, 4
      %v10276 = vrot.slane %v9461, 5
      %v10277 = vsel %vm1976, %v10275, %v10276
      %v10278 = vrot.slane %v10176, 5
      %v10279 = vrot.slane %v10278, 4
      %v10280 = vrot.slane %v9463, 5
      %v10281 = vsel %vm1976, %v10279, %v10280
      %v10282 = vrot.slane %v10280, 4
      %v10283 = vrot.slane %v9464, 5
      %v10284 = vsel %vm1976, %v10282, %v10283
      %v10285 = vrot.slane %v10177, 5
      %v10286 = vrot.slane %v10285, 4
      %v10287 = vrot.slane %v9466, 5
      %v10288 = vsel %vm1976, %v10286, %v10287
      %v10289 = vrot.slane %v10287, 4
      %v10290 = vrot.slane %v9467, 5
      %v10291 = vsel %vm1976, %v10289, %v10290
      %v10292 = vrot.slane %v10178, 5
      %v10293 = vrot.slane %v10292, 4
      %v10294 = vrot.slane %v9469, 5
      %v10295 = vsel %vm1976, %v10293, %v10294
      %v10296 = vrot.slane %v10294, 4
      %v10297 = vrot.slane %v9470, 5
      %v10298 = vsel %vm1976, %v10296, %v10297
      %v10299 = vrot.slane %v10179, 5
      %v10300 = vrot.slane %v10299, 4
      %v10301 = vrot.slane %v9472, 5
      %v10302 = vsel %vm1976, %v10300, %v10301
      %v10303 = vrot.slane %v10301, 4
      %v10304 = vrot.slane %v9473, 5
      %v10305 = vsel %vm1976, %v10303, %v10304
      %v10306 = vrot.slane %v10180, 5
      %v10307 = vrot.slane %v10306, 4
      %v10308 = vrot.slane %v9475, 5
      %v10309 = vsel %vm1976, %v10307, %v10308
      %v10310 = vrot.slane %v10308, 4
      %v10311 = vrot.slane %v9476, 5
      %v10312 = vsel %vm1976, %v10310, %v10311
      %v10313 = vrot.slane %v10181, 5
      %v10314 = vrot.slane %v10313, 4
      %v10315 = vrot.slane %v9478, 5
      %v10316 = vsel %vm1976, %v10314, %v10315
      %v10317 = vrot.slane %v10315, 4
      %v10318 = vrot.slane %v9479, 5
      %v10319 = vsel %vm1976, %v10317, %v10318
      %v10320 = vrot.slane %v10182, 5
      %v10321 = vrot.slane %v10320, 4
      %v10322 = vrot.slane %v9481, 5
      %v10323 = vsel %vm1976, %v10321, %v10322
      %v10324 = vrot.slane %v10322, 4
      %v10325 = vrot.slane %v9482, 5
      %v10326 = vsel %vm1976, %v10324, %v10325
      %v10327 = vrot.slane %v10183, 5
      %v10328 = vrot.slane %v10327, 4
      %v10329 = vrot.slane %v9484, 5
      %v10330 = vsel %vm1976, %v10328, %v10329
      %v10331 = vrot.slane %v10329, 4
      %v10332 = vrot.slane %v9485, 5
      %v10333 = vsel %vm1976, %v10331, %v10332
      %v10334 = vrot.slane %v10184, 5
      %v10335 = vrot.slane %v10334, 4
      %v10336 = vrot.slane %v9487, 5
      %v10337 = vsel %vm1976, %v10335, %v10336
      %v10338 = vrot.slane %v10336, 4
      %v10339 = vrot.slane %v9488, 5
      %v10340 = vsel %vm1976, %v10338, %v10339
      %v10341 = vrot.slane %v10185, 5
      %v10342 = vrot.slane %v10341, 4
      %v10343 = vrot.slane %v9490, 5
      %v10344 = vsel %vm1976, %v10342, %v10343
      %v10345 = vrot.slane %v10343, 4
      %v10346 = vrot.slane %v9491, 5
      %v10347 = vsel %vm1976, %v10345, %v10346
      %v10348 = vunpack.c.l.b16 %v10239
      %v10349 = vunpack.c.l.b16 %v10242
      %v10350 = vunpack.c.l.b16 %v10246
      %v10351 = vunpack.c.l.b16 %v10249
      %v10352 = vunpack.c.l.b16 %v10253
      %v10353 = vunpack.c.l.b16 %v10256
      %v10354 = vunpack.c.l.b16 %v10260
      %v10355 = vunpack.c.l.b16 %v10263
      %v10356 = vunpack.c.l.b16 %v10267
      %v10357 = vunpack.c.l.b16 %v10270
      %v10358 = vunpack.c.l.b16 %v10274
      %v10359 = vunpack.c.l.b16 %v10277
      %v10360 = vunpack.c.l.b16 %v10281
      %v10361 = vunpack.c.l.b16 %v10284
      %v10362 = vunpack.c.l.b16 %v10288
      %v10363 = vunpack.c.l.b16 %v10291
      %v10364 = vunpack.c.l.b16 %v10295
      %v10365 = vunpack.c.l.b16 %v10298
      %v10366 = vunpack.c.l.b16 %v10302
      %v10367 = vunpack.c.l.b16 %v10305
      %v10368 = vunpack.c.l.b16 %v10309
      %v10369 = vunpack.c.l.b16 %v10312
      %v10370 = vunpack.c.l.b16 %v10316
      %v10371 = vunpack.c.l.b16 %v10319
      %v10372 = vunpack.c.l.b16 %v10323
      %v10373 = vunpack.c.l.b16 %v10326
      %v10374 = vunpack.c.l.b16 %v10330
      %v10375 = vunpack.c.l.b16 %v10333
      %v10376 = vunpack.c.l.b16 %v10337
      %v10377 = vunpack.c.l.b16 %v10340
      %v10378 = vunpack.c.l.b16 %v10344
      %v10379 = vunpack.c.l.b16 %v10347
      %v10380 = vpack.c.b16 %v10349, %v10348
      %v10381 = vpack.c.b16 %v10351, %v10350
      %v10382 = vpack.c.b16 %v10353, %v10352
      %v10383 = vpack.c.b16 %v10355, %v10354
      %v10384 = vpack.c.b16 %v10357, %v10356
      %v10385 = vpack.c.b16 %v10359, %v10358
      %v10386 = vpack.c.b16 %v10361, %v10360
      %v10387 = vpack.c.b16 %v10363, %v10362
      %v10388 = vpack.c.b16 %v10365, %v10364
      %v10389 = vpack.c.b16 %v10367, %v10366
      %v10390 = vpack.c.b16 %v10369, %v10368
      %v10391 = vpack.c.b16 %v10371, %v10370
      %v10392 = vpack.c.b16 %v10373, %v10372
      %v10393 = vpack.c.b16 %v10375, %v10374
      %v10394 = vpack.c.b16 %v10377, %v10376
      %v10395 = vpack.c.b16 %v10379, %v10378
      %v10397 = vsel %vm1418, %v10380, 0
      %v10400 = vsel %vm1418, %v10381, 0
      %v10403 = vsel %vm1418, %v10382, 0
      %v10406 = vsel %vm1418, %v10383, 0
      %v10409 = vsel %vm1418, %v10384, 0
      %v10412 = vsel %vm1418, %v10385, 0
      %v10415 = vsel %vm1418, %v10386, 0
      %v10418 = vsel %vm1418, %v10387, 0
      %v10421 = vsel %vm1418, %v10388, 0
      %v10424 = vsel %vm1418, %v10389, 0
      %v10427 = vsel %vm1418, %v10390, 0
      %v10430 = vsel %vm1418, %v10391, 0
      %v10433 = vsel %vm1418, %v10392, 0
      %v10436 = vsel %vm1418, %v10393, 0
      %v10439 = vsel %vm1418, %v10394, 0
      %v10442 = vsel %vm1418, %v10395, 0
      %v10445 = vsel %vm1467, %v10187, 0
      %10447 = vmatprep.subr.bf16.mxu0 0
      %10448 = vmatpush1.bf16.msra.mxu0 %v10445
      %10449 = vmatprep.subr.bf16.mxu0 0
      %10450 = vmatpush1.bf16.msra.mxu0 0
      %10451 = vmatprep.subr.bf16.mxu0 0
      %10452 = vmatpush1.bf16.msra.mxu0 0
      %10453 = vmatprep.subr.bf16.mxu0 0
      %10454 = vmatpush1.bf16.msra.mxu0 0
      %10455 = vmatprep.subr.bf16.mxu0 0
      %10456 = vmatpush1.bf16.msra.mxu0 0
      %10457 = vmatprep.subr.bf16.mxu0 0
      %10458 = vmatpush1.bf16.msra.mxu0 0
      %10459 = vmatprep.subr.bf16.mxu0 0
      %10460 = vmatpush1.bf16.msra.mxu0 0
      %10461 = vmatprep.subr.bf16.mxu0 0
      %10462 = vmatpush1.bf16.msra.mxu0 0
      %10463 = vmatprep.subr.bf16.mxu0 0
      %10464 = vmatpush1.bf16.msra.mxu0 0
      %10465 = vmatprep.subr.bf16.mxu0 0
      %10466 = vmatpush1.bf16.msra.mxu0 0
      %10467 = vmatprep.subr.bf16.mxu0 0
      %10468 = vmatpush1.bf16.msra.mxu0 0
      %10469 = vmatprep.subr.bf16.mxu0 0
      %10470 = vmatpush1.bf16.msra.mxu0 0
      %10471 = vmatprep.subr.bf16.mxu0 0
      %10472 = vmatpush1.bf16.msra.mxu0 0
      %10473 = vmatprep.subr.bf16.mxu0 0
      %10474 = vmatpush1.bf16.msra.mxu0 0
      %10475 = vmatprep.subr.bf16.mxu0 0
      %10476 = vmatpush1.bf16.msra.mxu0 0
      %10477 = vmatprep.subr.bf16.mxu0 0
      %10478 = vmatpush1.bf16.msra.mxu0 0
      %10479 = vmatprep.mubr.bf16.mxu0 0
      %10480 = vmatmul.mubr.bf16.gmra.mrb[0].mxu0 %v10397
      %v10481 = vpop.f32.mrb[0].mxu0
      %v10482 = vadd.f32 0.0, %v10481
      %v10483 = vpop.f32.mrb[0].mxu0
      %v10484 = vpop.f32.mrb[0].mxu0
      %v10485 = vadd.f32 0.0, %v10484
      %v10486 = vpop.f32.mrb[0].mxu0
      %10487 = vmatprep.mubr.bf16.mxu0 0
      %10488 = vmatmul.mubr.bf16.gmra.mrb[0].mxu0 %v10400
      %v10489 = vpop.f32.mrb[0].mxu0
      %v10490 = vadd.f32 0.0, %v10489
      %v10491 = vpop.f32.mrb[0].mxu0
      %v10492 = vpop.f32.mrb[0].mxu0
      %v10493 = vadd.f32 0.0, %v10492
      %v10494 = vpop.f32.mrb[0].mxu0
      %10495 = vmatprep.mubr.bf16.mxu0 0
      %10496 = vmatmul.mubr.bf16.gmra.mrb[0].mxu0 %v10403
      %v10497 = vpop.f32.mrb[0].mxu0
      %v10498 = vadd.f32 0.0, %v10497
      %v10499 = vpop.f32.mrb[0].mxu0
      %v10500 = vpop.f32.mrb[0].mxu0
      %v10501 = vadd.f32 0.0, %v10500
      %v10502 = vpop.f32.mrb[0].mxu0
      %10503 = vmatprep.mubr.bf16.mxu0 0
      %10504 = vmatmul.mubr.bf16.gmra.mrb[0].mxu0 %v10406
      %v10505 = vpop.f32.mrb[0].mxu0
      %v10506 = vadd.f32 0.0, %v10505
      %v10507 = vpop.f32.mrb[0].mxu0
      %v10508 = vpop.f32.mrb[0].mxu0
      %v10509 = vadd.f32 0.0, %v10508
      %v10510 = vpop.f32.mrb[0].mxu0
      %10511 = vmatprep.mubr.bf16.mxu0 0
      %10512 = vmatmul.mubr.bf16.gmra.mrb[0].mxu0 %v10409
      %v10513 = vpop.f32.mrb[0].mxu0
      %v10514 = vadd.f32 0.0, %v10513
      %v10515 = vpop.f32.mrb[0].mxu0
      %v10516 = vpop.f32.mrb[0].mxu0
      %v10517 = vadd.f32 0.0, %v10516
      %v10518 = vpop.f32.mrb[0].mxu0
      %10519 = vmatprep.mubr.bf16.mxu0 0
      %10520 = vmatmul.mubr.bf16.gmra.mrb[0].mxu0 %v10412
      %v10521 = vpop.f32.mrb[0].mxu0
      %v10522 = vadd.f32 0.0, %v10521
      %v10523 = vpop.f32.mrb[0].mxu0
      %v10524 = vpop.f32.mrb[0].mxu0
      %v10525 = vadd.f32 0.0, %v10524
      %v10526 = vpop.f32.mrb[0].mxu0
      %10527 = vmatprep.mubr.bf16.mxu0 0
      %10528 = vmatmul.mubr.bf16.gmra.mrb[0].mxu0 %v10415
      %v10529 = vpop.f32.mrb[0].mxu0
      %v10530 = vadd.f32 0.0, %v10529
      %v10531 = vpop.f32.mrb[0].mxu0
      %v10532 = vpop.f32.mrb[0].mxu0
      %v10533 = vadd.f32 0.0, %v10532
      %v10534 = vpop.f32.mrb[0].mxu0
      %10535 = vmatprep.mubr.bf16.mxu0 0
      %10536 = vmatmul.mubr.bf16.gmra.mrb[0].mxu0 %v10418
      %v10537 = vpop.f32.mrb[0].mxu0
      %v10538 = vadd.f32 0.0, %v10537
      %v10539 = vpop.f32.mrb[0].mxu0
      %v10540 = vpop.f32.mrb[0].mxu0
      %v10541 = vadd.f32 0.0, %v10540
      %v10542 = vpop.f32.mrb[0].mxu0
      %10543 = vmatprep.mubr.bf16.mxu0 0
      %10544 = vmatmul.mubr.bf16.gmra.mrb[0].mxu0 %v10421
      %v10545 = vpop.f32.mrb[0].mxu0
      %v10546 = vadd.f32 0.0, %v10545
      %v10547 = vpop.f32.mrb[0].mxu0
      %v10548 = vpop.f32.mrb[0].mxu0
      %v10549 = vadd.f32 0.0, %v10548
      %v10550 = vpop.f32.mrb[0].mxu0
      %10551 = vmatprep.mubr.bf16.mxu0 0
      %10552 = vmatmul.mubr.bf16.gmra.mrb[0].mxu0 %v10424
      %v10553 = vpop.f32.mrb[0].mxu0
      %v10554 = vadd.f32 0.0, %v10553
      %v10555 = vpop.f32.mrb[0].mxu0
      %v10556 = vpop.f32.mrb[0].mxu0
      %v10557 = vadd.f32 0.0, %v10556
      %v10558 = vpop.f32.mrb[0].mxu0
      %10559 = vmatprep.mubr.bf16.mxu0 0
      %10560 = vmatmul.mubr.bf16.gmra.mrb[0].mxu0 %v10427
      %v10561 = vpop.f32.mrb[0].mxu0
      %v10562 = vadd.f32 0.0, %v10561
      %v10563 = vpop.f32.mrb[0].mxu0
      %v10564 = vpop.f32.mrb[0].mxu0
      %v10565 = vadd.f32 0.0, %v10564
      %v10566 = vpop.f32.mrb[0].mxu0
      %10567 = vmatprep.mubr.bf16.mxu0 0
      %10568 = vmatmul.mubr.bf16.gmra.mrb[0].mxu0 %v10430
      %v10569 = vpop.f32.mrb[0].mxu0
      %v10570 = vadd.f32 0.0, %v10569
      %v10571 = vpop.f32.mrb[0].mxu0
      %v10572 = vpop.f32.mrb[0].mxu0
      %v10573 = vadd.f32 0.0, %v10572
      %v10574 = vpop.f32.mrb[0].mxu0
      %10575 = vmatprep.mubr.bf16.mxu0 0
      %10576 = vmatmul.mubr.bf16.gmra.mrb[0].mxu0 %v10433
      %v10577 = vpop.f32.mrb[0].mxu0
      %v10578 = vadd.f32 0.0, %v10577
      %v10579 = vpop.f32.mrb[0].mxu0
      %v10580 = vpop.f32.mrb[0].mxu0
      %v10581 = vadd.f32 0.0, %v10580
      %v10582 = vpop.f32.mrb[0].mxu0
      %10583 = vmatprep.mubr.bf16.mxu0 0
      %10584 = vmatmul.mubr.bf16.gmra.mrb[0].mxu0 %v10436
      %v10585 = vpop.f32.mrb[0].mxu0
      %v10586 = vadd.f32 0.0, %v10585
      %v10587 = vpop.f32.mrb[0].mxu0
      %v10588 = vpop.f32.mrb[0].mxu0
      %v10589 = vadd.f32 0.0, %v10588
      %v10590 = vpop.f32.mrb[0].mxu0
      %10591 = vmatprep.mubr.bf16.mxu0 0
      %10592 = vmatmul.mubr.bf16.gmra.mrb[0].mxu0 %v10439
      %v10593 = vpop.f32.mrb[0].mxu0
      %v10594 = vadd.f32 0.0, %v10593
      %v10595 = vpop.f32.mrb[0].mxu0
      %v10596 = vpop.f32.mrb[0].mxu0
      %v10597 = vadd.f32 0.0, %v10596
      %v10598 = vpop.f32.mrb[0].mxu0
      %10599 = vmatprep.mubr.bf16.mxu0 0
      %10600 = vmatmul.mubr.bf16.gmra.mrb[0].mxu0 %v10442
      %v10601 = vpop.f32.mrb[0].mxu0
      %v10602 = vadd.f32 0.0, %v10601
      %v10603 = vpop.f32.mrb[0].mxu0
      %v10604 = vpop.f32.mrb[0].mxu0
      %v10605 = vadd.f32 0.0, %v10604
      %v10606 = vpop.f32.mrb[0].mxu0
      %10607 = vdwg.mxu0
      %v10608 = vadd.f32 %v10138, %v10482
      %v10609 = vadd.f32 %v10139, %v10485
      %v10610 = vadd.f32 %v10140, %v10490
      %v10611 = vadd.f32 %v10141, %v10493
      %v10612 = vadd.f32 %v10142, %v10498
      %v10613 = vadd.f32 %v10143, %v10501
      %v10614 = vadd.f32 %v10144, %v10506
      %v10615 = vadd.f32 %v10145, %v10509
      %v10616 = vadd.f32 %v10146, %v10514
      %v10617 = vadd.f32 %v10147, %v10517
      %v10618 = vadd.f32 %v10148, %v10522
      %v10619 = vadd.f32 %v10149, %v10525
      %v10620 = vadd.f32 %v10150, %v10530
      %v10621 = vadd.f32 %v10151, %v10533
      %v10622 = vadd.f32 %v10152, %v10538
      %v10623 = vadd.f32 %v10153, %v10541
      %v10624 = vadd.f32 %v10154, %v10546
      %v10625 = vadd.f32 %v10155, %v10549
      %v10626 = vadd.f32 %v10156, %v10554
      %v10627 = vadd.f32 %v10157, %v10557
      %v10628 = vadd.f32 %v10158, %v10562
      %v10629 = vadd.f32 %v10159, %v10565
      %v10630 = vadd.f32 %v10160, %v10570
      %v10631 = vadd.f32 %v10161, %v10573
      %v10632 = vadd.f32 %v10162, %v10578
      %v10633 = vadd.f32 %v10163, %v10581
      %v10634 = vadd.f32 %v10164, %v10586
      %v10635 = vadd.f32 %v10165, %v10589
      %v10636 = vadd.f32 %v10166, %v10594
      %v10637 = vadd.f32 %v10167, %v10597
      %v10638 = vadd.f32 %v10168, %v10602
      %v10639 = vadd.f32 %v10169, %v10605
      %v10640 = vld [vmem:[%s4] sm:$0x1]
      %v10642 = vlaneseq
      %v10643 = vshrl.u32 %v10642, 7
      %v10644 = vsub.s32 0, %v10643
      %v10645 = vrot.slane %v10640, %v10644
      %v10647 = vadd.f32 %v10608, %v10645
      %v10648 = vadd.f32 %v10609, %v10645
      %v10649 = vadd.f32 %v10610, %v10645
      %v10650 = vadd.f32 %v10611, %v10645
      %v10651 = vadd.f32 %v10612, %v10645
      %v10652 = vadd.f32 %v10613, %v10645
      %v10653 = vadd.f32 %v10614, %v10645
      %v10654 = vadd.f32 %v10615, %v10645
      %v10655 = vadd.f32 %v10616, %v10645
      %v10656 = vadd.f32 %v10617, %v10645
      %v10657 = vadd.f32 %v10618, %v10645
      %v10658 = vadd.f32 %v10619, %v10645
      %v10659 = vadd.f32 %v10620, %v10645
      %v10660 = vadd.f32 %v10621, %v10645
      %v10661 = vadd.f32 %v10622, %v10645
      %v10662 = vadd.f32 %v10623, %v10645
      %v10663 = vadd.f32 %v10624, %v10645
      %v10664 = vadd.f32 %v10625, %v10645
      %v10665 = vadd.f32 %v10626, %v10645
      %v10666 = vadd.f32 %v10627, %v10645
      %v10667 = vadd.f32 %v10628, %v10645
      %v10668 = vadd.f32 %v10629, %v10645
      %v10669 = vadd.f32 %v10630, %v10645
      %v10670 = vadd.f32 %v10631, %v10645
      %v10671 = vadd.f32 %v10632, %v10645
      %v10672 = vadd.f32 %v10633, %v10645
      %v10673 = vadd.f32 %v10634, %v10645
      %v10674 = vadd.f32 %v10635, %v10645
      %v10675 = vadd.f32 %v10636, %v10645
      %v10676 = vadd.f32 %v10637, %v10645
      %v10677 = vadd.f32 %v10638, %v10645
      %v10678 = vadd.f32 %v10639, %v10645
      %v10679 = vunpack.c.l.bf16 %v463
      %v10680 = vunpack.c.l.bf16 %v464
      %v10681 = vunpack.c.l.bf16 %v465
      %v10682 = vunpack.c.l.bf16 %v466
      %v10683 = vunpack.c.l.bf16 %v467
      %v10684 = vunpack.c.l.bf16 %v468
      %v10685 = vunpack.c.l.bf16 %v469
      %v10686 = vunpack.c.l.bf16 %v470
      %v10687 = vunpack.c.l.bf16 %v471
      %v10688 = vunpack.c.l.bf16 %v472
      %v10689 = vunpack.c.l.bf16 %v473
      %v10690 = vunpack.c.l.bf16 %v474
      %v10691 = vunpack.c.l.bf16 %v475
      %v10692 = vunpack.c.l.bf16 %v476
      %v10693 = vunpack.c.l.bf16 %v477
      %v10694 = vunpack.c.l.bf16 %v478
      %v10695 = vunpack.c.l.bf16 %v479
      %v10696 = vunpack.c.l.bf16 %v480
      %v10697 = vunpack.c.l.bf16 %v481
      %v10698 = vunpack.c.l.bf16 %v482
      %v10699 = vunpack.c.l.bf16 %v483
      %v10700 = vunpack.c.l.bf16 %v484
      %v10701 = vunpack.c.l.bf16 %v485
      %v10702 = vunpack.c.l.bf16 %v486
      %v10703 = vunpack.c.l.bf16 %v487
      %v10704 = vunpack.c.l.bf16 %v488
      %v10705 = vunpack.c.l.bf16 %v489
      %v10706 = vunpack.c.l.bf16 %v490
      %v10707 = vunpack.c.l.bf16 %v491
      %v10708 = vunpack.c.l.bf16 %v492
      %v10709 = vunpack.c.l.bf16 %v493
      %v10710 = vunpack.c.l.bf16 %v494
      %v10711 = vadd.f32 %v10647, %v10679
      %v10712 = vadd.f32 %v10648, %v10680
      %v10713 = vadd.f32 %v10649, %v10681
      %v10714 = vadd.f32 %v10650, %v10682
      %v10715 = vadd.f32 %v10651, %v10683
      %v10716 = vadd.f32 %v10652, %v10684
      %v10717 = vadd.f32 %v10653, %v10685
      %v10718 = vadd.f32 %v10654, %v10686
      %v10719 = vadd.f32 %v10655, %v10687
      %v10720 = vadd.f32 %v10656, %v10688
      %v10721 = vadd.f32 %v10657, %v10689
      %v10722 = vadd.f32 %v10658, %v10690
      %v10723 = vadd.f32 %v10659, %v10691
      %v10724 = vadd.f32 %v10660, %v10692
      %v10725 = vadd.f32 %v10661, %v10693
      %v10726 = vadd.f32 %v10662, %v10694
      %v10727 = vadd.f32 %v10663, %v10695
      %v10728 = vadd.f32 %v10664, %v10696
      %v10729 = vadd.f32 %v10665, %v10697
      %v10730 = vadd.f32 %v10666, %v10698
      %v10731 = vadd.f32 %v10667, %v10699
      %v10732 = vadd.f32 %v10668, %v10700
      %v10733 = vadd.f32 %v10669, %v10701
      %v10734 = vadd.f32 %v10670, %v10702
      %v10735 = vadd.f32 %v10671, %v10703
      %v10736 = vadd.f32 %v10672, %v10704
      %v10737 = vadd.f32 %v10673, %v10705
      %v10738 = vadd.f32 %v10674, %v10706
      %v10739 = vadd.f32 %v10675, %v10707
      %v10740 = vadd.f32 %v10676, %v10708
      %v10741 = vadd.f32 %v10677, %v10709
      %v10742 = vadd.f32 %v10678, %v10710
      %v10743 = vmax.f32 %v10711, 0.0
      %v10744 = vmax.f32 %v10712, 0.0
      %v10745 = vmax.f32 %v10713, 0.0
      %v10746 = vmax.f32 %v10714, 0.0
      %v10747 = vmax.f32 %v10715, 0.0
      %v10748 = vmax.f32 %v10716, 0.0
      %v10749 = vmax.f32 %v10717, 0.0
      %v10750 = vmax.f32 %v10718, 0.0
      %v10751 = vmax.f32 %v10719, 0.0
      %v10752 = vmax.f32 %v10720, 0.0
      %v10753 = vmax.f32 %v10721, 0.0
      %v10754 = vmax.f32 %v10722, 0.0
      %v10755 = vmax.f32 %v10723, 0.0
      %v10756 = vmax.f32 %v10724, 0.0
      %v10757 = vmax.f32 %v10725, 0.0
      %v10758 = vmax.f32 %v10726, 0.0
      %v10759 = vmax.f32 %v10727, 0.0
      %v10760 = vmax.f32 %v10728, 0.0
      %v10761 = vmax.f32 %v10729, 0.0
      %v10762 = vmax.f32 %v10730, 0.0
      %v10763 = vmax.f32 %v10731, 0.0
      %v10764 = vmax.f32 %v10732, 0.0
      %v10765 = vmax.f32 %v10733, 0.0
      %v10766 = vmax.f32 %v10734, 0.0
      %v10767 = vmax.f32 %v10735, 0.0
      %v10768 = vmax.f32 %v10736, 0.0
      %v10769 = vmax.f32 %v10737, 0.0
      %v10770 = vmax.f32 %v10738, 0.0
      %v10771 = vmax.f32 %v10739, 0.0
      %v10772 = vmax.f32 %v10740, 0.0
      %v10773 = vmax.f32 %v10741, 0.0
      %v10774 = vmax.f32 %v10742, 0.0
      %10775 = vst.msk [vmem:[%s224] sm:$0xff] %vm1418, %v10743
      %10776 = vst.msk [vmem:[%s224 + $0x8] sm:$0xff] %vm1418, %v10744
      %10777 = vst.msk [vmem:[%s224 + $0x10] sm:$0xff] %vm1418, %v10745
      %10778 = vst.msk [vmem:[%s224 + $0x18] sm:$0xff] %vm1418, %v10746
      %10779 = vst.msk [vmem:[%s224 + $0x20] sm:$0xff] %vm1418, %v10747
      %10780 = vst.msk [vmem:[%s224 + $0x28] sm:$0xff] %vm1418, %v10748
      %10781 = vst.msk [vmem:[%s224 + $0x30] sm:$0xff] %vm1418, %v10749
      %10782 = vst.msk [vmem:[%s224 + $0x38] sm:$0xff] %vm1418, %v10750
      %10783 = vst.msk [vmem:[%s224 + $0x40] sm:$0xff] %vm1418, %v10751
      %10784 = vst.msk [vmem:[%s224 + $0x48] sm:$0xff] %vm1418, %v10752
      %10785 = vst.msk [vmem:[%s224 + $0x50] sm:$0xff] %vm1418, %v10753
      %10786 = vst.msk [vmem:[%s224 + $0x58] sm:$0xff] %vm1418, %v10754
      %10787 = vst.msk [vmem:[%s224 + $0x60] sm:$0xff] %vm1418, %v10755
      %10788 = vst.msk [vmem:[%s224 + $0x68] sm:$0xff] %vm1418, %v10756
      %10789 = vst.msk [vmem:[%s224 + $0x70] sm:$0xff] %vm1418, %v10757
      %10790 = vst.msk [vmem:[%s224 + $0x78] sm:$0xff] %vm1418, %v10758
      %10791 = vst.msk [vmem:[%s224 + $0x80] sm:$0xff] %vm1418, %v10759
      %10792 = vst.msk [vmem:[%s224 + $0x88] sm:$0xff] %vm1418, %v10760
      %10793 = vst.msk [vmem:[%s224 + $0x90] sm:$0xff] %vm1418, %v10761
      %10794 = vst.msk [vmem:[%s224 + $0x98] sm:$0xff] %vm1418, %v10762
      %10795 = vst.msk [vmem:[%s224 + $0xa0] sm:$0xff] %vm1418, %v10763
      %10796 = vst.msk [vmem:[%s224 + $0xa8] sm:$0xff] %vm1418, %v10764
      %10797 = vst.msk [vmem:[%s224 + $0xb0] sm:$0xff] %vm1418, %v10765
      %10798 = vst.msk [vmem:[%s224 + $0xb8] sm:$0xff] %vm1418, %v10766
      %10799 = vst.msk [vmem:[%s224 + $0xc0] sm:$0xff] %vm1418, %v10767
      %10800 = vst.msk [vmem:[%s224 + $0xc8] sm:$0xff] %vm1418, %v10768
      %10801 = vst.msk [vmem:[%s224 + $0xd0] sm:$0xff] %vm1418, %v10769
      %10802 = vst.msk [vmem:[%s224 + $0xd8] sm:$0xff] %vm1418, %v10770
      %10803 = vst.msk [vmem:[%s224 + $0xe0] sm:$0xff] %vm1418, %v10771
      %10804 = vst.msk [vmem:[%s224 + $0xe8] sm:$0xff] %vm1418, %v10772
      %10805 = vst.msk [vmem:[%s224 + $0xf0] sm:$0xff] %vm1418, %v10773
      %10806 = vst.msk [vmem:[%s224 + $0xf8] sm:$0xff] %vm1418, %v10774
      %p10807 = scmp.lt.s32.totalorder %s16, 1
      %s10808 = scalar_select %p10807, %s16, 1
      %s10809 = smul.addr %s10808, 32
      %s10810 = smul.addr %s10809, 8
      %s10811 = scalar_lea.vmem %s5, %s10810
      // Predicated region
      $region41: #{basic_block_forward.1} parent=39 // pred_check
        %p10812 = pneg %p144
      $region42: #{basic_block_forward.1} parent=39 // pred_check_branch
        %10814 = sbr.rel (%p10812) target = $region44
      $region43: #{basic_block_forward.1} parent=39 // pred_region
        _
      $region44: #{basic_block_forward.1} parent=39 // pred_fallthru
        _
    $region40: #{basic_block_forward.1} parent=5 // pred_fallthru
      _
    %p10815 = scmp.le.s32.totalorder 2, %s11
    // Predicated region
    $region45: #{basic_block_forward.1} parent=5 // pred_check
      %p10816 = pneg %p10815
    $region46: #{basic_block_forward.1} parent=5 // pred_check_branch
      %10818 = sbr.rel (%p10816) target = $region48
    $region47: #{basic_block_forward.1} parent=5 // pred_region
      %s10819 = ssub.s32 %s11, 2
      // Predicated region
      $region49: #{basic_block_forward.1} parent=47 // pred_check
        %p10820 = pneg %p150
      $region50: #{basic_block_forward.1} parent=47 // pred_check_branch
        %10822 = sbr.rel (%p10820) target = $region52
      $region51: #{basic_block_forward.1} parent=47 // pred_region
        %p10823 = scmp.lt.s32.totalorder %s17, 1
        %s10824 = scalar_select %p10823, %s17, 1
        %s10825 = smul.addr %s10824, 32
        %s10826 = smul.addr %s10825, 8
        %s10827 = scalar_lea.vmem %s5, %s10826
      $region52: #{basic_block_forward.1} parent=47 // pred_fallthru
        _
    $region48: #{basic_block_forward.1} parent=5 // pred_fallthru
      _
  $region6: #{basic_block_forward.1} parent=0 // loop_footer
    %s15 = sadd.s32 1, %s11
  $region7: #{basic_block_forward.1} parent=0 // loop_footer_branch
    %10 = sbr.rel target = $region3
  $region8: #{basic_block_forward.1} parent=0 // loop_exit
    _

</llo_original>
